<compile_context>
chip_gen: v7x
topology: tpu7x:2x2x1
jax: 0.10.0
libtpu: 0.0.40
codegen_flags: <defaults>
</compile_context>

<pallas_src>
import jax
import jax.numpy as jnp
from jax import lax
from jax.experimental import pallas as pl
from jax.experimental.pallas import tpu as pltpu

EPS = 1e-5


def double_conv_kernel(x_pad_ref, w1_ref, g1_ref, b1_ref, w2_ref, g2_ref, b2_ref,
                       out_ref, pad_scratch):
    N, Hp, Wp, Cin = x_pad_ref.shape
    H, W = Hp - 2, Wp - 2
    Cp = pad_scratch.shape[-1]          # lane-padded channel count
    M = N * H * W

    # ---- conv1: single im2col-along-K matmul for the whole batch (bf16 MXU) --
    cols = []
    for k in range(9):
        dy, dx = divmod(k, 3)
        cols.append(x_pad_ref[:, dy:dy + H, dx:dx + W, :].reshape(M, Cin))
    patch1 = jnp.concatenate(cols, axis=-1).astype(jnp.bfloat16)      # (M, 9*Cin)
    y = jnp.dot(patch1, w1_ref[...], preferred_element_type=jnp.float32)  # (M, Cp)

    # ---- BN1 (training-mode batch stats, biased variance) folded into a
    #      per-channel scale/shift, fused with ReLU ----------------------------
    mean1 = jnp.mean(y, axis=0, keepdims=True)
    var1 = jnp.mean((y - mean1) ** 2, axis=0, keepdims=True)
    scale1 = g1_ref[...] * lax.rsqrt(var1 + EPS)
    shift1 = b1_ref[...] - mean1 * scale1
    y = jnp.maximum(y * scale1 + shift1, 0.0)

    # ---- fused epilogue: write activation straight into the scratch interior;
    #      zero only the 1-pixel border (not the whole buffer) -----------------
    pad_scratch[:, 1:H + 1, 1:W + 1, :] = y.reshape(N, H, W, Cp)
    zrow = jnp.zeros((N, 1, Wp, Cp), jnp.float32)
    pad_scratch[:, 0:1, :, :] = zrow
    pad_scratch[:, Hp - 1:Hp, :, :] = zrow
    zcol = jnp.zeros((N, H, 1, Cp), jnp.float32)
    pad_scratch[:, 1:H + 1, 0:1, :] = zcol
    pad_scratch[:, 1:H + 1, Wp - 1:Wp, :] = zcol

    # ---- conv2: second im2col matmul ------------------------------------------
    cols2 = []
    for k in range(9):
        dy, dx = divmod(k, 3)
        cols2.append(pad_scratch[:, dy:dy + H, dx:dx + W, :].reshape(M, Cp))
    patch2 = jnp.concatenate(cols2, axis=-1).astype(jnp.bfloat16)     # (M, 9*Cp)
    z = jnp.dot(patch2, w2_ref[...], preferred_element_type=jnp.float32)  # (M, Cp)

    # ---- BN2 + ReLU, single lane-dense store ----------------------------------
    mean2 = jnp.mean(z, axis=0, keepdims=True)
    var2 = jnp.mean((z - mean2) ** 2, axis=0, keepdims=True)
    scale2 = g2_ref[...] * lax.rsqrt(var2 + EPS)
    shift2 = b2_ref[...] - mean2 * scale2
    out_ref[...] = jnp.maximum(z * scale2 + shift2, 0.0).reshape(N, H, W, Cp)


def _round_up(x, m):
    return (x + m - 1) // m * m


@jax.jit
def double_conv(x_nchw, w1, g1, b1, w2, g2, b2):
    """x_nchw: (N, Cin, H, W); w1: (Cout, Cin, 3, 3); w2: (Cout, Cout, 3, 3)."""
    N, Cin, H, W = x_nchw.shape
    Cout = w1.shape[0]
    Cp = _round_up(Cout, 128)           # lane-dense channel padding
    pad_c = Cp - Cout

    # NCHW -> NHWC and "same" zero padding (layout glue outside the kernel).
    x = jnp.transpose(x_nchw, (0, 2, 3, 1)).astype(jnp.float32)
    x_pad = jnp.pad(x, ((0, 0), (1, 1), (1, 1), (0, 0)))

    # conv1 weights: (Cout,Cin,3,3) -> (ky,kx,Cin,Cout) -> (9*Cin, Cp), bf16.
    w1_r = jnp.transpose(w1, (2, 3, 1, 0)).reshape(9 * Cin, Cout)
    w1_r = jnp.pad(w1_r, ((0, 0), (0, pad_c))).astype(jnp.bfloat16)
    # conv2 weights: pad both input and output channels to Cp -> (9*Cp, Cp), bf16.
    w2_t = jnp.transpose(w2, (2, 3, 1, 0))                         # (3,3,Cout,Cout)
    w2_t = jnp.pad(w2_t, ((0, 0), (0, 0), (0, pad_c), (0, pad_c)))
    w2_r = w2_t.reshape(9 * Cp, Cp).astype(jnp.bfloat16)

    g1_r = jnp.pad(g1.astype(jnp.float32), (0, pad_c)).reshape(1, Cp)
    b1_r = jnp.pad(b1.astype(jnp.float32), (0, pad_c)).reshape(1, Cp)
    g2_r = jnp.pad(g2.astype(jnp.float32), (0, pad_c)).reshape(1, Cp)
    b2_r = jnp.pad(b2.astype(jnp.float32), (0, pad_c)).reshape(1, Cp)

    out_nhwc = pl.pallas_call(
        double_conv_kernel,
        out_shape=jax.ShapeDtypeStruct((N, H, W, Cp), jnp.float32),
        in_specs=[pl.BlockSpec(memory_space=pltpu.MemorySpace.VMEM)] * 7,
        out_specs=pl.BlockSpec(memory_space=pltpu.MemorySpace.VMEM),
        scratch_shapes=[pltpu.VMEM((N, H + 2, W + 2, Cp), jnp.float32)],
        compiler_params=pltpu.CompilerParams(vmem_limit_bytes=32 * 1024 * 1024),
    )(x_pad, w1_r, g1_r, b1_r, w2_r, g2_r, b2_r)

    # Drop the channel padding, back to NCHW.
    return jnp.transpose(out_nhwc[..., :Cout], (0, 3, 1, 2))


def ref_double_conv(x, w1, g1, b1, w2, g2, b2):
    """Pure-JAX reference matching PyTorch training-mode DoubleConv.

    Conv operands are quantized to bf16 (with f32 accumulation) at the same
    points as the kernel so the comparison is apples-to-apples.
    """
    def block(x, w, g, b):
        y = lax.conv_general_dilated(
            x.astype(jnp.bfloat16), w.astype(jnp.bfloat16), (1, 1), "SAME",
            dimension_numbers=("NCHW", "OIHW", "NCHW"),
            preferred_element_type=jnp.float32)
        mean = y.mean(axis=(0, 2, 3), keepdims=True)
        var = ((y - mean) ** 2).mean(axis=(0, 2, 3), keepdims=True)
        y = (y - mean) * lax.rsqrt(var + EPS) * g.reshape(1, -1, 1, 1) \
            + b.reshape(1, -1, 1, 1)
        return jnp.maximum(y, 0.0)
    return block(block(x, w1, g1, b1), w2, g2, b2)


if __name__ == "__main__":
    key = jax.random.PRNGKey(0)
    k_x, k_w1, k_g1, k_b1, k_w2, k_g2, k_b2 = jax.random.split(key, 7)

    N, Cin, Cout, H, W = 2, 4, 8, 16, 16
    x = jax.random.normal(k_x, (N, Cin, H, W), jnp.float32)

    # Deterministic synthetic parameters (nn.Conv2d has bias=False).
    w1 = 0.2 * jax.random.normal(k_w1, (Cout, Cin, 3, 3), jnp.float32)
    g1 = 1.0 + 0.1 * jax.random.normal(k_g1, (Cout,), jnp.float32)
    b1 = 0.1 * jax.random.normal(k_b1, (Cout,), jnp.float32)
    w2 = 0.2 * jax.random.normal(k_w2, (Cout, Cout, 3, 3), jnp.float32)
    g2 = 1.0 + 0.1 * jax.random.normal(k_g2, (Cout,), jnp.float32)
    b2 = 0.1 * jax.random.normal(k_b2, (Cout,), jnp.float32)

    out = double_conv(x, w1, g1, b1, w2, g2, b2)
    out = jax.block_until_ready(out)

    ref = ref_double_conv(x, w1, g1, b1, w2, g2, b2)
    assert out.shape == (N, Cout, H, W), out.shape
    assert jnp.allclose(out, ref, atol=2e-3, rtol=2e-3), \
        f"max abs err {jnp.max(jnp.abs(out - ref))}"

    print("KERNEL_OK")
</pallas_src>

<mosaic_0001>
module attributes {stable_mosaic.version = 11 : i64} {
  func.func @double_conv_kernel(%arg0: memref<2x18x18x4xf32, #tpu.memory_space<vmem>>, %arg1: memref<36x128xbf16, #tpu.memory_space<vmem>>, %arg2: memref<1x128xf32, #tpu.memory_space<vmem>>, %arg3: memref<1x128xf32, #tpu.memory_space<vmem>>, %arg4: memref<1152x128xbf16, #tpu.memory_space<vmem>>, %arg5: memref<1x128xf32, #tpu.memory_space<vmem>>, %arg6: memref<1x128xf32, #tpu.memory_space<vmem>>, %arg7: memref<2x16x16x128xf32, #tpu.memory_space<vmem>>, %arg8: memref<2x18x18x128xf32, #tpu.memory_space<vmem>>) attributes {dimension_semantics = [], scalar_prefetch = 0 : i64, scratch_operands = 1 : i64, tpu.core_type = #tpu.core_type<tc>} {
    %c0 = arith.constant 0 : index
    %c0_0 = arith.constant 0 : index
    %c0_1 = arith.constant 0 : index
    %c0_2 = arith.constant 0 : index
    %0 = vector.load %arg0[%c0, %c0_0, %c0_1, %c0_2] : memref<2x18x18x4xf32, #tpu.memory_space<vmem>>, vector<2x16x16x4xf32>
    %1 = vector.shape_cast %0 : vector<2x16x16x4xf32> to vector<512x4xf32>
    %c0_3 = arith.constant 0 : index
    %c0_4 = arith.constant 0 : index
    %c1 = arith.constant 1 : index
    %c0_5 = arith.constant 0 : index
    %2 = vector.load %arg0[%c0_3, %c0_4, %c1, %c0_5] : memref<2x18x18x4xf32, #tpu.memory_space<vmem>>, vector<2x16x16x4xf32>
    %3 = vector.shape_cast %2 : vector<2x16x16x4xf32> to vector<512x4xf32>
    %c0_6 = arith.constant 0 : index
    %c0_7 = arith.constant 0 : index
    %c2 = arith.constant 2 : index
    %c0_8 = arith.constant 0 : index
    %4 = vector.load %arg0[%c0_6, %c0_7, %c2, %c0_8] : memref<2x18x18x4xf32, #tpu.memory_space<vmem>>, vector<2x16x16x4xf32>
    %5 = vector.shape_cast %4 : vector<2x16x16x4xf32> to vector<512x4xf32>
    %c0_9 = arith.constant 0 : index
    %c1_10 = arith.constant 1 : index
    %c0_11 = arith.constant 0 : index
    %c0_12 = arith.constant 0 : index
    %6 = vector.load %arg0[%c0_9, %c1_10, %c0_11, %c0_12] : memref<2x18x18x4xf32, #tpu.memory_space<vmem>>, vector<2x16x16x4xf32>
    %7 = vector.shape_cast %6 : vector<2x16x16x4xf32> to vector<512x4xf32>
    %c0_13 = arith.constant 0 : index
    %c1_14 = arith.constant 1 : index
    %c1_15 = arith.constant 1 : index
    %c0_16 = arith.constant 0 : index
    %8 = vector.load %arg0[%c0_13, %c1_14, %c1_15, %c0_16] : memref<2x18x18x4xf32, #tpu.memory_space<vmem>>, vector<2x16x16x4xf32>
    %9 = vector.shape_cast %8 : vector<2x16x16x4xf32> to vector<512x4xf32>
    %c0_17 = arith.constant 0 : index
    %c1_18 = arith.constant 1 : index
    %c2_19 = arith.constant 2 : index
    %c0_20 = arith.constant 0 : index
    %10 = vector.load %arg0[%c0_17, %c1_18, %c2_19, %c0_20] : memref<2x18x18x4xf32, #tpu.memory_space<vmem>>, vector<2x16x16x4xf32>
    %11 = vector.shape_cast %10 : vector<2x16x16x4xf32> to vector<512x4xf32>
    %c0_21 = arith.constant 0 : index
    %c2_22 = arith.constant 2 : index
    %c0_23 = arith.constant 0 : index
    %c0_24 = arith.constant 0 : index
    %12 = vector.load %arg0[%c0_21, %c2_22, %c0_23, %c0_24] : memref<2x18x18x4xf32, #tpu.memory_space<vmem>>, vector<2x16x16x4xf32>
    %13 = vector.shape_cast %12 : vector<2x16x16x4xf32> to vector<512x4xf32>
    %c0_25 = arith.constant 0 : index
    %c2_26 = arith.constant 2 : index
    %c1_27 = arith.constant 1 : index
    %c0_28 = arith.constant 0 : index
    %14 = vector.load %arg0[%c0_25, %c2_26, %c1_27, %c0_28] : memref<2x18x18x4xf32, #tpu.memory_space<vmem>>, vector<2x16x16x4xf32>
    %15 = vector.shape_cast %14 : vector<2x16x16x4xf32> to vector<512x4xf32>
    %c0_29 = arith.constant 0 : index
    %c2_30 = arith.constant 2 : index
    %c2_31 = arith.constant 2 : index
    %c0_32 = arith.constant 0 : index
    %16 = vector.load %arg0[%c0_29, %c2_30, %c2_31, %c0_32] : memref<2x18x18x4xf32, #tpu.memory_space<vmem>>, vector<2x16x16x4xf32>
    %17 = vector.shape_cast %16 : vector<2x16x16x4xf32> to vector<512x4xf32>
    %18 = tpu.concatenate %1, %3, %5, %7, %9, %11, %13, %15, %17 in 1 : vector<512x4xf32>, vector<512x4xf32>, vector<512x4xf32>, vector<512x4xf32>, vector<512x4xf32>, vector<512x4xf32>, vector<512x4xf32>, vector<512x4xf32>, vector<512x4xf32> -> vector<512x36xf32>
    %19 = arith.truncf %18 : vector<512x36xf32> to vector<512x36xbf16>
    %c0_33 = arith.constant 0 : index
    %c0_34 = arith.constant 0 : index
    %20 = vector.load %arg1[%c0_33, %c0_34] : memref<36x128xbf16, #tpu.memory_space<vmem>>, vector<36x128xbf16>
    %cst = arith.constant dense<0.000000e+00> : vector<512x128xf32>
    %21 = tpu.matmul %19, %20, %cst {dimension_numbers = #tpu.dot_dimension_numbers<[1], [0], [0], [1], [0, 0, 1, 1], [], []>} : vector<512x36xbf16>, vector<36x128xbf16>, vector<512x128xf32> -> vector<512x128xf32>
    %cst_35 = arith.constant dense<0.000000e+00> : vector<128xf32>
    %22 = vector.multi_reduction <add>, %21, %cst_35 [0] : vector<512x128xf32> to vector<128xf32>
    %23 = vector.shape_cast %22 : vector<128xf32> to vector<1x128xf32>
    %cst_36 = arith.constant 5.120000e+02 : f32
    %24 = vector.broadcast %cst_36 : f32 to vector<1x128xf32>
    %25 = arith.divf %23, %24 : vector<1x128xf32>
    %26 = vector.broadcast %25 : vector<1x128xf32> to vector<512x128xf32>
    %27 = arith.subf %21, %26 : vector<512x128xf32>
    %28 = arith.mulf %27, %27 : vector<512x128xf32>
    %cst_37 = arith.constant dense<0.000000e+00> : vector<128xf32>
    %29 = vector.multi_reduction <add>, %28, %cst_37 [0] : vector<512x128xf32> to vector<128xf32>
    %30 = vector.shape_cast %29 : vector<128xf32> to vector<1x128xf32>
    %cst_38 = arith.constant 5.120000e+02 : f32
    %31 = vector.broadcast %cst_38 : f32 to vector<1x128xf32>
    %32 = arith.divf %30, %31 : vector<1x128xf32>
    %c0_39 = arith.constant 0 : index
    %c0_40 = arith.constant 0 : index
    %33 = vector.load %arg2[%c0_39, %c0_40] : memref<1x128xf32, #tpu.memory_space<vmem>>, vector<1x128xf32>
    %cst_41 = arith.constant 9.99999974E-6 : f32
    %34 = vector.broadcast %cst_41 : f32 to vector<1x128xf32>
    %35 = arith.addf %32, %34 : vector<1x128xf32>
    %36 = math.rsqrt %35 : vector<1x128xf32>
    %37 = arith.mulf %33, %36 : vector<1x128xf32>
    %c0_42 = arith.constant 0 : index
    %c0_43 = arith.constant 0 : index
    %38 = vector.load %arg3[%c0_42, %c0_43] : memref<1x128xf32, #tpu.memory_space<vmem>>, vector<1x128xf32>
    %39 = arith.mulf %25, %37 : vector<1x128xf32>
    %40 = arith.subf %38, %39 : vector<1x128xf32>
    %41 = vector.broadcast %37 : vector<1x128xf32> to vector<512x128xf32>
    %42 = arith.mulf %21, %41 : vector<512x128xf32>
    %43 = vector.broadcast %40 : vector<1x128xf32> to vector<512x128xf32>
    %44 = arith.addf %42, %43 : vector<512x128xf32>
    %cst_44 = arith.constant 0.000000e+00 : f32
    %45 = vector.broadcast %cst_44 : f32 to vector<512x128xf32>
    %46 = arith.maximumf %44, %45 : vector<512x128xf32>
    %47 = vector.shape_cast %46 : vector<512x128xf32> to vector<2x16x16x128xf32>
    %c0_45 = arith.constant 0 : index
    %c1_46 = arith.constant 1 : index
    %c1_47 = arith.constant 1 : index
    %c0_48 = arith.constant 0 : index
    %48 = vector.load %arg8[%c0_45, %c1_46, %c1_47, %c0_48] : memref<2x18x18x128xf32, #tpu.memory_space<vmem>>, vector<2x16x16x128xf32>
    tpu.vector_store %arg8[%c0_45, %c1_46, %c1_47, %c0_48], %47 {strides = array<i32>} : memref<2x18x18x128xf32, #tpu.memory_space<vmem>>, vector<2x16x16x128xf32>,
    %cst_49 = arith.constant 0.000000e+00 : f32
    %49 = vector.broadcast %cst_49 : f32 to vector<2x1x18x128xf32>
    %c0_50 = arith.constant 0 : index
    %c0_51 = arith.constant 0 : index
    %c0_52 = arith.constant 0 : index
    %c0_53 = arith.constant 0 : index
    %50 = vector.load %arg8[%c0_50, %c0_51, %c0_52, %c0_53] : memref<2x18x18x128xf32, #tpu.memory_space<vmem>>, vector<2x1x18x128xf32>
    tpu.vector_store %arg8[%c0_50, %c0_51, %c0_52, %c0_53], %49 {strides = array<i32>} : memref<2x18x18x128xf32, #tpu.memory_space<vmem>>, vector<2x1x18x128xf32>,
    %c0_54 = arith.constant 0 : index
    %c17 = arith.constant 17 : index
    %c0_55 = arith.constant 0 : index
    %c0_56 = arith.constant 0 : index
    %51 = vector.load %arg8[%c0_54, %c17, %c0_55, %c0_56] : memref<2x18x18x128xf32, #tpu.memory_space<vmem>>, vector<2x1x18x128xf32>
    tpu.vector_store %arg8[%c0_54, %c17, %c0_55, %c0_56], %49 {strides = array<i32>} : memref<2x18x18x128xf32, #tpu.memory_space<vmem>>, vector<2x1x18x128xf32>,
    %cst_57 = arith.constant 0.000000e+00 : f32
    %52 = vector.broadcast %cst_57 : f32 to vector<2x16x1x128xf32>
    %c0_58 = arith.constant 0 : index
    %c1_59 = arith.constant 1 : index
    %c0_60 = arith.constant 0 : index
    %c0_61 = arith.constant 0 : index
    %53 = vector.load %arg8[%c0_58, %c1_59, %c0_60, %c0_61] : memref<2x18x18x128xf32, #tpu.memory_space<vmem>>, vector<2x16x1x128xf32>
    tpu.vector_store %arg8[%c0_58, %c1_59, %c0_60, %c0_61], %52 {strides = array<i32>} : memref<2x18x18x128xf32, #tpu.memory_space<vmem>>, vector<2x16x1x128xf32>,
    %c0_62 = arith.constant 0 : index
    %c1_63 = arith.constant 1 : index
    %c17_64 = arith.constant 17 : index
    %c0_65 = arith.constant 0 : index
    %54 = vector.load %arg8[%c0_62, %c1_63, %c17_64, %c0_65] : memref<2x18x18x128xf32, #tpu.memory_space<vmem>>, vector<2x16x1x128xf32>
    tpu.vector_store %arg8[%c0_62, %c1_63, %c17_64, %c0_65], %52 {strides = array<i32>} : memref<2x18x18x128xf32, #tpu.memory_space<vmem>>, vector<2x16x1x128xf32>,
    %c0_66 = arith.constant 0 : index
    %c0_67 = arith.constant 0 : index
    %c0_68 = arith.constant 0 : index
    %c0_69 = arith.constant 0 : index
    %55 = vector.load %arg8[%c0_66, %c0_67, %c0_68, %c0_69] : memref<2x18x18x128xf32, #tpu.memory_space<vmem>>, vector<2x16x16x128xf32>
    %56 = vector.shape_cast %55 : vector<2x16x16x128xf32> to vector<512x128xf32>
    %c0_70 = arith.constant 0 : index
    %c0_71 = arith.constant 0 : index
    %c1_72 = arith.constant 1 : index
    %c0_73 = arith.constant 0 : index
    %57 = vector.load %arg8[%c0_70, %c0_71, %c1_72, %c0_73] : memref<2x18x18x128xf32, #tpu.memory_space<vmem>>, vector<2x16x16x128xf32>
    %58 = vector.shape_cast %57 : vector<2x16x16x128xf32> to vector<512x128xf32>
    %c0_74 = arith.constant 0 : index
    %c0_75 = arith.constant 0 : index
    %c2_76 = arith.constant 2 : index
    %c0_77 = arith.constant 0 : index
    %59 = vector.load %arg8[%c0_74, %c0_75, %c2_76, %c0_77] : memref<2x18x18x128xf32, #tpu.memory_space<vmem>>, vector<2x16x16x128xf32>
    %60 = vector.shape_cast %59 : vector<2x16x16x128xf32> to vector<512x128xf32>
    %c0_78 = arith.constant 0 : index
    %c1_79 = arith.constant 1 : index
    %c0_80 = arith.constant 0 : index
    %c0_81 = arith.constant 0 : index
    %61 = vector.load %arg8[%c0_78, %c1_79, %c0_80, %c0_81] : memref<2x18x18x128xf32, #tpu.memory_space<vmem>>, vector<2x16x16x128xf32>
    %62 = vector.shape_cast %61 : vector<2x16x16x128xf32> to vector<512x128xf32>
    %c0_82 = arith.constant 0 : index
    %c1_83 = arith.constant 1 : index
    %c1_84 = arith.constant 1 : index
    %c0_85 = arith.constant 0 : index
    %63 = vector.load %arg8[%c0_82, %c1_83, %c1_84, %c0_85] : memref<2x18x18x128xf32, #tpu.memory_space<vmem>>, vector<2x16x16x128xf32>
    %64 = vector.shape_cast %63 : vector<2x16x16x128xf32> to vector<512x128xf32>
    %c0_86 = arith.constant 0 : index
    %c1_87 = arith.constant 1 : index
    %c2_88 = arith.constant 2 : index
    %c0_89 = arith.constant 0 : index
    %65 = vector.load %arg8[%c0_86, %c1_87, %c2_88, %c0_89] : memref<2x18x18x128xf32, #tpu.memory_space<vmem>>, vector<2x16x16x128xf32>
    %66 = vector.shape_cast %65 : vector<2x16x16x128xf32> to vector<512x128xf32>
    %c0_90 = arith.constant 0 : index
    %c2_91 = arith.constant 2 : index
    %c0_92 = arith.constant 0 : index
    %c0_93 = arith.constant 0 : index
    %67 = vector.load %arg8[%c0_90, %c2_91, %c0_92, %c0_93] : memref<2x18x18x128xf32, #tpu.memory_space<vmem>>, vector<2x16x16x128xf32>
    %68 = vector.shape_cast %67 : vector<2x16x16x128xf32> to vector<512x128xf32>
    %c0_94 = arith.constant 0 : index
    %c2_95 = arith.constant 2 : index
    %c1_96 = arith.constant 1 : index
    %c0_97 = arith.constant 0 : index
    %69 = vector.load %arg8[%c0_94, %c2_95, %c1_96, %c0_97] : memref<2x18x18x128xf32, #tpu.memory_space<vmem>>, vector<2x16x16x128xf32>
    %70 = vector.shape_cast %69 : vector<2x16x16x128xf32> to vector<512x128xf32>
    %c0_98 = arith.constant 0 : index
    %c2_99 = arith.constant 2 : index
    %c2_100 = arith.constant 2 : index
    %c0_101 = arith.constant 0 : index
    %71 = vector.load %arg8[%c0_98, %c2_99, %c2_100, %c0_101] : memref<2x18x18x128xf32, #tpu.memory_space<vmem>>, vector<2x16x16x128xf32>
    %72 = vector.shape_cast %71 : vector<2x16x16x128xf32> to vector<512x128xf32>
    %73 = tpu.concatenate %56, %58, %60, %62, %64, %66, %68, %70, %72 in 1 : vector<512x128xf32>, vector<512x128xf32>, vector<512x128xf32>, vector<512x128xf32>, vector<512x128xf32>, vector<512x128xf32>, vector<512x128xf32>, vector<512x128xf32>, vector<512x128xf32> -> vector<512x1152xf32>
    %74 = arith.truncf %73 : vector<512x1152xf32> to vector<512x1152xbf16>
    %c0_102 = arith.constant 0 : index
    %c0_103 = arith.constant 0 : index
    %75 = vector.load %arg4[%c0_102, %c0_103] : memref<1152x128xbf16, #tpu.memory_space<vmem>>, vector<1152x128xbf16>
    %cst_104 = arith.constant dense<0.000000e+00> : vector<512x128xf32>
    %76 = tpu.matmul %74, %75, %cst_104 {dimension_numbers = #tpu.dot_dimension_numbers<[1], [0], [0], [1], [0, 0, 1, 1], [], []>} : vector<512x1152xbf16>, vector<1152x128xbf16>, vector<512x128xf32> -> vector<512x128xf32>
    %cst_105 = arith.constant dense<0.000000e+00> : vector<128xf32>
    %77 = vector.multi_reduction <add>, %76, %cst_105 [0] : vector<512x128xf32> to vector<128xf32>
    %78 = vector.shape_cast %77 : vector<128xf32> to vector<1x128xf32>
    %cst_106 = arith.constant 5.120000e+02 : f32
    %79 = vector.broadcast %cst_106 : f32 to vector<1x128xf32>
    %80 = arith.divf %78, %79 : vector<1x128xf32>
    %81 = vector.broadcast %80 : vector<1x128xf32> to vector<512x128xf32>
    %82 = arith.subf %76, %81 : vector<512x128xf32>
    %83 = arith.mulf %82, %82 : vector<512x128xf32>
    %cst_107 = arith.constant dense<0.000000e+00> : vector<128xf32>
    %84 = vector.multi_reduction <add>, %83, %cst_107 [0] : vector<512x128xf32> to vector<128xf32>
    %85 = vector.shape_cast %84 : vector<128xf32> to vector<1x128xf32>
    %cst_108 = arith.constant 5.120000e+02 : f32
    %86 = vector.broadcast %cst_108 : f32 to vector<1x128xf32>
    %87 = arith.divf %85, %86 : vector<1x128xf32>
    %c0_109 = arith.constant 0 : index
    %c0_110 = arith.constant 0 : index
    %88 = vector.load %arg5[%c0_109, %c0_110] : memref<1x128xf32, #tpu.memory_space<vmem>>, vector<1x128xf32>
    %cst_111 = arith.constant 9.99999974E-6 : f32
    %89 = vector.broadcast %cst_111 : f32 to vector<1x128xf32>
    %90 = arith.addf %87, %89 : vector<1x128xf32>
    %91 = math.rsqrt %90 : vector<1x128xf32>
    %92 = arith.mulf %88, %91 : vector<1x128xf32>
    %c0_112 = arith.constant 0 : index
    %c0_113 = arith.constant 0 : index
    %93 = vector.load %arg6[%c0_112, %c0_113] : memref<1x128xf32, #tpu.memory_space<vmem>>, vector<1x128xf32>
    %94 = arith.mulf %80, %92 : vector<1x128xf32>
    %95 = arith.subf %93, %94 : vector<1x128xf32>
    %96 = vector.broadcast %92 : vector<1x128xf32> to vector<512x128xf32>
    %97 = arith.mulf %76, %96 : vector<512x128xf32>
    %98 = vector.broadcast %95 : vector<1x128xf32> to vector<512x128xf32>
    %99 = arith.addf %97, %98 : vector<512x128xf32>
    %cst_114 = arith.constant 0.000000e+00 : f32
    %100 = vector.broadcast %cst_114 : f32 to vector<512x128xf32>
    %101 = arith.maximumf %99, %100 : vector<512x128xf32>
    %102 = vector.shape_cast %101 : vector<512x128xf32> to vector<2x16x16x128xf32>
    %c0_115 = arith.constant 0 : index
    %c0_116 = arith.constant 0 : index
    %c0_117 = arith.constant 0 : index
    %c0_118 = arith.constant 0 : index
    %103 = vector.load %arg7[%c0_115, %c0_116, %c0_117, %c0_118] : memref<2x16x16x128xf32, #tpu.memory_space<vmem>>, vector<2x16x16x128xf32>
    tpu.vector_store %arg7[%c0_115, %c0_116, %c0_117, %c0_118], %102 {strides = array<i32>} : memref<2x16x16x128xf32, #tpu.memory_space<vmem>>, vector<2x16x16x128xf32>,
    return
  }
}

</mosaic_0001>

<llo_original>
// kernel: double_conv.1
$region0: #{double_conv.1}
  #allocation0 [shape = 'u32[]', space=smem, size = 0x4, offset = 0x4, fixed_abs, tag = 'smem constant byte address 0x4 - core index']
  #allocation1 [shape = 'u32[144,128]{1,0:T(1,128)}', space=vmem, size = 0x12000, scoped, tag = 'internal scratch']
  #allocation2 [shape = 'f32[2,18,18,128]{3,2,1,0:T(8,128)}', space=vmem, size = 0x6c000, scoped, tag = 'scratch operand']
  %s0 = inlined_call_operand.vmem [shape: f32[2,18,18,4], index: 0, kind: input, shape index: {}]
  %s1 = inlined_call_operand.vmem [shape: bf16[36,128], index: 1, kind: input, shape index: {}]
  %s2 = inlined_call_operand.vmem [shape: f32[1,128], index: 2, kind: input, shape index: {}]
  %s3 = inlined_call_operand.vmem [shape: f32[1,128], index: 3, kind: input, shape index: {}]
  %s4 = inlined_call_operand.vmem [shape: bf16[1152,128], index: 4, kind: input, shape index: {}]
  %s5 = inlined_call_operand.vmem [shape: f32[1,128], index: 5, kind: input, shape index: {}]
  %s6 = inlined_call_operand.vmem [shape: f32[1,128], index: 6, kind: input, shape index: {}]
  %s7 = inlined_call_operand.vmem [shape: f32[2,16,16,128], index: 7, kind: output, shape index: {}]
  %s8 = sld [smem:[#allocation0]]
  $region38: #{double_conv.1} parent=0
    _
  %s10 = ssub.s32 1, %s8
  %s11 = scalar_select 0, %s10, %s8
  // Predicated region
  $region2: #{double_conv.1} parent=0 // pred_check
    _
  $region3: #{double_conv.1} parent=0 // pred_check_branch
    %13 = sbr.rel (0) target = $region5
  $region4: #{double_conv.1} parent=0 // pred_region
    _
  $region5: #{double_conv.1} parent=0 // pred_fallthru
    _
  // Predicated region
  $region6: #{double_conv.1} parent=0 // pred_check
    _
  $region7: #{double_conv.1} parent=0 // pred_check_branch
    %15 = sbr.rel (0) target = $region9
  $region8: #{double_conv.1} parent=0 // pred_region
    _
  $region9: #{double_conv.1} parent=0 // pred_fallthru
    _
  // Predicated region
  $region10: #{double_conv.1} parent=0 // pred_check
    _
  $region11: #{double_conv.1} parent=0 // pred_check_branch
    %17 = sbr.rel (0) target = $region13
  $region12: #{double_conv.1} parent=0 // pred_region
    _
  $region13: #{double_conv.1} parent=0 // pred_fallthru
    _
  // Predicated region
  $region14: #{double_conv.1} parent=0 // pred_check
    _
  $region15: #{double_conv.1} parent=0 // pred_check_branch
    %19 = sbr.rel (0) target = $region17
  $region16: #{double_conv.1} parent=0 // pred_region
    _
  $region17: #{double_conv.1} parent=0 // pred_fallthru
    _
  // Predicated region
  $region18: #{double_conv.1} parent=0 // pred_check
    _
  $region19: #{double_conv.1} parent=0 // pred_check_branch
    %21 = sbr.rel (0) target = $region21
  $region20: #{double_conv.1} parent=0 // pred_region
    _
  $region21: #{double_conv.1} parent=0 // pred_fallthru
    _
  // Predicated region
  $region22: #{double_conv.1} parent=0 // pred_check
    _
  $region23: #{double_conv.1} parent=0 // pred_check_branch
    %23 = sbr.rel (0) target = $region25
  $region24: #{double_conv.1} parent=0 // pred_region
    _
  $region25: #{double_conv.1} parent=0 // pred_fallthru
    _
  // Predicated region
  $region26: #{double_conv.1} parent=0 // pred_check
    _
  $region27: #{double_conv.1} parent=0 // pred_check_branch
    %25 = sbr.rel (0) target = $region29
  $region28: #{double_conv.1} parent=0 // pred_region
    _
  $region29: #{double_conv.1} parent=0 // pred_fallthru
    _
  %v27 = vld [vmem:[%s0] sm:$0xff]
  %v28 = vld [vmem:[%s0 + $0x8] sm:$0xff]
  %v29 = vld [vmem:[%s0 + $0x18] sm:$0xff]
  %v30 = vld [vmem:[%s0 + $0x20] sm:$0xff]
  %v31 = vld [vmem:[%s0 + $0x30] sm:$0xff]
  %v32 = vld [vmem:[%s0 + $0x38] sm:$0xff]
  %v33 = vld [vmem:[%s0 + $0x48] sm:$0xff]
  %v34 = vld [vmem:[%s0 + $0x50] sm:$0xff]
  %v35 = vld [vmem:[%s0 + $0x60] sm:$0xff]
  %v36 = vld [vmem:[%s0 + $0x68] sm:$0xff]
  %v37 = vld [vmem:[%s0 + $0x78] sm:$0xff]
  %v38 = vld [vmem:[%s0 + $0x80] sm:$0xff]
  %v39 = vld [vmem:[%s0 + $0x90] sm:$0xff]
  %v40 = vld [vmem:[%s0 + $0x98] sm:$0xff]
  %v41 = vld [vmem:[%s0 + $0xa8] sm:$0xff]
  %v42 = vld [vmem:[%s0 + $0xb0] sm:$0xff]
  %v43 = vld [vmem:[%s0 + $0xc0] sm:$0xff]
  %v44 = vld [vmem:[%s0 + $0xc8] sm:$0xff]
  %v45 = vld [vmem:[%s0 + $0xd8] sm:$0xff]
  %v46 = vld [vmem:[%s0 + $0xe0] sm:$0xff]
  %v47 = vld [vmem:[%s0 + $0xf0] sm:$0xff]
  %v48 = vld [vmem:[%s0 + $0xf8] sm:$0xff]
  %v49 = vld [vmem:[%s0 + $0x108] sm:$0xff]
  %v50 = vld [vmem:[%s0 + $0x110] sm:$0xff]
  %v51 = vld [vmem:[%s0 + $0x120] sm:$0xff]
  %v52 = vld [vmem:[%s0 + $0x128] sm:$0xff]
  %v53 = vld [vmem:[%s0 + $0x138] sm:$0xff]
  %v54 = vld [vmem:[%s0 + $0x140] sm:$0xff]
  %v55 = vld [vmem:[%s0 + $0x150] sm:$0xff]
  %v56 = vld [vmem:[%s0 + $0x158] sm:$0xff]
  %v57 = vld [vmem:[%s0 + $0x168] sm:$0xff]
  %v58 = vld [vmem:[%s0 + $0x170] sm:$0xff]
  %v59 = vld [vmem:[%s0 + $0x1b0] sm:$0xff]
  %v60 = vld [vmem:[%s0 + $0x1b8] sm:$0xff]
  %v61 = vld [vmem:[%s0 + $0x1c8] sm:$0xff]
  %v62 = vld [vmem:[%s0 + $0x1d0] sm:$0xff]
  %v63 = vld [vmem:[%s0 + $0x1e0] sm:$0xff]
  %v64 = vld [vmem:[%s0 + $0x1e8] sm:$0xff]
  %v65 = vld [vmem:[%s0 + $0x1f8] sm:$0xff]
  %v66 = vld [vmem:[%s0 + $0x200] sm:$0xff]
  %v67 = vld [vmem:[%s0 + $0x210] sm:$0xff]
  %v68 = vld [vmem:[%s0 + $0x218] sm:$0xff]
  %v69 = vld [vmem:[%s0 + $0x228] sm:$0xff]
  %v70 = vld [vmem:[%s0 + $0x230] sm:$0xff]
  %v71 = vld [vmem:[%s0 + $0x240] sm:$0xff]
  %v72 = vld [vmem:[%s0 + $0x248] sm:$0xff]
  %v73 = vld [vmem:[%s0 + $0x258] sm:$0xff]
  %v74 = vld [vmem:[%s0 + $0x260] sm:$0xff]
  %v75 = vld [vmem:[%s0 + $0x270] sm:$0xff]
  %v76 = vld [vmem:[%s0 + $0x278] sm:$0xff]
  %v77 = vld [vmem:[%s0 + $0x288] sm:$0xff]
  %v78 = vld [vmem:[%s0 + $0x290] sm:$0xff]
  %v79 = vld [vmem:[%s0 + $0x2a0] sm:$0xff]
  %v80 = vld [vmem:[%s0 + $0x2a8] sm:$0xff]
  %v81 = vld [vmem:[%s0 + $0x2b8] sm:$0xff]
  %v82 = vld [vmem:[%s0 + $0x2c0] sm:$0xff]
  %v83 = vld [vmem:[%s0 + $0x2d0] sm:$0xff]
  %v84 = vld [vmem:[%s0 + $0x2d8] sm:$0xff]
  %v85 = vld [vmem:[%s0 + $0x2e8] sm:$0xff]
  %v86 = vld [vmem:[%s0 + $0x2f0] sm:$0xff]
  %v87 = vld [vmem:[%s0 + $0x300] sm:$0xff]
  %v88 = vld [vmem:[%s0 + $0x308] sm:$0xff]
  %v89 = vld [vmem:[%s0 + $0x318] sm:$0xff]
  %v90 = vld [vmem:[%s0 + $0x320] sm:$0xff]
  %v91 = vld [vmem:[%s0 + $0x1] sm:$0xff]
  %v92 = vld [vmem:[%s0 + $0x9] sm:$0xff]
  %v93 = vld [vmem:[%s0 + $0x19] sm:$0xff]
  %v94 = vld [vmem:[%s0 + $0x21] sm:$0xff]
  %v95 = vld [vmem:[%s0 + $0x31] sm:$0xff]
  %v96 = vld [vmem:[%s0 + $0x39] sm:$0xff]
  %v97 = vld [vmem:[%s0 + $0x49] sm:$0xff]
  %v98 = vld [vmem:[%s0 + $0x51] sm:$0xff]
  %v99 = vld [vmem:[%s0 + $0x61] sm:$0xff]
  %v100 = vld [vmem:[%s0 + $0x69] sm:$0xff]
  %v101 = vld [vmem:[%s0 + $0x79] sm:$0xff]
  %v102 = vld [vmem:[%s0 + $0x81] sm:$0xff]
  %v103 = vld [vmem:[%s0 + $0x91] sm:$0xff]
  %v104 = vld [vmem:[%s0 + $0x99] sm:$0xff]
  %v105 = vld [vmem:[%s0 + $0xa9] sm:$0xff]
  %v106 = vld [vmem:[%s0 + $0xb1] sm:$0xff]
  %v107 = vld [vmem:[%s0 + $0xc1] sm:$0xff]
  %v108 = vld [vmem:[%s0 + $0xc9] sm:$0xff]
  %v109 = vld [vmem:[%s0 + $0xd9] sm:$0xff]
  %v110 = vld [vmem:[%s0 + $0xe1] sm:$0xff]
  %v111 = vld [vmem:[%s0 + $0xf1] sm:$0xff]
  %v112 = vld [vmem:[%s0 + $0xf9] sm:$0xff]
  %v113 = vld [vmem:[%s0 + $0x109] sm:$0xff]
  %v114 = vld [vmem:[%s0 + $0x111] sm:$0xff]
  %v115 = vld [vmem:[%s0 + $0x121] sm:$0xff]
  %v116 = vld [vmem:[%s0 + $0x129] sm:$0xff]
  %v117 = vld [vmem:[%s0 + $0x139] sm:$0xff]
  %v118 = vld [vmem:[%s0 + $0x141] sm:$0xff]
  %v119 = vld [vmem:[%s0 + $0x151] sm:$0xff]
  %v120 = vld [vmem:[%s0 + $0x159] sm:$0xff]
  %v121 = vld [vmem:[%s0 + $0x169] sm:$0xff]
  %v122 = vld [vmem:[%s0 + $0x171] sm:$0xff]
  %v123 = vld [vmem:[%s0 + $0x1b1] sm:$0xff]
  %v124 = vld [vmem:[%s0 + $0x1b9] sm:$0xff]
  %v125 = vld [vmem:[%s0 + $0x1c9] sm:$0xff]
  %v126 = vld [vmem:[%s0 + $0x1d1] sm:$0xff]
  %v127 = vld [vmem:[%s0 + $0x1e1] sm:$0xff]
  %v128 = vld [vmem:[%s0 + $0x1e9] sm:$0xff]
  %v129 = vld [vmem:[%s0 + $0x1f9] sm:$0xff]
  %v130 = vld [vmem:[%s0 + $0x201] sm:$0xff]
  %v131 = vld [vmem:[%s0 + $0x211] sm:$0xff]
  %v132 = vld [vmem:[%s0 + $0x219] sm:$0xff]
  %v133 = vld [vmem:[%s0 + $0x229] sm:$0xff]
  %v134 = vld [vmem:[%s0 + $0x231] sm:$0xff]
  %v135 = vld [vmem:[%s0 + $0x241] sm:$0xff]
  %v136 = vld [vmem:[%s0 + $0x249] sm:$0xff]
  %v137 = vld [vmem:[%s0 + $0x259] sm:$0xff]
  %v138 = vld [vmem:[%s0 + $0x261] sm:$0xff]
  %v139 = vld [vmem:[%s0 + $0x271] sm:$0xff]
  %v140 = vld [vmem:[%s0 + $0x279] sm:$0xff]
  %v141 = vld [vmem:[%s0 + $0x289] sm:$0xff]
  %v142 = vld [vmem:[%s0 + $0x291] sm:$0xff]
  %v143 = vld [vmem:[%s0 + $0x2a1] sm:$0xff]
  %v144 = vld [vmem:[%s0 + $0x2a9] sm:$0xff]
  %v145 = vld [vmem:[%s0 + $0x2b9] sm:$0xff]
  %v146 = vld [vmem:[%s0 + $0x2c1] sm:$0xff]
  %v147 = vld [vmem:[%s0 + $0x2d1] sm:$0xff]
  %v148 = vld [vmem:[%s0 + $0x2d9] sm:$0xff]
  %v149 = vld [vmem:[%s0 + $0x2e9] sm:$0xff]
  %v150 = vld [vmem:[%s0 + $0x2f1] sm:$0xff]
  %v151 = vld [vmem:[%s0 + $0x301] sm:$0xff]
  %v152 = vld [vmem:[%s0 + $0x309] sm:$0xff]
  %v153 = vld [vmem:[%s0 + $0x319] sm:$0xff]
  %v154 = vld [vmem:[%s0 + $0x321] sm:$0xff]
  %v155 = vld [vmem:[%s0 + $0x2] sm:$0xff]
  %v156 = vld [vmem:[%s0 + $0xa] sm:$0xff]
  %v157 = vld [vmem:[%s0 + $0x1a] sm:$0xff]
  %v158 = vld [vmem:[%s0 + $0x22] sm:$0xff]
  %v159 = vld [vmem:[%s0 + $0x32] sm:$0xff]
  %v160 = vld [vmem:[%s0 + $0x3a] sm:$0xff]
  %v161 = vld [vmem:[%s0 + $0x4a] sm:$0xff]
  %v162 = vld [vmem:[%s0 + $0x52] sm:$0xff]
  %v163 = vld [vmem:[%s0 + $0x62] sm:$0xff]
  %v164 = vld [vmem:[%s0 + $0x6a] sm:$0xff]
  %v165 = vld [vmem:[%s0 + $0x7a] sm:$0xff]
  %v166 = vld [vmem:[%s0 + $0x82] sm:$0xff]
  %v167 = vld [vmem:[%s0 + $0x92] sm:$0xff]
  %v168 = vld [vmem:[%s0 + $0x9a] sm:$0xff]
  %v169 = vld [vmem:[%s0 + $0xaa] sm:$0xff]
  %v170 = vld [vmem:[%s0 + $0xb2] sm:$0xff]
  %v171 = vld [vmem:[%s0 + $0xc2] sm:$0xff]
  %v172 = vld [vmem:[%s0 + $0xca] sm:$0xff]
  %v173 = vld [vmem:[%s0 + $0xda] sm:$0xff]
  %v174 = vld [vmem:[%s0 + $0xe2] sm:$0xff]
  %v175 = vld [vmem:[%s0 + $0xf2] sm:$0xff]
  %v176 = vld [vmem:[%s0 + $0xfa] sm:$0xff]
  %v177 = vld [vmem:[%s0 + $0x10a] sm:$0xff]
  %v178 = vld [vmem:[%s0 + $0x112] sm:$0xff]
  %v179 = vld [vmem:[%s0 + $0x122] sm:$0xff]
  %v180 = vld [vmem:[%s0 + $0x12a] sm:$0xff]
  %v181 = vld [vmem:[%s0 + $0x13a] sm:$0xff]
  %v182 = vld [vmem:[%s0 + $0x142] sm:$0xff]
  %v183 = vld [vmem:[%s0 + $0x152] sm:$0xff]
  %v184 = vld [vmem:[%s0 + $0x15a] sm:$0xff]
  %v185 = vld [vmem:[%s0 + $0x16a] sm:$0xff]
  %v186 = vld [vmem:[%s0 + $0x172] sm:$0xff]
  %v187 = vld [vmem:[%s0 + $0x1b2] sm:$0xff]
  %v188 = vld [vmem:[%s0 + $0x1ba] sm:$0xff]
  %v189 = vld [vmem:[%s0 + $0x1ca] sm:$0xff]
  %v190 = vld [vmem:[%s0 + $0x1d2] sm:$0xff]
  %v191 = vld [vmem:[%s0 + $0x1e2] sm:$0xff]
  %v192 = vld [vmem:[%s0 + $0x1ea] sm:$0xff]
  %v193 = vld [vmem:[%s0 + $0x1fa] sm:$0xff]
  %v194 = vld [vmem:[%s0 + $0x202] sm:$0xff]
  %v195 = vld [vmem:[%s0 + $0x212] sm:$0xff]
  %v196 = vld [vmem:[%s0 + $0x21a] sm:$0xff]
  %v197 = vld [vmem:[%s0 + $0x22a] sm:$0xff]
  %v198 = vld [vmem:[%s0 + $0x232] sm:$0xff]
  %v199 = vld [vmem:[%s0 + $0x242] sm:$0xff]
  %v200 = vld [vmem:[%s0 + $0x24a] sm:$0xff]
  %v201 = vld [vmem:[%s0 + $0x25a] sm:$0xff]
  %v202 = vld [vmem:[%s0 + $0x262] sm:$0xff]
  %v203 = vld [vmem:[%s0 + $0x272] sm:$0xff]
  %v204 = vld [vmem:[%s0 + $0x27a] sm:$0xff]
  %v205 = vld [vmem:[%s0 + $0x28a] sm:$0xff]
  %v206 = vld [vmem:[%s0 + $0x292] sm:$0xff]
  %v207 = vld [vmem:[%s0 + $0x2a2] sm:$0xff]
  %v208 = vld [vmem:[%s0 + $0x2aa] sm:$0xff]
  %v209 = vld [vmem:[%s0 + $0x2ba] sm:$0xff]
  %v210 = vld [vmem:[%s0 + $0x2c2] sm:$0xff]
  %v211 = vld [vmem:[%s0 + $0x2d2] sm:$0xff]
  %v212 = vld [vmem:[%s0 + $0x2da] sm:$0xff]
  %v213 = vld [vmem:[%s0 + $0x2ea] sm:$0xff]
  %v214 = vld [vmem:[%s0 + $0x2f2] sm:$0xff]
  %v215 = vld [vmem:[%s0 + $0x302] sm:$0xff]
  %v216 = vld [vmem:[%s0 + $0x30a] sm:$0xff]
  %v217 = vld [vmem:[%s0 + $0x31a] sm:$0xff]
  %v218 = vld [vmem:[%s0 + $0x322] sm:$0xff]
  %s219 = scalar_lea.vmem %s0, 24
  %v220 = vld [vmem:[%s219] sm:$0xff]
  %v221 = vld [vmem:[%s219 + $0x8] sm:$0xff]
  %v222 = vld [vmem:[%s219 + $0x18] sm:$0xff]
  %v223 = vld [vmem:[%s219 + $0x20] sm:$0xff]
  %v224 = vld [vmem:[%s219 + $0x30] sm:$0xff]
  %v225 = vld [vmem:[%s219 + $0x38] sm:$0xff]
  %v226 = vld [vmem:[%s219 + $0x48] sm:$0xff]
  %v227 = vld [vmem:[%s219 + $0x50] sm:$0xff]
  %v228 = vld [vmem:[%s219 + $0x60] sm:$0xff]
  %v229 = vld [vmem:[%s219 + $0x68] sm:$0xff]
  %v230 = vld [vmem:[%s219 + $0x78] sm:$0xff]
  %v231 = vld [vmem:[%s219 + $0x80] sm:$0xff]
  %v232 = vld [vmem:[%s219 + $0x90] sm:$0xff]
  %v233 = vld [vmem:[%s219 + $0x98] sm:$0xff]
  %v234 = vld [vmem:[%s219 + $0xa8] sm:$0xff]
  %v235 = vld [vmem:[%s219 + $0xb0] sm:$0xff]
  %v236 = vld [vmem:[%s219 + $0xc0] sm:$0xff]
  %v237 = vld [vmem:[%s219 + $0xc8] sm:$0xff]
  %v238 = vld [vmem:[%s219 + $0xd8] sm:$0xff]
  %v239 = vld [vmem:[%s219 + $0xe0] sm:$0xff]
  %v240 = vld [vmem:[%s219 + $0xf0] sm:$0xff]
  %v241 = vld [vmem:[%s219 + $0xf8] sm:$0xff]
  %v242 = vld [vmem:[%s219 + $0x108] sm:$0xff]
  %v243 = vld [vmem:[%s219 + $0x110] sm:$0xff]
  %v244 = vld [vmem:[%s219 + $0x120] sm:$0xff]
  %v245 = vld [vmem:[%s219 + $0x128] sm:$0xff]
  %v246 = vld [vmem:[%s219 + $0x138] sm:$0xff]
  %v247 = vld [vmem:[%s219 + $0x140] sm:$0xff]
  %v248 = vld [vmem:[%s219 + $0x150] sm:$0xff]
  %v249 = vld [vmem:[%s219 + $0x158] sm:$0xff]
  %v250 = vld [vmem:[%s219 + $0x168] sm:$0xff]
  %v251 = vld [vmem:[%s219 + $0x170] sm:$0xff]
  %v252 = vld [vmem:[%s219 + $0x1b0] sm:$0xff]
  %v253 = vld [vmem:[%s219 + $0x1b8] sm:$0xff]
  %v254 = vld [vmem:[%s219 + $0x1c8] sm:$0xff]
  %v255 = vld [vmem:[%s219 + $0x1d0] sm:$0xff]
  %v256 = vld [vmem:[%s219 + $0x1e0] sm:$0xff]
  %v257 = vld [vmem:[%s219 + $0x1e8] sm:$0xff]
  %v258 = vld [vmem:[%s219 + $0x1f8] sm:$0xff]
  %v259 = vld [vmem:[%s219 + $0x200] sm:$0xff]
  %v260 = vld [vmem:[%s219 + $0x210] sm:$0xff]
  %v261 = vld [vmem:[%s219 + $0x218] sm:$0xff]
  %v262 = vld [vmem:[%s219 + $0x228] sm:$0xff]
  %v263 = vld [vmem:[%s219 + $0x230] sm:$0xff]
  %v264 = vld [vmem:[%s219 + $0x240] sm:$0xff]
  %v265 = vld [vmem:[%s219 + $0x248] sm:$0xff]
  %v266 = vld [vmem:[%s219 + $0x258] sm:$0xff]
  %v267 = vld [vmem:[%s219 + $0x260] sm:$0xff]
  %v268 = vld [vmem:[%s219 + $0x270] sm:$0xff]
  %v269 = vld [vmem:[%s219 + $0x278] sm:$0xff]
  %v270 = vld [vmem:[%s219 + $0x288] sm:$0xff]
  %v271 = vld [vmem:[%s219 + $0x290] sm:$0xff]
  %v272 = vld [vmem:[%s219 + $0x2a0] sm:$0xff]
  %v273 = vld [vmem:[%s219 + $0x2a8] sm:$0xff]
  %v274 = vld [vmem:[%s219 + $0x2b8] sm:$0xff]
  %v275 = vld [vmem:[%s219 + $0x2c0] sm:$0xff]
  %v276 = vld [vmem:[%s219 + $0x2d0] sm:$0xff]
  %v277 = vld [vmem:[%s219 + $0x2d8] sm:$0xff]
  %v278 = vld [vmem:[%s219 + $0x2e8] sm:$0xff]
  %v279 = vld [vmem:[%s219 + $0x2f0] sm:$0xff]
  %v280 = vld [vmem:[%s219 + $0x300] sm:$0xff]
  %v281 = vld [vmem:[%s219 + $0x308] sm:$0xff]
  %v282 = vld [vmem:[%s219 + $0x318] sm:$0xff]
  %v283 = vld [vmem:[%s219 + $0x320] sm:$0xff]
  %v284 = vld [vmem:[%s219 + $0x1] sm:$0xff]
  %v285 = vld [vmem:[%s219 + $0x9] sm:$0xff]
  %v286 = vld [vmem:[%s219 + $0x19] sm:$0xff]
  %v287 = vld [vmem:[%s219 + $0x21] sm:$0xff]
  %v288 = vld [vmem:[%s219 + $0x31] sm:$0xff]
  %v289 = vld [vmem:[%s219 + $0x39] sm:$0xff]
  %v290 = vld [vmem:[%s219 + $0x49] sm:$0xff]
  %v291 = vld [vmem:[%s219 + $0x51] sm:$0xff]
  %v292 = vld [vmem:[%s219 + $0x61] sm:$0xff]
  %v293 = vld [vmem:[%s219 + $0x69] sm:$0xff]
  %v294 = vld [vmem:[%s219 + $0x79] sm:$0xff]
  %v295 = vld [vmem:[%s219 + $0x81] sm:$0xff]
  %v296 = vld [vmem:[%s219 + $0x91] sm:$0xff]
  %v297 = vld [vmem:[%s219 + $0x99] sm:$0xff]
  %v298 = vld [vmem:[%s219 + $0xa9] sm:$0xff]
  %v299 = vld [vmem:[%s219 + $0xb1] sm:$0xff]
  %v300 = vld [vmem:[%s219 + $0xc1] sm:$0xff]
  %v301 = vld [vmem:[%s219 + $0xc9] sm:$0xff]
  %v302 = vld [vmem:[%s219 + $0xd9] sm:$0xff]
  %v303 = vld [vmem:[%s219 + $0xe1] sm:$0xff]
  %v304 = vld [vmem:[%s219 + $0xf1] sm:$0xff]
  %v305 = vld [vmem:[%s219 + $0xf9] sm:$0xff]
  %v306 = vld [vmem:[%s219 + $0x109] sm:$0xff]
  %v307 = vld [vmem:[%s219 + $0x111] sm:$0xff]
  %v308 = vld [vmem:[%s219 + $0x121] sm:$0xff]
  %v309 = vld [vmem:[%s219 + $0x129] sm:$0xff]
  %v310 = vld [vmem:[%s219 + $0x139] sm:$0xff]
  %v311 = vld [vmem:[%s219 + $0x141] sm:$0xff]
  %v312 = vld [vmem:[%s219 + $0x151] sm:$0xff]
  %v313 = vld [vmem:[%s219 + $0x159] sm:$0xff]
  %v314 = vld [vmem:[%s219 + $0x169] sm:$0xff]
  %v315 = vld [vmem:[%s219 + $0x171] sm:$0xff]
  %v316 = vld [vmem:[%s219 + $0x1b1] sm:$0xff]
  %v317 = vld [vmem:[%s219 + $0x1b9] sm:$0xff]
  %v318 = vld [vmem:[%s219 + $0x1c9] sm:$0xff]
  %v319 = vld [vmem:[%s219 + $0x1d1] sm:$0xff]
  %v320 = vld [vmem:[%s219 + $0x1e1] sm:$0xff]
  %v321 = vld [vmem:[%s219 + $0x1e9] sm:$0xff]
  %v322 = vld [vmem:[%s219 + $0x1f9] sm:$0xff]
  %v323 = vld [vmem:[%s219 + $0x201] sm:$0xff]
  %v324 = vld [vmem:[%s219 + $0x211] sm:$0xff]
  %v325 = vld [vmem:[%s219 + $0x219] sm:$0xff]
  %v326 = vld [vmem:[%s219 + $0x229] sm:$0xff]
  %v327 = vld [vmem:[%s219 + $0x231] sm:$0xff]
  %v328 = vld [vmem:[%s219 + $0x241] sm:$0xff]
  %v329 = vld [vmem:[%s219 + $0x249] sm:$0xff]
  %v330 = vld [vmem:[%s219 + $0x259] sm:$0xff]
  %v331 = vld [vmem:[%s219 + $0x261] sm:$0xff]
  %v332 = vld [vmem:[%s219 + $0x271] sm:$0xff]
  %v333 = vld [vmem:[%s219 + $0x279] sm:$0xff]
  %v334 = vld [vmem:[%s219 + $0x289] sm:$0xff]
  %v335 = vld [vmem:[%s219 + $0x291] sm:$0xff]
  %v336 = vld [vmem:[%s219 + $0x2a1] sm:$0xff]
  %v337 = vld [vmem:[%s219 + $0x2a9] sm:$0xff]
  %v338 = vld [vmem:[%s219 + $0x2b9] sm:$0xff]
  %v339 = vld [vmem:[%s219 + $0x2c1] sm:$0xff]
  %v340 = vld [vmem:[%s219 + $0x2d1] sm:$0xff]
  %v341 = vld [vmem:[%s219 + $0x2d9] sm:$0xff]
  %v342 = vld [vmem:[%s219 + $0x2e9] sm:$0xff]
  %v343 = vld [vmem:[%s219 + $0x2f1] sm:$0xff]
  %v344 = vld [vmem:[%s219 + $0x301] sm:$0xff]
  %v345 = vld [vmem:[%s219 + $0x309] sm:$0xff]
  %v346 = vld [vmem:[%s219 + $0x319] sm:$0xff]
  %v347 = vld [vmem:[%s219 + $0x321] sm:$0xff]
  %v348 = vld [vmem:[%s219 + $0x2] sm:$0xff]
  %v349 = vld [vmem:[%s219 + $0xa] sm:$0xff]
  %v350 = vld [vmem:[%s219 + $0x1a] sm:$0xff]
  %v351 = vld [vmem:[%s219 + $0x22] sm:$0xff]
  %v352 = vld [vmem:[%s219 + $0x32] sm:$0xff]
  %v353 = vld [vmem:[%s219 + $0x3a] sm:$0xff]
  %v354 = vld [vmem:[%s219 + $0x4a] sm:$0xff]
  %v355 = vld [vmem:[%s219 + $0x52] sm:$0xff]
  %v356 = vld [vmem:[%s219 + $0x62] sm:$0xff]
  %v357 = vld [vmem:[%s219 + $0x6a] sm:$0xff]
  %v358 = vld [vmem:[%s219 + $0x7a] sm:$0xff]
  %v359 = vld [vmem:[%s219 + $0x82] sm:$0xff]
  %v360 = vld [vmem:[%s219 + $0x92] sm:$0xff]
  %v361 = vld [vmem:[%s219 + $0x9a] sm:$0xff]
  %v362 = vld [vmem:[%s219 + $0xaa] sm:$0xff]
  %v363 = vld [vmem:[%s219 + $0xb2] sm:$0xff]
  %v364 = vld [vmem:[%s219 + $0xc2] sm:$0xff]
  %v365 = vld [vmem:[%s219 + $0xca] sm:$0xff]
  %v366 = vld [vmem:[%s219 + $0xda] sm:$0xff]
  %v367 = vld [vmem:[%s219 + $0xe2] sm:$0xff]
  %v368 = vld [vmem:[%s219 + $0xf2] sm:$0xff]
  %v369 = vld [vmem:[%s219 + $0xfa] sm:$0xff]
  %v370 = vld [vmem:[%s219 + $0x10a] sm:$0xff]
  %v371 = vld [vmem:[%s219 + $0x112] sm:$0xff]
  %v372 = vld [vmem:[%s219 + $0x122] sm:$0xff]
  %v373 = vld [vmem:[%s219 + $0x12a] sm:$0xff]
  %v374 = vld [vmem:[%s219 + $0x13a] sm:$0xff]
  %v375 = vld [vmem:[%s219 + $0x142] sm:$0xff]
  %v376 = vld [vmem:[%s219 + $0x152] sm:$0xff]
  %v377 = vld [vmem:[%s219 + $0x15a] sm:$0xff]
  %v378 = vld [vmem:[%s219 + $0x16a] sm:$0xff]
  %v379 = vld [vmem:[%s219 + $0x172] sm:$0xff]
  %v380 = vld [vmem:[%s219 + $0x1b2] sm:$0xff]
  %v381 = vld [vmem:[%s219 + $0x1ba] sm:$0xff]
  %v382 = vld [vmem:[%s219 + $0x1ca] sm:$0xff]
  %v383 = vld [vmem:[%s219 + $0x1d2] sm:$0xff]
  %v384 = vld [vmem:[%s219 + $0x1e2] sm:$0xff]
  %v385 = vld [vmem:[%s219 + $0x1ea] sm:$0xff]
  %v386 = vld [vmem:[%s219 + $0x1fa] sm:$0xff]
  %v387 = vld [vmem:[%s219 + $0x202] sm:$0xff]
  %v388 = vld [vmem:[%s219 + $0x212] sm:$0xff]
  %v389 = vld [vmem:[%s219 + $0x21a] sm:$0xff]
  %v390 = vld [vmem:[%s219 + $0x22a] sm:$0xff]
  %v391 = vld [vmem:[%s219 + $0x232] sm:$0xff]
  %v392 = vld [vmem:[%s219 + $0x242] sm:$0xff]
  %v393 = vld [vmem:[%s219 + $0x24a] sm:$0xff]
  %v394 = vld [vmem:[%s219 + $0x25a] sm:$0xff]
  %v395 = vld [vmem:[%s219 + $0x262] sm:$0xff]
  %v396 = vld [vmem:[%s219 + $0x272] sm:$0xff]
  %v397 = vld [vmem:[%s219 + $0x27a] sm:$0xff]
  %v398 = vld [vmem:[%s219 + $0x28a] sm:$0xff]
  %v399 = vld [vmem:[%s219 + $0x292] sm:$0xff]
  %v400 = vld [vmem:[%s219 + $0x2a2] sm:$0xff]
  %v401 = vld [vmem:[%s219 + $0x2aa] sm:$0xff]
  %v402 = vld [vmem:[%s219 + $0x2ba] sm:$0xff]
  %v403 = vld [vmem:[%s219 + $0x2c2] sm:$0xff]
  %v404 = vld [vmem:[%s219 + $0x2d2] sm:$0xff]
  %v405 = vld [vmem:[%s219 + $0x2da] sm:$0xff]
  %v406 = vld [vmem:[%s219 + $0x2ea] sm:$0xff]
  %v407 = vld [vmem:[%s219 + $0x2f2] sm:$0xff]
  %v408 = vld [vmem:[%s219 + $0x302] sm:$0xff]
  %v409 = vld [vmem:[%s219 + $0x30a] sm:$0xff]
  %v410 = vld [vmem:[%s219 + $0x31a] sm:$0xff]
  %v411 = vld [vmem:[%s219 + $0x322] sm:$0xff]
  %s412 = scalar_lea.vmem %s0, 48
  %v413 = vld [vmem:[%s412] sm:$0xff]
  %v414 = vld [vmem:[%s412 + $0x8] sm:$0xff]
  %v415 = vld [vmem:[%s412 + $0x18] sm:$0xff]
  %v416 = vld [vmem:[%s412 + $0x20] sm:$0xff]
  %v417 = vld [vmem:[%s412 + $0x30] sm:$0xff]
  %v418 = vld [vmem:[%s412 + $0x38] sm:$0xff]
  %v419 = vld [vmem:[%s412 + $0x48] sm:$0xff]
  %v420 = vld [vmem:[%s412 + $0x50] sm:$0xff]
  %v421 = vld [vmem:[%s412 + $0x60] sm:$0xff]
  %v422 = vld [vmem:[%s412 + $0x68] sm:$0xff]
  %v423 = vld [vmem:[%s412 + $0x78] sm:$0xff]
  %v424 = vld [vmem:[%s412 + $0x80] sm:$0xff]
  %v425 = vld [vmem:[%s412 + $0x90] sm:$0xff]
  %v426 = vld [vmem:[%s412 + $0x98] sm:$0xff]
  %v427 = vld [vmem:[%s412 + $0xa8] sm:$0xff]
  %v428 = vld [vmem:[%s412 + $0xb0] sm:$0xff]
  %v429 = vld [vmem:[%s412 + $0xc0] sm:$0xff]
  %v430 = vld [vmem:[%s412 + $0xc8] sm:$0xff]
  %v431 = vld [vmem:[%s412 + $0xd8] sm:$0xff]
  %v432 = vld [vmem:[%s412 + $0xe0] sm:$0xff]
  %v433 = vld [vmem:[%s412 + $0xf0] sm:$0xff]
  %v434 = vld [vmem:[%s412 + $0xf8] sm:$0xff]
  %v435 = vld [vmem:[%s412 + $0x108] sm:$0xff]
  %v436 = vld [vmem:[%s412 + $0x110] sm:$0xff]
  %v437 = vld [vmem:[%s412 + $0x120] sm:$0xff]
  %v438 = vld [vmem:[%s412 + $0x128] sm:$0xff]
  %v439 = vld [vmem:[%s412 + $0x138] sm:$0xff]
  %v440 = vld [vmem:[%s412 + $0x140] sm:$0xff]
  %v441 = vld [vmem:[%s412 + $0x150] sm:$0xff]
  %v442 = vld [vmem:[%s412 + $0x158] sm:$0xff]
  %v443 = vld [vmem:[%s412 + $0x168] sm:$0xff]
  %v444 = vld [vmem:[%s412 + $0x170] sm:$0xff]
  %v445 = vld [vmem:[%s412 + $0x1b0] sm:$0xff]
  %v446 = vld [vmem:[%s412 + $0x1b8] sm:$0xff]
  %v447 = vld [vmem:[%s412 + $0x1c8] sm:$0xff]
  %v448 = vld [vmem:[%s412 + $0x1d0] sm:$0xff]
  %v449 = vld [vmem:[%s412 + $0x1e0] sm:$0xff]
  %v450 = vld [vmem:[%s412 + $0x1e8] sm:$0xff]
  %v451 = vld [vmem:[%s412 + $0x1f8] sm:$0xff]
  %v452 = vld [vmem:[%s412 + $0x200] sm:$0xff]
  %v453 = vld [vmem:[%s412 + $0x210] sm:$0xff]
  %v454 = vld [vmem:[%s412 + $0x218] sm:$0xff]
  %v455 = vld [vmem:[%s412 + $0x228] sm:$0xff]
  %v456 = vld [vmem:[%s412 + $0x230] sm:$0xff]
  %v457 = vld [vmem:[%s412 + $0x240] sm:$0xff]
  %v458 = vld [vmem:[%s412 + $0x248] sm:$0xff]
  %v459 = vld [vmem:[%s412 + $0x258] sm:$0xff]
  %v460 = vld [vmem:[%s412 + $0x260] sm:$0xff]
  %v461 = vld [vmem:[%s412 + $0x270] sm:$0xff]
  %v462 = vld [vmem:[%s412 + $0x278] sm:$0xff]
  %v463 = vld [vmem:[%s412 + $0x288] sm:$0xff]
  %v464 = vld [vmem:[%s412 + $0x290] sm:$0xff]
  %v465 = vld [vmem:[%s412 + $0x2a0] sm:$0xff]
  %v466 = vld [vmem:[%s412 + $0x2a8] sm:$0xff]
  %v467 = vld [vmem:[%s412 + $0x2b8] sm:$0xff]
  %v468 = vld [vmem:[%s412 + $0x2c0] sm:$0xff]
  %v469 = vld [vmem:[%s412 + $0x2d0] sm:$0xff]
  %v470 = vld [vmem:[%s412 + $0x2d8] sm:$0xff]
  %v471 = vld [vmem:[%s412 + $0x2e8] sm:$0xff]
  %v472 = vld [vmem:[%s412 + $0x2f0] sm:$0xff]
  %v473 = vld [vmem:[%s412 + $0x300] sm:$0xff]
  %v474 = vld [vmem:[%s412 + $0x308] sm:$0xff]
  %v475 = vld [vmem:[%s412 + $0x318] sm:$0xff]
  %v476 = vld [vmem:[%s412 + $0x320] sm:$0xff]
  %v477 = vld [vmem:[%s412 + $0x1] sm:$0xff]
  %v478 = vld [vmem:[%s412 + $0x9] sm:$0xff]
  %v479 = vld [vmem:[%s412 + $0x19] sm:$0xff]
  %v480 = vld [vmem:[%s412 + $0x21] sm:$0xff]
  %v481 = vld [vmem:[%s412 + $0x31] sm:$0xff]
  %v482 = vld [vmem:[%s412 + $0x39] sm:$0xff]
  %v483 = vld [vmem:[%s412 + $0x49] sm:$0xff]
  %v484 = vld [vmem:[%s412 + $0x51] sm:$0xff]
  %v485 = vld [vmem:[%s412 + $0x61] sm:$0xff]
  %v486 = vld [vmem:[%s412 + $0x69] sm:$0xff]
  %v487 = vld [vmem:[%s412 + $0x79] sm:$0xff]
  %v488 = vld [vmem:[%s412 + $0x81] sm:$0xff]
  %v489 = vld [vmem:[%s412 + $0x91] sm:$0xff]
  %v490 = vld [vmem:[%s412 + $0x99] sm:$0xff]
  %v491 = vld [vmem:[%s412 + $0xa9] sm:$0xff]
  %v492 = vld [vmem:[%s412 + $0xb1] sm:$0xff]
  %v493 = vld [vmem:[%s412 + $0xc1] sm:$0xff]
  %v494 = vld [vmem:[%s412 + $0xc9] sm:$0xff]
  %v495 = vld [vmem:[%s412 + $0xd9] sm:$0xff]
  %v496 = vld [vmem:[%s412 + $0xe1] sm:$0xff]
  %v497 = vld [vmem:[%s412 + $0xf1] sm:$0xff]
  %v498 = vld [vmem:[%s412 + $0xf9] sm:$0xff]
  %v499 = vld [vmem:[%s412 + $0x109] sm:$0xff]
  %v500 = vld [vmem:[%s412 + $0x111] sm:$0xff]
  %v501 = vld [vmem:[%s412 + $0x121] sm:$0xff]
  %v502 = vld [vmem:[%s412 + $0x129] sm:$0xff]
  %v503 = vld [vmem:[%s412 + $0x139] sm:$0xff]
  %v504 = vld [vmem:[%s412 + $0x141] sm:$0xff]
  %v505 = vld [vmem:[%s412 + $0x151] sm:$0xff]
  %v506 = vld [vmem:[%s412 + $0x159] sm:$0xff]
  %v507 = vld [vmem:[%s412 + $0x169] sm:$0xff]
  %v508 = vld [vmem:[%s412 + $0x171] sm:$0xff]
  %v509 = vld [vmem:[%s412 + $0x1b1] sm:$0xff]
  %v510 = vld [vmem:[%s412 + $0x1b9] sm:$0xff]
  %v511 = vld [vmem:[%s412 + $0x1c9] sm:$0xff]
  %v512 = vld [vmem:[%s412 + $0x1d1] sm:$0xff]
  %v513 = vld [vmem:[%s412 + $0x1e1] sm:$0xff]
  %v514 = vld [vmem:[%s412 + $0x1e9] sm:$0xff]
  %v515 = vld [vmem:[%s412 + $0x1f9] sm:$0xff]
  %v516 = vld [vmem:[%s412 + $0x201] sm:$0xff]
  %v517 = vld [vmem:[%s412 + $0x211] sm:$0xff]
  %v518 = vld [vmem:[%s412 + $0x219] sm:$0xff]
  %v519 = vld [vmem:[%s412 + $0x229] sm:$0xff]
  %v520 = vld [vmem:[%s412 + $0x231] sm:$0xff]
  %v521 = vld [vmem:[%s412 + $0x241] sm:$0xff]
  %v522 = vld [vmem:[%s412 + $0x249] sm:$0xff]
  %v523 = vld [vmem:[%s412 + $0x259] sm:$0xff]
  %v524 = vld [vmem:[%s412 + $0x261] sm:$0xff]
  %v525 = vld [vmem:[%s412 + $0x271] sm:$0xff]
  %v526 = vld [vmem:[%s412 + $0x279] sm:$0xff]
  %v527 = vld [vmem:[%s412 + $0x289] sm:$0xff]
  %v528 = vld [vmem:[%s412 + $0x291] sm:$0xff]
  %v529 = vld [vmem:[%s412 + $0x2a1] sm:$0xff]
  %v530 = vld [vmem:[%s412 + $0x2a9] sm:$0xff]
  %v531 = vld [vmem:[%s412 + $0x2b9] sm:$0xff]
  %v532 = vld [vmem:[%s412 + $0x2c1] sm:$0xff]
  %v533 = vld [vmem:[%s412 + $0x2d1] sm:$0xff]
  %v534 = vld [vmem:[%s412 + $0x2d9] sm:$0xff]
  %v535 = vld [vmem:[%s412 + $0x2e9] sm:$0xff]
  %v536 = vld [vmem:[%s412 + $0x2f1] sm:$0xff]
  %v537 = vld [vmem:[%s412 + $0x301] sm:$0xff]
  %v538 = vld [vmem:[%s412 + $0x309] sm:$0xff]
  %v539 = vld [vmem:[%s412 + $0x319] sm:$0xff]
  %v540 = vld [vmem:[%s412 + $0x321] sm:$0xff]
  %v541 = vld [vmem:[%s412 + $0x2] sm:$0xff]
  %v542 = vld [vmem:[%s412 + $0xa] sm:$0xff]
  %v543 = vld [vmem:[%s412 + $0x1a] sm:$0xff]
  %v544 = vld [vmem:[%s412 + $0x22] sm:$0xff]
  %v545 = vld [vmem:[%s412 + $0x32] sm:$0xff]
  %v546 = vld [vmem:[%s412 + $0x3a] sm:$0xff]
  %v547 = vld [vmem:[%s412 + $0x4a] sm:$0xff]
  %v548 = vld [vmem:[%s412 + $0x52] sm:$0xff]
  %v549 = vld [vmem:[%s412 + $0x62] sm:$0xff]
  %v550 = vld [vmem:[%s412 + $0x6a] sm:$0xff]
  %v551 = vld [vmem:[%s412 + $0x7a] sm:$0xff]
  %v552 = vld [vmem:[%s412 + $0x82] sm:$0xff]
  %v553 = vld [vmem:[%s412 + $0x92] sm:$0xff]
  %v554 = vld [vmem:[%s412 + $0x9a] sm:$0xff]
  %v555 = vld [vmem:[%s412 + $0xaa] sm:$0xff]
  %v556 = vld [vmem:[%s412 + $0xb2] sm:$0xff]
  %v557 = vld [vmem:[%s412 + $0xc2] sm:$0xff]
  %v558 = vld [vmem:[%s412 + $0xca] sm:$0xff]
  %v559 = vld [vmem:[%s412 + $0xda] sm:$0xff]
  %v560 = vld [vmem:[%s412 + $0xe2] sm:$0xff]
  %v561 = vld [vmem:[%s412 + $0xf2] sm:$0xff]
  %v562 = vld [vmem:[%s412 + $0xfa] sm:$0xff]
  %v563 = vld [vmem:[%s412 + $0x10a] sm:$0xff]
  %v564 = vld [vmem:[%s412 + $0x112] sm:$0xff]
  %v565 = vld [vmem:[%s412 + $0x122] sm:$0xff]
  %v566 = vld [vmem:[%s412 + $0x12a] sm:$0xff]
  %v567 = vld [vmem:[%s412 + $0x13a] sm:$0xff]
  %v568 = vld [vmem:[%s412 + $0x142] sm:$0xff]
  %v569 = vld [vmem:[%s412 + $0x152] sm:$0xff]
  %v570 = vld [vmem:[%s412 + $0x15a] sm:$0xff]
  %v571 = vld [vmem:[%s412 + $0x16a] sm:$0xff]
  %v572 = vld [vmem:[%s412 + $0x172] sm:$0xff]
  %v573 = vld [vmem:[%s412 + $0x1b2] sm:$0xff]
  %v574 = vld [vmem:[%s412 + $0x1ba] sm:$0xff]
  %v575 = vld [vmem:[%s412 + $0x1ca] sm:$0xff]
  %v576 = vld [vmem:[%s412 + $0x1d2] sm:$0xff]
  %v577 = vld [vmem:[%s412 + $0x1e2] sm:$0xff]
  %v578 = vld [vmem:[%s412 + $0x1ea] sm:$0xff]
  %v579 = vld [vmem:[%s412 + $0x1fa] sm:$0xff]
  %v580 = vld [vmem:[%s412 + $0x202] sm:$0xff]
  %v581 = vld [vmem:[%s412 + $0x212] sm:$0xff]
  %v582 = vld [vmem:[%s412 + $0x21a] sm:$0xff]
  %v583 = vld [vmem:[%s412 + $0x22a] sm:$0xff]
  %v584 = vld [vmem:[%s412 + $0x232] sm:$0xff]
  %v585 = vld [vmem:[%s412 + $0x242] sm:$0xff]
  %v586 = vld [vmem:[%s412 + $0x24a] sm:$0xff]
  %v587 = vld [vmem:[%s412 + $0x25a] sm:$0xff]
  %v588 = vld [vmem:[%s412 + $0x262] sm:$0xff]
  %v589 = vld [vmem:[%s412 + $0x272] sm:$0xff]
  %v590 = vld [vmem:[%s412 + $0x27a] sm:$0xff]
  %v591 = vld [vmem:[%s412 + $0x28a] sm:$0xff]
  %v592 = vld [vmem:[%s412 + $0x292] sm:$0xff]
  %v593 = vld [vmem:[%s412 + $0x2a2] sm:$0xff]
  %v594 = vld [vmem:[%s412 + $0x2aa] sm:$0xff]
  %v595 = vld [vmem:[%s412 + $0x2ba] sm:$0xff]
  %v596 = vld [vmem:[%s412 + $0x2c2] sm:$0xff]
  %v597 = vld [vmem:[%s412 + $0x2d2] sm:$0xff]
  %v598 = vld [vmem:[%s412 + $0x2da] sm:$0xff]
  %v599 = vld [vmem:[%s412 + $0x2ea] sm:$0xff]
  %v600 = vld [vmem:[%s412 + $0x2f2] sm:$0xff]
  %v601 = vld [vmem:[%s412 + $0x302] sm:$0xff]
  %v602 = vld [vmem:[%s412 + $0x30a] sm:$0xff]
  %v603 = vld [vmem:[%s412 + $0x31a] sm:$0xff]
  %v604 = vld [vmem:[%s412 + $0x322] sm:$0xff]
  %669 = vrot.lane.b32.xlu0 %v91, 4
  %v670 = vpop.permute.xlu0 %669
  %671 = vrot.lane.b32.xlu0 %v92, 4
  %v672 = vpop.permute.xlu0 %671
  %673 = vrot.lane.b32.xlu0 %v93, 4
  %v674 = vpop.permute.xlu0 %673
  %675 = vrot.lane.b32.xlu0 %v94, 4
  %v676 = vpop.permute.xlu0 %675
  %677 = vrot.lane.b32.xlu0 %v95, 4
  %v678 = vpop.permute.xlu0 %677
  %679 = vrot.lane.b32.xlu0 %v96, 4
  %v680 = vpop.permute.xlu0 %679
  %681 = vrot.lane.b32.xlu0 %v97, 4
  %v682 = vpop.permute.xlu0 %681
  %683 = vrot.lane.b32.xlu0 %v98, 4
  %v684 = vpop.permute.xlu0 %683
  %685 = vrot.lane.b32.xlu0 %v99, 4
  %v686 = vpop.permute.xlu0 %685
  %687 = vrot.lane.b32.xlu0 %v100, 4
  %v688 = vpop.permute.xlu0 %687
  %689 = vrot.lane.b32.xlu0 %v101, 4
  %v690 = vpop.permute.xlu0 %689
  %691 = vrot.lane.b32.xlu0 %v102, 4
  %v692 = vpop.permute.xlu0 %691
  %693 = vrot.lane.b32.xlu0 %v103, 4
  %v694 = vpop.permute.xlu0 %693
  %695 = vrot.lane.b32.xlu0 %v104, 4
  %v696 = vpop.permute.xlu0 %695
  %697 = vrot.lane.b32.xlu0 %v105, 4
  %v698 = vpop.permute.xlu0 %697
  %699 = vrot.lane.b32.xlu0 %v106, 4
  %v700 = vpop.permute.xlu0 %699
  %701 = vrot.lane.b32.xlu0 %v107, 4
  %v702 = vpop.permute.xlu0 %701
  %703 = vrot.lane.b32.xlu0 %v108, 4
  %v704 = vpop.permute.xlu0 %703
  %705 = vrot.lane.b32.xlu0 %v109, 4
  %v706 = vpop.permute.xlu0 %705
  %707 = vrot.lane.b32.xlu0 %v110, 4
  %v708 = vpop.permute.xlu0 %707
  %709 = vrot.lane.b32.xlu0 %v111, 4
  %v710 = vpop.permute.xlu0 %709
  %711 = vrot.lane.b32.xlu0 %v112, 4
  %v712 = vpop.permute.xlu0 %711
  %713 = vrot.lane.b32.xlu0 %v113, 4
  %v714 = vpop.permute.xlu0 %713
  %715 = vrot.lane.b32.xlu0 %v114, 4
  %v716 = vpop.permute.xlu0 %715
  %717 = vrot.lane.b32.xlu0 %v115, 4
  %v718 = vpop.permute.xlu0 %717
  %719 = vrot.lane.b32.xlu0 %v116, 4
  %v720 = vpop.permute.xlu0 %719
  %721 = vrot.lane.b32.xlu0 %v117, 4
  %v722 = vpop.permute.xlu0 %721
  %723 = vrot.lane.b32.xlu0 %v118, 4
  %v724 = vpop.permute.xlu0 %723
  %725 = vrot.lane.b32.xlu0 %v119, 4
  %v726 = vpop.permute.xlu0 %725
  %727 = vrot.lane.b32.xlu0 %v120, 4
  %v728 = vpop.permute.xlu0 %727
  %729 = vrot.lane.b32.xlu0 %v121, 4
  %v730 = vpop.permute.xlu0 %729
  %731 = vrot.lane.b32.xlu0 %v122, 4
  %v732 = vpop.permute.xlu0 %731
  %733 = vrot.lane.b32.xlu0 %v123, 4
  %v734 = vpop.permute.xlu0 %733
  %735 = vrot.lane.b32.xlu0 %v124, 4
  %v736 = vpop.permute.xlu0 %735
  %737 = vrot.lane.b32.xlu0 %v125, 4
  %v738 = vpop.permute.xlu0 %737
  %739 = vrot.lane.b32.xlu0 %v126, 4
  %v740 = vpop.permute.xlu0 %739
  %741 = vrot.lane.b32.xlu0 %v127, 4
  %v742 = vpop.permute.xlu0 %741
  %743 = vrot.lane.b32.xlu0 %v128, 4
  %v744 = vpop.permute.xlu0 %743
  %745 = vrot.lane.b32.xlu0 %v129, 4
  %v746 = vpop.permute.xlu0 %745
  %747 = vrot.lane.b32.xlu0 %v130, 4
  %v748 = vpop.permute.xlu0 %747
  %749 = vrot.lane.b32.xlu0 %v131, 4
  %v750 = vpop.permute.xlu0 %749
  %751 = vrot.lane.b32.xlu0 %v132, 4
  %v752 = vpop.permute.xlu0 %751
  %753 = vrot.lane.b32.xlu0 %v133, 4
  %v754 = vpop.permute.xlu0 %753
  %755 = vrot.lane.b32.xlu0 %v134, 4
  %v756 = vpop.permute.xlu0 %755
  %757 = vrot.lane.b32.xlu0 %v135, 4
  %v758 = vpop.permute.xlu0 %757
  %759 = vrot.lane.b32.xlu0 %v136, 4
  %v760 = vpop.permute.xlu0 %759
  %761 = vrot.lane.b32.xlu0 %v137, 4
  %v762 = vpop.permute.xlu0 %761
  %763 = vrot.lane.b32.xlu0 %v138, 4
  %v764 = vpop.permute.xlu0 %763
  %765 = vrot.lane.b32.xlu0 %v139, 4
  %v766 = vpop.permute.xlu0 %765
  %767 = vrot.lane.b32.xlu0 %v140, 4
  %v768 = vpop.permute.xlu0 %767
  %769 = vrot.lane.b32.xlu0 %v141, 4
  %v770 = vpop.permute.xlu0 %769
  %771 = vrot.lane.b32.xlu0 %v142, 4
  %v772 = vpop.permute.xlu0 %771
  %773 = vrot.lane.b32.xlu0 %v143, 4
  %v774 = vpop.permute.xlu0 %773
  %775 = vrot.lane.b32.xlu0 %v144, 4
  %v776 = vpop.permute.xlu0 %775
  %777 = vrot.lane.b32.xlu0 %v145, 4
  %v778 = vpop.permute.xlu0 %777
  %779 = vrot.lane.b32.xlu0 %v146, 4
  %v780 = vpop.permute.xlu0 %779
  %781 = vrot.lane.b32.xlu0 %v147, 4
  %v782 = vpop.permute.xlu0 %781
  %783 = vrot.lane.b32.xlu0 %v148, 4
  %v784 = vpop.permute.xlu0 %783
  %785 = vrot.lane.b32.xlu0 %v149, 4
  %v786 = vpop.permute.xlu0 %785
  %787 = vrot.lane.b32.xlu0 %v150, 4
  %v788 = vpop.permute.xlu0 %787
  %789 = vrot.lane.b32.xlu0 %v151, 4
  %v790 = vpop.permute.xlu0 %789
  %791 = vrot.lane.b32.xlu0 %v152, 4
  %v792 = vpop.permute.xlu0 %791
  %793 = vrot.lane.b32.xlu0 %v153, 4
  %v794 = vpop.permute.xlu0 %793
  %795 = vrot.lane.b32.xlu0 %v154, 4
  %v796 = vpop.permute.xlu0 %795
  %925 = vrot.lane.b32.xlu0 %v155, 8
  %v926 = vpop.permute.xlu0 %925
  %927 = vrot.lane.b32.xlu0 %v156, 8
  %v928 = vpop.permute.xlu0 %927
  %929 = vrot.lane.b32.xlu0 %v157, 8
  %v930 = vpop.permute.xlu0 %929
  %931 = vrot.lane.b32.xlu0 %v158, 8
  %v932 = vpop.permute.xlu0 %931
  %933 = vrot.lane.b32.xlu0 %v159, 8
  %v934 = vpop.permute.xlu0 %933
  %935 = vrot.lane.b32.xlu0 %v160, 8
  %v936 = vpop.permute.xlu0 %935
  %937 = vrot.lane.b32.xlu0 %v161, 8
  %v938 = vpop.permute.xlu0 %937
  %939 = vrot.lane.b32.xlu0 %v162, 8
  %v940 = vpop.permute.xlu0 %939
  %941 = vrot.lane.b32.xlu0 %v163, 8
  %v942 = vpop.permute.xlu0 %941
  %943 = vrot.lane.b32.xlu0 %v164, 8
  %v944 = vpop.permute.xlu0 %943
  %945 = vrot.lane.b32.xlu0 %v165, 8
  %v946 = vpop.permute.xlu0 %945
  %947 = vrot.lane.b32.xlu0 %v166, 8
  %v948 = vpop.permute.xlu0 %947
  %949 = vrot.lane.b32.xlu0 %v167, 8
  %v950 = vpop.permute.xlu0 %949
  %951 = vrot.lane.b32.xlu0 %v168, 8
  %v952 = vpop.permute.xlu0 %951
  %953 = vrot.lane.b32.xlu0 %v169, 8
  %v954 = vpop.permute.xlu0 %953
  %955 = vrot.lane.b32.xlu0 %v170, 8
  %v956 = vpop.permute.xlu0 %955
  %957 = vrot.lane.b32.xlu0 %v171, 8
  %v958 = vpop.permute.xlu0 %957
  %959 = vrot.lane.b32.xlu0 %v172, 8
  %v960 = vpop.permute.xlu0 %959
  %961 = vrot.lane.b32.xlu0 %v173, 8
  %v962 = vpop.permute.xlu0 %961
  %963 = vrot.lane.b32.xlu0 %v174, 8
  %v964 = vpop.permute.xlu0 %963
  %965 = vrot.lane.b32.xlu0 %v175, 8
  %v966 = vpop.permute.xlu0 %965
  %967 = vrot.lane.b32.xlu0 %v176, 8
  %v968 = vpop.permute.xlu0 %967
  %969 = vrot.lane.b32.xlu0 %v177, 8
  %v970 = vpop.permute.xlu0 %969
  %971 = vrot.lane.b32.xlu0 %v178, 8
  %v972 = vpop.permute.xlu0 %971
  %973 = vrot.lane.b32.xlu0 %v179, 8
  %v974 = vpop.permute.xlu0 %973
  %975 = vrot.lane.b32.xlu0 %v180, 8
  %v976 = vpop.permute.xlu0 %975
  %977 = vrot.lane.b32.xlu0 %v181, 8
  %v978 = vpop.permute.xlu0 %977
  %979 = vrot.lane.b32.xlu0 %v182, 8
  %v980 = vpop.permute.xlu0 %979
  %981 = vrot.lane.b32.xlu0 %v183, 8
  %v982 = vpop.permute.xlu0 %981
  %983 = vrot.lane.b32.xlu0 %v184, 8
  %v984 = vpop.permute.xlu0 %983
  %985 = vrot.lane.b32.xlu0 %v185, 8
  %v986 = vpop.permute.xlu0 %985
  %987 = vrot.lane.b32.xlu0 %v186, 8
  %v988 = vpop.permute.xlu0 %987
  %989 = vrot.lane.b32.xlu0 %v187, 8
  %v990 = vpop.permute.xlu0 %989
  %991 = vrot.lane.b32.xlu0 %v188, 8
  %v992 = vpop.permute.xlu0 %991
  %993 = vrot.lane.b32.xlu0 %v189, 8
  %v994 = vpop.permute.xlu0 %993
  %995 = vrot.lane.b32.xlu0 %v190, 8
  %v996 = vpop.permute.xlu0 %995
  %997 = vrot.lane.b32.xlu0 %v191, 8
  %v998 = vpop.permute.xlu0 %997
  %999 = vrot.lane.b32.xlu0 %v192, 8
  %v1000 = vpop.permute.xlu0 %999
  %1001 = vrot.lane.b32.xlu0 %v193, 8
  %v1002 = vpop.permute.xlu0 %1001
  %1003 = vrot.lane.b32.xlu0 %v194, 8
  %v1004 = vpop.permute.xlu0 %1003
  %1005 = vrot.lane.b32.xlu0 %v195, 8
  %v1006 = vpop.permute.xlu0 %1005
  %1007 = vrot.lane.b32.xlu0 %v196, 8
  %v1008 = vpop.permute.xlu0 %1007
  %1009 = vrot.lane.b32.xlu0 %v197, 8
  %v1010 = vpop.permute.xlu0 %1009
  %1011 = vrot.lane.b32.xlu0 %v198, 8
  %v1012 = vpop.permute.xlu0 %1011
  %1013 = vrot.lane.b32.xlu0 %v199, 8
  %v1014 = vpop.permute.xlu0 %1013
  %1015 = vrot.lane.b32.xlu0 %v200, 8
  %v1016 = vpop.permute.xlu0 %1015
  %1017 = vrot.lane.b32.xlu0 %v201, 8
  %v1018 = vpop.permute.xlu0 %1017
  %1019 = vrot.lane.b32.xlu0 %v202, 8
  %v1020 = vpop.permute.xlu0 %1019
  %1021 = vrot.lane.b32.xlu0 %v203, 8
  %v1022 = vpop.permute.xlu0 %1021
  %1023 = vrot.lane.b32.xlu0 %v204, 8
  %v1024 = vpop.permute.xlu0 %1023
  %1025 = vrot.lane.b32.xlu0 %v205, 8
  %v1026 = vpop.permute.xlu0 %1025
  %1027 = vrot.lane.b32.xlu0 %v206, 8
  %v1028 = vpop.permute.xlu0 %1027
  %1029 = vrot.lane.b32.xlu0 %v207, 8
  %v1030 = vpop.permute.xlu0 %1029
  %1031 = vrot.lane.b32.xlu0 %v208, 8
  %v1032 = vpop.permute.xlu0 %1031
  %1033 = vrot.lane.b32.xlu0 %v209, 8
  %v1034 = vpop.permute.xlu0 %1033
  %1035 = vrot.lane.b32.xlu0 %v210, 8
  %v1036 = vpop.permute.xlu0 %1035
  %1037 = vrot.lane.b32.xlu0 %v211, 8
  %v1038 = vpop.permute.xlu0 %1037
  %1039 = vrot.lane.b32.xlu0 %v212, 8
  %v1040 = vpop.permute.xlu0 %1039
  %1041 = vrot.lane.b32.xlu0 %v213, 8
  %v1042 = vpop.permute.xlu0 %1041
  %1043 = vrot.lane.b32.xlu0 %v214, 8
  %v1044 = vpop.permute.xlu0 %1043
  %1045 = vrot.lane.b32.xlu0 %v215, 8
  %v1046 = vpop.permute.xlu0 %1045
  %1047 = vrot.lane.b32.xlu0 %v216, 8
  %v1048 = vpop.permute.xlu0 %1047
  %1049 = vrot.lane.b32.xlu0 %v217, 8
  %v1050 = vpop.permute.xlu0 %1049
  %1051 = vrot.lane.b32.xlu0 %v218, 8
  %v1052 = vpop.permute.xlu0 %1051
  %1181 = vrot.lane.b32.xlu0 %v220, 12
  %v1182 = vpop.permute.xlu0 %1181
  %1183 = vrot.lane.b32.xlu0 %v221, 12
  %v1184 = vpop.permute.xlu0 %1183
  %1185 = vrot.lane.b32.xlu0 %v222, 12
  %v1186 = vpop.permute.xlu0 %1185
  %1187 = vrot.lane.b32.xlu0 %v223, 12
  %v1188 = vpop.permute.xlu0 %1187
  %1189 = vrot.lane.b32.xlu0 %v224, 12
  %v1190 = vpop.permute.xlu0 %1189
  %1191 = vrot.lane.b32.xlu0 %v225, 12
  %v1192 = vpop.permute.xlu0 %1191
  %1193 = vrot.lane.b32.xlu0 %v226, 12
  %v1194 = vpop.permute.xlu0 %1193
  %1195 = vrot.lane.b32.xlu0 %v227, 12
  %v1196 = vpop.permute.xlu0 %1195
  %1197 = vrot.lane.b32.xlu0 %v228, 12
  %v1198 = vpop.permute.xlu0 %1197
  %1199 = vrot.lane.b32.xlu0 %v229, 12
  %v1200 = vpop.permute.xlu0 %1199
  %1201 = vrot.lane.b32.xlu0 %v230, 12
  %v1202 = vpop.permute.xlu0 %1201
  %1203 = vrot.lane.b32.xlu0 %v231, 12
  %v1204 = vpop.permute.xlu0 %1203
  %1205 = vrot.lane.b32.xlu0 %v232, 12
  %v1206 = vpop.permute.xlu0 %1205
  %1207 = vrot.lane.b32.xlu0 %v233, 12
  %v1208 = vpop.permute.xlu0 %1207
  %1209 = vrot.lane.b32.xlu0 %v234, 12
  %v1210 = vpop.permute.xlu0 %1209
  %1211 = vrot.lane.b32.xlu0 %v235, 12
  %v1212 = vpop.permute.xlu0 %1211
  %1213 = vrot.lane.b32.xlu0 %v236, 12
  %v1214 = vpop.permute.xlu0 %1213
  %1215 = vrot.lane.b32.xlu0 %v237, 12
  %v1216 = vpop.permute.xlu0 %1215
  %1217 = vrot.lane.b32.xlu0 %v238, 12
  %v1218 = vpop.permute.xlu0 %1217
  %1219 = vrot.lane.b32.xlu0 %v239, 12
  %v1220 = vpop.permute.xlu0 %1219
  %1221 = vrot.lane.b32.xlu0 %v240, 12
  %v1222 = vpop.permute.xlu0 %1221
  %1223 = vrot.lane.b32.xlu0 %v241, 12
  %v1224 = vpop.permute.xlu0 %1223
  %1225 = vrot.lane.b32.xlu0 %v242, 12
  %v1226 = vpop.permute.xlu0 %1225
  %1227 = vrot.lane.b32.xlu0 %v243, 12
  %v1228 = vpop.permute.xlu0 %1227
  %1229 = vrot.lane.b32.xlu0 %v244, 12
  %v1230 = vpop.permute.xlu0 %1229
  %1231 = vrot.lane.b32.xlu0 %v245, 12
  %v1232 = vpop.permute.xlu0 %1231
  %1233 = vrot.lane.b32.xlu0 %v246, 12
  %v1234 = vpop.permute.xlu0 %1233
  %1235 = vrot.lane.b32.xlu0 %v247, 12
  %v1236 = vpop.permute.xlu0 %1235
  %1237 = vrot.lane.b32.xlu0 %v248, 12
  %v1238 = vpop.permute.xlu0 %1237
  %1239 = vrot.lane.b32.xlu0 %v249, 12
  %v1240 = vpop.permute.xlu0 %1239
  %1241 = vrot.lane.b32.xlu0 %v250, 12
  %v1242 = vpop.permute.xlu0 %1241
  %1243 = vrot.lane.b32.xlu0 %v251, 12
  %v1244 = vpop.permute.xlu0 %1243
  %1245 = vrot.lane.b32.xlu0 %v252, 12
  %v1246 = vpop.permute.xlu0 %1245
  %1247 = vrot.lane.b32.xlu0 %v253, 12
  %v1248 = vpop.permute.xlu0 %1247
  %1249 = vrot.lane.b32.xlu0 %v254, 12
  %v1250 = vpop.permute.xlu0 %1249
  %1251 = vrot.lane.b32.xlu0 %v255, 12
  %v1252 = vpop.permute.xlu0 %1251
  %1253 = vrot.lane.b32.xlu0 %v256, 12
  %v1254 = vpop.permute.xlu0 %1253
  %1255 = vrot.lane.b32.xlu0 %v257, 12
  %v1256 = vpop.permute.xlu0 %1255
  %1257 = vrot.lane.b32.xlu0 %v258, 12
  %v1258 = vpop.permute.xlu0 %1257
  %1259 = vrot.lane.b32.xlu0 %v259, 12
  %v1260 = vpop.permute.xlu0 %1259
  %1261 = vrot.lane.b32.xlu0 %v260, 12
  %v1262 = vpop.permute.xlu0 %1261
  %1263 = vrot.lane.b32.xlu0 %v261, 12
  %v1264 = vpop.permute.xlu0 %1263
  %1265 = vrot.lane.b32.xlu0 %v262, 12
  %v1266 = vpop.permute.xlu0 %1265
  %1267 = vrot.lane.b32.xlu0 %v263, 12
  %v1268 = vpop.permute.xlu0 %1267
  %1269 = vrot.lane.b32.xlu0 %v264, 12
  %v1270 = vpop.permute.xlu0 %1269
  %1271 = vrot.lane.b32.xlu0 %v265, 12
  %v1272 = vpop.permute.xlu0 %1271
  %1273 = vrot.lane.b32.xlu0 %v266, 12
  %v1274 = vpop.permute.xlu0 %1273
  %1275 = vrot.lane.b32.xlu0 %v267, 12
  %v1276 = vpop.permute.xlu0 %1275
  %1277 = vrot.lane.b32.xlu0 %v268, 12
  %v1278 = vpop.permute.xlu0 %1277
  %1279 = vrot.lane.b32.xlu0 %v269, 12
  %v1280 = vpop.permute.xlu0 %1279
  %1281 = vrot.lane.b32.xlu0 %v270, 12
  %v1282 = vpop.permute.xlu0 %1281
  %1283 = vrot.lane.b32.xlu0 %v271, 12
  %v1284 = vpop.permute.xlu0 %1283
  %1285 = vrot.lane.b32.xlu0 %v272, 12
  %v1286 = vpop.permute.xlu0 %1285
  %1287 = vrot.lane.b32.xlu0 %v273, 12
  %v1288 = vpop.permute.xlu0 %1287
  %1289 = vrot.lane.b32.xlu0 %v274, 12
  %v1290 = vpop.permute.xlu0 %1289
  %1291 = vrot.lane.b32.xlu0 %v275, 12
  %v1292 = vpop.permute.xlu0 %1291
  %1293 = vrot.lane.b32.xlu0 %v276, 12
  %v1294 = vpop.permute.xlu0 %1293
  %1295 = vrot.lane.b32.xlu0 %v277, 12
  %v1296 = vpop.permute.xlu0 %1295
  %1297 = vrot.lane.b32.xlu0 %v278, 12
  %v1298 = vpop.permute.xlu0 %1297
  %1299 = vrot.lane.b32.xlu0 %v279, 12
  %v1300 = vpop.permute.xlu0 %1299
  %1301 = vrot.lane.b32.xlu0 %v280, 12
  %v1302 = vpop.permute.xlu0 %1301
  %1303 = vrot.lane.b32.xlu0 %v281, 12
  %v1304 = vpop.permute.xlu0 %1303
  %1305 = vrot.lane.b32.xlu0 %v282, 12
  %v1306 = vpop.permute.xlu0 %1305
  %1307 = vrot.lane.b32.xlu0 %v283, 12
  %v1308 = vpop.permute.xlu0 %1307
  %1437 = vrot.lane.b32.xlu0 %v284, 16
  %v1438 = vpop.permute.xlu0 %1437
  %1439 = vrot.lane.b32.xlu0 %v285, 16
  %v1440 = vpop.permute.xlu0 %1439
  %1441 = vrot.lane.b32.xlu0 %v286, 16
  %v1442 = vpop.permute.xlu0 %1441
  %1443 = vrot.lane.b32.xlu0 %v287, 16
  %v1444 = vpop.permute.xlu0 %1443
  %1445 = vrot.lane.b32.xlu0 %v288, 16
  %v1446 = vpop.permute.xlu0 %1445
  %1447 = vrot.lane.b32.xlu0 %v289, 16
  %v1448 = vpop.permute.xlu0 %1447
  %1449 = vrot.lane.b32.xlu0 %v290, 16
  %v1450 = vpop.permute.xlu0 %1449
  %1451 = vrot.lane.b32.xlu0 %v291, 16
  %v1452 = vpop.permute.xlu0 %1451
  %1453 = vrot.lane.b32.xlu0 %v292, 16
  %v1454 = vpop.permute.xlu0 %1453
  %1455 = vrot.lane.b32.xlu0 %v293, 16
  %v1456 = vpop.permute.xlu0 %1455
  %1457 = vrot.lane.b32.xlu0 %v294, 16
  %v1458 = vpop.permute.xlu0 %1457
  %1459 = vrot.lane.b32.xlu0 %v295, 16
  %v1460 = vpop.permute.xlu0 %1459
  %1461 = vrot.lane.b32.xlu0 %v296, 16
  %v1462 = vpop.permute.xlu0 %1461
  %1463 = vrot.lane.b32.xlu0 %v297, 16
  %v1464 = vpop.permute.xlu0 %1463
  %1465 = vrot.lane.b32.xlu0 %v298, 16
  %v1466 = vpop.permute.xlu0 %1465
  %1467 = vrot.lane.b32.xlu0 %v299, 16
  %v1468 = vpop.permute.xlu0 %1467
  %1469 = vrot.lane.b32.xlu0 %v300, 16
  %v1470 = vpop.permute.xlu0 %1469
  %1471 = vrot.lane.b32.xlu0 %v301, 16
  %v1472 = vpop.permute.xlu0 %1471
  %1473 = vrot.lane.b32.xlu0 %v302, 16
  %v1474 = vpop.permute.xlu0 %1473
  %1475 = vrot.lane.b32.xlu0 %v303, 16
  %v1476 = vpop.permute.xlu0 %1475
  %1477 = vrot.lane.b32.xlu0 %v304, 16
  %v1478 = vpop.permute.xlu0 %1477
  %1479 = vrot.lane.b32.xlu0 %v305, 16
  %v1480 = vpop.permute.xlu0 %1479
  %1481 = vrot.lane.b32.xlu0 %v306, 16
  %v1482 = vpop.permute.xlu0 %1481
  %1483 = vrot.lane.b32.xlu0 %v307, 16
  %v1484 = vpop.permute.xlu0 %1483
  %1485 = vrot.lane.b32.xlu0 %v308, 16
  %v1486 = vpop.permute.xlu0 %1485
  %1487 = vrot.lane.b32.xlu0 %v309, 16
  %v1488 = vpop.permute.xlu0 %1487
  %1489 = vrot.lane.b32.xlu0 %v310, 16
  %v1490 = vpop.permute.xlu0 %1489
  %1491 = vrot.lane.b32.xlu0 %v311, 16
  %v1492 = vpop.permute.xlu0 %1491
  %1493 = vrot.lane.b32.xlu0 %v312, 16
  %v1494 = vpop.permute.xlu0 %1493
  %1495 = vrot.lane.b32.xlu0 %v313, 16
  %v1496 = vpop.permute.xlu0 %1495
  %1497 = vrot.lane.b32.xlu0 %v314, 16
  %v1498 = vpop.permute.xlu0 %1497
  %1499 = vrot.lane.b32.xlu0 %v315, 16
  %v1500 = vpop.permute.xlu0 %1499
  %1501 = vrot.lane.b32.xlu0 %v316, 16
  %v1502 = vpop.permute.xlu0 %1501
  %1503 = vrot.lane.b32.xlu0 %v317, 16
  %v1504 = vpop.permute.xlu0 %1503
  %1505 = vrot.lane.b32.xlu0 %v318, 16
  %v1506 = vpop.permute.xlu0 %1505
  %1507 = vrot.lane.b32.xlu0 %v319, 16
  %v1508 = vpop.permute.xlu0 %1507
  %1509 = vrot.lane.b32.xlu0 %v320, 16
  %v1510 = vpop.permute.xlu0 %1509
  %1511 = vrot.lane.b32.xlu0 %v321, 16
  %v1512 = vpop.permute.xlu0 %1511
  %1513 = vrot.lane.b32.xlu0 %v322, 16
  %v1514 = vpop.permute.xlu0 %1513
  %1515 = vrot.lane.b32.xlu0 %v323, 16
  %v1516 = vpop.permute.xlu0 %1515
  %1517 = vrot.lane.b32.xlu0 %v324, 16
  %v1518 = vpop.permute.xlu0 %1517
  %1519 = vrot.lane.b32.xlu0 %v325, 16
  %v1520 = vpop.permute.xlu0 %1519
  %1521 = vrot.lane.b32.xlu0 %v326, 16
  %v1522 = vpop.permute.xlu0 %1521
  %1523 = vrot.lane.b32.xlu0 %v327, 16
  %v1524 = vpop.permute.xlu0 %1523
  %1525 = vrot.lane.b32.xlu0 %v328, 16
  %v1526 = vpop.permute.xlu0 %1525
  %1527 = vrot.lane.b32.xlu0 %v329, 16
  %v1528 = vpop.permute.xlu0 %1527
  %1529 = vrot.lane.b32.xlu0 %v330, 16
  %v1530 = vpop.permute.xlu0 %1529
  %1531 = vrot.lane.b32.xlu0 %v331, 16
  %v1532 = vpop.permute.xlu0 %1531
  %1533 = vrot.lane.b32.xlu0 %v332, 16
  %v1534 = vpop.permute.xlu0 %1533
  %1535 = vrot.lane.b32.xlu0 %v333, 16
  %v1536 = vpop.permute.xlu0 %1535
  %1537 = vrot.lane.b32.xlu0 %v334, 16
  %v1538 = vpop.permute.xlu0 %1537
  %1539 = vrot.lane.b32.xlu0 %v335, 16
  %v1540 = vpop.permute.xlu0 %1539
  %1541 = vrot.lane.b32.xlu0 %v336, 16
  %v1542 = vpop.permute.xlu0 %1541
  %1543 = vrot.lane.b32.xlu0 %v337, 16
  %v1544 = vpop.permute.xlu0 %1543
  %1545 = vrot.lane.b32.xlu0 %v338, 16
  %v1546 = vpop.permute.xlu0 %1545
  %1547 = vrot.lane.b32.xlu0 %v339, 16
  %v1548 = vpop.permute.xlu0 %1547
  %1549 = vrot.lane.b32.xlu0 %v340, 16
  %v1550 = vpop.permute.xlu0 %1549
  %1551 = vrot.lane.b32.xlu0 %v341, 16
  %v1552 = vpop.permute.xlu0 %1551
  %1553 = vrot.lane.b32.xlu0 %v342, 16
  %v1554 = vpop.permute.xlu0 %1553
  %1555 = vrot.lane.b32.xlu0 %v343, 16
  %v1556 = vpop.permute.xlu0 %1555
  %1557 = vrot.lane.b32.xlu0 %v344, 16
  %v1558 = vpop.permute.xlu0 %1557
  %1559 = vrot.lane.b32.xlu0 %v345, 16
  %v1560 = vpop.permute.xlu0 %1559
  %1561 = vrot.lane.b32.xlu0 %v346, 16
  %v1562 = vpop.permute.xlu0 %1561
  %1563 = vrot.lane.b32.xlu0 %v347, 16
  %v1564 = vpop.permute.xlu0 %1563
  %1693 = vrot.lane.b32.xlu0 %v348, 20
  %v1694 = vpop.permute.xlu0 %1693
  %1695 = vrot.lane.b32.xlu0 %v349, 20
  %v1696 = vpop.permute.xlu0 %1695
  %1697 = vrot.lane.b32.xlu0 %v350, 20
  %v1698 = vpop.permute.xlu0 %1697
  %1699 = vrot.lane.b32.xlu0 %v351, 20
  %v1700 = vpop.permute.xlu0 %1699
  %1701 = vrot.lane.b32.xlu0 %v352, 20
  %v1702 = vpop.permute.xlu0 %1701
  %1703 = vrot.lane.b32.xlu0 %v353, 20
  %v1704 = vpop.permute.xlu0 %1703
  %1705 = vrot.lane.b32.xlu0 %v354, 20
  %v1706 = vpop.permute.xlu0 %1705
  %1707 = vrot.lane.b32.xlu0 %v355, 20
  %v1708 = vpop.permute.xlu0 %1707
  %1709 = vrot.lane.b32.xlu0 %v356, 20
  %v1710 = vpop.permute.xlu0 %1709
  %1711 = vrot.lane.b32.xlu0 %v357, 20
  %v1712 = vpop.permute.xlu0 %1711
  %1713 = vrot.lane.b32.xlu0 %v358, 20
  %v1714 = vpop.permute.xlu0 %1713
  %1715 = vrot.lane.b32.xlu0 %v359, 20
  %v1716 = vpop.permute.xlu0 %1715
  %1717 = vrot.lane.b32.xlu0 %v360, 20
  %v1718 = vpop.permute.xlu0 %1717
  %1719 = vrot.lane.b32.xlu0 %v361, 20
  %v1720 = vpop.permute.xlu0 %1719
  %1721 = vrot.lane.b32.xlu0 %v362, 20
  %v1722 = vpop.permute.xlu0 %1721
  %1723 = vrot.lane.b32.xlu0 %v363, 20
  %v1724 = vpop.permute.xlu0 %1723
  %1725 = vrot.lane.b32.xlu0 %v364, 20
  %v1726 = vpop.permute.xlu0 %1725
  %1727 = vrot.lane.b32.xlu0 %v365, 20
  %v1728 = vpop.permute.xlu0 %1727
  %1729 = vrot.lane.b32.xlu0 %v366, 20
  %v1730 = vpop.permute.xlu0 %1729
  %1731 = vrot.lane.b32.xlu0 %v367, 20
  %v1732 = vpop.permute.xlu0 %1731
  %1733 = vrot.lane.b32.xlu0 %v368, 20
  %v1734 = vpop.permute.xlu0 %1733
  %1735 = vrot.lane.b32.xlu0 %v369, 20
  %v1736 = vpop.permute.xlu0 %1735
  %1737 = vrot.lane.b32.xlu0 %v370, 20
  %v1738 = vpop.permute.xlu0 %1737
  %1739 = vrot.lane.b32.xlu0 %v371, 20
  %v1740 = vpop.permute.xlu0 %1739
  %1741 = vrot.lane.b32.xlu0 %v372, 20
  %v1742 = vpop.permute.xlu0 %1741
  %1743 = vrot.lane.b32.xlu0 %v373, 20
  %v1744 = vpop.permute.xlu0 %1743
  %1745 = vrot.lane.b32.xlu0 %v374, 20
  %v1746 = vpop.permute.xlu0 %1745
  %1747 = vrot.lane.b32.xlu0 %v375, 20
  %v1748 = vpop.permute.xlu0 %1747
  %1749 = vrot.lane.b32.xlu0 %v376, 20
  %v1750 = vpop.permute.xlu0 %1749
  %1751 = vrot.lane.b32.xlu0 %v377, 20
  %v1752 = vpop.permute.xlu0 %1751
  %1753 = vrot.lane.b32.xlu0 %v378, 20
  %v1754 = vpop.permute.xlu0 %1753
  %1755 = vrot.lane.b32.xlu0 %v379, 20
  %v1756 = vpop.permute.xlu0 %1755
  %1757 = vrot.lane.b32.xlu0 %v380, 20
  %v1758 = vpop.permute.xlu0 %1757
  %1759 = vrot.lane.b32.xlu0 %v381, 20
  %v1760 = vpop.permute.xlu0 %1759
  %1761 = vrot.lane.b32.xlu0 %v382, 20
  %v1762 = vpop.permute.xlu0 %1761
  %1763 = vrot.lane.b32.xlu0 %v383, 20
  %v1764 = vpop.permute.xlu0 %1763
  %1765 = vrot.lane.b32.xlu0 %v384, 20
  %v1766 = vpop.permute.xlu0 %1765
  %1767 = vrot.lane.b32.xlu0 %v385, 20
  %v1768 = vpop.permute.xlu0 %1767
  %1769 = vrot.lane.b32.xlu0 %v386, 20
  %v1770 = vpop.permute.xlu0 %1769
  %1771 = vrot.lane.b32.xlu0 %v387, 20
  %v1772 = vpop.permute.xlu0 %1771
  %1773 = vrot.lane.b32.xlu0 %v388, 20
  %v1774 = vpop.permute.xlu0 %1773
  %1775 = vrot.lane.b32.xlu0 %v389, 20
  %v1776 = vpop.permute.xlu0 %1775
  %1777 = vrot.lane.b32.xlu0 %v390, 20
  %v1778 = vpop.permute.xlu0 %1777
  %1779 = vrot.lane.b32.xlu0 %v391, 20
  %v1780 = vpop.permute.xlu0 %1779
  %1781 = vrot.lane.b32.xlu0 %v392, 20
  %v1782 = vpop.permute.xlu0 %1781
  %1783 = vrot.lane.b32.xlu0 %v393, 20
  %v1784 = vpop.permute.xlu0 %1783
  %1785 = vrot.lane.b32.xlu0 %v394, 20
  %v1786 = vpop.permute.xlu0 %1785
  %1787 = vrot.lane.b32.xlu0 %v395, 20
  %v1788 = vpop.permute.xlu0 %1787
  %1789 = vrot.lane.b32.xlu0 %v396, 20
  %v1790 = vpop.permute.xlu0 %1789
  %1791 = vrot.lane.b32.xlu0 %v397, 20
  %v1792 = vpop.permute.xlu0 %1791
  %1793 = vrot.lane.b32.xlu0 %v398, 20
  %v1794 = vpop.permute.xlu0 %1793
  %1795 = vrot.lane.b32.xlu0 %v399, 20
  %v1796 = vpop.permute.xlu0 %1795
  %1797 = vrot.lane.b32.xlu0 %v400, 20
  %v1798 = vpop.permute.xlu0 %1797
  %1799 = vrot.lane.b32.xlu0 %v401, 20
  %v1800 = vpop.permute.xlu0 %1799
  %1801 = vrot.lane.b32.xlu0 %v402, 20
  %v1802 = vpop.permute.xlu0 %1801
  %1803 = vrot.lane.b32.xlu0 %v403, 20
  %v1804 = vpop.permute.xlu0 %1803
  %1805 = vrot.lane.b32.xlu0 %v404, 20
  %v1806 = vpop.permute.xlu0 %1805
  %1807 = vrot.lane.b32.xlu0 %v405, 20
  %v1808 = vpop.permute.xlu0 %1807
  %1809 = vrot.lane.b32.xlu0 %v406, 20
  %v1810 = vpop.permute.xlu0 %1809
  %1811 = vrot.lane.b32.xlu0 %v407, 20
  %v1812 = vpop.permute.xlu0 %1811
  %1813 = vrot.lane.b32.xlu0 %v408, 20
  %v1814 = vpop.permute.xlu0 %1813
  %1815 = vrot.lane.b32.xlu0 %v409, 20
  %v1816 = vpop.permute.xlu0 %1815
  %1817 = vrot.lane.b32.xlu0 %v410, 20
  %v1818 = vpop.permute.xlu0 %1817
  %1819 = vrot.lane.b32.xlu0 %v411, 20
  %v1820 = vpop.permute.xlu0 %1819
  %1949 = vrot.lane.b32.xlu0 %v413, 24
  %v1950 = vpop.permute.xlu0 %1949
  %1951 = vrot.lane.b32.xlu0 %v414, 24
  %v1952 = vpop.permute.xlu0 %1951
  %1953 = vrot.lane.b32.xlu0 %v415, 24
  %v1954 = vpop.permute.xlu0 %1953
  %1955 = vrot.lane.b32.xlu0 %v416, 24
  %v1956 = vpop.permute.xlu0 %1955
  %1957 = vrot.lane.b32.xlu0 %v417, 24
  %v1958 = vpop.permute.xlu0 %1957
  %1959 = vrot.lane.b32.xlu0 %v418, 24
  %v1960 = vpop.permute.xlu0 %1959
  %1961 = vrot.lane.b32.xlu0 %v419, 24
  %v1962 = vpop.permute.xlu0 %1961
  %1963 = vrot.lane.b32.xlu0 %v420, 24
  %v1964 = vpop.permute.xlu0 %1963
  %1965 = vrot.lane.b32.xlu0 %v421, 24
  %v1966 = vpop.permute.xlu0 %1965
  %1967 = vrot.lane.b32.xlu0 %v422, 24
  %v1968 = vpop.permute.xlu0 %1967
  %1969 = vrot.lane.b32.xlu0 %v423, 24
  %v1970 = vpop.permute.xlu0 %1969
  %1971 = vrot.lane.b32.xlu0 %v424, 24
  %v1972 = vpop.permute.xlu0 %1971
  %1973 = vrot.lane.b32.xlu0 %v425, 24
  %v1974 = vpop.permute.xlu0 %1973
  %1975 = vrot.lane.b32.xlu0 %v426, 24
  %v1976 = vpop.permute.xlu0 %1975
  %1977 = vrot.lane.b32.xlu0 %v427, 24
  %v1978 = vpop.permute.xlu0 %1977
  %1979 = vrot.lane.b32.xlu0 %v428, 24
  %v1980 = vpop.permute.xlu0 %1979
  %1981 = vrot.lane.b32.xlu0 %v429, 24
  %v1982 = vpop.permute.xlu0 %1981
  %1983 = vrot.lane.b32.xlu0 %v430, 24
  %v1984 = vpop.permute.xlu0 %1983
  %1985 = vrot.lane.b32.xlu0 %v431, 24
  %v1986 = vpop.permute.xlu0 %1985
  %1987 = vrot.lane.b32.xlu0 %v432, 24
  %v1988 = vpop.permute.xlu0 %1987
  %1989 = vrot.lane.b32.xlu0 %v433, 24
  %v1990 = vpop.permute.xlu0 %1989
  %1991 = vrot.lane.b32.xlu0 %v434, 24
  %v1992 = vpop.permute.xlu0 %1991
  %1993 = vrot.lane.b32.xlu0 %v435, 24
  %v1994 = vpop.permute.xlu0 %1993
  %1995 = vrot.lane.b32.xlu0 %v436, 24
  %v1996 = vpop.permute.xlu0 %1995
  %1997 = vrot.lane.b32.xlu0 %v437, 24
  %v1998 = vpop.permute.xlu0 %1997
  %1999 = vrot.lane.b32.xlu0 %v438, 24
  %v2000 = vpop.permute.xlu0 %1999
  %2001 = vrot.lane.b32.xlu0 %v439, 24
  %v2002 = vpop.permute.xlu0 %2001
  %2003 = vrot.lane.b32.xlu0 %v440, 24
  %v2004 = vpop.permute.xlu0 %2003
  %2005 = vrot.lane.b32.xlu0 %v441, 24
  %v2006 = vpop.permute.xlu0 %2005
  %2007 = vrot.lane.b32.xlu0 %v442, 24
  %v2008 = vpop.permute.xlu0 %2007
  %2009 = vrot.lane.b32.xlu0 %v443, 24
  %v2010 = vpop.permute.xlu0 %2009
  %2011 = vrot.lane.b32.xlu0 %v444, 24
  %v2012 = vpop.permute.xlu0 %2011
  %2013 = vrot.lane.b32.xlu0 %v445, 24
  %v2014 = vpop.permute.xlu0 %2013
  %2015 = vrot.lane.b32.xlu0 %v446, 24
  %v2016 = vpop.permute.xlu0 %2015
  %2017 = vrot.lane.b32.xlu0 %v447, 24
  %v2018 = vpop.permute.xlu0 %2017
  %2019 = vrot.lane.b32.xlu0 %v448, 24
  %v2020 = vpop.permute.xlu0 %2019
  %2021 = vrot.lane.b32.xlu0 %v449, 24
  %v2022 = vpop.permute.xlu0 %2021
  %2023 = vrot.lane.b32.xlu0 %v450, 24
  %v2024 = vpop.permute.xlu0 %2023
  %2025 = vrot.lane.b32.xlu0 %v451, 24
  %v2026 = vpop.permute.xlu0 %2025
  %2027 = vrot.lane.b32.xlu0 %v452, 24
  %v2028 = vpop.permute.xlu0 %2027
  %2029 = vrot.lane.b32.xlu0 %v453, 24
  %v2030 = vpop.permute.xlu0 %2029
  %2031 = vrot.lane.b32.xlu0 %v454, 24
  %v2032 = vpop.permute.xlu0 %2031
  %2033 = vrot.lane.b32.xlu0 %v455, 24
  %v2034 = vpop.permute.xlu0 %2033
  %2035 = vrot.lane.b32.xlu0 %v456, 24
  %v2036 = vpop.permute.xlu0 %2035
  %2037 = vrot.lane.b32.xlu0 %v457, 24
  %v2038 = vpop.permute.xlu0 %2037
  %2039 = vrot.lane.b32.xlu0 %v458, 24
  %v2040 = vpop.permute.xlu0 %2039
  %2041 = vrot.lane.b32.xlu0 %v459, 24
  %v2042 = vpop.permute.xlu0 %2041
  %2043 = vrot.lane.b32.xlu0 %v460, 24
  %v2044 = vpop.permute.xlu0 %2043
  %2045 = vrot.lane.b32.xlu0 %v461, 24
  %v2046 = vpop.permute.xlu0 %2045
  %2047 = vrot.lane.b32.xlu0 %v462, 24
  %v2048 = vpop.permute.xlu0 %2047
  %2049 = vrot.lane.b32.xlu0 %v463, 24
  %v2050 = vpop.permute.xlu0 %2049
  %2051 = vrot.lane.b32.xlu0 %v464, 24
  %v2052 = vpop.permute.xlu0 %2051
  %2053 = vrot.lane.b32.xlu0 %v465, 24
  %v2054 = vpop.permute.xlu0 %2053
  %2055 = vrot.lane.b32.xlu0 %v466, 24
  %v2056 = vpop.permute.xlu0 %2055
  %2057 = vrot.lane.b32.xlu0 %v467, 24
  %v2058 = vpop.permute.xlu0 %2057
  %2059 = vrot.lane.b32.xlu0 %v468, 24
  %v2060 = vpop.permute.xlu0 %2059
  %2061 = vrot.lane.b32.xlu0 %v469, 24
  %v2062 = vpop.permute.xlu0 %2061
  %2063 = vrot.lane.b32.xlu0 %v470, 24
  %v2064 = vpop.permute.xlu0 %2063
  %2065 = vrot.lane.b32.xlu0 %v471, 24
  %v2066 = vpop.permute.xlu0 %2065
  %2067 = vrot.lane.b32.xlu0 %v472, 24
  %v2068 = vpop.permute.xlu0 %2067
  %2069 = vrot.lane.b32.xlu0 %v473, 24
  %v2070 = vpop.permute.xlu0 %2069
  %2071 = vrot.lane.b32.xlu0 %v474, 24
  %v2072 = vpop.permute.xlu0 %2071
  %2073 = vrot.lane.b32.xlu0 %v475, 24
  %v2074 = vpop.permute.xlu0 %2073
  %2075 = vrot.lane.b32.xlu0 %v476, 24
  %v2076 = vpop.permute.xlu0 %2075
  %2205 = vrot.lane.b32.xlu0 %v477, 28
  %v2206 = vpop.permute.xlu0 %2205
  %2207 = vrot.lane.b32.xlu0 %v478, 28
  %v2208 = vpop.permute.xlu0 %2207
  %2209 = vrot.lane.b32.xlu0 %v479, 28
  %v2210 = vpop.permute.xlu0 %2209
  %2211 = vrot.lane.b32.xlu0 %v480, 28
  %v2212 = vpop.permute.xlu0 %2211
  %2213 = vrot.lane.b32.xlu0 %v481, 28
  %v2214 = vpop.permute.xlu0 %2213
  %2215 = vrot.lane.b32.xlu0 %v482, 28
  %v2216 = vpop.permute.xlu0 %2215
  %2217 = vrot.lane.b32.xlu0 %v483, 28
  %v2218 = vpop.permute.xlu0 %2217
  %2219 = vrot.lane.b32.xlu0 %v484, 28
  %v2220 = vpop.permute.xlu0 %2219
  %2221 = vrot.lane.b32.xlu0 %v485, 28
  %v2222 = vpop.permute.xlu0 %2221
  %2223 = vrot.lane.b32.xlu0 %v486, 28
  %v2224 = vpop.permute.xlu0 %2223
  %2225 = vrot.lane.b32.xlu0 %v487, 28
  %v2226 = vpop.permute.xlu0 %2225
  %2227 = vrot.lane.b32.xlu0 %v488, 28
  %v2228 = vpop.permute.xlu0 %2227
  %2229 = vrot.lane.b32.xlu0 %v489, 28
  %v2230 = vpop.permute.xlu0 %2229
  %2231 = vrot.lane.b32.xlu0 %v490, 28
  %v2232 = vpop.permute.xlu0 %2231
  %2233 = vrot.lane.b32.xlu0 %v491, 28
  %v2234 = vpop.permute.xlu0 %2233
  %2235 = vrot.lane.b32.xlu0 %v492, 28
  %v2236 = vpop.permute.xlu0 %2235
  %2237 = vrot.lane.b32.xlu0 %v493, 28
  %v2238 = vpop.permute.xlu0 %2237
  %2239 = vrot.lane.b32.xlu0 %v494, 28
  %v2240 = vpop.permute.xlu0 %2239
  %2241 = vrot.lane.b32.xlu0 %v495, 28
  %v2242 = vpop.permute.xlu0 %2241
  %2243 = vrot.lane.b32.xlu0 %v496, 28
  %v2244 = vpop.permute.xlu0 %2243
  %2245 = vrot.lane.b32.xlu0 %v497, 28
  %v2246 = vpop.permute.xlu0 %2245
  %2247 = vrot.lane.b32.xlu0 %v498, 28
  %v2248 = vpop.permute.xlu0 %2247
  %2249 = vrot.lane.b32.xlu0 %v499, 28
  %v2250 = vpop.permute.xlu0 %2249
  %2251 = vrot.lane.b32.xlu0 %v500, 28
  %v2252 = vpop.permute.xlu0 %2251
  %2253 = vrot.lane.b32.xlu0 %v501, 28
  %v2254 = vpop.permute.xlu0 %2253
  %2255 = vrot.lane.b32.xlu0 %v502, 28
  %v2256 = vpop.permute.xlu0 %2255
  %2257 = vrot.lane.b32.xlu0 %v503, 28
  %v2258 = vpop.permute.xlu0 %2257
  %2259 = vrot.lane.b32.xlu0 %v504, 28
  %v2260 = vpop.permute.xlu0 %2259
  %2261 = vrot.lane.b32.xlu0 %v505, 28
  %v2262 = vpop.permute.xlu0 %2261
  %2263 = vrot.lane.b32.xlu0 %v506, 28
  %v2264 = vpop.permute.xlu0 %2263
  %2265 = vrot.lane.b32.xlu0 %v507, 28
  %v2266 = vpop.permute.xlu0 %2265
  %2267 = vrot.lane.b32.xlu0 %v508, 28
  %v2268 = vpop.permute.xlu0 %2267
  %2269 = vrot.lane.b32.xlu0 %v509, 28
  %v2270 = vpop.permute.xlu0 %2269
  %2271 = vrot.lane.b32.xlu0 %v510, 28
  %v2272 = vpop.permute.xlu0 %2271
  %2273 = vrot.lane.b32.xlu0 %v511, 28
  %v2274 = vpop.permute.xlu0 %2273
  %2275 = vrot.lane.b32.xlu0 %v512, 28
  %v2276 = vpop.permute.xlu0 %2275
  %2277 = vrot.lane.b32.xlu0 %v513, 28
  %v2278 = vpop.permute.xlu0 %2277
  %2279 = vrot.lane.b32.xlu0 %v514, 28
  %v2280 = vpop.permute.xlu0 %2279
  %2281 = vrot.lane.b32.xlu0 %v515, 28
  %v2282 = vpop.permute.xlu0 %2281
  %2283 = vrot.lane.b32.xlu0 %v516, 28
  %v2284 = vpop.permute.xlu0 %2283
  %2285 = vrot.lane.b32.xlu0 %v517, 28
  %v2286 = vpop.permute.xlu0 %2285
  %2287 = vrot.lane.b32.xlu0 %v518, 28
  %v2288 = vpop.permute.xlu0 %2287
  %2289 = vrot.lane.b32.xlu0 %v519, 28
  %v2290 = vpop.permute.xlu0 %2289
  %2291 = vrot.lane.b32.xlu0 %v520, 28
  %v2292 = vpop.permute.xlu0 %2291
  %2293 = vrot.lane.b32.xlu0 %v521, 28
  %v2294 = vpop.permute.xlu0 %2293
  %2295 = vrot.lane.b32.xlu0 %v522, 28
  %v2296 = vpop.permute.xlu0 %2295
  %2297 = vrot.lane.b32.xlu0 %v523, 28
  %v2298 = vpop.permute.xlu0 %2297
  %2299 = vrot.lane.b32.xlu0 %v524, 28
  %v2300 = vpop.permute.xlu0 %2299
  %2301 = vrot.lane.b32.xlu0 %v525, 28
  %v2302 = vpop.permute.xlu0 %2301
  %2303 = vrot.lane.b32.xlu0 %v526, 28
  %v2304 = vpop.permute.xlu0 %2303
  %2305 = vrot.lane.b32.xlu0 %v527, 28
  %v2306 = vpop.permute.xlu0 %2305
  %2307 = vrot.lane.b32.xlu0 %v528, 28
  %v2308 = vpop.permute.xlu0 %2307
  %2309 = vrot.lane.b32.xlu0 %v529, 28
  %v2310 = vpop.permute.xlu0 %2309
  %2311 = vrot.lane.b32.xlu0 %v530, 28
  %v2312 = vpop.permute.xlu0 %2311
  %2313 = vrot.lane.b32.xlu0 %v531, 28
  %v2314 = vpop.permute.xlu0 %2313
  %2315 = vrot.lane.b32.xlu0 %v532, 28
  %v2316 = vpop.permute.xlu0 %2315
  %2317 = vrot.lane.b32.xlu0 %v533, 28
  %v2318 = vpop.permute.xlu0 %2317
  %2319 = vrot.lane.b32.xlu0 %v534, 28
  %v2320 = vpop.permute.xlu0 %2319
  %2321 = vrot.lane.b32.xlu0 %v535, 28
  %v2322 = vpop.permute.xlu0 %2321
  %2323 = vrot.lane.b32.xlu0 %v536, 28
  %v2324 = vpop.permute.xlu0 %2323
  %2325 = vrot.lane.b32.xlu0 %v537, 28
  %v2326 = vpop.permute.xlu0 %2325
  %2327 = vrot.lane.b32.xlu0 %v538, 28
  %v2328 = vpop.permute.xlu0 %2327
  %2329 = vrot.lane.b32.xlu0 %v539, 28
  %v2330 = vpop.permute.xlu0 %2329
  %2331 = vrot.lane.b32.xlu0 %v540, 28
  %v2332 = vpop.permute.xlu0 %2331
  %2461 = vrot.lane.b32.xlu0 %v541, 32
  %v2462 = vpop.permute.xlu0 %2461
  %2463 = vrot.lane.b32.xlu0 %v542, 32
  %v2464 = vpop.permute.xlu0 %2463
  %2465 = vrot.lane.b32.xlu0 %v543, 32
  %v2466 = vpop.permute.xlu0 %2465
  %2467 = vrot.lane.b32.xlu0 %v544, 32
  %v2468 = vpop.permute.xlu0 %2467
  %2469 = vrot.lane.b32.xlu0 %v545, 32
  %v2470 = vpop.permute.xlu0 %2469
  %2471 = vrot.lane.b32.xlu0 %v546, 32
  %v2472 = vpop.permute.xlu0 %2471
  %2473 = vrot.lane.b32.xlu0 %v547, 32
  %v2474 = vpop.permute.xlu0 %2473
  %2475 = vrot.lane.b32.xlu0 %v548, 32
  %v2476 = vpop.permute.xlu0 %2475
  %2477 = vrot.lane.b32.xlu0 %v549, 32
  %v2478 = vpop.permute.xlu0 %2477
  %2479 = vrot.lane.b32.xlu0 %v550, 32
  %v2480 = vpop.permute.xlu0 %2479
  %2481 = vrot.lane.b32.xlu0 %v551, 32
  %v2482 = vpop.permute.xlu0 %2481
  %2483 = vrot.lane.b32.xlu0 %v552, 32
  %v2484 = vpop.permute.xlu0 %2483
  %2485 = vrot.lane.b32.xlu0 %v553, 32
  %v2486 = vpop.permute.xlu0 %2485
  %2487 = vrot.lane.b32.xlu0 %v554, 32
  %v2488 = vpop.permute.xlu0 %2487
  %2489 = vrot.lane.b32.xlu0 %v555, 32
  %v2490 = vpop.permute.xlu0 %2489
  %2491 = vrot.lane.b32.xlu0 %v556, 32
  %v2492 = vpop.permute.xlu0 %2491
  %2493 = vrot.lane.b32.xlu0 %v557, 32
  %v2494 = vpop.permute.xlu0 %2493
  %2495 = vrot.lane.b32.xlu0 %v558, 32
  %v2496 = vpop.permute.xlu0 %2495
  %2497 = vrot.lane.b32.xlu0 %v559, 32
  %v2498 = vpop.permute.xlu0 %2497
  %2499 = vrot.lane.b32.xlu0 %v560, 32
  %v2500 = vpop.permute.xlu0 %2499
  %2501 = vrot.lane.b32.xlu0 %v561, 32
  %v2502 = vpop.permute.xlu0 %2501
  %2503 = vrot.lane.b32.xlu0 %v562, 32
  %v2504 = vpop.permute.xlu0 %2503
  %2505 = vrot.lane.b32.xlu0 %v563, 32
  %v2506 = vpop.permute.xlu0 %2505
  %2507 = vrot.lane.b32.xlu0 %v564, 32
  %v2508 = vpop.permute.xlu0 %2507
  %2509 = vrot.lane.b32.xlu0 %v565, 32
  %v2510 = vpop.permute.xlu0 %2509
  %2511 = vrot.lane.b32.xlu0 %v566, 32
  %v2512 = vpop.permute.xlu0 %2511
  %2513 = vrot.lane.b32.xlu0 %v567, 32
  %v2514 = vpop.permute.xlu0 %2513
  %2515 = vrot.lane.b32.xlu0 %v568, 32
  %v2516 = vpop.permute.xlu0 %2515
  %2517 = vrot.lane.b32.xlu0 %v569, 32
  %v2518 = vpop.permute.xlu0 %2517
  %2519 = vrot.lane.b32.xlu0 %v570, 32
  %v2520 = vpop.permute.xlu0 %2519
  %2521 = vrot.lane.b32.xlu0 %v571, 32
  %v2522 = vpop.permute.xlu0 %2521
  %2523 = vrot.lane.b32.xlu0 %v572, 32
  %v2524 = vpop.permute.xlu0 %2523
  %2525 = vrot.lane.b32.xlu0 %v573, 32
  %v2526 = vpop.permute.xlu0 %2525
  %2527 = vrot.lane.b32.xlu0 %v574, 32
  %v2528 = vpop.permute.xlu0 %2527
  %2529 = vrot.lane.b32.xlu0 %v575, 32
  %v2530 = vpop.permute.xlu0 %2529
  %2531 = vrot.lane.b32.xlu0 %v576, 32
  %v2532 = vpop.permute.xlu0 %2531
  %2533 = vrot.lane.b32.xlu0 %v577, 32
  %v2534 = vpop.permute.xlu0 %2533
  %2535 = vrot.lane.b32.xlu0 %v578, 32
  %v2536 = vpop.permute.xlu0 %2535
  %2537 = vrot.lane.b32.xlu0 %v579, 32
  %v2538 = vpop.permute.xlu0 %2537
  %2539 = vrot.lane.b32.xlu0 %v580, 32
  %v2540 = vpop.permute.xlu0 %2539
  %2541 = vrot.lane.b32.xlu0 %v581, 32
  %v2542 = vpop.permute.xlu0 %2541
  %2543 = vrot.lane.b32.xlu0 %v582, 32
  %v2544 = vpop.permute.xlu0 %2543
  %2545 = vrot.lane.b32.xlu0 %v583, 32
  %v2546 = vpop.permute.xlu0 %2545
  %2547 = vrot.lane.b32.xlu0 %v584, 32
  %v2548 = vpop.permute.xlu0 %2547
  %2549 = vrot.lane.b32.xlu0 %v585, 32
  %v2550 = vpop.permute.xlu0 %2549
  %2551 = vrot.lane.b32.xlu0 %v586, 32
  %v2552 = vpop.permute.xlu0 %2551
  %2553 = vrot.lane.b32.xlu0 %v587, 32
  %v2554 = vpop.permute.xlu0 %2553
  %2555 = vrot.lane.b32.xlu0 %v588, 32
  %v2556 = vpop.permute.xlu0 %2555
  %2557 = vrot.lane.b32.xlu0 %v589, 32
  %v2558 = vpop.permute.xlu0 %2557
  %2559 = vrot.lane.b32.xlu0 %v590, 32
  %v2560 = vpop.permute.xlu0 %2559
  %2561 = vrot.lane.b32.xlu0 %v591, 32
  %v2562 = vpop.permute.xlu0 %2561
  %2563 = vrot.lane.b32.xlu0 %v592, 32
  %v2564 = vpop.permute.xlu0 %2563
  %2565 = vrot.lane.b32.xlu0 %v593, 32
  %v2566 = vpop.permute.xlu0 %2565
  %2567 = vrot.lane.b32.xlu0 %v594, 32
  %v2568 = vpop.permute.xlu0 %2567
  %2569 = vrot.lane.b32.xlu0 %v595, 32
  %v2570 = vpop.permute.xlu0 %2569
  %2571 = vrot.lane.b32.xlu0 %v596, 32
  %v2572 = vpop.permute.xlu0 %2571
  %2573 = vrot.lane.b32.xlu0 %v597, 32
  %v2574 = vpop.permute.xlu0 %2573
  %2575 = vrot.lane.b32.xlu0 %v598, 32
  %v2576 = vpop.permute.xlu0 %2575
  %2577 = vrot.lane.b32.xlu0 %v599, 32
  %v2578 = vpop.permute.xlu0 %2577
  %2579 = vrot.lane.b32.xlu0 %v600, 32
  %v2580 = vpop.permute.xlu0 %2579
  %2581 = vrot.lane.b32.xlu0 %v601, 32
  %v2582 = vpop.permute.xlu0 %2581
  %2583 = vrot.lane.b32.xlu0 %v602, 32
  %v2584 = vpop.permute.xlu0 %2583
  %2585 = vrot.lane.b32.xlu0 %v603, 32
  %v2586 = vpop.permute.xlu0 %2585
  %2587 = vrot.lane.b32.xlu0 %v604, 32
  %v2588 = vpop.permute.xlu0 %2587
  %vm2653 = vcmask 31744
  %v2654 = vsel %vm2653, %v27, %v670
  %v2655 = vsel %vm2653, %v28, %v672
  %v2656 = vsel %vm2653, %v29, %v674
  %v2657 = vsel %vm2653, %v30, %v676
  %v2658 = vsel %vm2653, %v31, %v678
  %v2659 = vsel %vm2653, %v32, %v680
  %v2660 = vsel %vm2653, %v33, %v682
  %v2661 = vsel %vm2653, %v34, %v684
  %v2662 = vsel %vm2653, %v35, %v686
  %v2663 = vsel %vm2653, %v36, %v688
  %v2664 = vsel %vm2653, %v37, %v690
  %v2665 = vsel %vm2653, %v38, %v692
  %v2666 = vsel %vm2653, %v39, %v694
  %v2667 = vsel %vm2653, %v40, %v696
  %v2668 = vsel %vm2653, %v41, %v698
  %v2669 = vsel %vm2653, %v42, %v700
  %v2670 = vsel %vm2653, %v43, %v702
  %v2671 = vsel %vm2653, %v44, %v704
  %v2672 = vsel %vm2653, %v45, %v706
  %v2673 = vsel %vm2653, %v46, %v708
  %v2674 = vsel %vm2653, %v47, %v710
  %v2675 = vsel %vm2653, %v48, %v712
  %v2676 = vsel %vm2653, %v49, %v714
  %v2677 = vsel %vm2653, %v50, %v716
  %v2678 = vsel %vm2653, %v51, %v718
  %v2679 = vsel %vm2653, %v52, %v720
  %v2680 = vsel %vm2653, %v53, %v722
  %v2681 = vsel %vm2653, %v54, %v724
  %v2682 = vsel %vm2653, %v55, %v726
  %v2683 = vsel %vm2653, %v56, %v728
  %v2684 = vsel %vm2653, %v57, %v730
  %v2685 = vsel %vm2653, %v58, %v732
  %v2686 = vsel %vm2653, %v59, %v734
  %v2687 = vsel %vm2653, %v60, %v736
  %v2688 = vsel %vm2653, %v61, %v738
  %v2689 = vsel %vm2653, %v62, %v740
  %v2690 = vsel %vm2653, %v63, %v742
  %v2691 = vsel %vm2653, %v64, %v744
  %v2692 = vsel %vm2653, %v65, %v746
  %v2693 = vsel %vm2653, %v66, %v748
  %v2694 = vsel %vm2653, %v67, %v750
  %v2695 = vsel %vm2653, %v68, %v752
  %v2696 = vsel %vm2653, %v69, %v754
  %v2697 = vsel %vm2653, %v70, %v756
  %v2698 = vsel %vm2653, %v71, %v758
  %v2699 = vsel %vm2653, %v72, %v760
  %v2700 = vsel %vm2653, %v73, %v762
  %v2701 = vsel %vm2653, %v74, %v764
  %v2702 = vsel %vm2653, %v75, %v766
  %v2703 = vsel %vm2653, %v76, %v768
  %v2704 = vsel %vm2653, %v77, %v770
  %v2705 = vsel %vm2653, %v78, %v772
  %v2706 = vsel %vm2653, %v79, %v774
  %v2707 = vsel %vm2653, %v80, %v776
  %v2708 = vsel %vm2653, %v81, %v778
  %v2709 = vsel %vm2653, %v82, %v780
  %v2710 = vsel %vm2653, %v83, %v782
  %v2711 = vsel %vm2653, %v84, %v784
  %v2712 = vsel %vm2653, %v85, %v786
  %v2713 = vsel %vm2653, %v86, %v788
  %v2714 = vsel %vm2653, %v87, %v790
  %v2715 = vsel %vm2653, %v88, %v792
  %v2716 = vsel %vm2653, %v89, %v794
  %v2717 = vsel %vm2653, %v90, %v796
  %vm2718 = vcmask 64512
  %v2719 = vsel %vm2718, %v2654, %v926
  %v2720 = vsel %vm2718, %v2655, %v928
  %v2721 = vsel %vm2718, %v2656, %v930
  %v2722 = vsel %vm2718, %v2657, %v932
  %v2723 = vsel %vm2718, %v2658, %v934
  %v2724 = vsel %vm2718, %v2659, %v936
  %v2725 = vsel %vm2718, %v2660, %v938
  %v2726 = vsel %vm2718, %v2661, %v940
  %v2727 = vsel %vm2718, %v2662, %v942
  %v2728 = vsel %vm2718, %v2663, %v944
  %v2729 = vsel %vm2718, %v2664, %v946
  %v2730 = vsel %vm2718, %v2665, %v948
  %v2731 = vsel %vm2718, %v2666, %v950
  %v2732 = vsel %vm2718, %v2667, %v952
  %v2733 = vsel %vm2718, %v2668, %v954
  %v2734 = vsel %vm2718, %v2669, %v956
  %v2735 = vsel %vm2718, %v2670, %v958
  %v2736 = vsel %vm2718, %v2671, %v960
  %v2737 = vsel %vm2718, %v2672, %v962
  %v2738 = vsel %vm2718, %v2673, %v964
  %v2739 = vsel %vm2718, %v2674, %v966
  %v2740 = vsel %vm2718, %v2675, %v968
  %v2741 = vsel %vm2718, %v2676, %v970
  %v2742 = vsel %vm2718, %v2677, %v972
  %v2743 = vsel %vm2718, %v2678, %v974
  %v2744 = vsel %vm2718, %v2679, %v976
  %v2745 = vsel %vm2718, %v2680, %v978
  %v2746 = vsel %vm2718, %v2681, %v980
  %v2747 = vsel %vm2718, %v2682, %v982
  %v2748 = vsel %vm2718, %v2683, %v984
  %v2749 = vsel %vm2718, %v2684, %v986
  %v2750 = vsel %vm2718, %v2685, %v988
  %v2751 = vsel %vm2718, %v2686, %v990
  %v2752 = vsel %vm2718, %v2687, %v992
  %v2753 = vsel %vm2718, %v2688, %v994
  %v2754 = vsel %vm2718, %v2689, %v996
  %v2755 = vsel %vm2718, %v2690, %v998
  %v2756 = vsel %vm2718, %v2691, %v1000
  %v2757 = vsel %vm2718, %v2692, %v1002
  %v2758 = vsel %vm2718, %v2693, %v1004
  %v2759 = vsel %vm2718, %v2694, %v1006
  %v2760 = vsel %vm2718, %v2695, %v1008
  %v2761 = vsel %vm2718, %v2696, %v1010
  %v2762 = vsel %vm2718, %v2697, %v1012
  %v2763 = vsel %vm2718, %v2698, %v1014
  %v2764 = vsel %vm2718, %v2699, %v1016
  %v2765 = vsel %vm2718, %v2700, %v1018
  %v2766 = vsel %vm2718, %v2701, %v1020
  %v2767 = vsel %vm2718, %v2702, %v1022
  %v2768 = vsel %vm2718, %v2703, %v1024
  %v2769 = vsel %vm2718, %v2704, %v1026
  %v2770 = vsel %vm2718, %v2705, %v1028
  %v2771 = vsel %vm2718, %v2706, %v1030
  %v2772 = vsel %vm2718, %v2707, %v1032
  %v2773 = vsel %vm2718, %v2708, %v1034
  %v2774 = vsel %vm2718, %v2709, %v1036
  %v2775 = vsel %vm2718, %v2710, %v1038
  %v2776 = vsel %vm2718, %v2711, %v1040
  %v2777 = vsel %vm2718, %v2712, %v1042
  %v2778 = vsel %vm2718, %v2713, %v1044
  %v2779 = vsel %vm2718, %v2714, %v1046
  %v2780 = vsel %vm2718, %v2715, %v1048
  %v2781 = vsel %vm2718, %v2716, %v1050
  %v2782 = vsel %vm2718, %v2717, %v1052
  %vm2783 = vcmask 97280
  %v2784 = vsel %vm2783, %v2719, %v1182
  %v2785 = vsel %vm2783, %v2720, %v1184
  %v2786 = vsel %vm2783, %v2721, %v1186
  %v2787 = vsel %vm2783, %v2722, %v1188
  %v2788 = vsel %vm2783, %v2723, %v1190
  %v2789 = vsel %vm2783, %v2724, %v1192
  %v2790 = vsel %vm2783, %v2725, %v1194
  %v2791 = vsel %vm2783, %v2726, %v1196
  %v2792 = vsel %vm2783, %v2727, %v1198
  %v2793 = vsel %vm2783, %v2728, %v1200
  %v2794 = vsel %vm2783, %v2729, %v1202
  %v2795 = vsel %vm2783, %v2730, %v1204
  %v2796 = vsel %vm2783, %v2731, %v1206
  %v2797 = vsel %vm2783, %v2732, %v1208
  %v2798 = vsel %vm2783, %v2733, %v1210
  %v2799 = vsel %vm2783, %v2734, %v1212
  %v2800 = vsel %vm2783, %v2735, %v1214
  %v2801 = vsel %vm2783, %v2736, %v1216
  %v2802 = vsel %vm2783, %v2737, %v1218
  %v2803 = vsel %vm2783, %v2738, %v1220
  %v2804 = vsel %vm2783, %v2739, %v1222
  %v2805 = vsel %vm2783, %v2740, %v1224
  %v2806 = vsel %vm2783, %v2741, %v1226
  %v2807 = vsel %vm2783, %v2742, %v1228
  %v2808 = vsel %vm2783, %v2743, %v1230
  %v2809 = vsel %vm2783, %v2744, %v1232
  %v2810 = vsel %vm2783, %v2745, %v1234
  %v2811 = vsel %vm2783, %v2746, %v1236
  %v2812 = vsel %vm2783, %v2747, %v1238
  %v2813 = vsel %vm2783, %v2748, %v1240
  %v2814 = vsel %vm2783, %v2749, %v1242
  %v2815 = vsel %vm2783, %v2750, %v1244
  %v2816 = vsel %vm2783, %v2751, %v1246
  %v2817 = vsel %vm2783, %v2752, %v1248
  %v2818 = vsel %vm2783, %v2753, %v1250
  %v2819 = vsel %vm2783, %v2754, %v1252
  %v2820 = vsel %vm2783, %v2755, %v1254
  %v2821 = vsel %vm2783, %v2756, %v1256
  %v2822 = vsel %vm2783, %v2757, %v1258
  %v2823 = vsel %vm2783, %v2758, %v1260
  %v2824 = vsel %vm2783, %v2759, %v1262
  %v2825 = vsel %vm2783, %v2760, %v1264
  %v2826 = vsel %vm2783, %v2761, %v1266
  %v2827 = vsel %vm2783, %v2762, %v1268
  %v2828 = vsel %vm2783, %v2763, %v1270
  %v2829 = vsel %vm2783, %v2764, %v1272
  %v2830 = vsel %vm2783, %v2765, %v1274
  %v2831 = vsel %vm2783, %v2766, %v1276
  %v2832 = vsel %vm2783, %v2767, %v1278
  %v2833 = vsel %vm2783, %v2768, %v1280
  %v2834 = vsel %vm2783, %v2769, %v1282
  %v2835 = vsel %vm2783, %v2770, %v1284
  %v2836 = vsel %vm2783, %v2771, %v1286
  %v2837 = vsel %vm2783, %v2772, %v1288
  %v2838 = vsel %vm2783, %v2773, %v1290
  %v2839 = vsel %vm2783, %v2774, %v1292
  %v2840 = vsel %vm2783, %v2775, %v1294
  %v2841 = vsel %vm2783, %v2776, %v1296
  %v2842 = vsel %vm2783, %v2777, %v1298
  %v2843 = vsel %vm2783, %v2778, %v1300
  %v2844 = vsel %vm2783, %v2779, %v1302
  %v2845 = vsel %vm2783, %v2780, %v1304
  %v2846 = vsel %vm2783, %v2781, %v1306
  %v2847 = vsel %vm2783, %v2782, %v1308
  %vm2848 = vcmask 130048
  %v2849 = vsel %vm2848, %v2784, %v1438
  %v2850 = vsel %vm2848, %v2785, %v1440
  %v2851 = vsel %vm2848, %v2786, %v1442
  %v2852 = vsel %vm2848, %v2787, %v1444
  %v2853 = vsel %vm2848, %v2788, %v1446
  %v2854 = vsel %vm2848, %v2789, %v1448
  %v2855 = vsel %vm2848, %v2790, %v1450
  %v2856 = vsel %vm2848, %v2791, %v1452
  %v2857 = vsel %vm2848, %v2792, %v1454
  %v2858 = vsel %vm2848, %v2793, %v1456
  %v2859 = vsel %vm2848, %v2794, %v1458
  %v2860 = vsel %vm2848, %v2795, %v1460
  %v2861 = vsel %vm2848, %v2796, %v1462
  %v2862 = vsel %vm2848, %v2797, %v1464
  %v2863 = vsel %vm2848, %v2798, %v1466
  %v2864 = vsel %vm2848, %v2799, %v1468
  %v2865 = vsel %vm2848, %v2800, %v1470
  %v2866 = vsel %vm2848, %v2801, %v1472
  %v2867 = vsel %vm2848, %v2802, %v1474
  %v2868 = vsel %vm2848, %v2803, %v1476
  %v2869 = vsel %vm2848, %v2804, %v1478
  %v2870 = vsel %vm2848, %v2805, %v1480
  %v2871 = vsel %vm2848, %v2806, %v1482
  %v2872 = vsel %vm2848, %v2807, %v1484
  %v2873 = vsel %vm2848, %v2808, %v1486
  %v2874 = vsel %vm2848, %v2809, %v1488
  %v2875 = vsel %vm2848, %v2810, %v1490
  %v2876 = vsel %vm2848, %v2811, %v1492
  %v2877 = vsel %vm2848, %v2812, %v1494
  %v2878 = vsel %vm2848, %v2813, %v1496
  %v2879 = vsel %vm2848, %v2814, %v1498
  %v2880 = vsel %vm2848, %v2815, %v1500
  %v2881 = vsel %vm2848, %v2816, %v1502
  %v2882 = vsel %vm2848, %v2817, %v1504
  %v2883 = vsel %vm2848, %v2818, %v1506
  %v2884 = vsel %vm2848, %v2819, %v1508
  %v2885 = vsel %vm2848, %v2820, %v1510
  %v2886 = vsel %vm2848, %v2821, %v1512
  %v2887 = vsel %vm2848, %v2822, %v1514
  %v2888 = vsel %vm2848, %v2823, %v1516
  %v2889 = vsel %vm2848, %v2824, %v1518
  %v2890 = vsel %vm2848, %v2825, %v1520
  %v2891 = vsel %vm2848, %v2826, %v1522
  %v2892 = vsel %vm2848, %v2827, %v1524
  %v2893 = vsel %vm2848, %v2828, %v1526
  %v2894 = vsel %vm2848, %v2829, %v1528
  %v2895 = vsel %vm2848, %v2830, %v1530
  %v2896 = vsel %vm2848, %v2831, %v1532
  %v2897 = vsel %vm2848, %v2832, %v1534
  %v2898 = vsel %vm2848, %v2833, %v1536
  %v2899 = vsel %vm2848, %v2834, %v1538
  %v2900 = vsel %vm2848, %v2835, %v1540
  %v2901 = vsel %vm2848, %v2836, %v1542
  %v2902 = vsel %vm2848, %v2837, %v1544
  %v2903 = vsel %vm2848, %v2838, %v1546
  %v2904 = vsel %vm2848, %v2839, %v1548
  %v2905 = vsel %vm2848, %v2840, %v1550
  %v2906 = vsel %vm2848, %v2841, %v1552
  %v2907 = vsel %vm2848, %v2842, %v1554
  %v2908 = vsel %vm2848, %v2843, %v1556
  %v2909 = vsel %vm2848, %v2844, %v1558
  %v2910 = vsel %vm2848, %v2845, %v1560
  %v2911 = vsel %vm2848, %v2846, %v1562
  %v2912 = vsel %vm2848, %v2847, %v1564
  %vm2913 = vcmask 162816
  %v2914 = vsel %vm2913, %v2849, %v1694
  %v2915 = vsel %vm2913, %v2850, %v1696
  %v2916 = vsel %vm2913, %v2851, %v1698
  %v2917 = vsel %vm2913, %v2852, %v1700
  %v2918 = vsel %vm2913, %v2853, %v1702
  %v2919 = vsel %vm2913, %v2854, %v1704
  %v2920 = vsel %vm2913, %v2855, %v1706
  %v2921 = vsel %vm2913, %v2856, %v1708
  %v2922 = vsel %vm2913, %v2857, %v1710
  %v2923 = vsel %vm2913, %v2858, %v1712
  %v2924 = vsel %vm2913, %v2859, %v1714
  %v2925 = vsel %vm2913, %v2860, %v1716
  %v2926 = vsel %vm2913, %v2861, %v1718
  %v2927 = vsel %vm2913, %v2862, %v1720
  %v2928 = vsel %vm2913, %v2863, %v1722
  %v2929 = vsel %vm2913, %v2864, %v1724
  %v2930 = vsel %vm2913, %v2865, %v1726
  %v2931 = vsel %vm2913, %v2866, %v1728
  %v2932 = vsel %vm2913, %v2867, %v1730
  %v2933 = vsel %vm2913, %v2868, %v1732
  %v2934 = vsel %vm2913, %v2869, %v1734
  %v2935 = vsel %vm2913, %v2870, %v1736
  %v2936 = vsel %vm2913, %v2871, %v1738
  %v2937 = vsel %vm2913, %v2872, %v1740
  %v2938 = vsel %vm2913, %v2873, %v1742
  %v2939 = vsel %vm2913, %v2874, %v1744
  %v2940 = vsel %vm2913, %v2875, %v1746
  %v2941 = vsel %vm2913, %v2876, %v1748
  %v2942 = vsel %vm2913, %v2877, %v1750
  %v2943 = vsel %vm2913, %v2878, %v1752
  %v2944 = vsel %vm2913, %v2879, %v1754
  %v2945 = vsel %vm2913, %v2880, %v1756
  %v2946 = vsel %vm2913, %v2881, %v1758
  %v2947 = vsel %vm2913, %v2882, %v1760
  %v2948 = vsel %vm2913, %v2883, %v1762
  %v2949 = vsel %vm2913, %v2884, %v1764
  %v2950 = vsel %vm2913, %v2885, %v1766
  %v2951 = vsel %vm2913, %v2886, %v1768
  %v2952 = vsel %vm2913, %v2887, %v1770
  %v2953 = vsel %vm2913, %v2888, %v1772
  %v2954 = vsel %vm2913, %v2889, %v1774
  %v2955 = vsel %vm2913, %v2890, %v1776
  %v2956 = vsel %vm2913, %v2891, %v1778
  %v2957 = vsel %vm2913, %v2892, %v1780
  %v2958 = vsel %vm2913, %v2893, %v1782
  %v2959 = vsel %vm2913, %v2894, %v1784
  %v2960 = vsel %vm2913, %v2895, %v1786
  %v2961 = vsel %vm2913, %v2896, %v1788
  %v2962 = vsel %vm2913, %v2897, %v1790
  %v2963 = vsel %vm2913, %v2898, %v1792
  %v2964 = vsel %vm2913, %v2899, %v1794
  %v2965 = vsel %vm2913, %v2900, %v1796
  %v2966 = vsel %vm2913, %v2901, %v1798
  %v2967 = vsel %vm2913, %v2902, %v1800
  %v2968 = vsel %vm2913, %v2903, %v1802
  %v2969 = vsel %vm2913, %v2904, %v1804
  %v2970 = vsel %vm2913, %v2905, %v1806
  %v2971 = vsel %vm2913, %v2906, %v1808
  %v2972 = vsel %vm2913, %v2907, %v1810
  %v2973 = vsel %vm2913, %v2908, %v1812
  %v2974 = vsel %vm2913, %v2909, %v1814
  %v2975 = vsel %vm2913, %v2910, %v1816
  %v2976 = vsel %vm2913, %v2911, %v1818
  %v2977 = vsel %vm2913, %v2912, %v1820
  %vm2978 = vcmask 195584
  %v2979 = vsel %vm2978, %v2914, %v1950
  %v2980 = vsel %vm2978, %v2915, %v1952
  %v2981 = vsel %vm2978, %v2916, %v1954
  %v2982 = vsel %vm2978, %v2917, %v1956
  %v2983 = vsel %vm2978, %v2918, %v1958
  %v2984 = vsel %vm2978, %v2919, %v1960
  %v2985 = vsel %vm2978, %v2920, %v1962
  %v2986 = vsel %vm2978, %v2921, %v1964
  %v2987 = vsel %vm2978, %v2922, %v1966
  %v2988 = vsel %vm2978, %v2923, %v1968
  %v2989 = vsel %vm2978, %v2924, %v1970
  %v2990 = vsel %vm2978, %v2925, %v1972
  %v2991 = vsel %vm2978, %v2926, %v1974
  %v2992 = vsel %vm2978, %v2927, %v1976
  %v2993 = vsel %vm2978, %v2928, %v1978
  %v2994 = vsel %vm2978, %v2929, %v1980
  %v2995 = vsel %vm2978, %v2930, %v1982
  %v2996 = vsel %vm2978, %v2931, %v1984
  %v2997 = vsel %vm2978, %v2932, %v1986
  %v2998 = vsel %vm2978, %v2933, %v1988
  %v2999 = vsel %vm2978, %v2934, %v1990
  %v3000 = vsel %vm2978, %v2935, %v1992
  %v3001 = vsel %vm2978, %v2936, %v1994
  %v3002 = vsel %vm2978, %v2937, %v1996
  %v3003 = vsel %vm2978, %v2938, %v1998
  %v3004 = vsel %vm2978, %v2939, %v2000
  %v3005 = vsel %vm2978, %v2940, %v2002
  %v3006 = vsel %vm2978, %v2941, %v2004
  %v3007 = vsel %vm2978, %v2942, %v2006
  %v3008 = vsel %vm2978, %v2943, %v2008
  %v3009 = vsel %vm2978, %v2944, %v2010
  %v3010 = vsel %vm2978, %v2945, %v2012
  %v3011 = vsel %vm2978, %v2946, %v2014
  %v3012 = vsel %vm2978, %v2947, %v2016
  %v3013 = vsel %vm2978, %v2948, %v2018
  %v3014 = vsel %vm2978, %v2949, %v2020
  %v3015 = vsel %vm2978, %v2950, %v2022
  %v3016 = vsel %vm2978, %v2951, %v2024
  %v3017 = vsel %vm2978, %v2952, %v2026
  %v3018 = vsel %vm2978, %v2953, %v2028
  %v3019 = vsel %vm2978, %v2954, %v2030
  %v3020 = vsel %vm2978, %v2955, %v2032
  %v3021 = vsel %vm2978, %v2956, %v2034
  %v3022 = vsel %vm2978, %v2957, %v2036
  %v3023 = vsel %vm2978, %v2958, %v2038
  %v3024 = vsel %vm2978, %v2959, %v2040
  %v3025 = vsel %vm2978, %v2960, %v2042
  %v3026 = vsel %vm2978, %v2961, %v2044
  %v3027 = vsel %vm2978, %v2962, %v2046
  %v3028 = vsel %vm2978, %v2963, %v2048
  %v3029 = vsel %vm2978, %v2964, %v2050
  %v3030 = vsel %vm2978, %v2965, %v2052
  %v3031 = vsel %vm2978, %v2966, %v2054
  %v3032 = vsel %vm2978, %v2967, %v2056
  %v3033 = vsel %vm2978, %v2968, %v2058
  %v3034 = vsel %vm2978, %v2969, %v2060
  %v3035 = vsel %vm2978, %v2970, %v2062
  %v3036 = vsel %vm2978, %v2971, %v2064
  %v3037 = vsel %vm2978, %v2972, %v2066
  %v3038 = vsel %vm2978, %v2973, %v2068
  %v3039 = vsel %vm2978, %v2974, %v2070
  %v3040 = vsel %vm2978, %v2975, %v2072
  %v3041 = vsel %vm2978, %v2976, %v2074
  %v3042 = vsel %vm2978, %v2977, %v2076
  %vm3043 = vcmask 228352
  %v3044 = vsel %vm3043, %v2979, %v2206
  %v3045 = vsel %vm3043, %v2980, %v2208
  %v3046 = vsel %vm3043, %v2981, %v2210
  %v3047 = vsel %vm3043, %v2982, %v2212
  %v3048 = vsel %vm3043, %v2983, %v2214
  %v3049 = vsel %vm3043, %v2984, %v2216
  %v3050 = vsel %vm3043, %v2985, %v2218
  %v3051 = vsel %vm3043, %v2986, %v2220
  %v3052 = vsel %vm3043, %v2987, %v2222
  %v3053 = vsel %vm3043, %v2988, %v2224
  %v3054 = vsel %vm3043, %v2989, %v2226
  %v3055 = vsel %vm3043, %v2990, %v2228
  %v3056 = vsel %vm3043, %v2991, %v2230
  %v3057 = vsel %vm3043, %v2992, %v2232
  %v3058 = vsel %vm3043, %v2993, %v2234
  %v3059 = vsel %vm3043, %v2994, %v2236
  %v3060 = vsel %vm3043, %v2995, %v2238
  %v3061 = vsel %vm3043, %v2996, %v2240
  %v3062 = vsel %vm3043, %v2997, %v2242
  %v3063 = vsel %vm3043, %v2998, %v2244
  %v3064 = vsel %vm3043, %v2999, %v2246
  %v3065 = vsel %vm3043, %v3000, %v2248
  %v3066 = vsel %vm3043, %v3001, %v2250
  %v3067 = vsel %vm3043, %v3002, %v2252
  %v3068 = vsel %vm3043, %v3003, %v2254
  %v3069 = vsel %vm3043, %v3004, %v2256
  %v3070 = vsel %vm3043, %v3005, %v2258
  %v3071 = vsel %vm3043, %v3006, %v2260
  %v3072 = vsel %vm3043, %v3007, %v2262
  %v3073 = vsel %vm3043, %v3008, %v2264
  %v3074 = vsel %vm3043, %v3009, %v2266
  %v3075 = vsel %vm3043, %v3010, %v2268
  %v3076 = vsel %vm3043, %v3011, %v2270
  %v3077 = vsel %vm3043, %v3012, %v2272
  %v3078 = vsel %vm3043, %v3013, %v2274
  %v3079 = vsel %vm3043, %v3014, %v2276
  %v3080 = vsel %vm3043, %v3015, %v2278
  %v3081 = vsel %vm3043, %v3016, %v2280
  %v3082 = vsel %vm3043, %v3017, %v2282
  %v3083 = vsel %vm3043, %v3018, %v2284
  %v3084 = vsel %vm3043, %v3019, %v2286
  %v3085 = vsel %vm3043, %v3020, %v2288
  %v3086 = vsel %vm3043, %v3021, %v2290
  %v3087 = vsel %vm3043, %v3022, %v2292
  %v3088 = vsel %vm3043, %v3023, %v2294
  %v3089 = vsel %vm3043, %v3024, %v2296
  %v3090 = vsel %vm3043, %v3025, %v2298
  %v3091 = vsel %vm3043, %v3026, %v2300
  %v3092 = vsel %vm3043, %v3027, %v2302
  %v3093 = vsel %vm3043, %v3028, %v2304
  %v3094 = vsel %vm3043, %v3029, %v2306
  %v3095 = vsel %vm3043, %v3030, %v2308
  %v3096 = vsel %vm3043, %v3031, %v2310
  %v3097 = vsel %vm3043, %v3032, %v2312
  %v3098 = vsel %vm3043, %v3033, %v2314
  %v3099 = vsel %vm3043, %v3034, %v2316
  %v3100 = vsel %vm3043, %v3035, %v2318
  %v3101 = vsel %vm3043, %v3036, %v2320
  %v3102 = vsel %vm3043, %v3037, %v2322
  %v3103 = vsel %vm3043, %v3038, %v2324
  %v3104 = vsel %vm3043, %v3039, %v2326
  %v3105 = vsel %vm3043, %v3040, %v2328
  %v3106 = vsel %vm3043, %v3041, %v2330
  %v3107 = vsel %vm3043, %v3042, %v2332
  %vm3108 = vcmask 261120
  %v3109 = vsel %vm3108, %v3044, %v2462
  %v3110 = vsel %vm3108, %v3045, %v2464
  %v3111 = vsel %vm3108, %v3046, %v2466
  %v3112 = vsel %vm3108, %v3047, %v2468
  %v3113 = vsel %vm3108, %v3048, %v2470
  %v3114 = vsel %vm3108, %v3049, %v2472
  %v3115 = vsel %vm3108, %v3050, %v2474
  %v3116 = vsel %vm3108, %v3051, %v2476
  %v3117 = vsel %vm3108, %v3052, %v2478
  %v3118 = vsel %vm3108, %v3053, %v2480
  %v3119 = vsel %vm3108, %v3054, %v2482
  %v3120 = vsel %vm3108, %v3055, %v2484
  %v3121 = vsel %vm3108, %v3056, %v2486
  %v3122 = vsel %vm3108, %v3057, %v2488
  %v3123 = vsel %vm3108, %v3058, %v2490
  %v3124 = vsel %vm3108, %v3059, %v2492
  %v3125 = vsel %vm3108, %v3060, %v2494
  %v3126 = vsel %vm3108, %v3061, %v2496
  %v3127 = vsel %vm3108, %v3062, %v2498
  %v3128 = vsel %vm3108, %v3063, %v2500
  %v3129 = vsel %vm3108, %v3064, %v2502
  %v3130 = vsel %vm3108, %v3065, %v2504
  %v3131 = vsel %vm3108, %v3066, %v2506
  %v3132 = vsel %vm3108, %v3067, %v2508
  %v3133 = vsel %vm3108, %v3068, %v2510
  %v3134 = vsel %vm3108, %v3069, %v2512
  %v3135 = vsel %vm3108, %v3070, %v2514
  %v3136 = vsel %vm3108, %v3071, %v2516
  %v3137 = vsel %vm3108, %v3072, %v2518
  %v3138 = vsel %vm3108, %v3073, %v2520
  %v3139 = vsel %vm3108, %v3074, %v2522
  %v3140 = vsel %vm3108, %v3075, %v2524
  %v3141 = vsel %vm3108, %v3076, %v2526
  %v3142 = vsel %vm3108, %v3077, %v2528
  %v3143 = vsel %vm3108, %v3078, %v2530
  %v3144 = vsel %vm3108, %v3079, %v2532
  %v3145 = vsel %vm3108, %v3080, %v2534
  %v3146 = vsel %vm3108, %v3081, %v2536
  %v3147 = vsel %vm3108, %v3082, %v2538
  %v3148 = vsel %vm3108, %v3083, %v2540
  %v3149 = vsel %vm3108, %v3084, %v2542
  %v3150 = vsel %vm3108, %v3085, %v2544
  %v3151 = vsel %vm3108, %v3086, %v2546
  %v3152 = vsel %vm3108, %v3087, %v2548
  %v3153 = vsel %vm3108, %v3088, %v2550
  %v3154 = vsel %vm3108, %v3089, %v2552
  %v3155 = vsel %vm3108, %v3090, %v2554
  %v3156 = vsel %vm3108, %v3091, %v2556
  %v3157 = vsel %vm3108, %v3092, %v2558
  %v3158 = vsel %vm3108, %v3093, %v2560
  %v3159 = vsel %vm3108, %v3094, %v2562
  %v3160 = vsel %vm3108, %v3095, %v2564
  %v3161 = vsel %vm3108, %v3096, %v2566
  %v3162 = vsel %vm3108, %v3097, %v2568
  %v3163 = vsel %vm3108, %v3098, %v2570
  %v3164 = vsel %vm3108, %v3099, %v2572
  %v3165 = vsel %vm3108, %v3100, %v2574
  %v3166 = vsel %vm3108, %v3101, %v2576
  %v3167 = vsel %vm3108, %v3102, %v2578
  %v3168 = vsel %vm3108, %v3103, %v2580
  %v3169 = vsel %vm3108, %v3104, %v2582
  %v3170 = vsel %vm3108, %v3105, %v2584
  %v3171 = vsel %vm3108, %v3106, %v2586
  %v3172 = vsel %vm3108, %v3107, %v2588
  %v3173 = vpack.c.bf16 %v3110, %v3109
  %v3174 = vpack.c.bf16 %v3112, %v3111
  %v3175 = vpack.c.bf16 %v3114, %v3113
  %v3176 = vpack.c.bf16 %v3116, %v3115
  %v3177 = vpack.c.bf16 %v3118, %v3117
  %v3178 = vpack.c.bf16 %v3120, %v3119
  %v3179 = vpack.c.bf16 %v3122, %v3121
  %v3180 = vpack.c.bf16 %v3124, %v3123
  %v3181 = vpack.c.bf16 %v3126, %v3125
  %v3182 = vpack.c.bf16 %v3128, %v3127
  %v3183 = vpack.c.bf16 %v3130, %v3129
  %v3184 = vpack.c.bf16 %v3132, %v3131
  %v3185 = vpack.c.bf16 %v3134, %v3133
  %v3186 = vpack.c.bf16 %v3136, %v3135
  %v3187 = vpack.c.bf16 %v3138, %v3137
  %v3188 = vpack.c.bf16 %v3140, %v3139
  %v3189 = vpack.c.bf16 %v3142, %v3141
  %v3190 = vpack.c.bf16 %v3144, %v3143
  %v3191 = vpack.c.bf16 %v3146, %v3145
  %v3192 = vpack.c.bf16 %v3148, %v3147
  %v3193 = vpack.c.bf16 %v3150, %v3149
  %v3194 = vpack.c.bf16 %v3152, %v3151
  %v3195 = vpack.c.bf16 %v3154, %v3153
  %v3196 = vpack.c.bf16 %v3156, %v3155
  %v3197 = vpack.c.bf16 %v3158, %v3157
  %v3198 = vpack.c.bf16 %v3160, %v3159
  %v3199 = vpack.c.bf16 %v3162, %v3161
  %v3200 = vpack.c.bf16 %v3164, %v3163
  %v3201 = vpack.c.bf16 %v3166, %v3165
  %v3202 = vpack.c.bf16 %v3168, %v3167
  %v3203 = vpack.c.bf16 %v3170, %v3169
  %v3204 = vpack.c.bf16 %v3172, %v3171
  %v3205 = vld [vmem:[%s1] sm:$0xf]
  %v3206 = vld [vmem:[%s1 + $0x4] sm:$0xf]
  %v3207 = vld [vmem:[%s1 + $0x8] sm:$0xf]
  %v3208 = vld [vmem:[%s1 + $0xc] sm:$0xf]
  %v3209 = vld [vmem:[%s1 + $0x10] sm:$0x3]
  %v3215 = vunpack.c.l.b16 %v3205
  %v3216 = vunpack.c.l.b16 %v3206
  %v3217 = vunpack.c.l.b16 %v3207
  %v3218 = vunpack.c.l.b16 %v3208
  %v3219 = vunpack.c.l.b16 %v3209
  %v3220 = vpack.c.b16 %v3216, %v3215
  %v3221 = vpack.c.b16 %v3218, %v3217
  %v3222 = vpack.c.b16 %v3219, %v3219
  %vm3225 = vcmask 293888
  %v3227 = vsel %vm3225, %v3173, 0
  %v3230 = vsel %vm3225, %v3174, 0
  %v3233 = vsel %vm3225, %v3175, 0
  %v3236 = vsel %vm3225, %v3176, 0
  %v3239 = vsel %vm3225, %v3177, 0
  %v3242 = vsel %vm3225, %v3178, 0
  %v3245 = vsel %vm3225, %v3179, 0
  %v3248 = vsel %vm3225, %v3180, 0
  %v3251 = vsel %vm3225, %v3181, 0
  %v3254 = vsel %vm3225, %v3182, 0
  %v3257 = vsel %vm3225, %v3183, 0
  %v3260 = vsel %vm3225, %v3184, 0
  %v3263 = vsel %vm3225, %v3185, 0
  %v3266 = vsel %vm3225, %v3186, 0
  %v3269 = vsel %vm3225, %v3187, 0
  %v3272 = vsel %vm3225, %v3188, 0
  %v3275 = vsel %vm3225, %v3189, 0
  %v3278 = vsel %vm3225, %v3190, 0
  %v3281 = vsel %vm3225, %v3191, 0
  %v3284 = vsel %vm3225, %v3192, 0
  %v3287 = vsel %vm3225, %v3193, 0
  %v3290 = vsel %vm3225, %v3194, 0
  %v3293 = vsel %vm3225, %v3195, 0
  %v3296 = vsel %vm3225, %v3196, 0
  %v3299 = vsel %vm3225, %v3197, 0
  %v3302 = vsel %vm3225, %v3198, 0
  %v3305 = vsel %vm3225, %v3199, 0
  %v3308 = vsel %vm3225, %v3200, 0
  %v3311 = vsel %vm3225, %v3201, 0
  %v3314 = vsel %vm3225, %v3202, 0
  %v3317 = vsel %vm3225, %v3203, 0
  %v3320 = vsel %vm3225, %v3204, 0
  %vm3322 = vcmask 1041408
  %v3324 = vsel %vm3322, %v3222, 0
  %3326 = vmatprep.subr.bf16.mxu0 0
  %3327 = vmatpush1.bf16.msra.mxu0 %v3220
  %3328 = vmatprep.subr.bf16.mxu0 0
  %3329 = vmatpush1.bf16.msra.mxu0 %v3221
  %3330 = vmatprep.subr.bf16.mxu0 0
  %3331 = vmatpush1.bf16.msra.mxu0 %v3324
  %3332 = vmatprep.subr.bf16.mxu0 0
  %3333 = vmatpush1.bf16.msra.mxu0 0
  %3334 = vmatprep.subr.bf16.mxu0 0
  %3335 = vmatpush1.bf16.msra.mxu0 0
  %3336 = vmatprep.subr.bf16.mxu0 0
  %3337 = vmatpush1.bf16.msra.mxu0 0
  %3338 = vmatprep.subr.bf16.mxu0 0
  %3339 = vmatpush1.bf16.msra.mxu0 0
  %3340 = vmatprep.subr.bf16.mxu0 0
  %3341 = vmatpush1.bf16.msra.mxu0 0
  %3342 = vmatprep.subr.bf16.mxu0 0
  %3343 = vmatpush1.bf16.msra.mxu0 0
  %3344 = vmatprep.subr.bf16.mxu0 0
  %3345 = vmatpush1.bf16.msra.mxu0 0
  %3346 = vmatprep.subr.bf16.mxu0 0
  %3347 = vmatpush1.bf16.msra.mxu0 0
  %3348 = vmatprep.subr.bf16.mxu0 0
  %3349 = vmatpush1.bf16.msra.mxu0 0
  %3350 = vmatprep.subr.bf16.mxu0 0
  %3351 = vmatpush1.bf16.msra.mxu0 0
  %3352 = vmatprep.subr.bf16.mxu0 0
  %3353 = vmatpush1.bf16.msra.mxu0 0
  %3354 = vmatprep.subr.bf16.mxu0 0
  %3355 = vmatpush1.bf16.msra.mxu0 0
  %3356 = vmatprep.subr.bf16.mxu0 0
  %3357 = vmatpush1.bf16.msra.mxu0 0
  %3358 = vmatprep.mubr.bf16.mxu0 0
  %3359 = vmatmul.mubr.bf16.gmra.mrb[0].mxu0 %v3227
  %v3360 = vpop.f32.mrb[0].mxu0
  %v3361 = vadd.f32 0.0, %v3360
  %v3362 = vpop.f32.mrb[0].mxu0
  %v3363 = vpop.f32.mrb[0].mxu0
  %v3364 = vadd.f32 0.0, %v3363
  %v3365 = vpop.f32.mrb[0].mxu0
  %3366 = vmatprep.mubr.bf16.mxu0 0
  %3367 = vmatmul.mubr.bf16.gmra.mrb[0].mxu0 %v3230
  %v3368 = vpop.f32.mrb[0].mxu0
  %v3369 = vadd.f32 0.0, %v3368
  %v3370 = vpop.f32.mrb[0].mxu0
  %v3371 = vpop.f32.mrb[0].mxu0
  %v3372 = vadd.f32 0.0, %v3371
  %v3373 = vpop.f32.mrb[0].mxu0
  %3374 = vmatprep.mubr.bf16.mxu0 0
  %3375 = vmatmul.mubr.bf16.gmra.mrb[0].mxu0 %v3233
  %v3376 = vpop.f32.mrb[0].mxu0
  %v3377 = vadd.f32 0.0, %v3376
  %v3378 = vpop.f32.mrb[0].mxu0
  %v3379 = vpop.f32.mrb[0].mxu0
  %v3380 = vadd.f32 0.0, %v3379
  %v3381 = vpop.f32.mrb[0].mxu0
  %3382 = vmatprep.mubr.bf16.mxu0 0
  %3383 = vmatmul.mubr.bf16.gmra.mrb[0].mxu0 %v3236
  %v3384 = vpop.f32.mrb[0].mxu0
  %v3385 = vadd.f32 0.0, %v3384
  %v3386 = vpop.f32.mrb[0].mxu0
  %v3387 = vpop.f32.mrb[0].mxu0
  %v3388 = vadd.f32 0.0, %v3387
  %v3389 = vpop.f32.mrb[0].mxu0
  %3390 = vmatprep.mubr.bf16.mxu0 0
  %3391 = vmatmul.mubr.bf16.gmra.mrb[0].mxu0 %v3239
  %v3392 = vpop.f32.mrb[0].mxu0
  %v3393 = vadd.f32 0.0, %v3392
  %v3394 = vpop.f32.mrb[0].mxu0
  %v3395 = vpop.f32.mrb[0].mxu0
  %v3396 = vadd.f32 0.0, %v3395
  %v3397 = vpop.f32.mrb[0].mxu0
  %3398 = vmatprep.mubr.bf16.mxu0 0
  %3399 = vmatmul.mubr.bf16.gmra.mrb[0].mxu0 %v3242
  %v3400 = vpop.f32.mrb[0].mxu0
  %v3401 = vadd.f32 0.0, %v3400
  %v3402 = vpop.f32.mrb[0].mxu0
  %v3403 = vpop.f32.mrb[0].mxu0
  %v3404 = vadd.f32 0.0, %v3403
  %v3405 = vpop.f32.mrb[0].mxu0
  %3406 = vmatprep.mubr.bf16.mxu0 0
  %3407 = vmatmul.mubr.bf16.gmra.mrb[0].mxu0 %v3245
  %v3408 = vpop.f32.mrb[0].mxu0
  %v3409 = vadd.f32 0.0, %v3408
  %v3410 = vpop.f32.mrb[0].mxu0
  %v3411 = vpop.f32.mrb[0].mxu0
  %v3412 = vadd.f32 0.0, %v3411
  %v3413 = vpop.f32.mrb[0].mxu0
  %3414 = vmatprep.mubr.bf16.mxu0 0
  %3415 = vmatmul.mubr.bf16.gmra.mrb[0].mxu0 %v3248
  %v3416 = vpop.f32.mrb[0].mxu0
  %v3417 = vadd.f32 0.0, %v3416
  %v3418 = vpop.f32.mrb[0].mxu0
  %v3419 = vpop.f32.mrb[0].mxu0
  %v3420 = vadd.f32 0.0, %v3419
  %v3421 = vpop.f32.mrb[0].mxu0
  %3422 = vmatprep.mubr.bf16.mxu0 0
  %3423 = vmatmul.mubr.bf16.gmra.mrb[0].mxu0 %v3251
  %v3424 = vpop.f32.mrb[0].mxu0
  %v3425 = vadd.f32 0.0, %v3424
  %v3426 = vpop.f32.mrb[0].mxu0
  %v3427 = vpop.f32.mrb[0].mxu0
  %v3428 = vadd.f32 0.0, %v3427
  %v3429 = vpop.f32.mrb[0].mxu0
  %3430 = vmatprep.mubr.bf16.mxu0 0
  %3431 = vmatmul.mubr.bf16.gmra.mrb[0].mxu0 %v3254
  %v3432 = vpop.f32.mrb[0].mxu0
  %v3433 = vadd.f32 0.0, %v3432
  %v3434 = vpop.f32.mrb[0].mxu0
  %v3435 = vpop.f32.mrb[0].mxu0
  %v3436 = vadd.f32 0.0, %v3435
  %v3437 = vpop.f32.mrb[0].mxu0
  %3438 = vmatprep.mubr.bf16.mxu0 0
  %3439 = vmatmul.mubr.bf16.gmra.mrb[0].mxu0 %v3257
  %v3440 = vpop.f32.mrb[0].mxu0
  %v3441 = vadd.f32 0.0, %v3440
  %v3442 = vpop.f32.mrb[0].mxu0
  %v3443 = vpop.f32.mrb[0].mxu0
  %v3444 = vadd.f32 0.0, %v3443
  %v3445 = vpop.f32.mrb[0].mxu0
  %3446 = vmatprep.mubr.bf16.mxu0 0
  %3447 = vmatmul.mubr.bf16.gmra.mrb[0].mxu0 %v3260
  %v3448 = vpop.f32.mrb[0].mxu0
  %v3449 = vadd.f32 0.0, %v3448
  %v3450 = vpop.f32.mrb[0].mxu0
  %v3451 = vpop.f32.mrb[0].mxu0
  %v3452 = vadd.f32 0.0, %v3451
  %v3453 = vpop.f32.mrb[0].mxu0
  %3454 = vmatprep.mubr.bf16.mxu0 0
  %3455 = vmatmul.mubr.bf16.gmra.mrb[0].mxu0 %v3263
  %v3456 = vpop.f32.mrb[0].mxu0
  %v3457 = vadd.f32 0.0, %v3456
  %v3458 = vpop.f32.mrb[0].mxu0
  %v3459 = vpop.f32.mrb[0].mxu0
  %v3460 = vadd.f32 0.0, %v3459
  %v3461 = vpop.f32.mrb[0].mxu0
  %3462 = vmatprep.mubr.bf16.mxu0 0
  %3463 = vmatmul.mubr.bf16.gmra.mrb[0].mxu0 %v3266
  %v3464 = vpop.f32.mrb[0].mxu0
  %v3465 = vadd.f32 0.0, %v3464
  %v3466 = vpop.f32.mrb[0].mxu0
  %v3467 = vpop.f32.mrb[0].mxu0
  %v3468 = vadd.f32 0.0, %v3467
  %v3469 = vpop.f32.mrb[0].mxu0
  %3470 = vmatprep.mubr.bf16.mxu0 0
  %3471 = vmatmul.mubr.bf16.gmra.mrb[0].mxu0 %v3269
  %v3472 = vpop.f32.mrb[0].mxu0
  %v3473 = vadd.f32 0.0, %v3472
  %v3474 = vpop.f32.mrb[0].mxu0
  %v3475 = vpop.f32.mrb[0].mxu0
  %v3476 = vadd.f32 0.0, %v3475
  %v3477 = vpop.f32.mrb[0].mxu0
  %3478 = vmatprep.mubr.bf16.mxu0 0
  %3479 = vmatmul.mubr.bf16.gmra.mrb[0].mxu0 %v3272
  %v3480 = vpop.f32.mrb[0].mxu0
  %v3481 = vadd.f32 0.0, %v3480
  %v3482 = vpop.f32.mrb[0].mxu0
  %v3483 = vpop.f32.mrb[0].mxu0
  %v3484 = vadd.f32 0.0, %v3483
  %v3485 = vpop.f32.mrb[0].mxu0
  %3486 = vmatprep.mubr.bf16.mxu0 0
  %3487 = vmatmul.mubr.bf16.gmra.mrb[0].mxu0 %v3275
  %v3488 = vpop.f32.mrb[0].mxu0
  %v3489 = vadd.f32 0.0, %v3488
  %v3490 = vpop.f32.mrb[0].mxu0
  %v3491 = vpop.f32.mrb[0].mxu0
  %v3492 = vadd.f32 0.0, %v3491
  %v3493 = vpop.f32.mrb[0].mxu0
  %3494 = vmatprep.mubr.bf16.mxu0 0
  %3495 = vmatmul.mubr.bf16.gmra.mrb[0].mxu0 %v3278
  %v3496 = vpop.f32.mrb[0].mxu0
  %v3497 = vadd.f32 0.0, %v3496
  %v3498 = vpop.f32.mrb[0].mxu0
  %v3499 = vpop.f32.mrb[0].mxu0
  %v3500 = vadd.f32 0.0, %v3499
  %v3501 = vpop.f32.mrb[0].mxu0
  %3502 = vmatprep.mubr.bf16.mxu0 0
  %3503 = vmatmul.mubr.bf16.gmra.mrb[0].mxu0 %v3281
  %v3504 = vpop.f32.mrb[0].mxu0
  %v3505 = vadd.f32 0.0, %v3504
  %v3506 = vpop.f32.mrb[0].mxu0
  %v3507 = vpop.f32.mrb[0].mxu0
  %v3508 = vadd.f32 0.0, %v3507
  %v3509 = vpop.f32.mrb[0].mxu0
  %3510 = vmatprep.mubr.bf16.mxu0 0
  %3511 = vmatmul.mubr.bf16.gmra.mrb[0].mxu0 %v3284
  %v3512 = vpop.f32.mrb[0].mxu0
  %v3513 = vadd.f32 0.0, %v3512
  %v3514 = vpop.f32.mrb[0].mxu0
  %v3515 = vpop.f32.mrb[0].mxu0
  %v3516 = vadd.f32 0.0, %v3515
  %v3517 = vpop.f32.mrb[0].mxu0
  %3518 = vmatprep.mubr.bf16.mxu0 0
  %3519 = vmatmul.mubr.bf16.gmra.mrb[0].mxu0 %v3287
  %v3520 = vpop.f32.mrb[0].mxu0
  %v3521 = vadd.f32 0.0, %v3520
  %v3522 = vpop.f32.mrb[0].mxu0
  %v3523 = vpop.f32.mrb[0].mxu0
  %v3524 = vadd.f32 0.0, %v3523
  %v3525 = vpop.f32.mrb[0].mxu0
  %3526 = vmatprep.mubr.bf16.mxu0 0
  %3527 = vmatmul.mubr.bf16.gmra.mrb[0].mxu0 %v3290
  %v3528 = vpop.f32.mrb[0].mxu0
  %v3529 = vadd.f32 0.0, %v3528
  %v3530 = vpop.f32.mrb[0].mxu0
  %v3531 = vpop.f32.mrb[0].mxu0
  %v3532 = vadd.f32 0.0, %v3531
  %v3533 = vpop.f32.mrb[0].mxu0
  %3534 = vmatprep.mubr.bf16.mxu0 0
  %3535 = vmatmul.mubr.bf16.gmra.mrb[0].mxu0 %v3293
  %v3536 = vpop.f32.mrb[0].mxu0
  %v3537 = vadd.f32 0.0, %v3536
  %v3538 = vpop.f32.mrb[0].mxu0
  %v3539 = vpop.f32.mrb[0].mxu0
  %v3540 = vadd.f32 0.0, %v3539
  %v3541 = vpop.f32.mrb[0].mxu0
  %3542 = vmatprep.mubr.bf16.mxu0 0
  %3543 = vmatmul.mubr.bf16.gmra.mrb[0].mxu0 %v3296
  %v3544 = vpop.f32.mrb[0].mxu0
  %v3545 = vadd.f32 0.0, %v3544
  %v3546 = vpop.f32.mrb[0].mxu0
  %v3547 = vpop.f32.mrb[0].mxu0
  %v3548 = vadd.f32 0.0, %v3547
  %v3549 = vpop.f32.mrb[0].mxu0
  %3550 = vmatprep.mubr.bf16.mxu0 0
  %3551 = vmatmul.mubr.bf16.gmra.mrb[0].mxu0 %v3299
  %v3552 = vpop.f32.mrb[0].mxu0
  %v3553 = vadd.f32 0.0, %v3552
  %v3554 = vpop.f32.mrb[0].mxu0
  %v3555 = vpop.f32.mrb[0].mxu0
  %v3556 = vadd.f32 0.0, %v3555
  %v3557 = vpop.f32.mrb[0].mxu0
  %3558 = vmatprep.mubr.bf16.mxu0 0
  %3559 = vmatmul.mubr.bf16.gmra.mrb[0].mxu0 %v3302
  %v3560 = vpop.f32.mrb[0].mxu0
  %v3561 = vadd.f32 0.0, %v3560
  %v3562 = vpop.f32.mrb[0].mxu0
  %v3563 = vpop.f32.mrb[0].mxu0
  %v3564 = vadd.f32 0.0, %v3563
  %v3565 = vpop.f32.mrb[0].mxu0
  %3566 = vmatprep.mubr.bf16.mxu0 0
  %3567 = vmatmul.mubr.bf16.gmra.mrb[0].mxu0 %v3305
  %v3568 = vpop.f32.mrb[0].mxu0
  %v3569 = vadd.f32 0.0, %v3568
  %v3570 = vpop.f32.mrb[0].mxu0
  %v3571 = vpop.f32.mrb[0].mxu0
  %v3572 = vadd.f32 0.0, %v3571
  %v3573 = vpop.f32.mrb[0].mxu0
  %3574 = vmatprep.mubr.bf16.mxu0 0
  %3575 = vmatmul.mubr.bf16.gmra.mrb[0].mxu0 %v3308
  %v3576 = vpop.f32.mrb[0].mxu0
  %v3577 = vadd.f32 0.0, %v3576
  %v3578 = vpop.f32.mrb[0].mxu0
  %v3579 = vpop.f32.mrb[0].mxu0
  %v3580 = vadd.f32 0.0, %v3579
  %v3581 = vpop.f32.mrb[0].mxu0
  %3582 = vmatprep.mubr.bf16.mxu0 0
  %3583 = vmatmul.mubr.bf16.gmra.mrb[0].mxu0 %v3311
  %v3584 = vpop.f32.mrb[0].mxu0
  %v3585 = vadd.f32 0.0, %v3584
  %v3586 = vpop.f32.mrb[0].mxu0
  %v3587 = vpop.f32.mrb[0].mxu0
  %v3588 = vadd.f32 0.0, %v3587
  %v3589 = vpop.f32.mrb[0].mxu0
  %3590 = vmatprep.mubr.bf16.mxu0 0
  %3591 = vmatmul.mubr.bf16.gmra.mrb[0].mxu0 %v3314
  %v3592 = vpop.f32.mrb[0].mxu0
  %v3593 = vadd.f32 0.0, %v3592
  %v3594 = vpop.f32.mrb[0].mxu0
  %v3595 = vpop.f32.mrb[0].mxu0
  %v3596 = vadd.f32 0.0, %v3595
  %v3597 = vpop.f32.mrb[0].mxu0
  %3598 = vmatprep.mubr.bf16.mxu0 0
  %3599 = vmatmul.mubr.bf16.gmra.mrb[0].mxu0 %v3317
  %v3600 = vpop.f32.mrb[0].mxu0
  %v3601 = vadd.f32 0.0, %v3600
  %v3602 = vpop.f32.mrb[0].mxu0
  %v3603 = vpop.f32.mrb[0].mxu0
  %v3604 = vadd.f32 0.0, %v3603
  %v3605 = vpop.f32.mrb[0].mxu0
  %3606 = vmatprep.mubr.bf16.mxu0 0
  %3607 = vmatmul.mubr.bf16.gmra.mrb[0].mxu0 %v3320
  %v3608 = vpop.f32.mrb[0].mxu0
  %v3609 = vadd.f32 0.0, %v3608
  %v3610 = vpop.f32.mrb[0].mxu0
  %v3611 = vpop.f32.mrb[0].mxu0
  %v3612 = vadd.f32 0.0, %v3611
  %v3613 = vpop.f32.mrb[0].mxu0
  %3614 = vdwg.mxu0
  %v3615 = vadd.f32 %v3361, %v3364
  %v3616 = vadd.f32 %v3615, %v3369
  %v3617 = vadd.f32 %v3616, %v3372
  %v3618 = vadd.f32 %v3617, %v3377
  %v3619 = vadd.f32 %v3618, %v3380
  %v3620 = vadd.f32 %v3619, %v3385
  %v3621 = vadd.f32 %v3620, %v3388
  %v3622 = vadd.f32 %v3621, %v3393
  %v3623 = vadd.f32 %v3622, %v3396
  %v3624 = vadd.f32 %v3623, %v3401
  %v3625 = vadd.f32 %v3624, %v3404
  %v3626 = vadd.f32 %v3625, %v3409
  %v3627 = vadd.f32 %v3626, %v3412
  %v3628 = vadd.f32 %v3627, %v3417
  %v3629 = vadd.f32 %v3628, %v3420
  %v3630 = vadd.f32 %v3629, %v3425
  %v3631 = vadd.f32 %v3630, %v3428
  %v3632 = vadd.f32 %v3631, %v3433
  %v3633 = vadd.f32 %v3632, %v3436
  %v3634 = vadd.f32 %v3633, %v3441
  %v3635 = vadd.f32 %v3634, %v3444
  %v3636 = vadd.f32 %v3635, %v3449
  %v3637 = vadd.f32 %v3636, %v3452
  %v3638 = vadd.f32 %v3637, %v3457
  %v3639 = vadd.f32 %v3638, %v3460
  %v3640 = vadd.f32 %v3639, %v3465
  %v3641 = vadd.f32 %v3640, %v3468
  %v3642 = vadd.f32 %v3641, %v3473
  %v3643 = vadd.f32 %v3642, %v3476
  %v3644 = vadd.f32 %v3643, %v3481
  %v3645 = vadd.f32 %v3644, %v3484
  %v3646 = vadd.f32 %v3645, %v3489
  %v3647 = vadd.f32 %v3646, %v3492
  %v3648 = vadd.f32 %v3647, %v3497
  %v3649 = vadd.f32 %v3648, %v3500
  %v3650 = vadd.f32 %v3649, %v3505
  %v3651 = vadd.f32 %v3650, %v3508
  %v3652 = vadd.f32 %v3651, %v3513
  %v3653 = vadd.f32 %v3652, %v3516
  %v3654 = vadd.f32 %v3653, %v3521
  %v3655 = vadd.f32 %v3654, %v3524
  %v3656 = vadd.f32 %v3655, %v3529
  %v3657 = vadd.f32 %v3656, %v3532
  %v3658 = vadd.f32 %v3657, %v3537
  %v3659 = vadd.f32 %v3658, %v3540
  %v3660 = vadd.f32 %v3659, %v3545
  %v3661 = vadd.f32 %v3660, %v3548
  %v3662 = vadd.f32 %v3661, %v3553
  %v3663 = vadd.f32 %v3662, %v3556
  %v3664 = vadd.f32 %v3663, %v3561
  %v3665 = vadd.f32 %v3664, %v3564
  %v3666 = vadd.f32 %v3665, %v3569
  %v3667 = vadd.f32 %v3666, %v3572
  %v3668 = vadd.f32 %v3667, %v3577
  %v3669 = vadd.f32 %v3668, %v3580
  %v3670 = vadd.f32 %v3669, %v3585
  %v3671 = vadd.f32 %v3670, %v3588
  %v3672 = vadd.f32 %v3671, %v3593
  %v3673 = vadd.f32 %v3672, %v3596
  %v3674 = vadd.f32 %v3673, %v3601
  %v3675 = vadd.f32 %v3674, %v3604
  %v3676 = vadd.f32 %v3675, %v3609
  %v3677 = vadd.f32 %v3676, %v3612
  %v3678 = vrot.slane %v3677, 4
  %v3679 = vadd.f32 %v3677, %v3678
  %v3680 = vrot.slane %v3679, 2
  %v3681 = vadd.f32 %v3679, %v3680
  %v3682 = vrot.slane %v3681, 1
  %v3683 = vadd.f32 %v3681, %v3682
  %v3684 = vrcp.pop 512.0
  %v3685 = vmul.f32 %v3683, %v3684
  %v3686 = vsub.f32 %v3361, %v3685
  %v3687 = vsub.f32 %v3364, %v3685
  %v3688 = vsub.f32 %v3369, %v3685
  %v3689 = vsub.f32 %v3372, %v3685
  %v3690 = vsub.f32 %v3377, %v3685
  %v3691 = vsub.f32 %v3380, %v3685
  %v3692 = vsub.f32 %v3385, %v3685
  %v3693 = vsub.f32 %v3388, %v3685
  %v3694 = vsub.f32 %v3393, %v3685
  %v3695 = vsub.f32 %v3396, %v3685
  %v3696 = vsub.f32 %v3401, %v3685
  %v3697 = vsub.f32 %v3404, %v3685
  %v3698 = vsub.f32 %v3409, %v3685
  %v3699 = vsub.f32 %v3412, %v3685
  %v3700 = vsub.f32 %v3417, %v3685
  %v3701 = vsub.f32 %v3420, %v3685
  %v3702 = vsub.f32 %v3425, %v3685
  %v3703 = vsub.f32 %v3428, %v3685
  %v3704 = vsub.f32 %v3433, %v3685
  %v3705 = vsub.f32 %v3436, %v3685
  %v3706 = vsub.f32 %v3441, %v3685
  %v3707 = vsub.f32 %v3444, %v3685
  %v3708 = vsub.f32 %v3449, %v3685
  %v3709 = vsub.f32 %v3452, %v3685
  %v3710 = vsub.f32 %v3457, %v3685
  %v3711 = vsub.f32 %v3460, %v3685
  %v3712 = vsub.f32 %v3465, %v3685
  %v3713 = vsub.f32 %v3468, %v3685
  %v3714 = vsub.f32 %v3473, %v3685
  %v3715 = vsub.f32 %v3476, %v3685
  %v3716 = vsub.f32 %v3481, %v3685
  %v3717 = vsub.f32 %v3484, %v3685
  %v3718 = vsub.f32 %v3489, %v3685
  %v3719 = vsub.f32 %v3492, %v3685
  %v3720 = vsub.f32 %v3497, %v3685
  %v3721 = vsub.f32 %v3500, %v3685
  %v3722 = vsub.f32 %v3505, %v3685
  %v3723 = vsub.f32 %v3508, %v3685
  %v3724 = vsub.f32 %v3513, %v3685
  %v3725 = vsub.f32 %v3516, %v3685
  %v3726 = vsub.f32 %v3521, %v3685
  %v3727 = vsub.f32 %v3524, %v3685
  %v3728 = vsub.f32 %v3529, %v3685
  %v3729 = vsub.f32 %v3532, %v3685
  %v3730 = vsub.f32 %v3537, %v3685
  %v3731 = vsub.f32 %v3540, %v3685
  %v3732 = vsub.f32 %v3545, %v3685
  %v3733 = vsub.f32 %v3548, %v3685
  %v3734 = vsub.f32 %v3553, %v3685
  %v3735 = vsub.f32 %v3556, %v3685
  %v3736 = vsub.f32 %v3561, %v3685
  %v3737 = vsub.f32 %v3564, %v3685
  %v3738 = vsub.f32 %v3569, %v3685
  %v3739 = vsub.f32 %v3572, %v3685
  %v3740 = vsub.f32 %v3577, %v3685
  %v3741 = vsub.f32 %v3580, %v3685
  %v3742 = vsub.f32 %v3585, %v3685
  %v3743 = vsub.f32 %v3588, %v3685
  %v3744 = vsub.f32 %v3593, %v3685
  %v3745 = vsub.f32 %v3596, %v3685
  %v3746 = vsub.f32 %v3601, %v3685
  %v3747 = vsub.f32 %v3604, %v3685
  %v3748 = vsub.f32 %v3609, %v3685
  %v3749 = vsub.f32 %v3612, %v3685
  %v3750 = vmul.f32 %v3686, %v3686
  %v3751 = vmul.f32 %v3687, %v3687
  %v3752 = vmul.f32 %v3688, %v3688
  %v3753 = vmul.f32 %v3689, %v3689
  %v3754 = vmul.f32 %v3690, %v3690
  %v3755 = vmul.f32 %v3691, %v3691
  %v3756 = vmul.f32 %v3692, %v3692
  %v3757 = vmul.f32 %v3693, %v3693
  %v3758 = vmul.f32 %v3694, %v3694
  %v3759 = vmul.f32 %v3695, %v3695
  %v3760 = vmul.f32 %v3696, %v3696
  %v3761 = vmul.f32 %v3697, %v3697
  %v3762 = vmul.f32 %v3698, %v3698
  %v3763 = vmul.f32 %v3699, %v3699
  %v3764 = vmul.f32 %v3700, %v3700
  %v3765 = vmul.f32 %v3701, %v3701
  %v3766 = vmul.f32 %v3702, %v3702
  %v3767 = vmul.f32 %v3703, %v3703
  %v3768 = vmul.f32 %v3704, %v3704
  %v3769 = vmul.f32 %v3705, %v3705
  %v3770 = vmul.f32 %v3706, %v3706
  %v3771 = vmul.f32 %v3707, %v3707
  %v3772 = vmul.f32 %v3708, %v3708
  %v3773 = vmul.f32 %v3709, %v3709
  %v3774 = vmul.f32 %v3710, %v3710
  %v3775 = vmul.f32 %v3711, %v3711
  %v3776 = vmul.f32 %v3712, %v3712
  %v3777 = vmul.f32 %v3713, %v3713
  %v3778 = vmul.f32 %v3714, %v3714
  %v3779 = vmul.f32 %v3715, %v3715
  %v3780 = vmul.f32 %v3716, %v3716
  %v3781 = vmul.f32 %v3717, %v3717
  %v3782 = vmul.f32 %v3718, %v3718
  %v3783 = vmul.f32 %v3719, %v3719
  %v3784 = vmul.f32 %v3720, %v3720
  %v3785 = vmul.f32 %v3721, %v3721
  %v3786 = vmul.f32 %v3722, %v3722
  %v3787 = vmul.f32 %v3723, %v3723
  %v3788 = vmul.f32 %v3724, %v3724
  %v3789 = vmul.f32 %v3725, %v3725
  %v3790 = vmul.f32 %v3726, %v3726
  %v3791 = vmul.f32 %v3727, %v3727
  %v3792 = vmul.f32 %v3728, %v3728
  %v3793 = vmul.f32 %v3729, %v3729
  %v3794 = vmul.f32 %v3730, %v3730
  %v3795 = vmul.f32 %v3731, %v3731
  %v3796 = vmul.f32 %v3732, %v3732
  %v3797 = vmul.f32 %v3733, %v3733
  %v3798 = vmul.f32 %v3734, %v3734
  %v3799 = vmul.f32 %v3735, %v3735
  %v3800 = vmul.f32 %v3736, %v3736
  %v3801 = vmul.f32 %v3737, %v3737
  %v3802 = vmul.f32 %v3738, %v3738
  %v3803 = vmul.f32 %v3739, %v3739
  %v3804 = vmul.f32 %v3740, %v3740
  %v3805 = vmul.f32 %v3741, %v3741
  %v3806 = vmul.f32 %v3742, %v3742
  %v3807 = vmul.f32 %v3743, %v3743
  %v3808 = vmul.f32 %v3744, %v3744
  %v3809 = vmul.f32 %v3745, %v3745
  %v3810 = vmul.f32 %v3746, %v3746
  %v3811 = vmul.f32 %v3747, %v3747
  %v3812 = vmul.f32 %v3748, %v3748
  %v3813 = vmul.f32 %v3749, %v3749
  %v3814 = vadd.f32 %v3750, %v3751
  %v3815 = vadd.f32 %v3814, %v3752
  %v3816 = vadd.f32 %v3815, %v3753
  %v3817 = vadd.f32 %v3816, %v3754
  %v3818 = vadd.f32 %v3817, %v3755
  %v3819 = vadd.f32 %v3818, %v3756
  %v3820 = vadd.f32 %v3819, %v3757
  %v3821 = vadd.f32 %v3820, %v3758
  %v3822 = vadd.f32 %v3821, %v3759
  %v3823 = vadd.f32 %v3822, %v3760
  %v3824 = vadd.f32 %v3823, %v3761
  %v3825 = vadd.f32 %v3824, %v3762
  %v3826 = vadd.f32 %v3825, %v3763
  %v3827 = vadd.f32 %v3826, %v3764
  %v3828 = vadd.f32 %v3827, %v3765
  %v3829 = vadd.f32 %v3828, %v3766
  %v3830 = vadd.f32 %v3829, %v3767
  %v3831 = vadd.f32 %v3830, %v3768
  %v3832 = vadd.f32 %v3831, %v3769
  %v3833 = vadd.f32 %v3832, %v3770
  %v3834 = vadd.f32 %v3833, %v3771
  %v3835 = vadd.f32 %v3834, %v3772
  %v3836 = vadd.f32 %v3835, %v3773
  %v3837 = vadd.f32 %v3836, %v3774
  %v3838 = vadd.f32 %v3837, %v3775
  %v3839 = vadd.f32 %v3838, %v3776
  %v3840 = vadd.f32 %v3839, %v3777
  %v3841 = vadd.f32 %v3840, %v3778
  %v3842 = vadd.f32 %v3841, %v3779
  %v3843 = vadd.f32 %v3842, %v3780
  %v3844 = vadd.f32 %v3843, %v3781
  %v3845 = vadd.f32 %v3844, %v3782
  %v3846 = vadd.f32 %v3845, %v3783
  %v3847 = vadd.f32 %v3846, %v3784
  %v3848 = vadd.f32 %v3847, %v3785
  %v3849 = vadd.f32 %v3848, %v3786
  %v3850 = vadd.f32 %v3849, %v3787
  %v3851 = vadd.f32 %v3850, %v3788
  %v3852 = vadd.f32 %v3851, %v3789
  %v3853 = vadd.f32 %v3852, %v3790
  %v3854 = vadd.f32 %v3853, %v3791
  %v3855 = vadd.f32 %v3854, %v3792
  %v3856 = vadd.f32 %v3855, %v3793
  %v3857 = vadd.f32 %v3856, %v3794
  %v3858 = vadd.f32 %v3857, %v3795
  %v3859 = vadd.f32 %v3858, %v3796
  %v3860 = vadd.f32 %v3859, %v3797
  %v3861 = vadd.f32 %v3860, %v3798
  %v3862 = vadd.f32 %v3861, %v3799
  %v3863 = vadd.f32 %v3862, %v3800
  %v3864 = vadd.f32 %v3863, %v3801
  %v3865 = vadd.f32 %v3864, %v3802
  %v3866 = vadd.f32 %v3865, %v3803
  %v3867 = vadd.f32 %v3866, %v3804
  %v3868 = vadd.f32 %v3867, %v3805
  %v3869 = vadd.f32 %v3868, %v3806
  %v3870 = vadd.f32 %v3869, %v3807
  %v3871 = vadd.f32 %v3870, %v3808
  %v3872 = vadd.f32 %v3871, %v3809
  %v3873 = vadd.f32 %v3872, %v3810
  %v3874 = vadd.f32 %v3873, %v3811
  %v3875 = vadd.f32 %v3874, %v3812
  %v3876 = vadd.f32 %v3875, %v3813
  %v3877 = vrot.slane %v3876, 4
  %v3878 = vadd.f32 %v3876, %v3877
  %v3879 = vrot.slane %v3878, 2
  %v3880 = vadd.f32 %v3878, %v3879
  %v3881 = vrot.slane %v3880, 1
  %v3882 = vadd.f32 %v3880, %v3881
  %v3883 = vmul.f32 %v3882, %v3684
  %v3884 = vld [vmem:[%s2] sm:$0x1]
  %v3885 = vadd.f32 %v3883, 1e-05
  %v3886 = vrsqrt.pop %v3885
  %v3887 = vmul.f32 %v3884, %v3886
  %v3888 = vld [vmem:[%s3] sm:$0x1]
  %v3889 = vmul.f32 %v3685, %v3887
  %v3890 = vsub.f32 %v3888, %v3889
  %v3892 = vlaneseq
  %v3893 = vshrl.u32 %v3892, 7
  %v3894 = vsub.s32 0, %v3893
  %v3895 = vrot.slane %v3887, %v3894
  %v3897 = vmul.f32 %v3361, %v3895
  %v3898 = vmul.f32 %v3364, %v3895
  %v3899 = vmul.f32 %v3369, %v3895
  %v3900 = vmul.f32 %v3372, %v3895
  %v3901 = vmul.f32 %v3377, %v3895
  %v3902 = vmul.f32 %v3380, %v3895
  %v3903 = vmul.f32 %v3385, %v3895
  %v3904 = vmul.f32 %v3388, %v3895
  %v3905 = vmul.f32 %v3393, %v3895
  %v3906 = vmul.f32 %v3396, %v3895
  %v3907 = vmul.f32 %v3401, %v3895
  %v3908 = vmul.f32 %v3404, %v3895
  %v3909 = vmul.f32 %v3409, %v3895
  %v3910 = vmul.f32 %v3412, %v3895
  %v3911 = vmul.f32 %v3417, %v3895
  %v3912 = vmul.f32 %v3420, %v3895
  %v3913 = vmul.f32 %v3425, %v3895
  %v3914 = vmul.f32 %v3428, %v3895
  %v3915 = vmul.f32 %v3433, %v3895
  %v3916 = vmul.f32 %v3436, %v3895
  %v3917 = vmul.f32 %v3441, %v3895
  %v3918 = vmul.f32 %v3444, %v3895
  %v3919 = vmul.f32 %v3449, %v3895
  %v3920 = vmul.f32 %v3452, %v3895
  %v3921 = vmul.f32 %v3457, %v3895
  %v3922 = vmul.f32 %v3460, %v3895
  %v3923 = vmul.f32 %v3465, %v3895
  %v3924 = vmul.f32 %v3468, %v3895
  %v3925 = vmul.f32 %v3473, %v3895
  %v3926 = vmul.f32 %v3476, %v3895
  %v3927 = vmul.f32 %v3481, %v3895
  %v3928 = vmul.f32 %v3484, %v3895
  %v3929 = vmul.f32 %v3489, %v3895
  %v3930 = vmul.f32 %v3492, %v3895
  %v3931 = vmul.f32 %v3497, %v3895
  %v3932 = vmul.f32 %v3500, %v3895
  %v3933 = vmul.f32 %v3505, %v3895
  %v3934 = vmul.f32 %v3508, %v3895
  %v3935 = vmul.f32 %v3513, %v3895
  %v3936 = vmul.f32 %v3516, %v3895
  %v3937 = vmul.f32 %v3521, %v3895
  %v3938 = vmul.f32 %v3524, %v3895
  %v3939 = vmul.f32 %v3529, %v3895
  %v3940 = vmul.f32 %v3532, %v3895
  %v3941 = vmul.f32 %v3537, %v3895
  %v3942 = vmul.f32 %v3540, %v3895
  %v3943 = vmul.f32 %v3545, %v3895
  %v3944 = vmul.f32 %v3548, %v3895
  %v3945 = vmul.f32 %v3553, %v3895
  %v3946 = vmul.f32 %v3556, %v3895
  %v3947 = vmul.f32 %v3561, %v3895
  %v3948 = vmul.f32 %v3564, %v3895
  %v3949 = vmul.f32 %v3569, %v3895
  %v3950 = vmul.f32 %v3572, %v3895
  %v3951 = vmul.f32 %v3577, %v3895
  %v3952 = vmul.f32 %v3580, %v3895
  %v3953 = vmul.f32 %v3585, %v3895
  %v3954 = vmul.f32 %v3588, %v3895
  %v3955 = vmul.f32 %v3593, %v3895
  %v3956 = vmul.f32 %v3596, %v3895
  %v3957 = vmul.f32 %v3601, %v3895
  %v3958 = vmul.f32 %v3604, %v3895
  %v3959 = vmul.f32 %v3609, %v3895
  %v3960 = vmul.f32 %v3612, %v3895
  %v3962 = vlaneseq
  %v3963 = vshrl.u32 %v3962, 7
  %v3964 = vsub.s32 0, %v3963
  %v3965 = vrot.slane %v3890, %v3964
  %v3967 = vadd.f32 %v3897, %v3965
  %v3968 = vadd.f32 %v3898, %v3965
  %v3969 = vadd.f32 %v3899, %v3965
  %v3970 = vadd.f32 %v3900, %v3965
  %v3971 = vadd.f32 %v3901, %v3965
  %v3972 = vadd.f32 %v3902, %v3965
  %v3973 = vadd.f32 %v3903, %v3965
  %v3974 = vadd.f32 %v3904, %v3965
  %v3975 = vadd.f32 %v3905, %v3965
  %v3976 = vadd.f32 %v3906, %v3965
  %v3977 = vadd.f32 %v3907, %v3965
  %v3978 = vadd.f32 %v3908, %v3965
  %v3979 = vadd.f32 %v3909, %v3965
  %v3980 = vadd.f32 %v3910, %v3965
  %v3981 = vadd.f32 %v3911, %v3965
  %v3982 = vadd.f32 %v3912, %v3965
  %v3983 = vadd.f32 %v3913, %v3965
  %v3984 = vadd.f32 %v3914, %v3965
  %v3985 = vadd.f32 %v3915, %v3965
  %v3986 = vadd.f32 %v3916, %v3965
  %v3987 = vadd.f32 %v3917, %v3965
  %v3988 = vadd.f32 %v3918, %v3965
  %v3989 = vadd.f32 %v3919, %v3965
  %v3990 = vadd.f32 %v3920, %v3965
  %v3991 = vadd.f32 %v3921, %v3965
  %v3992 = vadd.f32 %v3922, %v3965
  %v3993 = vadd.f32 %v3923, %v3965
  %v3994 = vadd.f32 %v3924, %v3965
  %v3995 = vadd.f32 %v3925, %v3965
  %v3996 = vadd.f32 %v3926, %v3965
  %v3997 = vadd.f32 %v3927, %v3965
  %v3998 = vadd.f32 %v3928, %v3965
  %v3999 = vadd.f32 %v3929, %v3965
  %v4000 = vadd.f32 %v3930, %v3965
  %v4001 = vadd.f32 %v3931, %v3965
  %v4002 = vadd.f32 %v3932, %v3965
  %v4003 = vadd.f32 %v3933, %v3965
  %v4004 = vadd.f32 %v3934, %v3965
  %v4005 = vadd.f32 %v3935, %v3965
  %v4006 = vadd.f32 %v3936, %v3965
  %v4007 = vadd.f32 %v3937, %v3965
  %v4008 = vadd.f32 %v3938, %v3965
  %v4009 = vadd.f32 %v3939, %v3965
  %v4010 = vadd.f32 %v3940, %v3965
  %v4011 = vadd.f32 %v3941, %v3965
  %v4012 = vadd.f32 %v3942, %v3965
  %v4013 = vadd.f32 %v3943, %v3965
  %v4014 = vadd.f32 %v3944, %v3965
  %v4015 = vadd.f32 %v3945, %v3965
  %v4016 = vadd.f32 %v3946, %v3965
  %v4017 = vadd.f32 %v3947, %v3965
  %v4018 = vadd.f32 %v3948, %v3965
  %v4019 = vadd.f32 %v3949, %v3965
  %v4020 = vadd.f32 %v3950, %v3965
  %v4021 = vadd.f32 %v3951, %v3965
  %v4022 = vadd.f32 %v3952, %v3965
  %v4023 = vadd.f32 %v3953, %v3965
  %v4024 = vadd.f32 %v3954, %v3965
  %v4025 = vadd.f32 %v3955, %v3965
  %v4026 = vadd.f32 %v3956, %v3965
  %v4027 = vadd.f32 %v3957, %v3965
  %v4028 = vadd.f32 %v3958, %v3965
  %v4029 = vadd.f32 %v3959, %v3965
  %v4030 = vadd.f32 %v3960, %v3965
  %v4031 = vmax.f32 %v3967, 0.0
  %v4032 = vmax.f32 %v3968, 0.0
  %v4033 = vmax.f32 %v3969, 0.0
  %v4034 = vmax.f32 %v3970, 0.0
  %v4035 = vmax.f32 %v3971, 0.0
  %v4036 = vmax.f32 %v3972, 0.0
  %v4037 = vmax.f32 %v3973, 0.0
  %v4038 = vmax.f32 %v3974, 0.0
  %v4039 = vmax.f32 %v3975, 0.0
  %v4040 = vmax.f32 %v3976, 0.0
  %v4041 = vmax.f32 %v3977, 0.0
  %v4042 = vmax.f32 %v3978, 0.0
  %v4043 = vmax.f32 %v3979, 0.0
  %v4044 = vmax.f32 %v3980, 0.0
  %v4045 = vmax.f32 %v3981, 0.0
  %v4046 = vmax.f32 %v3982, 0.0
  %v4047 = vmax.f32 %v3983, 0.0
  %v4048 = vmax.f32 %v3984, 0.0
  %v4049 = vmax.f32 %v3985, 0.0
  %v4050 = vmax.f32 %v3986, 0.0
  %v4051 = vmax.f32 %v3987, 0.0
  %v4052 = vmax.f32 %v3988, 0.0
  %v4053 = vmax.f32 %v3989, 0.0
  %v4054 = vmax.f32 %v3990, 0.0
  %v4055 = vmax.f32 %v3991, 0.0
  %v4056 = vmax.f32 %v3992, 0.0
  %v4057 = vmax.f32 %v3993, 0.0
  %v4058 = vmax.f32 %v3994, 0.0
  %v4059 = vmax.f32 %v3995, 0.0
  %v4060 = vmax.f32 %v3996, 0.0
  %v4061 = vmax.f32 %v3997, 0.0
  %v4062 = vmax.f32 %v3998, 0.0
  %v4063 = vmax.f32 %v3999, 0.0
  %v4064 = vmax.f32 %v4000, 0.0
  %v4065 = vmax.f32 %v4001, 0.0
  %v4066 = vmax.f32 %v4002, 0.0
  %v4067 = vmax.f32 %v4003, 0.0
  %v4068 = vmax.f32 %v4004, 0.0
  %v4069 = vmax.f32 %v4005, 0.0
  %v4070 = vmax.f32 %v4006, 0.0
  %v4071 = vmax.f32 %v4007, 0.0
  %v4072 = vmax.f32 %v4008, 0.0
  %v4073 = vmax.f32 %v4009, 0.0
  %v4074 = vmax.f32 %v4010, 0.0
  %v4075 = vmax.f32 %v4011, 0.0
  %v4076 = vmax.f32 %v4012, 0.0
  %v4077 = vmax.f32 %v4013, 0.0
  %v4078 = vmax.f32 %v4014, 0.0
  %v4079 = vmax.f32 %v4015, 0.0
  %v4080 = vmax.f32 %v4016, 0.0
  %v4081 = vmax.f32 %v4017, 0.0
  %v4082 = vmax.f32 %v4018, 0.0
  %v4083 = vmax.f32 %v4019, 0.0
  %v4084 = vmax.f32 %v4020, 0.0
  %v4085 = vmax.f32 %v4021, 0.0
  %v4086 = vmax.f32 %v4022, 0.0
  %v4087 = vmax.f32 %v4023, 0.0
  %v4088 = vmax.f32 %v4024, 0.0
  %v4089 = vmax.f32 %v4025, 0.0
  %v4090 = vmax.f32 %v4026, 0.0
  %v4091 = vmax.f32 %v4027, 0.0
  %v4092 = vmax.f32 %v4028, 0.0
  %v4093 = vmax.f32 %v4029, 0.0
  %v4094 = vmax.f32 %v4030, 0.0
  %s4095 = scalar_lea.vmem [#allocation2], 24
  %4096 = vst [vmem:[%s4095 + $0x1] sm:$0xff] %v4031
  %4097 = vst [vmem:[%s4095 + $0x9] sm:$0xff] %v4032
  %4098 = vst [vmem:[%s4095 + $0x19] sm:$0xff] %v4033
  %4099 = vst [vmem:[%s4095 + $0x21] sm:$0xff] %v4034
  %4100 = vst [vmem:[%s4095 + $0x31] sm:$0xff] %v4035
  %4101 = vst [vmem:[%s4095 + $0x39] sm:$0xff] %v4036
  %4102 = vst [vmem:[%s4095 + $0x49] sm:$0xff] %v4037
  %4103 = vst [vmem:[%s4095 + $0x51] sm:$0xff] %v4038
  %4104 = vst [vmem:[%s4095 + $0x61] sm:$0xff] %v4039
  %4105 = vst [vmem:[%s4095 + $0x69] sm:$0xff] %v4040
  %4106 = vst [vmem:[%s4095 + $0x79] sm:$0xff] %v4041
  %4107 = vst [vmem:[%s4095 + $0x81] sm:$0xff] %v4042
  %4108 = vst [vmem:[%s4095 + $0x91] sm:$0xff] %v4043
  %4109 = vst [vmem:[%s4095 + $0x99] sm:$0xff] %v4044
  %4110 = vst [vmem:[%s4095 + $0xa9] sm:$0xff] %v4045
  %4111 = vst [vmem:[%s4095 + $0xb1] sm:$0xff] %v4046
  %4112 = vst [vmem:[%s4095 + $0xc1] sm:$0xff] %v4047
  %4113 = vst [vmem:[%s4095 + $0xc9] sm:$0xff] %v4048
  %4114 = vst [vmem:[%s4095 + $0xd9] sm:$0xff] %v4049
  %4115 = vst [vmem:[%s4095 + $0xe1] sm:$0xff] %v4050
  %4116 = vst [vmem:[%s4095 + $0xf1] sm:$0xff] %v4051
  %4117 = vst [vmem:[%s4095 + $0xf9] sm:$0xff] %v4052
  %4118 = vst [vmem:[%s4095 + $0x109] sm:$0xff] %v4053
  %4119 = vst [vmem:[%s4095 + $0x111] sm:$0xff] %v4054
  %4120 = vst [vmem:[%s4095 + $0x121] sm:$0xff] %v4055
  %4121 = vst [vmem:[%s4095 + $0x129] sm:$0xff] %v4056
  %4122 = vst [vmem:[%s4095 + $0x139] sm:$0xff] %v4057
  %4123 = vst [vmem:[%s4095 + $0x141] sm:$0xff] %v4058
  %4124 = vst [vmem:[%s4095 + $0x151] sm:$0xff] %v4059
  %4125 = vst [vmem:[%s4095 + $0x159] sm:$0xff] %v4060
  %4126 = vst [vmem:[%s4095 + $0x169] sm:$0xff] %v4061
  %4127 = vst [vmem:[%s4095 + $0x171] sm:$0xff] %v4062
  %4128 = vst [vmem:[%s4095 + $0x1b1] sm:$0xff] %v4063
  %4129 = vst [vmem:[%s4095 + $0x1b9] sm:$0xff] %v4064
  %4130 = vst [vmem:[%s4095 + $0x1c9] sm:$0xff] %v4065
  %4131 = vst [vmem:[%s4095 + $0x1d1] sm:$0xff] %v4066
  %4132 = vst [vmem:[%s4095 + $0x1e1] sm:$0xff] %v4067
  %4133 = vst [vmem:[%s4095 + $0x1e9] sm:$0xff] %v4068
  %4134 = vst [vmem:[%s4095 + $0x1f9] sm:$0xff] %v4069
  %4135 = vst [vmem:[%s4095 + $0x201] sm:$0xff] %v4070
  %4136 = vst [vmem:[%s4095 + $0x211] sm:$0xff] %v4071
  %4137 = vst [vmem:[%s4095 + $0x219] sm:$0xff] %v4072
  %4138 = vst [vmem:[%s4095 + $0x229] sm:$0xff] %v4073
  %4139 = vst [vmem:[%s4095 + $0x231] sm:$0xff] %v4074
  %4140 = vst [vmem:[%s4095 + $0x241] sm:$0xff] %v4075
  %4141 = vst [vmem:[%s4095 + $0x249] sm:$0xff] %v4076
  %4142 = vst [vmem:[%s4095 + $0x259] sm:$0xff] %v4077
  %4143 = vst [vmem:[%s4095 + $0x261] sm:$0xff] %v4078
  %4144 = vst [vmem:[%s4095 + $0x271] sm:$0xff] %v4079
  %4145 = vst [vmem:[%s4095 + $0x279] sm:$0xff] %v4080
  %4146 = vst [vmem:[%s4095 + $0x289] sm:$0xff] %v4081
  %4147 = vst [vmem:[%s4095 + $0x291] sm:$0xff] %v4082
  %4148 = vst [vmem:[%s4095 + $0x2a1] sm:$0xff] %v4083
  %4149 = vst [vmem:[%s4095 + $0x2a9] sm:$0xff] %v4084
  %4150 = vst [vmem:[%s4095 + $0x2b9] sm:$0xff] %v4085
  %4151 = vst [vmem:[%s4095 + $0x2c1] sm:$0xff] %v4086
  %4152 = vst [vmem:[%s4095 + $0x2d1] sm:$0xff] %v4087
  %4153 = vst [vmem:[%s4095 + $0x2d9] sm:$0xff] %v4088
  %4154 = vst [vmem:[%s4095 + $0x2e9] sm:$0xff] %v4089
  %4155 = vst [vmem:[%s4095 + $0x2f1] sm:$0xff] %v4090
  %4156 = vst [vmem:[%s4095 + $0x301] sm:$0xff] %v4091
  %4157 = vst [vmem:[%s4095 + $0x309] sm:$0xff] %v4092
  %4158 = vst [vmem:[%s4095 + $0x319] sm:$0xff] %v4093
  %4159 = vst [vmem:[%s4095 + $0x321] sm:$0xff] %v4094
  %4160 = vst [vmem:[#allocation2] sm:$0xff] 0.0
  %4161 = vst [vmem:[#allocation2 + $0x8] sm:$0xff] 0.0
  %4162 = vst [vmem:[#allocation2 + $0x10] sm:$0x3] 0.0
  %4163 = vst [vmem:[#allocation2 + $0x1b0] sm:$0xff] 0.0
  %4164 = vst [vmem:[#allocation2 + $0x1b8] sm:$0xff] 0.0
  %4165 = vst [vmem:[#allocation2 + $0x1c0] sm:$0x3] 0.0
  %s4166 = scalar_lea.vmem [#allocation2], 408
  %4167 = vst [vmem:[%s4166] sm:$0xff] 0.0
  %4168 = vst [vmem:[%s4166 + $0x8] sm:$0xff] 0.0
  %4169 = vst [vmem:[%s4166 + $0x10] sm:$0x3] 0.0
  %4170 = vst [vmem:[%s4166 + $0x1b0] sm:$0xff] 0.0
  %4171 = vst [vmem:[%s4166 + $0x1b8] sm:$0xff] 0.0
  %4172 = vst [vmem:[%s4166 + $0x1c0] sm:$0x3] 0.0
  %4173 = vst [vmem:[%s4095] sm:$0x1] 0.0
  %4174 = vst [vmem:[%s4095 + $0x18] sm:$0x1] 0.0
  %4175 = vst [vmem:[%s4095 + $0x30] sm:$0x1] 0.0
  %4176 = vst [vmem:[%s4095 + $0x48] sm:$0x1] 0.0
  %4177 = vst [vmem:[%s4095 + $0x60] sm:$0x1] 0.0
  %4178 = vst [vmem:[%s4095 + $0x78] sm:$0x1] 0.0
  %4179 = vst [vmem:[%s4095 + $0x90] sm:$0x1] 0.0
  %4180 = vst [vmem:[%s4095 + $0xa8] sm:$0x1] 0.0
  %4181 = vst [vmem:[%s4095 + $0xc0] sm:$0x1] 0.0
  %4182 = vst [vmem:[%s4095 + $0xd8] sm:$0x1] 0.0
  %4183 = vst [vmem:[%s4095 + $0xf0] sm:$0x1] 0.0
  %4184 = vst [vmem:[%s4095 + $0x108] sm:$0x1] 0.0
  %4185 = vst [vmem:[%s4095 + $0x120] sm:$0x1] 0.0
  %4186 = vst [vmem:[%s4095 + $0x138] sm:$0x1] 0.0
  %4187 = vst [vmem:[%s4095 + $0x150] sm:$0x1] 0.0
  %4188 = vst [vmem:[%s4095 + $0x168] sm:$0x1] 0.0
  %4189 = vst [vmem:[%s4095 + $0x1b0] sm:$0x1] 0.0
  %4190 = vst [vmem:[%s4095 + $0x1c8] sm:$0x1] 0.0
  %4191 = vst [vmem:[%s4095 + $0x1e0] sm:$0x1] 0.0
  %4192 = vst [vmem:[%s4095 + $0x1f8] sm:$0x1] 0.0
  %4193 = vst [vmem:[%s4095 + $0x210] sm:$0x1] 0.0
  %4194 = vst [vmem:[%s4095 + $0x228] sm:$0x1] 0.0
  %4195 = vst [vmem:[%s4095 + $0x240] sm:$0x1] 0.0
  %4196 = vst [vmem:[%s4095 + $0x258] sm:$0x1] 0.0
  %4197 = vst [vmem:[%s4095 + $0x270] sm:$0x1] 0.0
  %4198 = vst [vmem:[%s4095 + $0x288] sm:$0x1] 0.0
  %4199 = vst [vmem:[%s4095 + $0x2a0] sm:$0x1] 0.0
  %4200 = vst [vmem:[%s4095 + $0x2b8] sm:$0x1] 0.0
  %4201 = vst [vmem:[%s4095 + $0x2d0] sm:$0x1] 0.0
  %4202 = vst [vmem:[%s4095 + $0x2e8] sm:$0x1] 0.0
  %4203 = vst [vmem:[%s4095 + $0x300] sm:$0x1] 0.0
  %4204 = vst [vmem:[%s4095 + $0x318] sm:$0x1] 0.0
  %4205 = vst [vmem:[%s4095 + $0x11] sm:$0x1] 0.0
  %4206 = vst [vmem:[%s4095 + $0x29] sm:$0x1] 0.0
  %4207 = vst [vmem:[%s4095 + $0x41] sm:$0x1] 0.0
  %4208 = vst [vmem:[%s4095 + $0x59] sm:$0x1] 0.0
  %4209 = vst [vmem:[%s4095 + $0x71] sm:$0x1] 0.0
  %4210 = vst [vmem:[%s4095 + $0x89] sm:$0x1] 0.0
  %4211 = vst [vmem:[%s4095 + $0xa1] sm:$0x1] 0.0
  %4212 = vst [vmem:[%s4095 + $0xb9] sm:$0x1] 0.0
  %4213 = vst [vmem:[%s4095 + $0xd1] sm:$0x1] 0.0
  %4214 = vst [vmem:[%s4095 + $0xe9] sm:$0x1] 0.0
  %4215 = vst [vmem:[%s4095 + $0x101] sm:$0x1] 0.0
  %4216 = vst [vmem:[%s4095 + $0x119] sm:$0x1] 0.0
  %4217 = vst [vmem:[%s4095 + $0x131] sm:$0x1] 0.0
  %4218 = vst [vmem:[%s4095 + $0x149] sm:$0x1] 0.0
  %4219 = vst [vmem:[%s4095 + $0x161] sm:$0x1] 0.0
  %4220 = vst [vmem:[%s4095 + $0x179] sm:$0x1] 0.0
  %4221 = vst [vmem:[%s4095 + $0x1c1] sm:$0x1] 0.0
  %4222 = vst [vmem:[%s4095 + $0x1d9] sm:$0x1] 0.0
  %4223 = vst [vmem:[%s4095 + $0x1f1] sm:$0x1] 0.0
  %4224 = vst [vmem:[%s4095 + $0x209] sm:$0x1] 0.0
  %4225 = vst [vmem:[%s4095 + $0x221] sm:$0x1] 0.0
  %4226 = vst [vmem:[%s4095 + $0x239] sm:$0x1] 0.0
  %4227 = vst [vmem:[%s4095 + $0x251] sm:$0x1] 0.0
  %4228 = vst [vmem:[%s4095 + $0x269] sm:$0x1] 0.0
  %4229 = vst [vmem:[%s4095 + $0x281] sm:$0x1] 0.0
  %4230 = vst [vmem:[%s4095 + $0x299] sm:$0x1] 0.0
  %4231 = vst [vmem:[%s4095 + $0x2b1] sm:$0x1] 0.0
  %4232 = vst [vmem:[%s4095 + $0x2c9] sm:$0x1] 0.0
  %4233 = vst [vmem:[%s4095 + $0x2e1] sm:$0x1] 0.0
  %4234 = vst [vmem:[%s4095 + $0x2f9] sm:$0x1] 0.0
  %4235 = vst [vmem:[%s4095 + $0x311] sm:$0x1] 0.0
  %4236 = vst [vmem:[%s4095 + $0x329] sm:$0x1] 0.0
  %v4237 = vld [vmem:[#allocation2] sm:$0xff]
  %v4238 = vld [vmem:[#allocation2 + $0x8] sm:$0xff]
  %v4239 = vld [vmem:[#allocation2 + $0x18] sm:$0xff]
  %v4240 = vld [vmem:[#allocation2 + $0x20] sm:$0xff]
  %v4241 = vld [vmem:[#allocation2 + $0x30] sm:$0xff]
  %v4242 = vld [vmem:[#allocation2 + $0x38] sm:$0xff]
  %v4243 = vld [vmem:[#allocation2 + $0x48] sm:$0xff]
  %v4244 = vld [vmem:[#allocation2 + $0x50] sm:$0xff]
  %v4245 = vld [vmem:[#allocation2 + $0x60] sm:$0xff]
  %v4246 = vld [vmem:[#allocation2 + $0x68] sm:$0xff]
  %v4247 = vld [vmem:[#allocation2 + $0x78] sm:$0xff]
  %v4248 = vld [vmem:[#allocation2 + $0x80] sm:$0xff]
  %v4249 = vld [vmem:[#allocation2 + $0x90] sm:$0xff]
  %v4250 = vld [vmem:[#allocation2 + $0x98] sm:$0xff]
  %v4251 = vld [vmem:[#allocation2 + $0xa8] sm:$0xff]
  %v4252 = vld [vmem:[#allocation2 + $0xb0] sm:$0xff]
  %v4253 = vld [vmem:[#allocation2 + $0xc0] sm:$0xff]
  %v4254 = vld [vmem:[#allocation2 + $0xc8] sm:$0xff]
  %v4255 = vld [vmem:[#allocation2 + $0xd8] sm:$0xff]
  %v4256 = vld [vmem:[#allocation2 + $0xe0] sm:$0xff]
  %v4257 = vld [vmem:[#allocation2 + $0xf0] sm:$0xff]
  %v4258 = vld [vmem:[#allocation2 + $0xf8] sm:$0xff]
  %v4259 = vld [vmem:[#allocation2 + $0x108] sm:$0xff]
  %v4260 = vld [vmem:[#allocation2 + $0x110] sm:$0xff]
  %v4261 = vld [vmem:[#allocation2 + $0x120] sm:$0xff]
  %v4262 = vld [vmem:[#allocation2 + $0x128] sm:$0xff]
  %v4263 = vld [vmem:[#allocation2 + $0x138] sm:$0xff]
  %v4264 = vld [vmem:[#allocation2 + $0x140] sm:$0xff]
  %v4265 = vld [vmem:[#allocation2 + $0x150] sm:$0xff]
  %v4266 = vld [vmem:[#allocation2 + $0x158] sm:$0xff]
  %v4267 = vld [vmem:[#allocation2 + $0x168] sm:$0xff]
  %v4268 = vld [vmem:[#allocation2 + $0x170] sm:$0xff]
  %v4269 = vld [vmem:[#allocation2 + $0x1b0] sm:$0xff]
  %v4270 = vld [vmem:[#allocation2 + $0x1b8] sm:$0xff]
  %v4271 = vld [vmem:[#allocation2 + $0x1c8] sm:$0xff]
  %v4272 = vld [vmem:[#allocation2 + $0x1d0] sm:$0xff]
  %v4273 = vld [vmem:[#allocation2 + $0x1e0] sm:$0xff]
  %v4274 = vld [vmem:[#allocation2 + $0x1e8] sm:$0xff]
  %v4275 = vld [vmem:[#allocation2 + $0x1f8] sm:$0xff]
  %v4276 = vld [vmem:[#allocation2 + $0x200] sm:$0xff]
  %v4277 = vld [vmem:[#allocation2 + $0x210] sm:$0xff]
  %v4278 = vld [vmem:[#allocation2 + $0x218] sm:$0xff]
  %v4279 = vld [vmem:[#allocation2 + $0x228] sm:$0xff]
  %v4280 = vld [vmem:[#allocation2 + $0x230] sm:$0xff]
  %v4281 = vld [vmem:[#allocation2 + $0x240] sm:$0xff]
  %v4282 = vld [vmem:[#allocation2 + $0x248] sm:$0xff]
  %v4283 = vld [vmem:[#allocation2 + $0x258] sm:$0xff]
  %v4284 = vld [vmem:[#allocation2 + $0x260] sm:$0xff]
  %v4285 = vld [vmem:[#allocation2 + $0x270] sm:$0xff]
  %v4286 = vld [vmem:[#allocation2 + $0x278] sm:$0xff]
  %v4287 = vld [vmem:[#allocation2 + $0x288] sm:$0xff]
  %v4288 = vld [vmem:[#allocation2 + $0x290] sm:$0xff]
  %v4289 = vld [vmem:[#allocation2 + $0x2a0] sm:$0xff]
  %v4290 = vld [vmem:[#allocation2 + $0x2a8] sm:$0xff]
  %v4291 = vld [vmem:[#allocation2 + $0x2b8] sm:$0xff]
  %v4292 = vld [vmem:[#allocation2 + $0x2c0] sm:$0xff]
  %v4293 = vld [vmem:[#allocation2 + $0x2d0] sm:$0xff]
  %v4294 = vld [vmem:[#allocation2 + $0x2d8] sm:$0xff]
  %v4295 = vld [vmem:[#allocation2 + $0x2e8] sm:$0xff]
  %v4296 = vld [vmem:[#allocation2 + $0x2f0] sm:$0xff]
  %v4297 = vld [vmem:[#allocation2 + $0x300] sm:$0xff]
  %v4298 = vld [vmem:[#allocation2 + $0x308] sm:$0xff]
  %v4299 = vld [vmem:[#allocation2 + $0x318] sm:$0xff]
  %v4300 = vld [vmem:[#allocation2 + $0x320] sm:$0xff]
  %v4301 = vld [vmem:[#allocation2 + $0x1] sm:$0xff]
  %v4302 = vld [vmem:[#allocation2 + $0x9] sm:$0xff]
  %v4303 = vld [vmem:[#allocation2 + $0x19] sm:$0xff]
  %v4304 = vld [vmem:[#allocation2 + $0x21] sm:$0xff]
  %v4305 = vld [vmem:[#allocation2 + $0x31] sm:$0xff]
  %v4306 = vld [vmem:[#allocation2 + $0x39] sm:$0xff]
  %v4307 = vld [vmem:[#allocation2 + $0x49] sm:$0xff]
  %v4308 = vld [vmem:[#allocation2 + $0x51] sm:$0xff]
  %v4309 = vld [vmem:[#allocation2 + $0x61] sm:$0xff]
  %v4310 = vld [vmem:[#allocation2 + $0x69] sm:$0xff]
  %v4311 = vld [vmem:[#allocation2 + $0x79] sm:$0xff]
  %v4312 = vld [vmem:[#allocation2 + $0x81] sm:$0xff]
  %v4313 = vld [vmem:[#allocation2 + $0x91] sm:$0xff]
  %v4314 = vld [vmem:[#allocation2 + $0x99] sm:$0xff]
  %v4315 = vld [vmem:[#allocation2 + $0xa9] sm:$0xff]
  %v4316 = vld [vmem:[#allocation2 + $0xb1] sm:$0xff]
  %v4317 = vld [vmem:[#allocation2 + $0xc1] sm:$0xff]
  %v4318 = vld [vmem:[#allocation2 + $0xc9] sm:$0xff]
  %v4319 = vld [vmem:[#allocation2 + $0xd9] sm:$0xff]
  %v4320 = vld [vmem:[#allocation2 + $0xe1] sm:$0xff]
  %v4321 = vld [vmem:[#allocation2 + $0xf1] sm:$0xff]
  %v4322 = vld [vmem:[#allocation2 + $0xf9] sm:$0xff]
  %v4323 = vld [vmem:[#allocation2 + $0x109] sm:$0xff]
  %v4324 = vld [vmem:[#allocation2 + $0x111] sm:$0xff]
  %v4325 = vld [vmem:[#allocation2 + $0x121] sm:$0xff]
  %v4326 = vld [vmem:[#allocation2 + $0x129] sm:$0xff]
  %v4327 = vld [vmem:[#allocation2 + $0x139] sm:$0xff]
  %v4328 = vld [vmem:[#allocation2 + $0x141] sm:$0xff]
  %v4329 = vld [vmem:[#allocation2 + $0x151] sm:$0xff]
  %v4330 = vld [vmem:[#allocation2 + $0x159] sm:$0xff]
  %v4331 = vld [vmem:[#allocation2 + $0x169] sm:$0xff]
  %v4332 = vld [vmem:[#allocation2 + $0x171] sm:$0xff]
  %v4333 = vld [vmem:[#allocation2 + $0x1b1] sm:$0xff]
  %v4334 = vld [vmem:[#allocation2 + $0x1b9] sm:$0xff]
  %v4335 = vld [vmem:[#allocation2 + $0x1c9] sm:$0xff]
  %v4336 = vld [vmem:[#allocation2 + $0x1d1] sm:$0xff]
  %v4337 = vld [vmem:[#allocation2 + $0x1e1] sm:$0xff]
  %v4338 = vld [vmem:[#allocation2 + $0x1e9] sm:$0xff]
  %v4339 = vld [vmem:[#allocation2 + $0x1f9] sm:$0xff]
  %v4340 = vld [vmem:[#allocation2 + $0x201] sm:$0xff]
  %v4341 = vld [vmem:[#allocation2 + $0x211] sm:$0xff]
  %v4342 = vld [vmem:[#allocation2 + $0x219] sm:$0xff]
  %v4343 = vld [vmem:[#allocation2 + $0x229] sm:$0xff]
  %v4344 = vld [vmem:[#allocation2 + $0x231] sm:$0xff]
  %v4345 = vld [vmem:[#allocation2 + $0x241] sm:$0xff]
  %v4346 = vld [vmem:[#allocation2 + $0x249] sm:$0xff]
  %v4347 = vld [vmem:[#allocation2 + $0x259] sm:$0xff]
  %v4348 = vld [vmem:[#allocation2 + $0x261] sm:$0xff]
  %v4349 = vld [vmem:[#allocation2 + $0x271] sm:$0xff]
  %v4350 = vld [vmem:[#allocation2 + $0x279] sm:$0xff]
  %v4351 = vld [vmem:[#allocation2 + $0x289] sm:$0xff]
  %v4352 = vld [vmem:[#allocation2 + $0x291] sm:$0xff]
  %v4353 = vld [vmem:[#allocation2 + $0x2a1] sm:$0xff]
  %v4354 = vld [vmem:[#allocation2 + $0x2a9] sm:$0xff]
  %v4355 = vld [vmem:[#allocation2 + $0x2b9] sm:$0xff]
  %v4356 = vld [vmem:[#allocation2 + $0x2c1] sm:$0xff]
  %v4357 = vld [vmem:[#allocation2 + $0x2d1] sm:$0xff]
  %v4358 = vld [vmem:[#allocation2 + $0x2d9] sm:$0xff]
  %v4359 = vld [vmem:[#allocation2 + $0x2e9] sm:$0xff]
  %v4360 = vld [vmem:[#allocation2 + $0x2f1] sm:$0xff]
  %v4361 = vld [vmem:[#allocation2 + $0x301] sm:$0xff]
  %v4362 = vld [vmem:[#allocation2 + $0x309] sm:$0xff]
  %v4363 = vld [vmem:[#allocation2 + $0x319] sm:$0xff]
  %v4364 = vld [vmem:[#allocation2 + $0x321] sm:$0xff]
  %v4365 = vld [vmem:[#allocation2 + $0x2] sm:$0xff]
  %v4366 = vld [vmem:[#allocation2 + $0xa] sm:$0xff]
  %v4367 = vld [vmem:[#allocation2 + $0x1a] sm:$0xff]
  %v4368 = vld [vmem:[#allocation2 + $0x22] sm:$0xff]
  %v4369 = vld [vmem:[#allocation2 + $0x32] sm:$0xff]
  %v4370 = vld [vmem:[#allocation2 + $0x3a] sm:$0xff]
  %v4371 = vld [vmem:[#allocation2 + $0x4a] sm:$0xff]
  %v4372 = vld [vmem:[#allocation2 + $0x52] sm:$0xff]
  %v4373 = vld [vmem:[#allocation2 + $0x62] sm:$0xff]
  %v4374 = vld [vmem:[#allocation2 + $0x6a] sm:$0xff]
  %v4375 = vld [vmem:[#allocation2 + $0x7a] sm:$0xff]
  %v4376 = vld [vmem:[#allocation2 + $0x82] sm:$0xff]
  %v4377 = vld [vmem:[#allocation2 + $0x92] sm:$0xff]
  %v4378 = vld [vmem:[#allocation2 + $0x9a] sm:$0xff]
  %v4379 = vld [vmem:[#allocation2 + $0xaa] sm:$0xff]
  %v4380 = vld [vmem:[#allocation2 + $0xb2] sm:$0xff]
  %v4381 = vld [vmem:[#allocation2 + $0xc2] sm:$0xff]
  %v4382 = vld [vmem:[#allocation2 + $0xca] sm:$0xff]
  %v4383 = vld [vmem:[#allocation2 + $0xda] sm:$0xff]
  %v4384 = vld [vmem:[#allocation2 + $0xe2] sm:$0xff]
  %v4385 = vld [vmem:[#allocation2 + $0xf2] sm:$0xff]
  %v4386 = vld [vmem:[#allocation2 + $0xfa] sm:$0xff]
  %v4387 = vld [vmem:[#allocation2 + $0x10a] sm:$0xff]
  %v4388 = vld [vmem:[#allocation2 + $0x112] sm:$0xff]
  %v4389 = vld [vmem:[#allocation2 + $0x122] sm:$0xff]
  %v4390 = vld [vmem:[#allocation2 + $0x12a] sm:$0xff]
  %v4391 = vld [vmem:[#allocation2 + $0x13a] sm:$0xff]
  %v4392 = vld [vmem:[#allocation2 + $0x142] sm:$0xff]
  %v4393 = vld [vmem:[#allocation2 + $0x152] sm:$0xff]
  %v4394 = vld [vmem:[#allocation2 + $0x15a] sm:$0xff]
  %v4395 = vld [vmem:[#allocation2 + $0x16a] sm:$0xff]
  %v4396 = vld [vmem:[#allocation2 + $0x172] sm:$0xff]
  %v4397 = vld [vmem:[#allocation2 + $0x1b2] sm:$0xff]
  %v4398 = vld [vmem:[#allocation2 + $0x1ba] sm:$0xff]
  %v4399 = vld [vmem:[#allocation2 + $0x1ca] sm:$0xff]
  %v4400 = vld [vmem:[#allocation2 + $0x1d2] sm:$0xff]
  %v4401 = vld [vmem:[#allocation2 + $0x1e2] sm:$0xff]
  %v4402 = vld [vmem:[#allocation2 + $0x1ea] sm:$0xff]
  %v4403 = vld [vmem:[#allocation2 + $0x1fa] sm:$0xff]
  %v4404 = vld [vmem:[#allocation2 + $0x202] sm:$0xff]
  %v4405 = vld [vmem:[#allocation2 + $0x212] sm:$0xff]
  %v4406 = vld [vmem:[#allocation2 + $0x21a] sm:$0xff]
  %v4407 = vld [vmem:[#allocation2 + $0x22a] sm:$0xff]
  %v4408 = vld [vmem:[#allocation2 + $0x232] sm:$0xff]
  %v4409 = vld [vmem:[#allocation2 + $0x242] sm:$0xff]
  %v4410 = vld [vmem:[#allocation2 + $0x24a] sm:$0xff]
  %v4411 = vld [vmem:[#allocation2 + $0x25a] sm:$0xff]
  %v4412 = vld [vmem:[#allocation2 + $0x262] sm:$0xff]
  %v4413 = vld [vmem:[#allocation2 + $0x272] sm:$0xff]
  %v4414 = vld [vmem:[#allocation2 + $0x27a] sm:$0xff]
  %v4415 = vld [vmem:[#allocation2 + $0x28a] sm:$0xff]
  %v4416 = vld [vmem:[#allocation2 + $0x292] sm:$0xff]
  %v4417 = vld [vmem:[#allocation2 + $0x2a2] sm:$0xff]
  %v4418 = vld [vmem:[#allocation2 + $0x2aa] sm:$0xff]
  %v4419 = vld [vmem:[#allocation2 + $0x2ba] sm:$0xff]
  %v4420 = vld [vmem:[#allocation2 + $0x2c2] sm:$0xff]
  %v4421 = vld [vmem:[#allocation2 + $0x2d2] sm:$0xff]
  %v4422 = vld [vmem:[#allocation2 + $0x2da] sm:$0xff]
  %v4423 = vld [vmem:[#allocation2 + $0x2ea] sm:$0xff]
  %v4424 = vld [vmem:[#allocation2 + $0x2f2] sm:$0xff]
  %v4425 = vld [vmem:[#allocation2 + $0x302] sm:$0xff]
  %v4426 = vld [vmem:[#allocation2 + $0x30a] sm:$0xff]
  %v4427 = vld [vmem:[#allocation2 + $0x31a] sm:$0xff]
  %v4428 = vld [vmem:[#allocation2 + $0x322] sm:$0xff]
  %v4429 = vld [vmem:[%s4095] sm:$0xff]
  %v4430 = vld [vmem:[%s4095 + $0x8] sm:$0xff]
  %v4431 = vld [vmem:[%s4095 + $0x18] sm:$0xff]
  %v4432 = vld [vmem:[%s4095 + $0x20] sm:$0xff]
  %v4433 = vld [vmem:[%s4095 + $0x30] sm:$0xff]
  %v4434 = vld [vmem:[%s4095 + $0x38] sm:$0xff]
  %v4435 = vld [vmem:[%s4095 + $0x48] sm:$0xff]
  %v4436 = vld [vmem:[%s4095 + $0x50] sm:$0xff]
  %v4437 = vld [vmem:[%s4095 + $0x60] sm:$0xff]
  %v4438 = vld [vmem:[%s4095 + $0x68] sm:$0xff]
  %v4439 = vld [vmem:[%s4095 + $0x78] sm:$0xff]
  %v4440 = vld [vmem:[%s4095 + $0x80] sm:$0xff]
  %v4441 = vld [vmem:[%s4095 + $0x90] sm:$0xff]
  %v4442 = vld [vmem:[%s4095 + $0x98] sm:$0xff]
  %v4443 = vld [vmem:[%s4095 + $0xa8] sm:$0xff]
  %v4444 = vld [vmem:[%s4095 + $0xb0] sm:$0xff]
  %v4445 = vld [vmem:[%s4095 + $0xc0] sm:$0xff]
  %v4446 = vld [vmem:[%s4095 + $0xc8] sm:$0xff]
  %v4447 = vld [vmem:[%s4095 + $0xd8] sm:$0xff]
  %v4448 = vld [vmem:[%s4095 + $0xe0] sm:$0xff]
  %v4449 = vld [vmem:[%s4095 + $0xf0] sm:$0xff]
  %v4450 = vld [vmem:[%s4095 + $0xf8] sm:$0xff]
  %v4451 = vld [vmem:[%s4095 + $0x108] sm:$0xff]
  %v4452 = vld [vmem:[%s4095 + $0x110] sm:$0xff]
  %v4453 = vld [vmem:[%s4095 + $0x120] sm:$0xff]
  %v4454 = vld [vmem:[%s4095 + $0x128] sm:$0xff]
  %v4455 = vld [vmem:[%s4095 + $0x138] sm:$0xff]
  %v4456 = vld [vmem:[%s4095 + $0x140] sm:$0xff]
  %v4457 = vld [vmem:[%s4095 + $0x150] sm:$0xff]
  %v4458 = vld [vmem:[%s4095 + $0x158] sm:$0xff]
  %v4459 = vld [vmem:[%s4095 + $0x168] sm:$0xff]
  %v4460 = vld [vmem:[%s4095 + $0x170] sm:$0xff]
  %v4461 = vld [vmem:[%s4095 + $0x1b0] sm:$0xff]
  %v4462 = vld [vmem:[%s4095 + $0x1b8] sm:$0xff]
  %v4463 = vld [vmem:[%s4095 + $0x1c8] sm:$0xff]
  %v4464 = vld [vmem:[%s4095 + $0x1d0] sm:$0xff]
  %v4465 = vld [vmem:[%s4095 + $0x1e0] sm:$0xff]
  %v4466 = vld [vmem:[%s4095 + $0x1e8] sm:$0xff]
  %v4467 = vld [vmem:[%s4095 + $0x1f8] sm:$0xff]
  %v4468 = vld [vmem:[%s4095 + $0x200] sm:$0xff]
  %v4469 = vld [vmem:[%s4095 + $0x210] sm:$0xff]
  %v4470 = vld [vmem:[%s4095 + $0x218] sm:$0xff]
  %v4471 = vld [vmem:[%s4095 + $0x228] sm:$0xff]
  %v4472 = vld [vmem:[%s4095 + $0x230] sm:$0xff]
  %v4473 = vld [vmem:[%s4095 + $0x240] sm:$0xff]
  %v4474 = vld [vmem:[%s4095 + $0x248] sm:$0xff]
  %v4475 = vld [vmem:[%s4095 + $0x258] sm:$0xff]
  %v4476 = vld [vmem:[%s4095 + $0x260] sm:$0xff]
  %v4477 = vld [vmem:[%s4095 + $0x270] sm:$0xff]
  %v4478 = vld [vmem:[%s4095 + $0x278] sm:$0xff]
  %v4479 = vld [vmem:[%s4095 + $0x288] sm:$0xff]
  %v4480 = vld [vmem:[%s4095 + $0x290] sm:$0xff]
  %v4481 = vld [vmem:[%s4095 + $0x2a0] sm:$0xff]
  %v4482 = vld [vmem:[%s4095 + $0x2a8] sm:$0xff]
  %v4483 = vld [vmem:[%s4095 + $0x2b8] sm:$0xff]
  %v4484 = vld [vmem:[%s4095 + $0x2c0] sm:$0xff]
  %v4485 = vld [vmem:[%s4095 + $0x2d0] sm:$0xff]
  %v4486 = vld [vmem:[%s4095 + $0x2d8] sm:$0xff]
  %v4487 = vld [vmem:[%s4095 + $0x2e8] sm:$0xff]
  %v4488 = vld [vmem:[%s4095 + $0x2f0] sm:$0xff]
  %v4489 = vld [vmem:[%s4095 + $0x300] sm:$0xff]
  %v4490 = vld [vmem:[%s4095 + $0x308] sm:$0xff]
  %v4491 = vld [vmem:[%s4095 + $0x318] sm:$0xff]
  %v4492 = vld [vmem:[%s4095 + $0x320] sm:$0xff]
  %v4493 = vld [vmem:[%s4095 + $0x1] sm:$0xff]
  %v4494 = vld [vmem:[%s4095 + $0x9] sm:$0xff]
  %v4495 = vld [vmem:[%s4095 + $0x19] sm:$0xff]
  %v4496 = vld [vmem:[%s4095 + $0x21] sm:$0xff]
  %v4497 = vld [vmem:[%s4095 + $0x31] sm:$0xff]
  %v4498 = vld [vmem:[%s4095 + $0x39] sm:$0xff]
  %v4499 = vld [vmem:[%s4095 + $0x49] sm:$0xff]
  %v4500 = vld [vmem:[%s4095 + $0x51] sm:$0xff]
  %v4501 = vld [vmem:[%s4095 + $0x61] sm:$0xff]
  %v4502 = vld [vmem:[%s4095 + $0x69] sm:$0xff]
  %v4503 = vld [vmem:[%s4095 + $0x79] sm:$0xff]
  %v4504 = vld [vmem:[%s4095 + $0x81] sm:$0xff]
  %v4505 = vld [vmem:[%s4095 + $0x91] sm:$0xff]
  %v4506 = vld [vmem:[%s4095 + $0x99] sm:$0xff]
  %v4507 = vld [vmem:[%s4095 + $0xa9] sm:$0xff]
  %v4508 = vld [vmem:[%s4095 + $0xb1] sm:$0xff]
  %v4509 = vld [vmem:[%s4095 + $0xc1] sm:$0xff]
  %v4510 = vld [vmem:[%s4095 + $0xc9] sm:$0xff]
  %v4511 = vld [vmem:[%s4095 + $0xd9] sm:$0xff]
  %v4512 = vld [vmem:[%s4095 + $0xe1] sm:$0xff]
  %v4513 = vld [vmem:[%s4095 + $0xf1] sm:$0xff]
  %v4514 = vld [vmem:[%s4095 + $0xf9] sm:$0xff]
  %v4515 = vld [vmem:[%s4095 + $0x109] sm:$0xff]
  %v4516 = vld [vmem:[%s4095 + $0x111] sm:$0xff]
  %v4517 = vld [vmem:[%s4095 + $0x121] sm:$0xff]
  %v4518 = vld [vmem:[%s4095 + $0x129] sm:$0xff]
  %v4519 = vld [vmem:[%s4095 + $0x139] sm:$0xff]
  %v4520 = vld [vmem:[%s4095 + $0x141] sm:$0xff]
  %v4521 = vld [vmem:[%s4095 + $0x151] sm:$0xff]
  %v4522 = vld [vmem:[%s4095 + $0x159] sm:$0xff]
  %v4523 = vld [vmem:[%s4095 + $0x169] sm:$0xff]
  %v4524 = vld [vmem:[%s4095 + $0x171] sm:$0xff]
  %v4525 = vld [vmem:[%s4095 + $0x1b1] sm:$0xff]
  %v4526 = vld [vmem:[%s4095 + $0x1b9] sm:$0xff]
  %v4527 = vld [vmem:[%s4095 + $0x1c9] sm:$0xff]
  %v4528 = vld [vmem:[%s4095 + $0x1d1] sm:$0xff]
  %v4529 = vld [vmem:[%s4095 + $0x1e1] sm:$0xff]
  %v4530 = vld [vmem:[%s4095 + $0x1e9] sm:$0xff]
  %v4531 = vld [vmem:[%s4095 + $0x1f9] sm:$0xff]
  %v4532 = vld [vmem:[%s4095 + $0x201] sm:$0xff]
  %v4533 = vld [vmem:[%s4095 + $0x211] sm:$0xff]
  %v4534 = vld [vmem:[%s4095 + $0x219] sm:$0xff]
  %v4535 = vld [vmem:[%s4095 + $0x229] sm:$0xff]
  %v4536 = vld [vmem:[%s4095 + $0x231] sm:$0xff]
  %v4537 = vld [vmem:[%s4095 + $0x241] sm:$0xff]
  %v4538 = vld [vmem:[%s4095 + $0x249] sm:$0xff]
  %v4539 = vld [vmem:[%s4095 + $0x259] sm:$0xff]
  %v4540 = vld [vmem:[%s4095 + $0x261] sm:$0xff]
  %v4541 = vld [vmem:[%s4095 + $0x271] sm:$0xff]
  %v4542 = vld [vmem:[%s4095 + $0x279] sm:$0xff]
  %v4543 = vld [vmem:[%s4095 + $0x289] sm:$0xff]
  %v4544 = vld [vmem:[%s4095 + $0x291] sm:$0xff]
  %v4545 = vld [vmem:[%s4095 + $0x2a1] sm:$0xff]
  %v4546 = vld [vmem:[%s4095 + $0x2a9] sm:$0xff]
  %v4547 = vld [vmem:[%s4095 + $0x2b9] sm:$0xff]
  %v4548 = vld [vmem:[%s4095 + $0x2c1] sm:$0xff]
  %v4549 = vld [vmem:[%s4095 + $0x2d1] sm:$0xff]
  %v4550 = vld [vmem:[%s4095 + $0x2d9] sm:$0xff]
  %v4551 = vld [vmem:[%s4095 + $0x2e9] sm:$0xff]
  %v4552 = vld [vmem:[%s4095 + $0x2f1] sm:$0xff]
  %v4553 = vld [vmem:[%s4095 + $0x301] sm:$0xff]
  %v4554 = vld [vmem:[%s4095 + $0x309] sm:$0xff]
  %v4555 = vld [vmem:[%s4095 + $0x319] sm:$0xff]
  %v4556 = vld [vmem:[%s4095 + $0x321] sm:$0xff]
  %v4557 = vld [vmem:[%s4095 + $0x2] sm:$0xff]
  %v4558 = vld [vmem:[%s4095 + $0xa] sm:$0xff]
  %v4559 = vld [vmem:[%s4095 + $0x1a] sm:$0xff]
  %v4560 = vld [vmem:[%s4095 + $0x22] sm:$0xff]
  %v4561 = vld [vmem:[%s4095 + $0x32] sm:$0xff]
  %v4562 = vld [vmem:[%s4095 + $0x3a] sm:$0xff]
  %v4563 = vld [vmem:[%s4095 + $0x4a] sm:$0xff]
  %v4564 = vld [vmem:[%s4095 + $0x52] sm:$0xff]
  %v4565 = vld [vmem:[%s4095 + $0x62] sm:$0xff]
  %v4566 = vld [vmem:[%s4095 + $0x6a] sm:$0xff]
  %v4567 = vld [vmem:[%s4095 + $0x7a] sm:$0xff]
  %v4568 = vld [vmem:[%s4095 + $0x82] sm:$0xff]
  %v4569 = vld [vmem:[%s4095 + $0x92] sm:$0xff]
  %v4570 = vld [vmem:[%s4095 + $0x9a] sm:$0xff]
  %v4571 = vld [vmem:[%s4095 + $0xaa] sm:$0xff]
  %v4572 = vld [vmem:[%s4095 + $0xb2] sm:$0xff]
  %v4573 = vld [vmem:[%s4095 + $0xc2] sm:$0xff]
  %v4574 = vld [vmem:[%s4095 + $0xca] sm:$0xff]
  %v4575 = vld [vmem:[%s4095 + $0xda] sm:$0xff]
  %v4576 = vld [vmem:[%s4095 + $0xe2] sm:$0xff]
  %v4577 = vld [vmem:[%s4095 + $0xf2] sm:$0xff]
  %v4578 = vld [vmem:[%s4095 + $0xfa] sm:$0xff]
  %v4579 = vld [vmem:[%s4095 + $0x10a] sm:$0xff]
  %v4580 = vld [vmem:[%s4095 + $0x112] sm:$0xff]
  %v4581 = vld [vmem:[%s4095 + $0x122] sm:$0xff]
  %v4582 = vld [vmem:[%s4095 + $0x12a] sm:$0xff]
  %v4583 = vld [vmem:[%s4095 + $0x13a] sm:$0xff]
  %v4584 = vld [vmem:[%s4095 + $0x142] sm:$0xff]
  %v4585 = vld [vmem:[%s4095 + $0x152] sm:$0xff]
  %v4586 = vld [vmem:[%s4095 + $0x15a] sm:$0xff]
  %v4587 = vld [vmem:[%s4095 + $0x16a] sm:$0xff]
  %v4588 = vld [vmem:[%s4095 + $0x172] sm:$0xff]
  %v4589 = vld [vmem:[%s4095 + $0x1b2] sm:$0xff]
  %v4590 = vld [vmem:[%s4095 + $0x1ba] sm:$0xff]
  %v4591 = vld [vmem:[%s4095 + $0x1ca] sm:$0xff]
  %v4592 = vld [vmem:[%s4095 + $0x1d2] sm:$0xff]
  %v4593 = vld [vmem:[%s4095 + $0x1e2] sm:$0xff]
  %v4594 = vld [vmem:[%s4095 + $0x1ea] sm:$0xff]
  %v4595 = vld [vmem:[%s4095 + $0x1fa] sm:$0xff]
  %v4596 = vld [vmem:[%s4095 + $0x202] sm:$0xff]
  %v4597 = vld [vmem:[%s4095 + $0x212] sm:$0xff]
  %v4598 = vld [vmem:[%s4095 + $0x21a] sm:$0xff]
  %v4599 = vld [vmem:[%s4095 + $0x22a] sm:$0xff]
  %v4600 = vld [vmem:[%s4095 + $0x232] sm:$0xff]
  %v4601 = vld [vmem:[%s4095 + $0x242] sm:$0xff]
  %v4602 = vld [vmem:[%s4095 + $0x24a] sm:$0xff]
  %v4603 = vld [vmem:[%s4095 + $0x25a] sm:$0xff]
  %v4604 = vld [vmem:[%s4095 + $0x262] sm:$0xff]
  %v4605 = vld [vmem:[%s4095 + $0x272] sm:$0xff]
  %v4606 = vld [vmem:[%s4095 + $0x27a] sm:$0xff]
  %v4607 = vld [vmem:[%s4095 + $0x28a] sm:$0xff]
  %v4608 = vld [vmem:[%s4095 + $0x292] sm:$0xff]
  %v4609 = vld [vmem:[%s4095 + $0x2a2] sm:$0xff]
  %v4610 = vld [vmem:[%s4095 + $0x2aa] sm:$0xff]
  %v4611 = vld [vmem:[%s4095 + $0x2ba] sm:$0xff]
  %v4612 = vld [vmem:[%s4095 + $0x2c2] sm:$0xff]
  %v4613 = vld [vmem:[%s4095 + $0x2d2] sm:$0xff]
  %v4614 = vld [vmem:[%s4095 + $0x2da] sm:$0xff]
  %v4615 = vld [vmem:[%s4095 + $0x2ea] sm:$0xff]
  %v4616 = vld [vmem:[%s4095 + $0x2f2] sm:$0xff]
  %v4617 = vld [vmem:[%s4095 + $0x302] sm:$0xff]
  %v4618 = vld [vmem:[%s4095 + $0x30a] sm:$0xff]
  %v4619 = vld [vmem:[%s4095 + $0x31a] sm:$0xff]
  %v4620 = vld [vmem:[%s4095 + $0x322] sm:$0xff]
  %s4621 = scalar_lea.vmem [#allocation2], 48
  %v4622 = vld [vmem:[%s4621] sm:$0xff]
  %v4623 = vld [vmem:[%s4621 + $0x8] sm:$0xff]
  %v4624 = vld [vmem:[%s4621 + $0x18] sm:$0xff]
  %v4625 = vld [vmem:[%s4621 + $0x20] sm:$0xff]
  %v4626 = vld [vmem:[%s4621 + $0x30] sm:$0xff]
  %v4627 = vld [vmem:[%s4621 + $0x38] sm:$0xff]
  %v4628 = vld [vmem:[%s4621 + $0x48] sm:$0xff]
  %v4629 = vld [vmem:[%s4621 + $0x50] sm:$0xff]
  %v4630 = vld [vmem:[%s4621 + $0x60] sm:$0xff]
  %v4631 = vld [vmem:[%s4621 + $0x68] sm:$0xff]
  %v4632 = vld [vmem:[%s4621 + $0x78] sm:$0xff]
  %v4633 = vld [vmem:[%s4621 + $0x80] sm:$0xff]
  %v4634 = vld [vmem:[%s4621 + $0x90] sm:$0xff]
  %v4635 = vld [vmem:[%s4621 + $0x98] sm:$0xff]
  %v4636 = vld [vmem:[%s4621 + $0xa8] sm:$0xff]
  %v4637 = vld [vmem:[%s4621 + $0xb0] sm:$0xff]
  %v4638 = vld [vmem:[%s4621 + $0xc0] sm:$0xff]
  %v4639 = vld [vmem:[%s4621 + $0xc8] sm:$0xff]
  %v4640 = vld [vmem:[%s4621 + $0xd8] sm:$0xff]
  %v4641 = vld [vmem:[%s4621 + $0xe0] sm:$0xff]
  %v4642 = vld [vmem:[%s4621 + $0xf0] sm:$0xff]
  %v4643 = vld [vmem:[%s4621 + $0xf8] sm:$0xff]
  %v4644 = vld [vmem:[%s4621 + $0x108] sm:$0xff]
  %v4645 = vld [vmem:[%s4621 + $0x110] sm:$0xff]
  %v4646 = vld [vmem:[%s4621 + $0x120] sm:$0xff]
  %v4647 = vld [vmem:[%s4621 + $0x128] sm:$0xff]
  %v4648 = vld [vmem:[%s4621 + $0x138] sm:$0xff]
  %v4649 = vld [vmem:[%s4621 + $0x140] sm:$0xff]
  %v4650 = vld [vmem:[%s4621 + $0x150] sm:$0xff]
  %v4651 = vld [vmem:[%s4621 + $0x158] sm:$0xff]
  %v4652 = vld [vmem:[%s4621 + $0x168] sm:$0xff]
  %v4653 = vld [vmem:[%s4621 + $0x170] sm:$0xff]
  %v4654 = vld [vmem:[%s4621 + $0x1b0] sm:$0xff]
  %v4655 = vld [vmem:[%s4621 + $0x1b8] sm:$0xff]
  %v4656 = vld [vmem:[%s4621 + $0x1c8] sm:$0xff]
  %v4657 = vld [vmem:[%s4621 + $0x1d0] sm:$0xff]
  %v4658 = vld [vmem:[%s4621 + $0x1e0] sm:$0xff]
  %v4659 = vld [vmem:[%s4621 + $0x1e8] sm:$0xff]
  %v4660 = vld [vmem:[%s4621 + $0x1f8] sm:$0xff]
  %v4661 = vld [vmem:[%s4621 + $0x200] sm:$0xff]
  %v4662 = vld [vmem:[%s4621 + $0x210] sm:$0xff]
  %v4663 = vld [vmem:[%s4621 + $0x218] sm:$0xff]
  %v4664 = vld [vmem:[%s4621 + $0x228] sm:$0xff]
  %v4665 = vld [vmem:[%s4621 + $0x230] sm:$0xff]
  %v4666 = vld [vmem:[%s4621 + $0x240] sm:$0xff]
  %v4667 = vld [vmem:[%s4621 + $0x248] sm:$0xff]
  %v4668 = vld [vmem:[%s4621 + $0x258] sm:$0xff]
  %v4669 = vld [vmem:[%s4621 + $0x260] sm:$0xff]
  %v4670 = vld [vmem:[%s4621 + $0x270] sm:$0xff]
  %v4671 = vld [vmem:[%s4621 + $0x278] sm:$0xff]
  %v4672 = vld [vmem:[%s4621 + $0x288] sm:$0xff]
  %v4673 = vld [vmem:[%s4621 + $0x290] sm:$0xff]
  %v4674 = vld [vmem:[%s4621 + $0x2a0] sm:$0xff]
  %v4675 = vld [vmem:[%s4621 + $0x2a8] sm:$0xff]
  %v4676 = vld [vmem:[%s4621 + $0x2b8] sm:$0xff]
  %v4677 = vld [vmem:[%s4621 + $0x2c0] sm:$0xff]
  %v4678 = vld [vmem:[%s4621 + $0x2d0] sm:$0xff]
  %v4679 = vld [vmem:[%s4621 + $0x2d8] sm:$0xff]
  %v4680 = vld [vmem:[%s4621 + $0x2e8] sm:$0xff]
  %v4681 = vld [vmem:[%s4621 + $0x2f0] sm:$0xff]
  %v4682 = vld [vmem:[%s4621 + $0x300] sm:$0xff]
  %v4683 = vld [vmem:[%s4621 + $0x308] sm:$0xff]
  %v4684 = vld [vmem:[%s4621 + $0x318] sm:$0xff]
  %v4685 = vld [vmem:[%s4621 + $0x320] sm:$0xff]
  %v4686 = vld [vmem:[%s4621 + $0x1] sm:$0xff]
  %v4687 = vld [vmem:[%s4621 + $0x9] sm:$0xff]
  %v4688 = vld [vmem:[%s4621 + $0x19] sm:$0xff]
  %v4689 = vld [vmem:[%s4621 + $0x21] sm:$0xff]
  %v4690 = vld [vmem:[%s4621 + $0x31] sm:$0xff]
  %v4691 = vld [vmem:[%s4621 + $0x39] sm:$0xff]
  %v4692 = vld [vmem:[%s4621 + $0x49] sm:$0xff]
  %v4693 = vld [vmem:[%s4621 + $0x51] sm:$0xff]
  %v4694 = vld [vmem:[%s4621 + $0x61] sm:$0xff]
  %v4695 = vld [vmem:[%s4621 + $0x69] sm:$0xff]
  %v4696 = vld [vmem:[%s4621 + $0x79] sm:$0xff]
  %v4697 = vld [vmem:[%s4621 + $0x81] sm:$0xff]
  %v4698 = vld [vmem:[%s4621 + $0x91] sm:$0xff]
  %v4699 = vld [vmem:[%s4621 + $0x99] sm:$0xff]
  %v4700 = vld [vmem:[%s4621 + $0xa9] sm:$0xff]
  %v4701 = vld [vmem:[%s4621 + $0xb1] sm:$0xff]
  %v4702 = vld [vmem:[%s4621 + $0xc1] sm:$0xff]
  %v4703 = vld [vmem:[%s4621 + $0xc9] sm:$0xff]
  %v4704 = vld [vmem:[%s4621 + $0xd9] sm:$0xff]
  %v4705 = vld [vmem:[%s4621 + $0xe1] sm:$0xff]
  %v4706 = vld [vmem:[%s4621 + $0xf1] sm:$0xff]
  %v4707 = vld [vmem:[%s4621 + $0xf9] sm:$0xff]
  %v4708 = vld [vmem:[%s4621 + $0x109] sm:$0xff]
  %v4709 = vld [vmem:[%s4621 + $0x111] sm:$0xff]
  %v4710 = vld [vmem:[%s4621 + $0x121] sm:$0xff]
  %v4711 = vld [vmem:[%s4621 + $0x129] sm:$0xff]
  %v4712 = vld [vmem:[%s4621 + $0x139] sm:$0xff]
  %v4713 = vld [vmem:[%s4621 + $0x141] sm:$0xff]
  %v4714 = vld [vmem:[%s4621 + $0x151] sm:$0xff]
  %v4715 = vld [vmem:[%s4621 + $0x159] sm:$0xff]
  %v4716 = vld [vmem:[%s4621 + $0x169] sm:$0xff]
  %v4717 = vld [vmem:[%s4621 + $0x171] sm:$0xff]
  %v4718 = vld [vmem:[%s4621 + $0x1b1] sm:$0xff]
  %v4719 = vld [vmem:[%s4621 + $0x1b9] sm:$0xff]
  %v4720 = vld [vmem:[%s4621 + $0x1c9] sm:$0xff]
  %v4721 = vld [vmem:[%s4621 + $0x1d1] sm:$0xff]
  %v4722 = vld [vmem:[%s4621 + $0x1e1] sm:$0xff]
  %v4723 = vld [vmem:[%s4621 + $0x1e9] sm:$0xff]
  %v4724 = vld [vmem:[%s4621 + $0x1f9] sm:$0xff]
  %v4725 = vld [vmem:[%s4621 + $0x201] sm:$0xff]
  %v4726 = vld [vmem:[%s4621 + $0x211] sm:$0xff]
  %v4727 = vld [vmem:[%s4621 + $0x219] sm:$0xff]
  %v4728 = vld [vmem:[%s4621 + $0x229] sm:$0xff]
  %v4729 = vld [vmem:[%s4621 + $0x231] sm:$0xff]
  %v4730 = vld [vmem:[%s4621 + $0x241] sm:$0xff]
  %v4731 = vld [vmem:[%s4621 + $0x249] sm:$0xff]
  %v4732 = vld [vmem:[%s4621 + $0x259] sm:$0xff]
  %v4733 = vld [vmem:[%s4621 + $0x261] sm:$0xff]
  %v4734 = vld [vmem:[%s4621 + $0x271] sm:$0xff]
  %v4735 = vld [vmem:[%s4621 + $0x279] sm:$0xff]
  %v4736 = vld [vmem:[%s4621 + $0x289] sm:$0xff]
  %v4737 = vld [vmem:[%s4621 + $0x291] sm:$0xff]
  %v4738 = vld [vmem:[%s4621 + $0x2a1] sm:$0xff]
  %v4739 = vld [vmem:[%s4621 + $0x2a9] sm:$0xff]
  %v4740 = vld [vmem:[%s4621 + $0x2b9] sm:$0xff]
  %v4741 = vld [vmem:[%s4621 + $0x2c1] sm:$0xff]
  %v4742 = vld [vmem:[%s4621 + $0x2d1] sm:$0xff]
  %v4743 = vld [vmem:[%s4621 + $0x2d9] sm:$0xff]
  %v4744 = vld [vmem:[%s4621 + $0x2e9] sm:$0xff]
  %v4745 = vld [vmem:[%s4621 + $0x2f1] sm:$0xff]
  %v4746 = vld [vmem:[%s4621 + $0x301] sm:$0xff]
  %v4747 = vld [vmem:[%s4621 + $0x309] sm:$0xff]
  %v4748 = vld [vmem:[%s4621 + $0x319] sm:$0xff]
  %v4749 = vld [vmem:[%s4621 + $0x321] sm:$0xff]
  %v4750 = vld [vmem:[%s4621 + $0x2] sm:$0xff]
  %v4751 = vld [vmem:[%s4621 + $0xa] sm:$0xff]
  %v4752 = vld [vmem:[%s4621 + $0x1a] sm:$0xff]
  %v4753 = vld [vmem:[%s4621 + $0x22] sm:$0xff]
  %v4754 = vld [vmem:[%s4621 + $0x32] sm:$0xff]
  %v4755 = vld [vmem:[%s4621 + $0x3a] sm:$0xff]
  %v4756 = vld [vmem:[%s4621 + $0x4a] sm:$0xff]
  %v4757 = vld [vmem:[%s4621 + $0x52] sm:$0xff]
  %v4758 = vld [vmem:[%s4621 + $0x62] sm:$0xff]
  %v4759 = vld [vmem:[%s4621 + $0x6a] sm:$0xff]
  %v4760 = vld [vmem:[%s4621 + $0x7a] sm:$0xff]
  %v4761 = vld [vmem:[%s4621 + $0x82] sm:$0xff]
  %v4762 = vld [vmem:[%s4621 + $0x92] sm:$0xff]
  %v4763 = vld [vmem:[%s4621 + $0x9a] sm:$0xff]
  %v4764 = vld [vmem:[%s4621 + $0xaa] sm:$0xff]
  %v4765 = vld [vmem:[%s4621 + $0xb2] sm:$0xff]
  %v4766 = vld [vmem:[%s4621 + $0xc2] sm:$0xff]
  %v4767 = vld [vmem:[%s4621 + $0xca] sm:$0xff]
  %v4768 = vld [vmem:[%s4621 + $0xda] sm:$0xff]
  %v4769 = vld [vmem:[%s4621 + $0xe2] sm:$0xff]
  %v4770 = vld [vmem:[%s4621 + $0xf2] sm:$0xff]
  %v4771 = vld [vmem:[%s4621 + $0xfa] sm:$0xff]
  %v4772 = vld [vmem:[%s4621 + $0x10a] sm:$0xff]
  %v4773 = vld [vmem:[%s4621 + $0x112] sm:$0xff]
  %v4774 = vld [vmem:[%s4621 + $0x122] sm:$0xff]
  %v4775 = vld [vmem:[%s4621 + $0x12a] sm:$0xff]
  %v4776 = vld [vmem:[%s4621 + $0x13a] sm:$0xff]
  %v4777 = vld [vmem:[%s4621 + $0x142] sm:$0xff]
  %v4778 = vld [vmem:[%s4621 + $0x152] sm:$0xff]
  %v4779 = vld [vmem:[%s4621 + $0x15a] sm:$0xff]
  %v4780 = vld [vmem:[%s4621 + $0x16a] sm:$0xff]
  %v4781 = vld [vmem:[%s4621 + $0x172] sm:$0xff]
  %v4782 = vld [vmem:[%s4621 + $0x1b2] sm:$0xff]
  %v4783 = vld [vmem:[%s4621 + $0x1ba] sm:$0xff]
  %v4784 = vld [vmem:[%s4621 + $0x1ca] sm:$0xff]
  %v4785 = vld [vmem:[%s4621 + $0x1d2] sm:$0xff]
  %v4786 = vld [vmem:[%s4621 + $0x1e2] sm:$0xff]
  %v4787 = vld [vmem:[%s4621 + $0x1ea] sm:$0xff]
  %v4788 = vld [vmem:[%s4621 + $0x1fa] sm:$0xff]
  %v4789 = vld [vmem:[%s4621 + $0x202] sm:$0xff]
  %v4790 = vld [vmem:[%s4621 + $0x212] sm:$0xff]
  %v4791 = vld [vmem:[%s4621 + $0x21a] sm:$0xff]
  %v4792 = vld [vmem:[%s4621 + $0x22a] sm:$0xff]
  %v4793 = vld [vmem:[%s4621 + $0x232] sm:$0xff]
  %v4794 = vld [vmem:[%s4621 + $0x242] sm:$0xff]
  %v4795 = vld [vmem:[%s4621 + $0x24a] sm:$0xff]
  %v4796 = vld [vmem:[%s4621 + $0x25a] sm:$0xff]
  %v4797 = vld [vmem:[%s4621 + $0x262] sm:$0xff]
  %v4798 = vld [vmem:[%s4621 + $0x272] sm:$0xff]
  %v4799 = vld [vmem:[%s4621 + $0x27a] sm:$0xff]
  %v4800 = vld [vmem:[%s4621 + $0x28a] sm:$0xff]
  %v4801 = vld [vmem:[%s4621 + $0x292] sm:$0xff]
  %v4802 = vld [vmem:[%s4621 + $0x2a2] sm:$0xff]
  %v4803 = vld [vmem:[%s4621 + $0x2aa] sm:$0xff]
  %v4804 = vld [vmem:[%s4621 + $0x2ba] sm:$0xff]
  %v4805 = vld [vmem:[%s4621 + $0x2c2] sm:$0xff]
  %v4806 = vld [vmem:[%s4621 + $0x2d2] sm:$0xff]
  %v4807 = vld [vmem:[%s4621 + $0x2da] sm:$0xff]
  %v4808 = vld [vmem:[%s4621 + $0x2ea] sm:$0xff]
  %v4809 = vld [vmem:[%s4621 + $0x2f2] sm:$0xff]
  %v4810 = vld [vmem:[%s4621 + $0x302] sm:$0xff]
  %v4811 = vld [vmem:[%s4621 + $0x30a] sm:$0xff]
  %v4812 = vld [vmem:[%s4621 + $0x31a] sm:$0xff]
  %v4813 = vld [vmem:[%s4621 + $0x322] sm:$0xff]
  %v4814 = vpack.c.bf16 %v4238, %v4237
  %v4815 = vpack.c.bf16 %v4302, %v4301
  %v4816 = vpack.c.bf16 %v4366, %v4365
  %v4817 = vpack.c.bf16 %v4430, %v4429
  %v4818 = vpack.c.bf16 %v4494, %v4493
  %v4819 = vpack.c.bf16 %v4558, %v4557
  %v4820 = vpack.c.bf16 %v4623, %v4622
  %v4821 = vpack.c.bf16 %v4687, %v4686
  %v4822 = vpack.c.bf16 %v4751, %v4750
  %v4823 = vpack.c.bf16 %v4240, %v4239
  %v4824 = vpack.c.bf16 %v4304, %v4303
  %v4825 = vpack.c.bf16 %v4368, %v4367
  %v4826 = vpack.c.bf16 %v4432, %v4431
  %v4827 = vpack.c.bf16 %v4496, %v4495
  %v4828 = vpack.c.bf16 %v4560, %v4559
  %v4829 = vpack.c.bf16 %v4625, %v4624
  %v4830 = vpack.c.bf16 %v4689, %v4688
  %v4831 = vpack.c.bf16 %v4753, %v4752
  %v4832 = vpack.c.bf16 %v4242, %v4241
  %v4833 = vpack.c.bf16 %v4306, %v4305
  %v4834 = vpack.c.bf16 %v4370, %v4369
  %v4835 = vpack.c.bf16 %v4434, %v4433
  %v4836 = vpack.c.bf16 %v4498, %v4497
  %v4837 = vpack.c.bf16 %v4562, %v4561
  %v4838 = vpack.c.bf16 %v4627, %v4626
  %v4839 = vpack.c.bf16 %v4691, %v4690
  %v4840 = vpack.c.bf16 %v4755, %v4754
  %v4841 = vpack.c.bf16 %v4244, %v4243
  %v4842 = vpack.c.bf16 %v4308, %v4307
  %v4843 = vpack.c.bf16 %v4372, %v4371
  %v4844 = vpack.c.bf16 %v4436, %v4435
  %v4845 = vpack.c.bf16 %v4500, %v4499
  %v4846 = vpack.c.bf16 %v4564, %v4563
  %v4847 = vpack.c.bf16 %v4629, %v4628
  %v4848 = vpack.c.bf16 %v4693, %v4692
  %v4849 = vpack.c.bf16 %v4757, %v4756
  %v4850 = vpack.c.bf16 %v4246, %v4245
  %v4851 = vpack.c.bf16 %v4310, %v4309
  %v4852 = vpack.c.bf16 %v4374, %v4373
  %v4853 = vpack.c.bf16 %v4438, %v4437
  %v4854 = vpack.c.bf16 %v4502, %v4501
  %v4855 = vpack.c.bf16 %v4566, %v4565
  %v4856 = vpack.c.bf16 %v4631, %v4630
  %v4857 = vpack.c.bf16 %v4695, %v4694
  %v4858 = vpack.c.bf16 %v4759, %v4758
  %v4859 = vpack.c.bf16 %v4248, %v4247
  %v4860 = vpack.c.bf16 %v4312, %v4311
  %v4861 = vpack.c.bf16 %v4376, %v4375
  %v4862 = vpack.c.bf16 %v4440, %v4439
  %v4863 = vpack.c.bf16 %v4504, %v4503
  %v4864 = vpack.c.bf16 %v4568, %v4567
  %v4865 = vpack.c.bf16 %v4633, %v4632
  %v4866 = vpack.c.bf16 %v4697, %v4696
  %v4867 = vpack.c.bf16 %v4761, %v4760
  %v4868 = vpack.c.bf16 %v4250, %v4249
  %v4869 = vpack.c.bf16 %v4314, %v4313
  %v4870 = vpack.c.bf16 %v4378, %v4377
  %v4871 = vpack.c.bf16 %v4442, %v4441
  %v4872 = vpack.c.bf16 %v4506, %v4505
  %v4873 = vpack.c.bf16 %v4570, %v4569
  %v4874 = vpack.c.bf16 %v4635, %v4634
  %v4875 = vpack.c.bf16 %v4699, %v4698
  %v4876 = vpack.c.bf16 %v4763, %v4762
  %v4877 = vpack.c.bf16 %v4252, %v4251
  %v4878 = vpack.c.bf16 %v4316, %v4315
  %v4879 = vpack.c.bf16 %v4380, %v4379
  %v4880 = vpack.c.bf16 %v4444, %v4443
  %v4881 = vpack.c.bf16 %v4508, %v4507
  %v4882 = vpack.c.bf16 %v4572, %v4571
  %v4883 = vpack.c.bf16 %v4637, %v4636
  %v4884 = vpack.c.bf16 %v4701, %v4700
  %v4885 = vpack.c.bf16 %v4765, %v4764
  %v4886 = vpack.c.bf16 %v4254, %v4253
  %v4887 = vpack.c.bf16 %v4318, %v4317
  %v4888 = vpack.c.bf16 %v4382, %v4381
  %v4889 = vpack.c.bf16 %v4446, %v4445
  %v4890 = vpack.c.bf16 %v4510, %v4509
  %v4891 = vpack.c.bf16 %v4574, %v4573
  %v4892 = vpack.c.bf16 %v4639, %v4638
  %v4893 = vpack.c.bf16 %v4703, %v4702
  %v4894 = vpack.c.bf16 %v4767, %v4766
  %v4895 = vpack.c.bf16 %v4256, %v4255
  %v4896 = vpack.c.bf16 %v4320, %v4319
  %v4897 = vpack.c.bf16 %v4384, %v4383
  %v4898 = vpack.c.bf16 %v4448, %v4447
  %v4899 = vpack.c.bf16 %v4512, %v4511
  %v4900 = vpack.c.bf16 %v4576, %v4575
  %v4901 = vpack.c.bf16 %v4641, %v4640
  %v4902 = vpack.c.bf16 %v4705, %v4704
  %v4903 = vpack.c.bf16 %v4769, %v4768
  %v4904 = vpack.c.bf16 %v4258, %v4257
  %v4905 = vpack.c.bf16 %v4322, %v4321
  %v4906 = vpack.c.bf16 %v4386, %v4385
  %v4907 = vpack.c.bf16 %v4450, %v4449
  %v4908 = vpack.c.bf16 %v4514, %v4513
  %v4909 = vpack.c.bf16 %v4578, %v4577
  %v4910 = vpack.c.bf16 %v4643, %v4642
  %v4911 = vpack.c.bf16 %v4707, %v4706
  %v4912 = vpack.c.bf16 %v4771, %v4770
  %v4913 = vpack.c.bf16 %v4260, %v4259
  %v4914 = vpack.c.bf16 %v4324, %v4323
  %v4915 = vpack.c.bf16 %v4388, %v4387
  %v4916 = vpack.c.bf16 %v4452, %v4451
  %v4917 = vpack.c.bf16 %v4516, %v4515
  %v4918 = vpack.c.bf16 %v4580, %v4579
  %v4919 = vpack.c.bf16 %v4645, %v4644
  %v4920 = vpack.c.bf16 %v4709, %v4708
  %v4921 = vpack.c.bf16 %v4773, %v4772
  %v4922 = vpack.c.bf16 %v4262, %v4261
  %v4923 = vpack.c.bf16 %v4326, %v4325
  %v4924 = vpack.c.bf16 %v4390, %v4389
  %v4925 = vpack.c.bf16 %v4454, %v4453
  %v4926 = vpack.c.bf16 %v4518, %v4517
  %v4927 = vpack.c.bf16 %v4582, %v4581
  %v4928 = vpack.c.bf16 %v4647, %v4646
  %v4929 = vpack.c.bf16 %v4711, %v4710
  %v4930 = vpack.c.bf16 %v4775, %v4774
  %v4931 = vpack.c.bf16 %v4264, %v4263
  %v4932 = vpack.c.bf16 %v4328, %v4327
  %v4933 = vpack.c.bf16 %v4392, %v4391
  %v4934 = vpack.c.bf16 %v4456, %v4455
  %v4935 = vpack.c.bf16 %v4520, %v4519
  %v4936 = vpack.c.bf16 %v4584, %v4583
  %v4937 = vpack.c.bf16 %v4649, %v4648
  %v4938 = vpack.c.bf16 %v4713, %v4712
  %v4939 = vpack.c.bf16 %v4777, %v4776
  %v4940 = vpack.c.bf16 %v4266, %v4265
  %v4941 = vpack.c.bf16 %v4330, %v4329
  %v4942 = vpack.c.bf16 %v4394, %v4393
  %v4943 = vpack.c.bf16 %v4458, %v4457
  %v4944 = vpack.c.bf16 %v4522, %v4521
  %v4945 = vpack.c.bf16 %v4586, %v4585
  %v4946 = vpack.c.bf16 %v4651, %v4650
  %v4947 = vpack.c.bf16 %v4715, %v4714
  %v4948 = vpack.c.bf16 %v4779, %v4778
  %v4949 = vpack.c.bf16 %v4268, %v4267
  %v4950 = vpack.c.bf16 %v4332, %v4331
  %v4951 = vpack.c.bf16 %v4396, %v4395
  %v4952 = vpack.c.bf16 %v4460, %v4459
  %v4953 = vpack.c.bf16 %v4524, %v4523
  %v4954 = vpack.c.bf16 %v4588, %v4587
  %v4955 = vpack.c.bf16 %v4653, %v4652
  %v4956 = vpack.c.bf16 %v4717, %v4716
  %v4957 = vpack.c.bf16 %v4781, %v4780
  %v4958 = vpack.c.bf16 %v4270, %v4269
  %v4959 = vpack.c.bf16 %v4334, %v4333
  %v4960 = vpack.c.bf16 %v4398, %v4397
  %v4961 = vpack.c.bf16 %v4462, %v4461
  %v4962 = vpack.c.bf16 %v4526, %v4525
  %v4963 = vpack.c.bf16 %v4590, %v4589
  %v4964 = vpack.c.bf16 %v4655, %v4654
  %v4965 = vpack.c.bf16 %v4719, %v4718
  %v4966 = vpack.c.bf16 %v4783, %v4782
  %v4967 = vpack.c.bf16 %v4272, %v4271
  %v4968 = vpack.c.bf16 %v4336, %v4335
  %v4969 = vpack.c.bf16 %v4400, %v4399
  %v4970 = vpack.c.bf16 %v4464, %v4463
  %v4971 = vpack.c.bf16 %v4528, %v4527
  %v4972 = vpack.c.bf16 %v4592, %v4591
  %v4973 = vpack.c.bf16 %v4657, %v4656
  %v4974 = vpack.c.bf16 %v4721, %v4720
  %v4975 = vpack.c.bf16 %v4785, %v4784
  %v4976 = vpack.c.bf16 %v4274, %v4273
  %v4977 = vpack.c.bf16 %v4338, %v4337
  %v4978 = vpack.c.bf16 %v4402, %v4401
  %v4979 = vpack.c.bf16 %v4466, %v4465
  %v4980 = vpack.c.bf16 %v4530, %v4529
  %v4981 = vpack.c.bf16 %v4594, %v4593
  %v4982 = vpack.c.bf16 %v4659, %v4658
  %v4983 = vpack.c.bf16 %v4723, %v4722
  %v4984 = vpack.c.bf16 %v4787, %v4786
  %v4985 = vpack.c.bf16 %v4276, %v4275
  %v4986 = vpack.c.bf16 %v4340, %v4339
  %v4987 = vpack.c.bf16 %v4404, %v4403
  %v4988 = vpack.c.bf16 %v4468, %v4467
  %v4989 = vpack.c.bf16 %v4532, %v4531
  %v4990 = vpack.c.bf16 %v4596, %v4595
  %v4991 = vpack.c.bf16 %v4661, %v4660
  %v4992 = vpack.c.bf16 %v4725, %v4724
  %v4993 = vpack.c.bf16 %v4789, %v4788
  %v4994 = vpack.c.bf16 %v4278, %v4277
  %v4995 = vpack.c.bf16 %v4342, %v4341
  %v4996 = vpack.c.bf16 %v4406, %v4405
  %v4997 = vpack.c.bf16 %v4470, %v4469
  %v4998 = vpack.c.bf16 %v4534, %v4533
  %v4999 = vpack.c.bf16 %v4598, %v4597
  %v5000 = vpack.c.bf16 %v4663, %v4662
  %v5001 = vpack.c.bf16 %v4727, %v4726
  %v5002 = vpack.c.bf16 %v4791, %v4790
  %v5003 = vpack.c.bf16 %v4280, %v4279
  %v5004 = vpack.c.bf16 %v4344, %v4343
  %v5005 = vpack.c.bf16 %v4408, %v4407
  %v5006 = vpack.c.bf16 %v4472, %v4471
  %v5007 = vpack.c.bf16 %v4536, %v4535
  %v5008 = vpack.c.bf16 %v4600, %v4599
  %v5009 = vpack.c.bf16 %v4665, %v4664
  %v5010 = vpack.c.bf16 %v4729, %v4728
  %v5011 = vpack.c.bf16 %v4793, %v4792
  %v5012 = vpack.c.bf16 %v4282, %v4281
  %v5013 = vpack.c.bf16 %v4346, %v4345
  %v5014 = vpack.c.bf16 %v4410, %v4409
  %v5015 = vpack.c.bf16 %v4474, %v4473
  %v5016 = vpack.c.bf16 %v4538, %v4537
  %v5017 = vpack.c.bf16 %v4602, %v4601
  %v5018 = vpack.c.bf16 %v4667, %v4666
  %v5019 = vpack.c.bf16 %v4731, %v4730
  %v5020 = vpack.c.bf16 %v4795, %v4794
  %v5021 = vpack.c.bf16 %v4284, %v4283
  %v5022 = vpack.c.bf16 %v4348, %v4347
  %v5023 = vpack.c.bf16 %v4412, %v4411
  %v5024 = vpack.c.bf16 %v4476, %v4475
  %v5025 = vpack.c.bf16 %v4540, %v4539
  %v5026 = vpack.c.bf16 %v4604, %v4603
  %v5027 = vpack.c.bf16 %v4669, %v4668
  %v5028 = vpack.c.bf16 %v4733, %v4732
  %v5029 = vpack.c.bf16 %v4797, %v4796
  %v5030 = vpack.c.bf16 %v4286, %v4285
  %v5031 = vpack.c.bf16 %v4350, %v4349
  %v5032 = vpack.c.bf16 %v4414, %v4413
  %v5033 = vpack.c.bf16 %v4478, %v4477
  %v5034 = vpack.c.bf16 %v4542, %v4541
  %v5035 = vpack.c.bf16 %v4606, %v4605
  %v5036 = vpack.c.bf16 %v4671, %v4670
  %v5037 = vpack.c.bf16 %v4735, %v4734
  %v5038 = vpack.c.bf16 %v4799, %v4798
  %v5039 = vpack.c.bf16 %v4288, %v4287
  %v5040 = vpack.c.bf16 %v4352, %v4351
  %v5041 = vpack.c.bf16 %v4416, %v4415
  %v5042 = vpack.c.bf16 %v4480, %v4479
  %v5043 = vpack.c.bf16 %v4544, %v4543
  %v5044 = vpack.c.bf16 %v4608, %v4607
  %v5045 = vpack.c.bf16 %v4673, %v4672
  %v5046 = vpack.c.bf16 %v4737, %v4736
  %v5047 = vpack.c.bf16 %v4801, %v4800
  %v5048 = vpack.c.bf16 %v4290, %v4289
  %v5049 = vpack.c.bf16 %v4354, %v4353
  %v5050 = vpack.c.bf16 %v4418, %v4417
  %v5051 = vpack.c.bf16 %v4482, %v4481
  %v5052 = vpack.c.bf16 %v4546, %v4545
  %v5053 = vpack.c.bf16 %v4610, %v4609
  %v5054 = vpack.c.bf16 %v4675, %v4674
  %v5055 = vpack.c.bf16 %v4739, %v4738
  %v5056 = vpack.c.bf16 %v4803, %v4802
  %v5057 = vpack.c.bf16 %v4292, %v4291
  %v5058 = vpack.c.bf16 %v4356, %v4355
  %v5059 = vpack.c.bf16 %v4420, %v4419
  %v5060 = vpack.c.bf16 %v4484, %v4483
  %v5061 = vpack.c.bf16 %v4548, %v4547
  %v5062 = vpack.c.bf16 %v4612, %v4611
  %v5063 = vpack.c.bf16 %v4677, %v4676
  %v5064 = vpack.c.bf16 %v4741, %v4740
  %v5065 = vpack.c.bf16 %v4805, %v4804
  %v5066 = vpack.c.bf16 %v4294, %v4293
  %v5067 = vpack.c.bf16 %v4358, %v4357
  %v5068 = vpack.c.bf16 %v4422, %v4421
  %v5069 = vpack.c.bf16 %v4486, %v4485
  %v5070 = vpack.c.bf16 %v4550, %v4549
  %v5071 = vpack.c.bf16 %v4614, %v4613
  %v5072 = vpack.c.bf16 %v4679, %v4678
  %v5073 = vpack.c.bf16 %v4743, %v4742
  %v5074 = vpack.c.bf16 %v4807, %v4806
  %v5075 = vpack.c.bf16 %v4296, %v4295
  %v5076 = vpack.c.bf16 %v4360, %v4359
  %v5077 = vpack.c.bf16 %v4424, %v4423
  %v5078 = vpack.c.bf16 %v4488, %v4487
  %v5079 = vpack.c.bf16 %v4552, %v4551
  %v5080 = vpack.c.bf16 %v4616, %v4615
  %v5081 = vpack.c.bf16 %v4681, %v4680
  %v5082 = vpack.c.bf16 %v4745, %v4744
  %v5083 = vpack.c.bf16 %v4809, %v4808
  %v5084 = vpack.c.bf16 %v4298, %v4297
  %v5085 = vpack.c.bf16 %v4362, %v4361
  %v5086 = vpack.c.bf16 %v4426, %v4425
  %v5087 = vpack.c.bf16 %v4490, %v4489
  %v5088 = vpack.c.bf16 %v4554, %v4553
  %v5089 = vpack.c.bf16 %v4618, %v4617
  %v5090 = vpack.c.bf16 %v4683, %v4682
  %v5091 = vpack.c.bf16 %v4747, %v4746
  %v5092 = vpack.c.bf16 %v4811, %v4810
  %v5093 = vpack.c.bf16 %v4300, %v4299
  %v5094 = vpack.c.bf16 %v4364, %v4363
  %v5095 = vpack.c.bf16 %v4428, %v4427
  %v5096 = vpack.c.bf16 %v4492, %v4491
  %v5097 = vpack.c.bf16 %v4556, %v4555
  %v5098 = vpack.c.bf16 %v4620, %v4619
  %v5099 = vpack.c.bf16 %v4685, %v4684
  %v5100 = vpack.c.bf16 %v4749, %v4748
  %v5101 = vpack.c.bf16 %v4813, %v4812
  %v5102 = vld [vmem:[%s4] sm:$0xf]
  %v5103 = vld [vmem:[%s4 + $0x4] sm:$0xf]
  %v5104 = vld [vmem:[%s4 + $0x8] sm:$0xf]
  %v5105 = vld [vmem:[%s4 + $0xc] sm:$0xf]
  %v5106 = vld [vmem:[%s4 + $0x10] sm:$0xf]
  %v5107 = vld [vmem:[%s4 + $0x14] sm:$0xf]
  %v5108 = vld [vmem:[%s4 + $0x18] sm:$0xf]
  %v5109 = vld [vmem:[%s4 + $0x1c] sm:$0xf]
  %v5110 = vld [vmem:[%s4 + $0x20] sm:$0xf]
  %v5111 = vld [vmem:[%s4 + $0x24] sm:$0xf]
  %v5112 = vld [vmem:[%s4 + $0x28] sm:$0xf]
  %v5113 = vld [vmem:[%s4 + $0x2c] sm:$0xf]
  %v5114 = vld [vmem:[%s4 + $0x30] sm:$0xf]
  %v5115 = vld [vmem:[%s4 + $0x34] sm:$0xf]
  %v5116 = vld [vmem:[%s4 + $0x38] sm:$0xf]
  %v5117 = vld [vmem:[%s4 + $0x3c] sm:$0xf]
  %v5118 = vld [vmem:[%s4 + $0x40] sm:$0xf]
  %v5119 = vld [vmem:[%s4 + $0x44] sm:$0xf]
  %v5120 = vld [vmem:[%s4 + $0x48] sm:$0xf]
  %v5121 = vld [vmem:[%s4 + $0x4c] sm:$0xf]
  %v5122 = vld [vmem:[%s4 + $0x50] sm:$0xf]
  %v5123 = vld [vmem:[%s4 + $0x54] sm:$0xf]
  %v5124 = vld [vmem:[%s4 + $0x58] sm:$0xf]
  %v5125 = vld [vmem:[%s4 + $0x5c] sm:$0xf]
  %v5126 = vld [vmem:[%s4 + $0x60] sm:$0xf]
  %v5127 = vld [vmem:[%s4 + $0x64] sm:$0xf]
  %v5128 = vld [vmem:[%s4 + $0x68] sm:$0xf]
  %v5129 = vld [vmem:[%s4 + $0x6c] sm:$0xf]
  %v5130 = vld [vmem:[%s4 + $0x70] sm:$0xf]
  %v5131 = vld [vmem:[%s4 + $0x74] sm:$0xf]
  %v5132 = vld [vmem:[%s4 + $0x78] sm:$0xf]
  %v5133 = vld [vmem:[%s4 + $0x7c] sm:$0xf]
  %v5134 = vld [vmem:[%s4 + $0x80] sm:$0xf]
  %v5135 = vld [vmem:[%s4 + $0x84] sm:$0xf]
  %v5136 = vld [vmem:[%s4 + $0x88] sm:$0xf]
  %v5137 = vld [vmem:[%s4 + $0x8c] sm:$0xf]
  %v5138 = vld [vmem:[%s4 + $0x90] sm:$0xf]
  %v5139 = vld [vmem:[%s4 + $0x94] sm:$0xf]
  %v5140 = vld [vmem:[%s4 + $0x98] sm:$0xf]
  %v5141 = vld [vmem:[%s4 + $0x9c] sm:$0xf]
  %v5142 = vld [vmem:[%s4 + $0xa0] sm:$0xf]
  %v5143 = vld [vmem:[%s4 + $0xa4] sm:$0xf]
  %v5144 = vld [vmem:[%s4 + $0xa8] sm:$0xf]
  %v5145 = vld [vmem:[%s4 + $0xac] sm:$0xf]
  %v5146 = vld [vmem:[%s4 + $0xb0] sm:$0xf]
  %v5147 = vld [vmem:[%s4 + $0xb4] sm:$0xf]
  %v5148 = vld [vmem:[%s4 + $0xb8] sm:$0xf]
  %v5149 = vld [vmem:[%s4 + $0xbc] sm:$0xf]
  %v5150 = vld [vmem:[%s4 + $0xc0] sm:$0xf]
  %v5151 = vld [vmem:[%s4 + $0xc4] sm:$0xf]
  %v5152 = vld [vmem:[%s4 + $0xc8] sm:$0xf]
  %v5153 = vld [vmem:[%s4 + $0xcc] sm:$0xf]
  %v5154 = vld [vmem:[%s4 + $0xd0] sm:$0xf]
  %v5155 = vld [vmem:[%s4 + $0xd4] sm:$0xf]
  %v5156 = vld [vmem:[%s4 + $0xd8] sm:$0xf]
  %v5157 = vld [vmem:[%s4 + $0xdc] sm:$0xf]
  %v5158 = vld [vmem:[%s4 + $0xe0] sm:$0xf]
  %v5159 = vld [vmem:[%s4 + $0xe4] sm:$0xf]
  %v5160 = vld [vmem:[%s4 + $0xe8] sm:$0xf]
  %v5161 = vld [vmem:[%s4 + $0xec] sm:$0xf]
  %v5162 = vld [vmem:[%s4 + $0xf0] sm:$0xf]
  %v5163 = vld [vmem:[%s4 + $0xf4] sm:$0xf]
  %v5164 = vld [vmem:[%s4 + $0xf8] sm:$0xf]
  %v5165 = vld [vmem:[%s4 + $0xfc] sm:$0xf]
  %v5166 = vld [vmem:[%s4 + $0x100] sm:$0xf]
  %v5167 = vld [vmem:[%s4 + $0x104] sm:$0xf]
  %v5168 = vld [vmem:[%s4 + $0x108] sm:$0xf]
  %v5169 = vld [vmem:[%s4 + $0x10c] sm:$0xf]
  %v5170 = vld [vmem:[%s4 + $0x110] sm:$0xf]
  %v5171 = vld [vmem:[%s4 + $0x114] sm:$0xf]
  %v5172 = vld [vmem:[%s4 + $0x118] sm:$0xf]
  %v5173 = vld [vmem:[%s4 + $0x11c] sm:$0xf]
  %v5174 = vld [vmem:[%s4 + $0x120] sm:$0xf]
  %v5175 = vld [vmem:[%s4 + $0x124] sm:$0xf]
  %v5176 = vld [vmem:[%s4 + $0x128] sm:$0xf]
  %v5177 = vld [vmem:[%s4 + $0x12c] sm:$0xf]
  %v5178 = vld [vmem:[%s4 + $0x130] sm:$0xf]
  %v5179 = vld [vmem:[%s4 + $0x134] sm:$0xf]
  %v5180 = vld [vmem:[%s4 + $0x138] sm:$0xf]
  %v5181 = vld [vmem:[%s4 + $0x13c] sm:$0xf]
  %v5182 = vld [vmem:[%s4 + $0x140] sm:$0xf]
  %v5183 = vld [vmem:[%s4 + $0x144] sm:$0xf]
  %v5184 = vld [vmem:[%s4 + $0x148] sm:$0xf]
  %v5185 = vld [vmem:[%s4 + $0x14c] sm:$0xf]
  %v5186 = vld [vmem:[%s4 + $0x150] sm:$0xf]
  %v5187 = vld [vmem:[%s4 + $0x154] sm:$0xf]
  %v5188 = vld [vmem:[%s4 + $0x158] sm:$0xf]
  %v5189 = vld [vmem:[%s4 + $0x15c] sm:$0xf]
  %v5190 = vld [vmem:[%s4 + $0x160] sm:$0xf]
  %v5191 = vld [vmem:[%s4 + $0x164] sm:$0xf]
  %v5192 = vld [vmem:[%s4 + $0x168] sm:$0xf]
  %v5193 = vld [vmem:[%s4 + $0x16c] sm:$0xf]
  %v5194 = vld [vmem:[%s4 + $0x170] sm:$0xf]
  %v5195 = vld [vmem:[%s4 + $0x174] sm:$0xf]
  %v5196 = vld [vmem:[%s4 + $0x178] sm:$0xf]
  %v5197 = vld [vmem:[%s4 + $0x17c] sm:$0xf]
  %v5198 = vld [vmem:[%s4 + $0x180] sm:$0xf]
  %v5199 = vld [vmem:[%s4 + $0x184] sm:$0xf]
  %v5200 = vld [vmem:[%s4 + $0x188] sm:$0xf]
  %v5201 = vld [vmem:[%s4 + $0x18c] sm:$0xf]
  %v5202 = vld [vmem:[%s4 + $0x190] sm:$0xf]
  %v5203 = vld [vmem:[%s4 + $0x194] sm:$0xf]
  %v5204 = vld [vmem:[%s4 + $0x198] sm:$0xf]
  %v5205 = vld [vmem:[%s4 + $0x19c] sm:$0xf]
  %v5206 = vld [vmem:[%s4 + $0x1a0] sm:$0xf]
  %v5207 = vld [vmem:[%s4 + $0x1a4] sm:$0xf]
  %v5208 = vld [vmem:[%s4 + $0x1a8] sm:$0xf]
  %v5209 = vld [vmem:[%s4 + $0x1ac] sm:$0xf]
  %v5210 = vld [vmem:[%s4 + $0x1b0] sm:$0xf]
  %v5211 = vld [vmem:[%s4 + $0x1b4] sm:$0xf]
  %v5212 = vld [vmem:[%s4 + $0x1b8] sm:$0xf]
  %v5213 = vld [vmem:[%s4 + $0x1bc] sm:$0xf]
  %v5214 = vld [vmem:[%s4 + $0x1c0] sm:$0xf]
  %v5215 = vld [vmem:[%s4 + $0x1c4] sm:$0xf]
  %v5216 = vld [vmem:[%s4 + $0x1c8] sm:$0xf]
  %v5217 = vld [vmem:[%s4 + $0x1cc] sm:$0xf]
  %v5218 = vld [vmem:[%s4 + $0x1d0] sm:$0xf]
  %v5219 = vld [vmem:[%s4 + $0x1d4] sm:$0xf]
  %v5220 = vld [vmem:[%s4 + $0x1d8] sm:$0xf]
  %v5221 = vld [vmem:[%s4 + $0x1dc] sm:$0xf]
  %v5222 = vld [vmem:[%s4 + $0x1e0] sm:$0xf]
  %v5223 = vld [vmem:[%s4 + $0x1e4] sm:$0xf]
  %v5224 = vld [vmem:[%s4 + $0x1e8] sm:$0xf]
  %v5225 = vld [vmem:[%s4 + $0x1ec] sm:$0xf]
  %v5226 = vld [vmem:[%s4 + $0x1f0] sm:$0xf]
  %v5227 = vld [vmem:[%s4 + $0x1f4] sm:$0xf]
  %v5228 = vld [vmem:[%s4 + $0x1f8] sm:$0xf]
  %v5229 = vld [vmem:[%s4 + $0x1fc] sm:$0xf]
  %v5230 = vld [vmem:[%s4 + $0x200] sm:$0xf]
  %v5231 = vld [vmem:[%s4 + $0x204] sm:$0xf]
  %v5232 = vld [vmem:[%s4 + $0x208] sm:$0xf]
  %v5233 = vld [vmem:[%s4 + $0x20c] sm:$0xf]
  %v5234 = vld [vmem:[%s4 + $0x210] sm:$0xf]
  %v5235 = vld [vmem:[%s4 + $0x214] sm:$0xf]
  %v5236 = vld [vmem:[%s4 + $0x218] sm:$0xf]
  %v5237 = vld [vmem:[%s4 + $0x21c] sm:$0xf]
  %v5238 = vld [vmem:[%s4 + $0x220] sm:$0xf]
  %v5239 = vld [vmem:[%s4 + $0x224] sm:$0xf]
  %v5240 = vld [vmem:[%s4 + $0x228] sm:$0xf]
  %v5241 = vld [vmem:[%s4 + $0x22c] sm:$0xf]
  %v5242 = vld [vmem:[%s4 + $0x230] sm:$0xf]
  %v5243 = vld [vmem:[%s4 + $0x234] sm:$0xf]
  %v5244 = vld [vmem:[%s4 + $0x238] sm:$0xf]
  %v5245 = vld [vmem:[%s4 + $0x23c] sm:$0xf]
  %v5390 = vunpack.c.l.b16 %v5102
  %v5391 = vunpack.c.l.b16 %v5103
  %v5392 = vunpack.c.l.b16 %v5104
  %v5393 = vunpack.c.l.b16 %v5105
  %v5394 = vunpack.c.l.b16 %v5106
  %v5395 = vunpack.c.l.b16 %v5107
  %v5396 = vunpack.c.l.b16 %v5108
  %v5397 = vunpack.c.l.b16 %v5109
  %v5398 = vunpack.c.l.b16 %v5110
  %v5399 = vunpack.c.l.b16 %v5111
  %v5400 = vunpack.c.l.b16 %v5112
  %v5401 = vunpack.c.l.b16 %v5113
  %v5402 = vunpack.c.l.b16 %v5114
  %v5403 = vunpack.c.l.b16 %v5115
  %v5404 = vunpack.c.l.b16 %v5116
  %v5405 = vunpack.c.l.b16 %v5117
  %v5406 = vunpack.c.l.b16 %v5118
  %v5407 = vunpack.c.l.b16 %v5119
  %v5408 = vunpack.c.l.b16 %v5120
  %v5409 = vunpack.c.l.b16 %v5121
  %v5410 = vunpack.c.l.b16 %v5122
  %v5411 = vunpack.c.l.b16 %v5123
  %v5412 = vunpack.c.l.b16 %v5124
  %v5413 = vunpack.c.l.b16 %v5125
  %v5414 = vunpack.c.l.b16 %v5126
  %v5415 = vunpack.c.l.b16 %v5127
  %v5416 = vunpack.c.l.b16 %v5128
  %v5417 = vunpack.c.l.b16 %v5129
  %v5418 = vunpack.c.l.b16 %v5130
  %v5419 = vunpack.c.l.b16 %v5131
  %v5420 = vunpack.c.l.b16 %v5132
  %v5421 = vunpack.c.l.b16 %v5133
  %v5422 = vunpack.c.l.b16 %v5134
  %v5423 = vunpack.c.l.b16 %v5135
  %v5424 = vunpack.c.l.b16 %v5136
  %v5425 = vunpack.c.l.b16 %v5137
  %v5426 = vunpack.c.l.b16 %v5138
  %v5427 = vunpack.c.l.b16 %v5139
  %v5428 = vunpack.c.l.b16 %v5140
  %v5429 = vunpack.c.l.b16 %v5141
  %v5430 = vunpack.c.l.b16 %v5142
  %v5431 = vunpack.c.l.b16 %v5143
  %v5432 = vunpack.c.l.b16 %v5144
  %v5433 = vunpack.c.l.b16 %v5145
  %v5434 = vunpack.c.l.b16 %v5146
  %v5435 = vunpack.c.l.b16 %v5147
  %v5436 = vunpack.c.l.b16 %v5148
  %v5437 = vunpack.c.l.b16 %v5149
  %v5438 = vunpack.c.l.b16 %v5150
  %v5439 = vunpack.c.l.b16 %v5151
  %v5440 = vunpack.c.l.b16 %v5152
  %v5441 = vunpack.c.l.b16 %v5153
  %v5442 = vunpack.c.l.b16 %v5154
  %v5443 = vunpack.c.l.b16 %v5155
  %v5444 = vunpack.c.l.b16 %v5156
  %v5445 = vunpack.c.l.b16 %v5157
  %v5446 = vunpack.c.l.b16 %v5158
  %v5447 = vunpack.c.l.b16 %v5159
  %v5448 = vunpack.c.l.b16 %v5160
  %v5449 = vunpack.c.l.b16 %v5161
  %v5450 = vunpack.c.l.b16 %v5162
  %v5451 = vunpack.c.l.b16 %v5163
  %v5452 = vunpack.c.l.b16 %v5164
  %v5453 = vunpack.c.l.b16 %v5165
  %v5454 = vunpack.c.l.b16 %v5166
  %v5455 = vunpack.c.l.b16 %v5167
  %v5456 = vunpack.c.l.b16 %v5168
  %v5457 = vunpack.c.l.b16 %v5169
  %v5458 = vunpack.c.l.b16 %v5170
  %v5459 = vunpack.c.l.b16 %v5171
  %v5460 = vunpack.c.l.b16 %v5172
  %v5461 = vunpack.c.l.b16 %v5173
  %v5462 = vunpack.c.l.b16 %v5174
  %v5463 = vunpack.c.l.b16 %v5175
  %v5464 = vunpack.c.l.b16 %v5176
  %v5465 = vunpack.c.l.b16 %v5177
  %v5466 = vunpack.c.l.b16 %v5178
  %v5467 = vunpack.c.l.b16 %v5179
  %v5468 = vunpack.c.l.b16 %v5180
  %v5469 = vunpack.c.l.b16 %v5181
  %v5470 = vunpack.c.l.b16 %v5182
  %v5471 = vunpack.c.l.b16 %v5183
  %v5472 = vunpack.c.l.b16 %v5184
  %v5473 = vunpack.c.l.b16 %v5185
  %v5474 = vunpack.c.l.b16 %v5186
  %v5475 = vunpack.c.l.b16 %v5187
  %v5476 = vunpack.c.l.b16 %v5188
  %v5477 = vunpack.c.l.b16 %v5189
  %v5478 = vunpack.c.l.b16 %v5190
  %v5479 = vunpack.c.l.b16 %v5191
  %v5480 = vunpack.c.l.b16 %v5192
  %v5481 = vunpack.c.l.b16 %v5193
  %v5482 = vunpack.c.l.b16 %v5194
  %v5483 = vunpack.c.l.b16 %v5195
  %v5484 = vunpack.c.l.b16 %v5196
  %v5485 = vunpack.c.l.b16 %v5197
  %v5486 = vunpack.c.l.b16 %v5198
  %v5487 = vunpack.c.l.b16 %v5199
  %v5488 = vunpack.c.l.b16 %v5200
  %v5489 = vunpack.c.l.b16 %v5201
  %v5490 = vunpack.c.l.b16 %v5202
  %v5491 = vunpack.c.l.b16 %v5203
  %v5492 = vunpack.c.l.b16 %v5204
  %v5493 = vunpack.c.l.b16 %v5205
  %v5494 = vunpack.c.l.b16 %v5206
  %v5495 = vunpack.c.l.b16 %v5207
  %v5496 = vunpack.c.l.b16 %v5208
  %v5497 = vunpack.c.l.b16 %v5209
  %v5498 = vunpack.c.l.b16 %v5210
  %v5499 = vunpack.c.l.b16 %v5211
  %v5500 = vunpack.c.l.b16 %v5212
  %v5501 = vunpack.c.l.b16 %v5213
  %v5502 = vunpack.c.l.b16 %v5214
  %v5503 = vunpack.c.l.b16 %v5215
  %v5504 = vunpack.c.l.b16 %v5216
  %v5505 = vunpack.c.l.b16 %v5217
  %v5506 = vunpack.c.l.b16 %v5218
  %v5507 = vunpack.c.l.b16 %v5219
  %v5508 = vunpack.c.l.b16 %v5220
  %v5509 = vunpack.c.l.b16 %v5221
  %v5510 = vunpack.c.l.b16 %v5222
  %v5511 = vunpack.c.l.b16 %v5223
  %v5512 = vunpack.c.l.b16 %v5224
  %v5513 = vunpack.c.l.b16 %v5225
  %v5514 = vunpack.c.l.b16 %v5226
  %v5515 = vunpack.c.l.b16 %v5227
  %v5516 = vunpack.c.l.b16 %v5228
  %v5517 = vunpack.c.l.b16 %v5229
  %v5518 = vunpack.c.l.b16 %v5230
  %v5519 = vunpack.c.l.b16 %v5231
  %v5520 = vunpack.c.l.b16 %v5232
  %v5521 = vunpack.c.l.b16 %v5233
  %v5522 = vunpack.c.l.b16 %v5234
  %v5523 = vunpack.c.l.b16 %v5235
  %v5524 = vunpack.c.l.b16 %v5236
  %v5525 = vunpack.c.l.b16 %v5237
  %v5526 = vunpack.c.l.b16 %v5238
  %v5527 = vunpack.c.l.b16 %v5239
  %v5528 = vunpack.c.l.b16 %v5240
  %v5529 = vunpack.c.l.b16 %v5241
  %v5530 = vunpack.c.l.b16 %v5242
  %v5531 = vunpack.c.l.b16 %v5243
  %v5532 = vunpack.c.l.b16 %v5244
  %v5533 = vunpack.c.l.b16 %v5245
  %v5534 = vpack.c.b16 %v5391, %v5390
  %v5535 = vpack.c.b16 %v5393, %v5392
  %v5536 = vpack.c.b16 %v5395, %v5394
  %v5537 = vpack.c.b16 %v5397, %v5396
  %v5538 = vpack.c.b16 %v5399, %v5398
  %v5539 = vpack.c.b16 %v5401, %v5400
  %v5540 = vpack.c.b16 %v5403, %v5402
  %v5541 = vpack.c.b16 %v5405, %v5404
  %v5542 = vpack.c.b16 %v5407, %v5406
  %v5543 = vpack.c.b16 %v5409, %v5408
  %v5544 = vpack.c.b16 %v5411, %v5410
  %v5545 = vpack.c.b16 %v5413, %v5412
  %v5546 = vpack.c.b16 %v5415, %v5414
  %v5547 = vpack.c.b16 %v5417, %v5416
  %v5548 = vpack.c.b16 %v5419, %v5418
  %v5549 = vpack.c.b16 %v5421, %v5420
  %v5550 = vpack.c.b16 %v5423, %v5422
  %v5551 = vpack.c.b16 %v5425, %v5424
  %v5552 = vpack.c.b16 %v5427, %v5426
  %v5553 = vpack.c.b16 %v5429, %v5428
  %v5554 = vpack.c.b16 %v5431, %v5430
  %v5555 = vpack.c.b16 %v5433, %v5432
  %v5556 = vpack.c.b16 %v5435, %v5434
  %v5557 = vpack.c.b16 %v5437, %v5436
  %v5558 = vpack.c.b16 %v5439, %v5438
  %v5559 = vpack.c.b16 %v5441, %v5440
  %v5560 = vpack.c.b16 %v5443, %v5442
  %v5561 = vpack.c.b16 %v5445, %v5444
  %v5562 = vpack.c.b16 %v5447, %v5446
  %v5563 = vpack.c.b16 %v5449, %v5448
  %v5564 = vpack.c.b16 %v5451, %v5450
  %v5565 = vpack.c.b16 %v5453, %v5452
  %v5566 = vpack.c.b16 %v5455, %v5454
  %v5567 = vpack.c.b16 %v5457, %v5456
  %v5568 = vpack.c.b16 %v5459, %v5458
  %v5569 = vpack.c.b16 %v5461, %v5460
  %v5570 = vpack.c.b16 %v5463, %v5462
  %v5571 = vpack.c.b16 %v5465, %v5464
  %v5572 = vpack.c.b16 %v5467, %v5466
  %v5573 = vpack.c.b16 %v5469, %v5468
  %v5574 = vpack.c.b16 %v5471, %v5470
  %v5575 = vpack.c.b16 %v5473, %v5472
  %v5576 = vpack.c.b16 %v5475, %v5474
  %v5577 = vpack.c.b16 %v5477, %v5476
  %v5578 = vpack.c.b16 %v5479, %v5478
  %v5579 = vpack.c.b16 %v5481, %v5480
  %v5580 = vpack.c.b16 %v5483, %v5482
  %v5581 = vpack.c.b16 %v5485, %v5484
  %v5582 = vpack.c.b16 %v5487, %v5486
  %v5583 = vpack.c.b16 %v5489, %v5488
  %v5584 = vpack.c.b16 %v5491, %v5490
  %v5585 = vpack.c.b16 %v5493, %v5492
  %v5586 = vpack.c.b16 %v5495, %v5494
  %v5587 = vpack.c.b16 %v5497, %v5496
  %v5588 = vpack.c.b16 %v5499, %v5498
  %v5589 = vpack.c.b16 %v5501, %v5500
  %v5590 = vpack.c.b16 %v5503, %v5502
  %v5591 = vpack.c.b16 %v5505, %v5504
  %v5592 = vpack.c.b16 %v5507, %v5506
  %v5593 = vpack.c.b16 %v5509, %v5508
  %v5594 = vpack.c.b16 %v5511, %v5510
  %v5595 = vpack.c.b16 %v5513, %v5512
  %v5596 = vpack.c.b16 %v5515, %v5514
  %v5597 = vpack.c.b16 %v5517, %v5516
  %v5598 = vpack.c.b16 %v5519, %v5518
  %v5599 = vpack.c.b16 %v5521, %v5520
  %v5600 = vpack.c.b16 %v5523, %v5522
  %v5601 = vpack.c.b16 %v5525, %v5524
  %v5602 = vpack.c.b16 %v5527, %v5526
  %v5603 = vpack.c.b16 %v5529, %v5528
  %v5604 = vpack.c.b16 %v5531, %v5530
  %v5605 = vpack.c.b16 %v5533, %v5532
  %5678 = vmatprep.subr.bf16.mxu0 0
  %5679 = vmatpush1.bf16.msra.mxu0 %v5534
  %5680 = vmatprep.subr.bf16.mxu0 0
  %5681 = vmatpush1.bf16.msra.mxu0 %v5535
  %5682 = vmatprep.subr.bf16.mxu0 0
  %5683 = vmatpush1.bf16.msra.mxu0 %v5536
  %5684 = vmatprep.subr.bf16.mxu0 0
  %5685 = vmatpush1.bf16.msra.mxu0 %v5537
  %5686 = vmatprep.subr.bf16.mxu0 0
  %5687 = vmatpush1.bf16.msra.mxu0 %v5538
  %5688 = vmatprep.subr.bf16.mxu0 0
  %5689 = vmatpush1.bf16.msra.mxu0 %v5539
  %5690 = vmatprep.subr.bf16.mxu0 0
  %5691 = vmatpush1.bf16.msra.mxu0 %v5540
  %5692 = vmatprep.subr.bf16.mxu0 0
  %5693 = vmatpush1.bf16.msra.mxu0 %v5541
  %5694 = vmatprep.subr.bf16.mxu0 0
  %5695 = vmatpush1.bf16.msra.mxu0 %v5542
  %5696 = vmatprep.subr.bf16.mxu0 0
  %5697 = vmatpush1.bf16.msra.mxu0 %v5543
  %5698 = vmatprep.subr.bf16.mxu0 0
  %5699 = vmatpush1.bf16.msra.mxu0 %v5544
  %5700 = vmatprep.subr.bf16.mxu0 0
  %5701 = vmatpush1.bf16.msra.mxu0 %v5545
  %5702 = vmatprep.subr.bf16.mxu0 0
  %5703 = vmatpush1.bf16.msra.mxu0 %v5546
  %5704 = vmatprep.subr.bf16.mxu0 0
  %5705 = vmatpush1.bf16.msra.mxu0 %v5547
  %5706 = vmatprep.subr.bf16.mxu0 0
  %5707 = vmatpush1.bf16.msra.mxu0 %v5548
  %5708 = vmatprep.subr.bf16.mxu0 0
  %5709 = vmatpush1.bf16.msra.mxu0 %v5549
  %5710 = vmatprep.mubr.bf16.mxu0 %v4815
  %5711 = vmatmul.mubr.bf16.gmra.mrb[0].mxu0 %v4814
  %v5712 = vpop.f32.mrb[0].mxu0
  %v5713 = vadd.f32 0.0, %v5712
  %v5714 = vpop.f32.mrb[0].mxu0
  %v5715 = vpop.f32.mrb[0].mxu0
  %v5716 = vadd.f32 0.0, %v5715
  %v5717 = vpop.f32.mrb[0].mxu0
  %5718 = vmatprep.mubr.bf16.mxu0 %v4824
  %5719 = vmatmul.mubr.bf16.gmra.mrb[0].mxu0 %v4823
  %v5720 = vpop.f32.mrb[0].mxu0
  %v5721 = vadd.f32 0.0, %v5720
  %v5722 = vpop.f32.mrb[0].mxu0
  %v5723 = vpop.f32.mrb[0].mxu0
  %v5724 = vadd.f32 0.0, %v5723
  %v5725 = vpop.f32.mrb[0].mxu0
  %5726 = vmatprep.mubr.bf16.mxu0 %v4833
  %5727 = vmatmul.mubr.bf16.gmra.mrb[0].mxu0 %v4832
  %v5728 = vpop.f32.mrb[0].mxu0
  %v5729 = vadd.f32 0.0, %v5728
  %v5730 = vpop.f32.mrb[0].mxu0
  %v5731 = vpop.f32.mrb[0].mxu0
  %v5732 = vadd.f32 0.0, %v5731
  %v5733 = vpop.f32.mrb[0].mxu0
  %5734 = vmatprep.mubr.bf16.mxu0 %v4842
  %5735 = vmatmul.mubr.bf16.gmra.mrb[0].mxu0 %v4841
  %v5736 = vpop.f32.mrb[0].mxu0
  %v5737 = vadd.f32 0.0, %v5736
  %v5738 = vpop.f32.mrb[0].mxu0
  %v5739 = vpop.f32.mrb[0].mxu0
  %v5740 = vadd.f32 0.0, %v5739
  %v5741 = vpop.f32.mrb[0].mxu0
  %5742 = vmatprep.mubr.bf16.mxu0 %v4851
  %5743 = vmatmul.mubr.bf16.gmra.mrb[0].mxu0 %v4850
  %v5744 = vpop.f32.mrb[0].mxu0
  %v5745 = vadd.f32 0.0, %v5744
  %v5746 = vpop.f32.mrb[0].mxu0
  %v5747 = vpop.f32.mrb[0].mxu0
  %v5748 = vadd.f32 0.0, %v5747
  %v5749 = vpop.f32.mrb[0].mxu0
  %5750 = vmatprep.mubr.bf16.mxu0 %v4860
  %5751 = vmatmul.mubr.bf16.gmra.mrb[0].mxu0 %v4859
  %v5752 = vpop.f32.mrb[0].mxu0
  %v5753 = vadd.f32 0.0, %v5752
  %v5754 = vpop.f32.mrb[0].mxu0
  %v5755 = vpop.f32.mrb[0].mxu0
  %v5756 = vadd.f32 0.0, %v5755
  %v5757 = vpop.f32.mrb[0].mxu0
  %5758 = vmatprep.mubr.bf16.mxu0 %v4869
  %5759 = vmatmul.mubr.bf16.gmra.mrb[0].mxu0 %v4868
  %v5760 = vpop.f32.mrb[0].mxu0
  %v5761 = vadd.f32 0.0, %v5760
  %v5762 = vpop.f32.mrb[0].mxu0
  %v5763 = vpop.f32.mrb[0].mxu0
  %v5764 = vadd.f32 0.0, %v5763
  %v5765 = vpop.f32.mrb[0].mxu0
  %5766 = vmatprep.mubr.bf16.mxu0 %v4878
  %5767 = vmatmul.mubr.bf16.gmra.mrb[0].mxu0 %v4877
  %v5768 = vpop.f32.mrb[0].mxu0
  %v5769 = vadd.f32 0.0, %v5768
  %v5770 = vpop.f32.mrb[0].mxu0
  %v5771 = vpop.f32.mrb[0].mxu0
  %v5772 = vadd.f32 0.0, %v5771
  %v5773 = vpop.f32.mrb[0].mxu0
  %5774 = vmatprep.mubr.bf16.mxu0 %v4887
  %5775 = vmatmul.mubr.bf16.gmra.mrb[0].mxu0 %v4886
  %v5776 = vpop.f32.mrb[0].mxu0
  %v5777 = vadd.f32 0.0, %v5776
  %v5778 = vpop.f32.mrb[0].mxu0
  %v5779 = vpop.f32.mrb[0].mxu0
  %v5780 = vadd.f32 0.0, %v5779
  %v5781 = vpop.f32.mrb[0].mxu0
  %5782 = vmatprep.mubr.bf16.mxu0 %v4896
  %5783 = vmatmul.mubr.bf16.gmra.mrb[0].mxu0 %v4895
  %v5784 = vpop.f32.mrb[0].mxu0
  %v5785 = vadd.f32 0.0, %v5784
  %v5786 = vpop.f32.mrb[0].mxu0
  %v5787 = vpop.f32.mrb[0].mxu0
  %v5788 = vadd.f32 0.0, %v5787
  %v5789 = vpop.f32.mrb[0].mxu0
  %5790 = vmatprep.mubr.bf16.mxu0 %v4905
  %5791 = vmatmul.mubr.bf16.gmra.mrb[0].mxu0 %v4904
  %v5792 = vpop.f32.mrb[0].mxu0
  %v5793 = vadd.f32 0.0, %v5792
  %v5794 = vpop.f32.mrb[0].mxu0
  %v5795 = vpop.f32.mrb[0].mxu0
  %v5796 = vadd.f32 0.0, %v5795
  %v5797 = vpop.f32.mrb[0].mxu0
  %5798 = vmatprep.mubr.bf16.mxu0 %v4914
  %5799 = vmatmul.mubr.bf16.gmra.mrb[0].mxu0 %v4913
  %v5800 = vpop.f32.mrb[0].mxu0
  %v5801 = vadd.f32 0.0, %v5800
  %v5802 = vpop.f32.mrb[0].mxu0
  %v5803 = vpop.f32.mrb[0].mxu0
  %v5804 = vadd.f32 0.0, %v5803
  %v5805 = vpop.f32.mrb[0].mxu0
  %5806 = vmatprep.mubr.bf16.mxu0 %v4923
  %5807 = vmatmul.mubr.bf16.gmra.mrb[0].mxu0 %v4922
  %v5808 = vpop.f32.mrb[0].mxu0
  %v5809 = vadd.f32 0.0, %v5808
  %v5810 = vpop.f32.mrb[0].mxu0
  %v5811 = vpop.f32.mrb[0].mxu0
  %v5812 = vadd.f32 0.0, %v5811
  %v5813 = vpop.f32.mrb[0].mxu0
  %5814 = vmatprep.mubr.bf16.mxu0 %v4932
  %5815 = vmatmul.mubr.bf16.gmra.mrb[0].mxu0 %v4931
  %v5816 = vpop.f32.mrb[0].mxu0
  %v5817 = vadd.f32 0.0, %v5816
  %v5818 = vpop.f32.mrb[0].mxu0
  %v5819 = vpop.f32.mrb[0].mxu0
  %v5820 = vadd.f32 0.0, %v5819
  %v5821 = vpop.f32.mrb[0].mxu0
  %5822 = vmatprep.mubr.bf16.mxu0 %v4941
  %5823 = vmatmul.mubr.bf16.gmra.mrb[0].mxu0 %v4940
  %v5824 = vpop.f32.mrb[0].mxu0
  %v5825 = vadd.f32 0.0, %v5824
  %v5826 = vpop.f32.mrb[0].mxu0
  %v5827 = vpop.f32.mrb[0].mxu0
  %v5828 = vadd.f32 0.0, %v5827
  %v5829 = vpop.f32.mrb[0].mxu0
  %5830 = vmatprep.mubr.bf16.mxu0 %v4950
  %5831 = vmatmul.mubr.bf16.gmra.mrb[0].mxu0 %v4949
  %v5832 = vpop.f32.mrb[0].mxu0
  %v5833 = vadd.f32 0.0, %v5832
  %v5834 = vpop.f32.mrb[0].mxu0
  %v5835 = vpop.f32.mrb[0].mxu0
  %v5836 = vadd.f32 0.0, %v5835
  %v5837 = vpop.f32.mrb[0].mxu0
  %5838 = vmatprep.mubr.bf16.mxu0 %v4959
  %5839 = vmatmul.mubr.bf16.gmra.mrb[0].mxu0 %v4958
  %v5840 = vpop.f32.mrb[0].mxu0
  %v5841 = vadd.f32 0.0, %v5840
  %v5842 = vpop.f32.mrb[0].mxu0
  %v5843 = vpop.f32.mrb[0].mxu0
  %v5844 = vadd.f32 0.0, %v5843
  %v5845 = vpop.f32.mrb[0].mxu0
  %5846 = vmatprep.mubr.bf16.mxu0 %v4968
  %5847 = vmatmul.mubr.bf16.gmra.mrb[0].mxu0 %v4967
  %v5848 = vpop.f32.mrb[0].mxu0
  %v5849 = vadd.f32 0.0, %v5848
  %v5850 = vpop.f32.mrb[0].mxu0
  %v5851 = vpop.f32.mrb[0].mxu0
  %v5852 = vadd.f32 0.0, %v5851
  %v5853 = vpop.f32.mrb[0].mxu0
  %5854 = vmatprep.mubr.bf16.mxu0 %v4977
  %5855 = vmatmul.mubr.bf16.gmra.mrb[0].mxu0 %v4976
  %v5856 = vpop.f32.mrb[0].mxu0
  %v5857 = vadd.f32 0.0, %v5856
  %v5858 = vpop.f32.mrb[0].mxu0
  %v5859 = vpop.f32.mrb[0].mxu0
  %v5860 = vadd.f32 0.0, %v5859
  %v5861 = vpop.f32.mrb[0].mxu0
  %5862 = vmatprep.mubr.bf16.mxu0 %v4986
  %5863 = vmatmul.mubr.bf16.gmra.mrb[0].mxu0 %v4985
  %v5864 = vpop.f32.mrb[0].mxu0
  %v5865 = vadd.f32 0.0, %v5864
  %v5866 = vpop.f32.mrb[0].mxu0
  %v5867 = vpop.f32.mrb[0].mxu0
  %v5868 = vadd.f32 0.0, %v5867
  %v5869 = vpop.f32.mrb[0].mxu0
  %5870 = vmatprep.mubr.bf16.mxu0 %v4995
  %5871 = vmatmul.mubr.bf16.gmra.mrb[0].mxu0 %v4994
  %v5872 = vpop.f32.mrb[0].mxu0
  %v5873 = vadd.f32 0.0, %v5872
  %v5874 = vpop.f32.mrb[0].mxu0
  %v5875 = vpop.f32.mrb[0].mxu0
  %v5876 = vadd.f32 0.0, %v5875
  %v5877 = vpop.f32.mrb[0].mxu0
  %5878 = vmatprep.mubr.bf16.mxu0 %v5004
  %5879 = vmatmul.mubr.bf16.gmra.mrb[0].mxu0 %v5003
  %v5880 = vpop.f32.mrb[0].mxu0
  %v5881 = vadd.f32 0.0, %v5880
  %v5882 = vpop.f32.mrb[0].mxu0
  %v5883 = vpop.f32.mrb[0].mxu0
  %v5884 = vadd.f32 0.0, %v5883
  %v5885 = vpop.f32.mrb[0].mxu0
  %5886 = vmatprep.mubr.bf16.mxu0 %v5013
  %5887 = vmatmul.mubr.bf16.gmra.mrb[0].mxu0 %v5012
  %v5888 = vpop.f32.mrb[0].mxu0
  %v5889 = vadd.f32 0.0, %v5888
  %v5890 = vpop.f32.mrb[0].mxu0
  %v5891 = vpop.f32.mrb[0].mxu0
  %v5892 = vadd.f32 0.0, %v5891
  %v5893 = vpop.f32.mrb[0].mxu0
  %5894 = vmatprep.mubr.bf16.mxu0 %v5022
  %5895 = vmatmul.mubr.bf16.gmra.mrb[0].mxu0 %v5021
  %v5896 = vpop.f32.mrb[0].mxu0
  %v5897 = vadd.f32 0.0, %v5896
  %v5898 = vpop.f32.mrb[0].mxu0
  %v5899 = vpop.f32.mrb[0].mxu0
  %v5900 = vadd.f32 0.0, %v5899
  %v5901 = vpop.f32.mrb[0].mxu0
  %5902 = vmatprep.mubr.bf16.mxu0 %v5031
  %5903 = vmatmul.mubr.bf16.gmra.mrb[0].mxu0 %v5030
  %v5904 = vpop.f32.mrb[0].mxu0
  %v5905 = vadd.f32 0.0, %v5904
  %v5906 = vpop.f32.mrb[0].mxu0
  %v5907 = vpop.f32.mrb[0].mxu0
  %v5908 = vadd.f32 0.0, %v5907
  %v5909 = vpop.f32.mrb[0].mxu0
  %5910 = vmatprep.mubr.bf16.mxu0 %v5040
  %5911 = vmatmul.mubr.bf16.gmra.mrb[0].mxu0 %v5039
  %v5912 = vpop.f32.mrb[0].mxu0
  %v5913 = vadd.f32 0.0, %v5912
  %v5914 = vpop.f32.mrb[0].mxu0
  %v5915 = vpop.f32.mrb[0].mxu0
  %v5916 = vadd.f32 0.0, %v5915
  %v5917 = vpop.f32.mrb[0].mxu0
  %5918 = vmatprep.mubr.bf16.mxu0 %v5049
  %5919 = vmatmul.mubr.bf16.gmra.mrb[0].mxu0 %v5048
  %v5920 = vpop.f32.mrb[0].mxu0
  %v5921 = vadd.f32 0.0, %v5920
  %v5922 = vpop.f32.mrb[0].mxu0
  %v5923 = vpop.f32.mrb[0].mxu0
  %v5924 = vadd.f32 0.0, %v5923
  %v5925 = vpop.f32.mrb[0].mxu0
  %5926 = vmatprep.mubr.bf16.mxu0 %v5058
  %5927 = vmatmul.mubr.bf16.gmra.mrb[0].mxu0 %v5057
  %v5928 = vpop.f32.mrb[0].mxu0
  %v5929 = vadd.f32 0.0, %v5928
  %v5930 = vpop.f32.mrb[0].mxu0
  %v5931 = vpop.f32.mrb[0].mxu0
  %v5932 = vadd.f32 0.0, %v5931
  %v5933 = vpop.f32.mrb[0].mxu0
  %5934 = vmatprep.mubr.bf16.mxu0 %v5067
  %5935 = vmatmul.mubr.bf16.gmra.mrb[0].mxu0 %v5066
  %v5936 = vpop.f32.mrb[0].mxu0
  %v5937 = vadd.f32 0.0, %v5936
  %v5938 = vpop.f32.mrb[0].mxu0
  %v5939 = vpop.f32.mrb[0].mxu0
  %v5940 = vadd.f32 0.0, %v5939
  %v5941 = vpop.f32.mrb[0].mxu0
  %5942 = vmatprep.mubr.bf16.mxu0 %v5076
  %5943 = vmatmul.mubr.bf16.gmra.mrb[0].mxu0 %v5075
  %v5944 = vpop.f32.mrb[0].mxu0
  %v5945 = vadd.f32 0.0, %v5944
  %v5946 = vpop.f32.mrb[0].mxu0
  %v5947 = vpop.f32.mrb[0].mxu0
  %v5948 = vadd.f32 0.0, %v5947
  %v5949 = vpop.f32.mrb[0].mxu0
  %5950 = vmatprep.mubr.bf16.mxu0 %v5085
  %5951 = vmatmul.mubr.bf16.gmra.mrb[0].mxu0 %v5084
  %v5952 = vpop.f32.mrb[0].mxu0
  %v5953 = vadd.f32 0.0, %v5952
  %v5954 = vpop.f32.mrb[0].mxu0
  %v5955 = vpop.f32.mrb[0].mxu0
  %v5956 = vadd.f32 0.0, %v5955
  %v5957 = vpop.f32.mrb[0].mxu0
  %5958 = vmatprep.mubr.bf16.mxu0 %v5094
  %5959 = vmatmul.mubr.bf16.gmra.mrb[0].mxu0 %v5093
  %v5960 = vpop.f32.mrb[0].mxu0
  %v5961 = vadd.f32 0.0, %v5960
  %v5962 = vpop.f32.mrb[0].mxu0
  %v5963 = vpop.f32.mrb[0].mxu0
  %v5964 = vadd.f32 0.0, %v5963
  %v5965 = vpop.f32.mrb[0].mxu0
  %5966 = vdwg.mxu0
  %5967 = vmatprep.subr.bf16.mxu0 0
  %5968 = vmatpush1.bf16.msra.mxu0 %v5550
  %5969 = vmatprep.subr.bf16.mxu0 0
  %5970 = vmatpush1.bf16.msra.mxu0 %v5551
  %5971 = vmatprep.subr.bf16.mxu0 0
  %5972 = vmatpush1.bf16.msra.mxu0 %v5552
  %5973 = vmatprep.subr.bf16.mxu0 0
  %5974 = vmatpush1.bf16.msra.mxu0 %v5553
  %5975 = vmatprep.subr.bf16.mxu0 0
  %5976 = vmatpush1.bf16.msra.mxu0 %v5554
  %5977 = vmatprep.subr.bf16.mxu0 0
  %5978 = vmatpush1.bf16.msra.mxu0 %v5555
  %5979 = vmatprep.subr.bf16.mxu0 0
  %5980 = vmatpush1.bf16.msra.mxu0 %v5556
  %5981 = vmatprep.subr.bf16.mxu0 0
  %5982 = vmatpush1.bf16.msra.mxu0 %v5557
  %5983 = vmatprep.subr.bf16.mxu0 0
  %5984 = vmatpush1.bf16.msra.mxu0 %v5558
  %5985 = vmatprep.subr.bf16.mxu0 0
  %5986 = vmatpush1.bf16.msra.mxu0 %v5559
  %5987 = vmatprep.subr.bf16.mxu0 0
  %5988 = vmatpush1.bf16.msra.mxu0 %v5560
  %5989 = vmatprep.subr.bf16.mxu0 0
  %5990 = vmatpush1.bf16.msra.mxu0 %v5561
  %5991 = vmatprep.subr.bf16.mxu0 0
  %5992 = vmatpush1.bf16.msra.mxu0 %v5562
  %5993 = vmatprep.subr.bf16.mxu0 0
  %5994 = vmatpush1.bf16.msra.mxu0 %v5563
  %5995 = vmatprep.subr.bf16.mxu0 0
  %5996 = vmatpush1.bf16.msra.mxu0 %v5564
  %5997 = vmatprep.subr.bf16.mxu0 0
  %5998 = vmatpush1.bf16.msra.mxu0 %v5565
  %5999 = vmatprep.mubr.bf16.mxu0 %v4817
  %6000 = vmatmul.mubr.bf16.gmra.mrb[0].mxu0 %v4816
  %v6001 = vpop.f32.mrb[0].mxu0
  %v6002 = vadd.f32 %v5713, %v6001
  %v6003 = vpop.f32.mrb[0].mxu0
  %v6004 = vpop.f32.mrb[0].mxu0
  %v6005 = vadd.f32 %v5716, %v6004
  %v6006 = vpop.f32.mrb[0].mxu0
  %6007 = vmatprep.mubr.bf16.mxu0 %v4826
  %6008 = vmatmul.mubr.bf16.gmra.mrb[0].mxu0 %v4825
  %v6009 = vpop.f32.mrb[0].mxu0
  %v6010 = vadd.f32 %v5721, %v6009
  %v6011 = vpop.f32.mrb[0].mxu0
  %v6012 = vpop.f32.mrb[0].mxu0
  %v6013 = vadd.f32 %v5724, %v6012
  %v6014 = vpop.f32.mrb[0].mxu0
  %6015 = vmatprep.mubr.bf16.mxu0 %v4835
  %6016 = vmatmul.mubr.bf16.gmra.mrb[0].mxu0 %v4834
  %v6017 = vpop.f32.mrb[0].mxu0
  %v6018 = vadd.f32 %v5729, %v6017
  %v6019 = vpop.f32.mrb[0].mxu0
  %v6020 = vpop.f32.mrb[0].mxu0
  %v6021 = vadd.f32 %v5732, %v6020
  %v6022 = vpop.f32.mrb[0].mxu0
  %6023 = vmatprep.mubr.bf16.mxu0 %v4844
  %6024 = vmatmul.mubr.bf16.gmra.mrb[0].mxu0 %v4843
  %v6025 = vpop.f32.mrb[0].mxu0
  %v6026 = vadd.f32 %v5737, %v6025
  %v6027 = vpop.f32.mrb[0].mxu0
  %v6028 = vpop.f32.mrb[0].mxu0
  %v6029 = vadd.f32 %v5740, %v6028
  %v6030 = vpop.f32.mrb[0].mxu0
  %6031 = vmatprep.mubr.bf16.mxu0 %v4853
  %6032 = vmatmul.mubr.bf16.gmra.mrb[0].mxu0 %v4852
  %v6033 = vpop.f32.mrb[0].mxu0
  %v6034 = vadd.f32 %v5745, %v6033
  %v6035 = vpop.f32.mrb[0].mxu0
  %v6036 = vpop.f32.mrb[0].mxu0
  %v6037 = vadd.f32 %v5748, %v6036
  %v6038 = vpop.f32.mrb[0].mxu0
  %6039 = vmatprep.mubr.bf16.mxu0 %v4862
  %6040 = vmatmul.mubr.bf16.gmra.mrb[0].mxu0 %v4861
  %v6041 = vpop.f32.mrb[0].mxu0
  %v6042 = vadd.f32 %v5753, %v6041
  %v6043 = vpop.f32.mrb[0].mxu0
  %v6044 = vpop.f32.mrb[0].mxu0
  %v6045 = vadd.f32 %v5756, %v6044
  %v6046 = vpop.f32.mrb[0].mxu0
  %6047 = vmatprep.mubr.bf16.mxu0 %v4871
  %6048 = vmatmul.mubr.bf16.gmra.mrb[0].mxu0 %v4870
  %v6049 = vpop.f32.mrb[0].mxu0
  %v6050 = vadd.f32 %v5761, %v6049
  %v6051 = vpop.f32.mrb[0].mxu0
  %v6052 = vpop.f32.mrb[0].mxu0
  %v6053 = vadd.f32 %v5764, %v6052
  %v6054 = vpop.f32.mrb[0].mxu0
  %6055 = vmatprep.mubr.bf16.mxu0 %v4880
  %6056 = vmatmul.mubr.bf16.gmra.mrb[0].mxu0 %v4879
  %v6057 = vpop.f32.mrb[0].mxu0
  %v6058 = vadd.f32 %v5769, %v6057
  %v6059 = vpop.f32.mrb[0].mxu0
  %v6060 = vpop.f32.mrb[0].mxu0
  %v6061 = vadd.f32 %v5772, %v6060
  %v6062 = vpop.f32.mrb[0].mxu0
  %6063 = vmatprep.mubr.bf16.mxu0 %v4889
  %6064 = vmatmul.mubr.bf16.gmra.mrb[0].mxu0 %v4888
  %v6065 = vpop.f32.mrb[0].mxu0
  %v6066 = vadd.f32 %v5777, %v6065
  %v6067 = vpop.f32.mrb[0].mxu0
  %v6068 = vpop.f32.mrb[0].mxu0
  %v6069 = vadd.f32 %v5780, %v6068
  %v6070 = vpop.f32.mrb[0].mxu0
  %6071 = vmatprep.mubr.bf16.mxu0 %v4898
  %6072 = vmatmul.mubr.bf16.gmra.mrb[0].mxu0 %v4897
  %v6073 = vpop.f32.mrb[0].mxu0
  %v6074 = vadd.f32 %v5785, %v6073
  %v6075 = vpop.f32.mrb[0].mxu0
  %v6076 = vpop.f32.mrb[0].mxu0
  %v6077 = vadd.f32 %v5788, %v6076
  %v6078 = vpop.f32.mrb[0].mxu0
  %6079 = vmatprep.mubr.bf16.mxu0 %v4907
  %6080 = vmatmul.mubr.bf16.gmra.mrb[0].mxu0 %v4906
  %v6081 = vpop.f32.mrb[0].mxu0
  %v6082 = vadd.f32 %v5793, %v6081
  %v6083 = vpop.f32.mrb[0].mxu0
  %v6084 = vpop.f32.mrb[0].mxu0
  %v6085 = vadd.f32 %v5796, %v6084
  %v6086 = vpop.f32.mrb[0].mxu0
  %6087 = vmatprep.mubr.bf16.mxu0 %v4916
  %6088 = vmatmul.mubr.bf16.gmra.mrb[0].mxu0 %v4915
  %v6089 = vpop.f32.mrb[0].mxu0
  %v6090 = vadd.f32 %v5801, %v6089
  %v6091 = vpop.f32.mrb[0].mxu0
  %v6092 = vpop.f32.mrb[0].mxu0
  %v6093 = vadd.f32 %v5804, %v6092
  %v6094 = vpop.f32.mrb[0].mxu0
  %6095 = vmatprep.mubr.bf16.mxu0 %v4925
  %6096 = vmatmul.mubr.bf16.gmra.mrb[0].mxu0 %v4924
  %v6097 = vpop.f32.mrb[0].mxu0
  %v6098 = vadd.f32 %v5809, %v6097
  %v6099 = vpop.f32.mrb[0].mxu0
  %v6100 = vpop.f32.mrb[0].mxu0
  %v6101 = vadd.f32 %v5812, %v6100
  %v6102 = vpop.f32.mrb[0].mxu0
  %6103 = vmatprep.mubr.bf16.mxu0 %v4934
  %6104 = vmatmul.mubr.bf16.gmra.mrb[0].mxu0 %v4933
  %v6105 = vpop.f32.mrb[0].mxu0
  %v6106 = vadd.f32 %v5817, %v6105
  %v6107 = vpop.f32.mrb[0].mxu0
  %v6108 = vpop.f32.mrb[0].mxu0
  %v6109 = vadd.f32 %v5820, %v6108
  %v6110 = vpop.f32.mrb[0].mxu0
  %6111 = vmatprep.mubr.bf16.mxu0 %v4943
  %6112 = vmatmul.mubr.bf16.gmra.mrb[0].mxu0 %v4942
  %v6113 = vpop.f32.mrb[0].mxu0
  %v6114 = vadd.f32 %v5825, %v6113
  %v6115 = vpop.f32.mrb[0].mxu0
  %v6116 = vpop.f32.mrb[0].mxu0
  %v6117 = vadd.f32 %v5828, %v6116
  %v6118 = vpop.f32.mrb[0].mxu0
  %6119 = vmatprep.mubr.bf16.mxu0 %v4952
  %6120 = vmatmul.mubr.bf16.gmra.mrb[0].mxu0 %v4951
  %v6121 = vpop.f32.mrb[0].mxu0
  %v6122 = vadd.f32 %v5833, %v6121
  %v6123 = vpop.f32.mrb[0].mxu0
  %v6124 = vpop.f32.mrb[0].mxu0
  %v6125 = vadd.f32 %v5836, %v6124
  %v6126 = vpop.f32.mrb[0].mxu0
  %6127 = vmatprep.mubr.bf16.mxu0 %v4961
  %6128 = vmatmul.mubr.bf16.gmra.mrb[0].mxu0 %v4960
  %v6129 = vpop.f32.mrb[0].mxu0
  %v6130 = vadd.f32 %v5841, %v6129
  %v6131 = vpop.f32.mrb[0].mxu0
  %v6132 = vpop.f32.mrb[0].mxu0
  %v6133 = vadd.f32 %v5844, %v6132
  %v6134 = vpop.f32.mrb[0].mxu0
  %6135 = vmatprep.mubr.bf16.mxu0 %v4970
  %6136 = vmatmul.mubr.bf16.gmra.mrb[0].mxu0 %v4969
  %v6137 = vpop.f32.mrb[0].mxu0
  %v6138 = vadd.f32 %v5849, %v6137
  %v6139 = vpop.f32.mrb[0].mxu0
  %v6140 = vpop.f32.mrb[0].mxu0
  %v6141 = vadd.f32 %v5852, %v6140
  %v6142 = vpop.f32.mrb[0].mxu0
  %6143 = vmatprep.mubr.bf16.mxu0 %v4979
  %6144 = vmatmul.mubr.bf16.gmra.mrb[0].mxu0 %v4978
  %v6145 = vpop.f32.mrb[0].mxu0
  %v6146 = vadd.f32 %v5857, %v6145
  %v6147 = vpop.f32.mrb[0].mxu0
  %v6148 = vpop.f32.mrb[0].mxu0
  %v6149 = vadd.f32 %v5860, %v6148
  %v6150 = vpop.f32.mrb[0].mxu0
  %6151 = vmatprep.mubr.bf16.mxu0 %v4988
  %6152 = vmatmul.mubr.bf16.gmra.mrb[0].mxu0 %v4987
  %v6153 = vpop.f32.mrb[0].mxu0
  %v6154 = vadd.f32 %v5865, %v6153
  %v6155 = vpop.f32.mrb[0].mxu0
  %v6156 = vpop.f32.mrb[0].mxu0
  %v6157 = vadd.f32 %v5868, %v6156
  %v6158 = vpop.f32.mrb[0].mxu0
  %6159 = vmatprep.mubr.bf16.mxu0 %v4997
  %6160 = vmatmul.mubr.bf16.gmra.mrb[0].mxu0 %v4996
  %v6161 = vpop.f32.mrb[0].mxu0
  %v6162 = vadd.f32 %v5873, %v6161
  %v6163 = vpop.f32.mrb[0].mxu0
  %v6164 = vpop.f32.mrb[0].mxu0
  %v6165 = vadd.f32 %v5876, %v6164
  %v6166 = vpop.f32.mrb[0].mxu0
  %6167 = vmatprep.mubr.bf16.mxu0 %v5006
  %6168 = vmatmul.mubr.bf16.gmra.mrb[0].mxu0 %v5005
  %v6169 = vpop.f32.mrb[0].mxu0
  %v6170 = vadd.f32 %v5881, %v6169
  %v6171 = vpop.f32.mrb[0].mxu0
  %v6172 = vpop.f32.mrb[0].mxu0
  %v6173 = vadd.f32 %v5884, %v6172
  %v6174 = vpop.f32.mrb[0].mxu0
  %6175 = vmatprep.mubr.bf16.mxu0 %v5015
  %6176 = vmatmul.mubr.bf16.gmra.mrb[0].mxu0 %v5014
  %v6177 = vpop.f32.mrb[0].mxu0
  %v6178 = vadd.f32 %v5889, %v6177
  %v6179 = vpop.f32.mrb[0].mxu0
  %v6180 = vpop.f32.mrb[0].mxu0
  %v6181 = vadd.f32 %v5892, %v6180
  %v6182 = vpop.f32.mrb[0].mxu0
  %6183 = vmatprep.mubr.bf16.mxu0 %v5024
  %6184 = vmatmul.mubr.bf16.gmra.mrb[0].mxu0 %v5023
  %v6185 = vpop.f32.mrb[0].mxu0
  %v6186 = vadd.f32 %v5897, %v6185
  %v6187 = vpop.f32.mrb[0].mxu0
  %v6188 = vpop.f32.mrb[0].mxu0
  %v6189 = vadd.f32 %v5900, %v6188
  %v6190 = vpop.f32.mrb[0].mxu0
  %6191 = vmatprep.mubr.bf16.mxu0 %v5033
  %6192 = vmatmul.mubr.bf16.gmra.mrb[0].mxu0 %v5032
  %v6193 = vpop.f32.mrb[0].mxu0
  %v6194 = vadd.f32 %v5905, %v6193
  %v6195 = vpop.f32.mrb[0].mxu0
  %v6196 = vpop.f32.mrb[0].mxu0
  %v6197 = vadd.f32 %v5908, %v6196
  %v6198 = vpop.f32.mrb[0].mxu0
  %6199 = vmatprep.mubr.bf16.mxu0 %v5042
  %6200 = vmatmul.mubr.bf16.gmra.mrb[0].mxu0 %v5041
  %v6201 = vpop.f32.mrb[0].mxu0
  %v6202 = vadd.f32 %v5913, %v6201
  %v6203 = vpop.f32.mrb[0].mxu0
  %v6204 = vpop.f32.mrb[0].mxu0
  %v6205 = vadd.f32 %v5916, %v6204
  %v6206 = vpop.f32.mrb[0].mxu0
  %6207 = vmatprep.mubr.bf16.mxu0 %v5051
  %6208 = vmatmul.mubr.bf16.gmra.mrb[0].mxu0 %v5050
  %v6209 = vpop.f32.mrb[0].mxu0
  %v6210 = vadd.f32 %v5921, %v6209
  %v6211 = vpop.f32.mrb[0].mxu0
  %v6212 = vpop.f32.mrb[0].mxu0
  %v6213 = vadd.f32 %v5924, %v6212
  %v6214 = vpop.f32.mrb[0].mxu0
  %6215 = vmatprep.mubr.bf16.mxu0 %v5060
  %6216 = vmatmul.mubr.bf16.gmra.mrb[0].mxu0 %v5059
  %v6217 = vpop.f32.mrb[0].mxu0
  %v6218 = vadd.f32 %v5929, %v6217
  %v6219 = vpop.f32.mrb[0].mxu0
  %v6220 = vpop.f32.mrb[0].mxu0
  %v6221 = vadd.f32 %v5932, %v6220
  %v6222 = vpop.f32.mrb[0].mxu0
  %6223 = vmatprep.mubr.bf16.mxu0 %v5069
  %6224 = vmatmul.mubr.bf16.gmra.mrb[0].mxu0 %v5068
  %v6225 = vpop.f32.mrb[0].mxu0
  %v6226 = vadd.f32 %v5937, %v6225
  %v6227 = vpop.f32.mrb[0].mxu0
  %v6228 = vpop.f32.mrb[0].mxu0
  %v6229 = vadd.f32 %v5940, %v6228
  %v6230 = vpop.f32.mrb[0].mxu0
  %6231 = vmatprep.mubr.bf16.mxu0 %v5078
  %6232 = vmatmul.mubr.bf16.gmra.mrb[0].mxu0 %v5077
  %v6233 = vpop.f32.mrb[0].mxu0
  %v6234 = vadd.f32 %v5945, %v6233
  %v6235 = vpop.f32.mrb[0].mxu0
  %v6236 = vpop.f32.mrb[0].mxu0
  %v6237 = vadd.f32 %v5948, %v6236
  %v6238 = vpop.f32.mrb[0].mxu0
  %6239 = vmatprep.mubr.bf16.mxu0 %v5087
  %6240 = vmatmul.mubr.bf16.gmra.mrb[0].mxu0 %v5086
  %v6241 = vpop.f32.mrb[0].mxu0
  %v6242 = vadd.f32 %v5953, %v6241
  %v6243 = vpop.f32.mrb[0].mxu0
  %v6244 = vpop.f32.mrb[0].mxu0
  %v6245 = vadd.f32 %v5956, %v6244
  %v6246 = vpop.f32.mrb[0].mxu0
  %6247 = vmatprep.mubr.bf16.mxu0 %v5096
  %6248 = vmatmul.mubr.bf16.gmra.mrb[0].mxu0 %v5095
  %v6249 = vpop.f32.mrb[0].mxu0
  %v6250 = vadd.f32 %v5961, %v6249
  %v6251 = vpop.f32.mrb[0].mxu0
  %v6252 = vpop.f32.mrb[0].mxu0
  %v6253 = vadd.f32 %v5964, %v6252
  %v6254 = vpop.f32.mrb[0].mxu0
  %6255 = vdwg.mxu0
  %6256 = vmatprep.subr.bf16.mxu0 0
  %6257 = vmatpush1.bf16.msra.mxu0 %v5566
  %6258 = vmatprep.subr.bf16.mxu0 0
  %6259 = vmatpush1.bf16.msra.mxu0 %v5567
  %6260 = vmatprep.subr.bf16.mxu0 0
  %6261 = vmatpush1.bf16.msra.mxu0 %v5568
  %6262 = vmatprep.subr.bf16.mxu0 0
  %6263 = vmatpush1.bf16.msra.mxu0 %v5569
  %6264 = vmatprep.subr.bf16.mxu0 0
  %6265 = vmatpush1.bf16.msra.mxu0 %v5570
  %6266 = vmatprep.subr.bf16.mxu0 0
  %6267 = vmatpush1.bf16.msra.mxu0 %v5571
  %6268 = vmatprep.subr.bf16.mxu0 0
  %6269 = vmatpush1.bf16.msra.mxu0 %v5572
  %6270 = vmatprep.subr.bf16.mxu0 0
  %6271 = vmatpush1.bf16.msra.mxu0 %v5573
  %6272 = vmatprep.subr.bf16.mxu0 0
  %6273 = vmatpush1.bf16.msra.mxu0 %v5574
  %6274 = vmatprep.subr.bf16.mxu0 0
  %6275 = vmatpush1.bf16.msra.mxu0 %v5575
  %6276 = vmatprep.subr.bf16.mxu0 0
  %6277 = vmatpush1.bf16.msra.mxu0 %v5576
  %6278 = vmatprep.subr.bf16.mxu0 0
  %6279 = vmatpush1.bf16.msra.mxu0 %v5577
  %6280 = vmatprep.subr.bf16.mxu0 0
  %6281 = vmatpush1.bf16.msra.mxu0 %v5578
  %6282 = vmatprep.subr.bf16.mxu0 0
  %6283 = vmatpush1.bf16.msra.mxu0 %v5579
  %6284 = vmatprep.subr.bf16.mxu0 0
  %6285 = vmatpush1.bf16.msra.mxu0 %v5580
  %6286 = vmatprep.subr.bf16.mxu0 0
  %6287 = vmatpush1.bf16.msra.mxu0 %v5581
  %6288 = vmatprep.mubr.bf16.mxu0 %v4819
  %6289 = vmatmul.mubr.bf16.gmra.mrb[0].mxu0 %v4818
  %v6290 = vpop.f32.mrb[0].mxu0
  %v6291 = vadd.f32 %v6002, %v6290
  %v6292 = vpop.f32.mrb[0].mxu0
  %v6293 = vpop.f32.mrb[0].mxu0
  %v6294 = vadd.f32 %v6005, %v6293
  %v6295 = vpop.f32.mrb[0].mxu0
  %6296 = vmatprep.mubr.bf16.mxu0 %v4828
  %6297 = vmatmul.mubr.bf16.gmra.mrb[0].mxu0 %v4827
  %v6298 = vpop.f32.mrb[0].mxu0
  %v6299 = vadd.f32 %v6010, %v6298
  %v6300 = vpop.f32.mrb[0].mxu0
  %v6301 = vpop.f32.mrb[0].mxu0
  %v6302 = vadd.f32 %v6013, %v6301
  %v6303 = vpop.f32.mrb[0].mxu0
  %6304 = vmatprep.mubr.bf16.mxu0 %v4837
  %6305 = vmatmul.mubr.bf16.gmra.mrb[0].mxu0 %v4836
  %v6306 = vpop.f32.mrb[0].mxu0
  %v6307 = vadd.f32 %v6018, %v6306
  %v6308 = vpop.f32.mrb[0].mxu0
  %v6309 = vpop.f32.mrb[0].mxu0
  %v6310 = vadd.f32 %v6021, %v6309
  %v6311 = vpop.f32.mrb[0].mxu0
  %6312 = vmatprep.mubr.bf16.mxu0 %v4846
  %6313 = vmatmul.mubr.bf16.gmra.mrb[0].mxu0 %v4845
  %v6314 = vpop.f32.mrb[0].mxu0
  %v6315 = vadd.f32 %v6026, %v6314
  %v6316 = vpop.f32.mrb[0].mxu0
  %v6317 = vpop.f32.mrb[0].mxu0
  %v6318 = vadd.f32 %v6029, %v6317
  %v6319 = vpop.f32.mrb[0].mxu0
  %6320 = vmatprep.mubr.bf16.mxu0 %v4855
  %6321 = vmatmul.mubr.bf16.gmra.mrb[0].mxu0 %v4854
  %v6322 = vpop.f32.mrb[0].mxu0
  %v6323 = vadd.f32 %v6034, %v6322
  %v6324 = vpop.f32.mrb[0].mxu0
  %v6325 = vpop.f32.mrb[0].mxu0
  %v6326 = vadd.f32 %v6037, %v6325
  %v6327 = vpop.f32.mrb[0].mxu0
  %6328 = vmatprep.mubr.bf16.mxu0 %v4864
  %6329 = vmatmul.mubr.bf16.gmra.mrb[0].mxu0 %v4863
  %v6330 = vpop.f32.mrb[0].mxu0
  %v6331 = vadd.f32 %v6042, %v6330
  %v6332 = vpop.f32.mrb[0].mxu0
  %v6333 = vpop.f32.mrb[0].mxu0
  %v6334 = vadd.f32 %v6045, %v6333
  %v6335 = vpop.f32.mrb[0].mxu0
  %6336 = vmatprep.mubr.bf16.mxu0 %v4873
  %6337 = vmatmul.mubr.bf16.gmra.mrb[0].mxu0 %v4872
  %v6338 = vpop.f32.mrb[0].mxu0
  %v6339 = vadd.f32 %v6050, %v6338
  %v6340 = vpop.f32.mrb[0].mxu0
  %v6341 = vpop.f32.mrb[0].mxu0
  %v6342 = vadd.f32 %v6053, %v6341
  %v6343 = vpop.f32.mrb[0].mxu0
  %6344 = vmatprep.mubr.bf16.mxu0 %v4882
  %6345 = vmatmul.mubr.bf16.gmra.mrb[0].mxu0 %v4881
  %v6346 = vpop.f32.mrb[0].mxu0
  %v6347 = vadd.f32 %v6058, %v6346
  %v6348 = vpop.f32.mrb[0].mxu0
  %v6349 = vpop.f32.mrb[0].mxu0
  %v6350 = vadd.f32 %v6061, %v6349
  %v6351 = vpop.f32.mrb[0].mxu0
  %6352 = vmatprep.mubr.bf16.mxu0 %v4891
  %6353 = vmatmul.mubr.bf16.gmra.mrb[0].mxu0 %v4890
  %v6354 = vpop.f32.mrb[0].mxu0
  %v6355 = vadd.f32 %v6066, %v6354
  %v6356 = vpop.f32.mrb[0].mxu0
  %v6357 = vpop.f32.mrb[0].mxu0
  %v6358 = vadd.f32 %v6069, %v6357
  %v6359 = vpop.f32.mrb[0].mxu0
  %6360 = vmatprep.mubr.bf16.mxu0 %v4900
  %6361 = vmatmul.mubr.bf16.gmra.mrb[0].mxu0 %v4899
  %v6362 = vpop.f32.mrb[0].mxu0
  %v6363 = vadd.f32 %v6074, %v6362
  %v6364 = vpop.f32.mrb[0].mxu0
  %v6365 = vpop.f32.mrb[0].mxu0
  %v6366 = vadd.f32 %v6077, %v6365
  %v6367 = vpop.f32.mrb[0].mxu0
  %6368 = vmatprep.mubr.bf16.mxu0 %v4909
  %6369 = vmatmul.mubr.bf16.gmra.mrb[0].mxu0 %v4908
  %v6370 = vpop.f32.mrb[0].mxu0
  %v6371 = vadd.f32 %v6082, %v6370
  %v6372 = vpop.f32.mrb[0].mxu0
  %v6373 = vpop.f32.mrb[0].mxu0
  %v6374 = vadd.f32 %v6085, %v6373
  %v6375 = vpop.f32.mrb[0].mxu0
  %6376 = vmatprep.mubr.bf16.mxu0 %v4918
  %6377 = vmatmul.mubr.bf16.gmra.mrb[0].mxu0 %v4917
  %v6378 = vpop.f32.mrb[0].mxu0
  %v6379 = vadd.f32 %v6090, %v6378
  %v6380 = vpop.f32.mrb[0].mxu0
  %v6381 = vpop.f32.mrb[0].mxu0
  %v6382 = vadd.f32 %v6093, %v6381
  %v6383 = vpop.f32.mrb[0].mxu0
  %6384 = vmatprep.mubr.bf16.mxu0 %v4927
  %6385 = vmatmul.mubr.bf16.gmra.mrb[0].mxu0 %v4926
  %v6386 = vpop.f32.mrb[0].mxu0
  %v6387 = vadd.f32 %v6098, %v6386
  %v6388 = vpop.f32.mrb[0].mxu0
  %v6389 = vpop.f32.mrb[0].mxu0
  %v6390 = vadd.f32 %v6101, %v6389
  %v6391 = vpop.f32.mrb[0].mxu0
  %6392 = vmatprep.mubr.bf16.mxu0 %v4936
  %6393 = vmatmul.mubr.bf16.gmra.mrb[0].mxu0 %v4935
  %v6394 = vpop.f32.mrb[0].mxu0
  %v6395 = vadd.f32 %v6106, %v6394
  %v6396 = vpop.f32.mrb[0].mxu0
  %v6397 = vpop.f32.mrb[0].mxu0
  %v6398 = vadd.f32 %v6109, %v6397
  %v6399 = vpop.f32.mrb[0].mxu0
  %6400 = vmatprep.mubr.bf16.mxu0 %v4945
  %6401 = vmatmul.mubr.bf16.gmra.mrb[0].mxu0 %v4944
  %v6402 = vpop.f32.mrb[0].mxu0
  %v6403 = vadd.f32 %v6114, %v6402
  %v6404 = vpop.f32.mrb[0].mxu0
  %v6405 = vpop.f32.mrb[0].mxu0
  %v6406 = vadd.f32 %v6117, %v6405
  %v6407 = vpop.f32.mrb[0].mxu0
  %6408 = vmatprep.mubr.bf16.mxu0 %v4954
  %6409 = vmatmul.mubr.bf16.gmra.mrb[0].mxu0 %v4953
  %v6410 = vpop.f32.mrb[0].mxu0
  %v6411 = vadd.f32 %v6122, %v6410
  %v6412 = vpop.f32.mrb[0].mxu0
  %v6413 = vpop.f32.mrb[0].mxu0
  %v6414 = vadd.f32 %v6125, %v6413
  %v6415 = vpop.f32.mrb[0].mxu0
  %6416 = vmatprep.mubr.bf16.mxu0 %v4963
  %6417 = vmatmul.mubr.bf16.gmra.mrb[0].mxu0 %v4962
  %v6418 = vpop.f32.mrb[0].mxu0
  %v6419 = vadd.f32 %v6130, %v6418
  %v6420 = vpop.f32.mrb[0].mxu0
  %v6421 = vpop.f32.mrb[0].mxu0
  %v6422 = vadd.f32 %v6133, %v6421
  %v6423 = vpop.f32.mrb[0].mxu0
  %6424 = vmatprep.mubr.bf16.mxu0 %v4972
  %6425 = vmatmul.mubr.bf16.gmra.mrb[0].mxu0 %v4971
  %v6426 = vpop.f32.mrb[0].mxu0
  %v6427 = vadd.f32 %v6138, %v6426
  %v6428 = vpop.f32.mrb[0].mxu0
  %v6429 = vpop.f32.mrb[0].mxu0
  %v6430 = vadd.f32 %v6141, %v6429
  %v6431 = vpop.f32.mrb[0].mxu0
  %6432 = vmatprep.mubr.bf16.mxu0 %v4981
  %6433 = vmatmul.mubr.bf16.gmra.mrb[0].mxu0 %v4980
  %v6434 = vpop.f32.mrb[0].mxu0
  %v6435 = vadd.f32 %v6146, %v6434
  %v6436 = vpop.f32.mrb[0].mxu0
  %v6437 = vpop.f32.mrb[0].mxu0
  %v6438 = vadd.f32 %v6149, %v6437
  %v6439 = vpop.f32.mrb[0].mxu0
  %6440 = vmatprep.mubr.bf16.mxu0 %v4990
  %6441 = vmatmul.mubr.bf16.gmra.mrb[0].mxu0 %v4989
  %v6442 = vpop.f32.mrb[0].mxu0
  %v6443 = vadd.f32 %v6154, %v6442
  %v6444 = vpop.f32.mrb[0].mxu0
  %v6445 = vpop.f32.mrb[0].mxu0
  %v6446 = vadd.f32 %v6157, %v6445
  %v6447 = vpop.f32.mrb[0].mxu0
  %6448 = vmatprep.mubr.bf16.mxu0 %v4999
  %6449 = vmatmul.mubr.bf16.gmra.mrb[0].mxu0 %v4998
  %v6450 = vpop.f32.mrb[0].mxu0
  %v6451 = vadd.f32 %v6162, %v6450
  %v6452 = vpop.f32.mrb[0].mxu0
  %v6453 = vpop.f32.mrb[0].mxu0
  %v6454 = vadd.f32 %v6165, %v6453
  %v6455 = vpop.f32.mrb[0].mxu0
  %6456 = vmatprep.mubr.bf16.mxu0 %v5008
  %6457 = vmatmul.mubr.bf16.gmra.mrb[0].mxu0 %v5007
  %v6458 = vpop.f32.mrb[0].mxu0
  %v6459 = vadd.f32 %v6170, %v6458
  %v6460 = vpop.f32.mrb[0].mxu0
  %v6461 = vpop.f32.mrb[0].mxu0
  %v6462 = vadd.f32 %v6173, %v6461
  %v6463 = vpop.f32.mrb[0].mxu0
  %6464 = vmatprep.mubr.bf16.mxu0 %v5017
  %6465 = vmatmul.mubr.bf16.gmra.mrb[0].mxu0 %v5016
  %v6466 = vpop.f32.mrb[0].mxu0
  %v6467 = vadd.f32 %v6178, %v6466
  %v6468 = vpop.f32.mrb[0].mxu0
  %v6469 = vpop.f32.mrb[0].mxu0
  %v6470 = vadd.f32 %v6181, %v6469
  %v6471 = vpop.f32.mrb[0].mxu0
  %6472 = vmatprep.mubr.bf16.mxu0 %v5026
  %6473 = vmatmul.mubr.bf16.gmra.mrb[0].mxu0 %v5025
  %v6474 = vpop.f32.mrb[0].mxu0
  %v6475 = vadd.f32 %v6186, %v6474
  %v6476 = vpop.f32.mrb[0].mxu0
  %v6477 = vpop.f32.mrb[0].mxu0
  %v6478 = vadd.f32 %v6189, %v6477
  %v6479 = vpop.f32.mrb[0].mxu0
  %6480 = vmatprep.mubr.bf16.mxu0 %v5035
  %6481 = vmatmul.mubr.bf16.gmra.mrb[0].mxu0 %v5034
  %v6482 = vpop.f32.mrb[0].mxu0
  %v6483 = vadd.f32 %v6194, %v6482
  %v6484 = vpop.f32.mrb[0].mxu0
  %v6485 = vpop.f32.mrb[0].mxu0
  %v6486 = vadd.f32 %v6197, %v6485
  %v6487 = vpop.f32.mrb[0].mxu0
  %6488 = vmatprep.mubr.bf16.mxu0 %v5044
  %6489 = vmatmul.mubr.bf16.gmra.mrb[0].mxu0 %v5043
  %v6490 = vpop.f32.mrb[0].mxu0
  %v6491 = vadd.f32 %v6202, %v6490
  %v6492 = vpop.f32.mrb[0].mxu0
  %v6493 = vpop.f32.mrb[0].mxu0
  %v6494 = vadd.f32 %v6205, %v6493
  %v6495 = vpop.f32.mrb[0].mxu0
  %6496 = vmatprep.mubr.bf16.mxu0 %v5053
  %6497 = vmatmul.mubr.bf16.gmra.mrb[0].mxu0 %v5052
  %v6498 = vpop.f32.mrb[0].mxu0
  %v6499 = vadd.f32 %v6210, %v6498
  %v6500 = vpop.f32.mrb[0].mxu0
  %v6501 = vpop.f32.mrb[0].mxu0
  %v6502 = vadd.f32 %v6213, %v6501
  %v6503 = vpop.f32.mrb[0].mxu0
  %6504 = vmatprep.mubr.bf16.mxu0 %v5062
  %6505 = vmatmul.mubr.bf16.gmra.mrb[0].mxu0 %v5061
  %v6506 = vpop.f32.mrb[0].mxu0
  %v6507 = vadd.f32 %v6218, %v6506
  %v6508 = vpop.f32.mrb[0].mxu0
  %v6509 = vpop.f32.mrb[0].mxu0
  %v6510 = vadd.f32 %v6221, %v6509
  %v6511 = vpop.f32.mrb[0].mxu0
  %6512 = vmatprep.mubr.bf16.mxu0 %v5071
  %6513 = vmatmul.mubr.bf16.gmra.mrb[0].mxu0 %v5070
  %v6514 = vpop.f32.mrb[0].mxu0
  %v6515 = vadd.f32 %v6226, %v6514
  %v6516 = vpop.f32.mrb[0].mxu0
  %v6517 = vpop.f32.mrb[0].mxu0
  %v6518 = vadd.f32 %v6229, %v6517
  %v6519 = vpop.f32.mrb[0].mxu0
  %6520 = vmatprep.mubr.bf16.mxu0 %v5080
  %6521 = vmatmul.mubr.bf16.gmra.mrb[0].mxu0 %v5079
  %v6522 = vpop.f32.mrb[0].mxu0
  %v6523 = vadd.f32 %v6234, %v6522
  %v6524 = vpop.f32.mrb[0].mxu0
  %v6525 = vpop.f32.mrb[0].mxu0
  %v6526 = vadd.f32 %v6237, %v6525
  %v6527 = vpop.f32.mrb[0].mxu0
  %6528 = vmatprep.mubr.bf16.mxu0 %v5089
  %6529 = vmatmul.mubr.bf16.gmra.mrb[0].mxu0 %v5088
  %v6530 = vpop.f32.mrb[0].mxu0
  %v6531 = vadd.f32 %v6242, %v6530
  %v6532 = vpop.f32.mrb[0].mxu0
  %v6533 = vpop.f32.mrb[0].mxu0
  %v6534 = vadd.f32 %v6245, %v6533
  %v6535 = vpop.f32.mrb[0].mxu0
  %6536 = vmatprep.mubr.bf16.mxu0 %v5098
  %6537 = vmatmul.mubr.bf16.gmra.mrb[0].mxu0 %v5097
  %v6538 = vpop.f32.mrb[0].mxu0
  %v6539 = vadd.f32 %v6250, %v6538
  %v6540 = vpop.f32.mrb[0].mxu0
  %v6541 = vpop.f32.mrb[0].mxu0
  %v6542 = vadd.f32 %v6253, %v6541
  %v6543 = vpop.f32.mrb[0].mxu0
  %6544 = vdwg.mxu0
  %6545 = vmatprep.subr.bf16.mxu0 0
  %6546 = vmatpush1.bf16.msra.mxu0 %v5582
  %6547 = vmatprep.subr.bf16.mxu0 0
  %6548 = vmatpush1.bf16.msra.mxu0 %v5583
  %6549 = vmatprep.subr.bf16.mxu0 0
  %6550 = vmatpush1.bf16.msra.mxu0 %v5584
  %6551 = vmatprep.subr.bf16.mxu0 0
  %6552 = vmatpush1.bf16.msra.mxu0 %v5585
  %6553 = vmatprep.subr.bf16.mxu0 0
  %6554 = vmatpush1.bf16.msra.mxu0 %v5586
  %6555 = vmatprep.subr.bf16.mxu0 0
  %6556 = vmatpush1.bf16.msra.mxu0 %v5587
  %6557 = vmatprep.subr.bf16.mxu0 0
  %6558 = vmatpush1.bf16.msra.mxu0 %v5588
  %6559 = vmatprep.subr.bf16.mxu0 0
  %6560 = vmatpush1.bf16.msra.mxu0 %v5589
  %6561 = vmatprep.subr.bf16.mxu0 0
  %6562 = vmatpush1.bf16.msra.mxu0 %v5590
  %6563 = vmatprep.subr.bf16.mxu0 0
  %6564 = vmatpush1.bf16.msra.mxu0 %v5591
  %6565 = vmatprep.subr.bf16.mxu0 0
  %6566 = vmatpush1.bf16.msra.mxu0 %v5592
  %6567 = vmatprep.subr.bf16.mxu0 0
  %6568 = vmatpush1.bf16.msra.mxu0 %v5593
  %6569 = vmatprep.subr.bf16.mxu0 0
  %6570 = vmatpush1.bf16.msra.mxu0 %v5594
  %6571 = vmatprep.subr.bf16.mxu0 0
  %6572 = vmatpush1.bf16.msra.mxu0 %v5595
  %6573 = vmatprep.subr.bf16.mxu0 0
  %6574 = vmatpush1.bf16.msra.mxu0 %v5596
  %6575 = vmatprep.subr.bf16.mxu0 0
  %6576 = vmatpush1.bf16.msra.mxu0 %v5597
  %6577 = vmatprep.mubr.bf16.mxu0 %v4821
  %6578 = vmatmul.mubr.bf16.gmra.mrb[0].mxu0 %v4820
  %v6579 = vpop.f32.mrb[0].mxu0
  %v6580 = vadd.f32 %v6291, %v6579
  %v6581 = vpop.f32.mrb[0].mxu0
  %v6582 = vpop.f32.mrb[0].mxu0
  %v6583 = vadd.f32 %v6294, %v6582
  %v6584 = vpop.f32.mrb[0].mxu0
  %6585 = vmatprep.mubr.bf16.mxu0 %v4830
  %6586 = vmatmul.mubr.bf16.gmra.mrb[0].mxu0 %v4829
  %v6587 = vpop.f32.mrb[0].mxu0
  %v6588 = vadd.f32 %v6299, %v6587
  %v6589 = vpop.f32.mrb[0].mxu0
  %v6590 = vpop.f32.mrb[0].mxu0
  %v6591 = vadd.f32 %v6302, %v6590
  %v6592 = vpop.f32.mrb[0].mxu0
  %6593 = vmatprep.mubr.bf16.mxu0 %v4839
  %6594 = vmatmul.mubr.bf16.gmra.mrb[0].mxu0 %v4838
  %v6595 = vpop.f32.mrb[0].mxu0
  %v6596 = vadd.f32 %v6307, %v6595
  %v6597 = vpop.f32.mrb[0].mxu0
  %v6598 = vpop.f32.mrb[0].mxu0
  %v6599 = vadd.f32 %v6310, %v6598
  %v6600 = vpop.f32.mrb[0].mxu0
  %6601 = vmatprep.mubr.bf16.mxu0 %v4848
  %6602 = vmatmul.mubr.bf16.gmra.mrb[0].mxu0 %v4847
  %v6603 = vpop.f32.mrb[0].mxu0
  %v6604 = vadd.f32 %v6315, %v6603
  %v6605 = vpop.f32.mrb[0].mxu0
  %v6606 = vpop.f32.mrb[0].mxu0
  %v6607 = vadd.f32 %v6318, %v6606
  %v6608 = vpop.f32.mrb[0].mxu0
  %6609 = vmatprep.mubr.bf16.mxu0 %v4857
  %6610 = vmatmul.mubr.bf16.gmra.mrb[0].mxu0 %v4856
  %v6611 = vpop.f32.mrb[0].mxu0
  %v6612 = vadd.f32 %v6323, %v6611
  %v6613 = vpop.f32.mrb[0].mxu0
  %v6614 = vpop.f32.mrb[0].mxu0
  %v6615 = vadd.f32 %v6326, %v6614
  %v6616 = vpop.f32.mrb[0].mxu0
  %6617 = vmatprep.mubr.bf16.mxu0 %v4866
  %6618 = vmatmul.mubr.bf16.gmra.mrb[0].mxu0 %v4865
  %v6619 = vpop.f32.mrb[0].mxu0
  %v6620 = vadd.f32 %v6331, %v6619
  %v6621 = vpop.f32.mrb[0].mxu0
  %v6622 = vpop.f32.mrb[0].mxu0
  %v6623 = vadd.f32 %v6334, %v6622
  %v6624 = vpop.f32.mrb[0].mxu0
  %6625 = vmatprep.mubr.bf16.mxu0 %v4875
  %6626 = vmatmul.mubr.bf16.gmra.mrb[0].mxu0 %v4874
  %v6627 = vpop.f32.mrb[0].mxu0
  %v6628 = vadd.f32 %v6339, %v6627
  %v6629 = vpop.f32.mrb[0].mxu0
  %v6630 = vpop.f32.mrb[0].mxu0
  %v6631 = vadd.f32 %v6342, %v6630
  %v6632 = vpop.f32.mrb[0].mxu0
  %6633 = vmatprep.mubr.bf16.mxu0 %v4884
  %6634 = vmatmul.mubr.bf16.gmra.mrb[0].mxu0 %v4883
  %v6635 = vpop.f32.mrb[0].mxu0
  %v6636 = vadd.f32 %v6347, %v6635
  %v6637 = vpop.f32.mrb[0].mxu0
  %v6638 = vpop.f32.mrb[0].mxu0
  %v6639 = vadd.f32 %v6350, %v6638
  %v6640 = vpop.f32.mrb[0].mxu0
  %6641 = vmatprep.mubr.bf16.mxu0 %v4893
  %6642 = vmatmul.mubr.bf16.gmra.mrb[0].mxu0 %v4892
  %v6643 = vpop.f32.mrb[0].mxu0
  %v6644 = vadd.f32 %v6355, %v6643
  %v6645 = vpop.f32.mrb[0].mxu0
  %v6646 = vpop.f32.mrb[0].mxu0
  %v6647 = vadd.f32 %v6358, %v6646
  %v6648 = vpop.f32.mrb[0].mxu0
  %6649 = vmatprep.mubr.bf16.mxu0 %v4902
  %6650 = vmatmul.mubr.bf16.gmra.mrb[0].mxu0 %v4901
  %v6651 = vpop.f32.mrb[0].mxu0
  %v6652 = vadd.f32 %v6363, %v6651
  %v6653 = vpop.f32.mrb[0].mxu0
  %v6654 = vpop.f32.mrb[0].mxu0
  %v6655 = vadd.f32 %v6366, %v6654
  %v6656 = vpop.f32.mrb[0].mxu0
  %6657 = vmatprep.mubr.bf16.mxu0 %v4911
  %6658 = vmatmul.mubr.bf16.gmra.mrb[0].mxu0 %v4910
  %v6659 = vpop.f32.mrb[0].mxu0
  %v6660 = vadd.f32 %v6371, %v6659
  %v6661 = vpop.f32.mrb[0].mxu0
  %v6662 = vpop.f32.mrb[0].mxu0
  %v6663 = vadd.f32 %v6374, %v6662
  %v6664 = vpop.f32.mrb[0].mxu0
  %6665 = vmatprep.mubr.bf16.mxu0 %v4920
  %6666 = vmatmul.mubr.bf16.gmra.mrb[0].mxu0 %v4919
  %v6667 = vpop.f32.mrb[0].mxu0
  %v6668 = vadd.f32 %v6379, %v6667
  %v6669 = vpop.f32.mrb[0].mxu0
  %v6670 = vpop.f32.mrb[0].mxu0
  %v6671 = vadd.f32 %v6382, %v6670
  %v6672 = vpop.f32.mrb[0].mxu0
  %6673 = vmatprep.mubr.bf16.mxu0 %v4929
  %6674 = vmatmul.mubr.bf16.gmra.mrb[0].mxu0 %v4928
  %v6675 = vpop.f32.mrb[0].mxu0
  %v6676 = vadd.f32 %v6387, %v6675
  %v6677 = vpop.f32.mrb[0].mxu0
  %v6678 = vpop.f32.mrb[0].mxu0
  %v6679 = vadd.f32 %v6390, %v6678
  %v6680 = vpop.f32.mrb[0].mxu0
  %6681 = vmatprep.mubr.bf16.mxu0 %v4938
  %6682 = vmatmul.mubr.bf16.gmra.mrb[0].mxu0 %v4937
  %v6683 = vpop.f32.mrb[0].mxu0
  %v6684 = vadd.f32 %v6395, %v6683
  %v6685 = vpop.f32.mrb[0].mxu0
  %v6686 = vpop.f32.mrb[0].mxu0
  %v6687 = vadd.f32 %v6398, %v6686
  %v6688 = vpop.f32.mrb[0].mxu0
  %6689 = vmatprep.mubr.bf16.mxu0 %v4947
  %6690 = vmatmul.mubr.bf16.gmra.mrb[0].mxu0 %v4946
  %v6691 = vpop.f32.mrb[0].mxu0
  %v6692 = vadd.f32 %v6403, %v6691
  %v6693 = vpop.f32.mrb[0].mxu0
  %v6694 = vpop.f32.mrb[0].mxu0
  %v6695 = vadd.f32 %v6406, %v6694
  %v6696 = vpop.f32.mrb[0].mxu0
  %6697 = vmatprep.mubr.bf16.mxu0 %v4956
  %6698 = vmatmul.mubr.bf16.gmra.mrb[0].mxu0 %v4955
  %v6699 = vpop.f32.mrb[0].mxu0
  %v6700 = vadd.f32 %v6411, %v6699
  %v6701 = vpop.f32.mrb[0].mxu0
  %v6702 = vpop.f32.mrb[0].mxu0
  %v6703 = vadd.f32 %v6414, %v6702
  %v6704 = vpop.f32.mrb[0].mxu0
  %6705 = vmatprep.mubr.bf16.mxu0 %v4965
  %6706 = vmatmul.mubr.bf16.gmra.mrb[0].mxu0 %v4964
  %v6707 = vpop.f32.mrb[0].mxu0
  %v6708 = vadd.f32 %v6419, %v6707
  %v6709 = vpop.f32.mrb[0].mxu0
  %v6710 = vpop.f32.mrb[0].mxu0
  %v6711 = vadd.f32 %v6422, %v6710
  %v6712 = vpop.f32.mrb[0].mxu0
  %6713 = vmatprep.mubr.bf16.mxu0 %v4974
  %6714 = vmatmul.mubr.bf16.gmra.mrb[0].mxu0 %v4973
  %v6715 = vpop.f32.mrb[0].mxu0
  %v6716 = vadd.f32 %v6427, %v6715
  %v6717 = vpop.f32.mrb[0].mxu0
  %v6718 = vpop.f32.mrb[0].mxu0
  %v6719 = vadd.f32 %v6430, %v6718
  %v6720 = vpop.f32.mrb[0].mxu0
  %6721 = vmatprep.mubr.bf16.mxu0 %v4983
  %6722 = vmatmul.mubr.bf16.gmra.mrb[0].mxu0 %v4982
  %v6723 = vpop.f32.mrb[0].mxu0
  %v6724 = vadd.f32 %v6435, %v6723
  %v6725 = vpop.f32.mrb[0].mxu0
  %v6726 = vpop.f32.mrb[0].mxu0
  %v6727 = vadd.f32 %v6438, %v6726
  %v6728 = vpop.f32.mrb[0].mxu0
  %6729 = vmatprep.mubr.bf16.mxu0 %v4992
  %6730 = vmatmul.mubr.bf16.gmra.mrb[0].mxu0 %v4991
  %v6731 = vpop.f32.mrb[0].mxu0
  %v6732 = vadd.f32 %v6443, %v6731
  %v6733 = vpop.f32.mrb[0].mxu0
  %v6734 = vpop.f32.mrb[0].mxu0
  %v6735 = vadd.f32 %v6446, %v6734
  %v6736 = vpop.f32.mrb[0].mxu0
  %6737 = vmatprep.mubr.bf16.mxu0 %v5001
  %6738 = vmatmul.mubr.bf16.gmra.mrb[0].mxu0 %v5000
  %v6739 = vpop.f32.mrb[0].mxu0
  %v6740 = vadd.f32 %v6451, %v6739
  %v6741 = vpop.f32.mrb[0].mxu0
  %v6742 = vpop.f32.mrb[0].mxu0
  %v6743 = vadd.f32 %v6454, %v6742
  %v6744 = vpop.f32.mrb[0].mxu0
  %6745 = vmatprep.mubr.bf16.mxu0 %v5010
  %6746 = vmatmul.mubr.bf16.gmra.mrb[0].mxu0 %v5009
  %v6747 = vpop.f32.mrb[0].mxu0
  %v6748 = vadd.f32 %v6459, %v6747
  %v6749 = vpop.f32.mrb[0].mxu0
  %v6750 = vpop.f32.mrb[0].mxu0
  %v6751 = vadd.f32 %v6462, %v6750
  %v6752 = vpop.f32.mrb[0].mxu0
  %6753 = vmatprep.mubr.bf16.mxu0 %v5019
  %6754 = vmatmul.mubr.bf16.gmra.mrb[0].mxu0 %v5018
  %v6755 = vpop.f32.mrb[0].mxu0
  %v6756 = vadd.f32 %v6467, %v6755
  %v6757 = vpop.f32.mrb[0].mxu0
  %v6758 = vpop.f32.mrb[0].mxu0
  %v6759 = vadd.f32 %v6470, %v6758
  %v6760 = vpop.f32.mrb[0].mxu0
  %6761 = vmatprep.mubr.bf16.mxu0 %v5028
  %6762 = vmatmul.mubr.bf16.gmra.mrb[0].mxu0 %v5027
  %v6763 = vpop.f32.mrb[0].mxu0
  %v6764 = vadd.f32 %v6475, %v6763
  %v6765 = vpop.f32.mrb[0].mxu0
  %v6766 = vpop.f32.mrb[0].mxu0
  %v6767 = vadd.f32 %v6478, %v6766
  %v6768 = vpop.f32.mrb[0].mxu0
  %6769 = vmatprep.mubr.bf16.mxu0 %v5037
  %6770 = vmatmul.mubr.bf16.gmra.mrb[0].mxu0 %v5036
  %v6771 = vpop.f32.mrb[0].mxu0
  %v6772 = vadd.f32 %v6483, %v6771
  %v6773 = vpop.f32.mrb[0].mxu0
  %v6774 = vpop.f32.mrb[0].mxu0
  %v6775 = vadd.f32 %v6486, %v6774
  %v6776 = vpop.f32.mrb[0].mxu0
  %6777 = vmatprep.mubr.bf16.mxu0 %v5046
  %6778 = vmatmul.mubr.bf16.gmra.mrb[0].mxu0 %v5045
  %v6779 = vpop.f32.mrb[0].mxu0
  %v6780 = vadd.f32 %v6491, %v6779
  %v6781 = vpop.f32.mrb[0].mxu0
  %v6782 = vpop.f32.mrb[0].mxu0
  %v6783 = vadd.f32 %v6494, %v6782
  %v6784 = vpop.f32.mrb[0].mxu0
  %6785 = vmatprep.mubr.bf16.mxu0 %v5055
  %6786 = vmatmul.mubr.bf16.gmra.mrb[0].mxu0 %v5054
  %v6787 = vpop.f32.mrb[0].mxu0
  %v6788 = vadd.f32 %v6499, %v6787
  %v6789 = vpop.f32.mrb[0].mxu0
  %v6790 = vpop.f32.mrb[0].mxu0
  %v6791 = vadd.f32 %v6502, %v6790
  %v6792 = vpop.f32.mrb[0].mxu0
  %6793 = vmatprep.mubr.bf16.mxu0 %v5064
  %6794 = vmatmul.mubr.bf16.gmra.mrb[0].mxu0 %v5063
  %v6795 = vpop.f32.mrb[0].mxu0
  %v6796 = vadd.f32 %v6507, %v6795
  %v6797 = vpop.f32.mrb[0].mxu0
  %v6798 = vpop.f32.mrb[0].mxu0
  %v6799 = vadd.f32 %v6510, %v6798
  %v6800 = vpop.f32.mrb[0].mxu0
  %6801 = vmatprep.mubr.bf16.mxu0 %v5073
  %6802 = vmatmul.mubr.bf16.gmra.mrb[0].mxu0 %v5072
  %v6803 = vpop.f32.mrb[0].mxu0
  %v6804 = vadd.f32 %v6515, %v6803
  %v6805 = vpop.f32.mrb[0].mxu0
  %v6806 = vpop.f32.mrb[0].mxu0
  %v6807 = vadd.f32 %v6518, %v6806
  %v6808 = vpop.f32.mrb[0].mxu0
  %6809 = vmatprep.mubr.bf16.mxu0 %v5082
  %6810 = vmatmul.mubr.bf16.gmra.mrb[0].mxu0 %v5081
  %v6811 = vpop.f32.mrb[0].mxu0
  %v6812 = vadd.f32 %v6523, %v6811
  %v6813 = vpop.f32.mrb[0].mxu0
  %v6814 = vpop.f32.mrb[0].mxu0
  %v6815 = vadd.f32 %v6526, %v6814
  %v6816 = vpop.f32.mrb[0].mxu0
  %6817 = vmatprep.mubr.bf16.mxu0 %v5091
  %6818 = vmatmul.mubr.bf16.gmra.mrb[0].mxu0 %v5090
  %v6819 = vpop.f32.mrb[0].mxu0
  %v6820 = vadd.f32 %v6531, %v6819
  %v6821 = vpop.f32.mrb[0].mxu0
  %v6822 = vpop.f32.mrb[0].mxu0
  %v6823 = vadd.f32 %v6534, %v6822
  %v6824 = vpop.f32.mrb[0].mxu0
  %6825 = vmatprep.mubr.bf16.mxu0 %v5100
  %6826 = vmatmul.mubr.bf16.gmra.mrb[0].mxu0 %v5099
  %v6827 = vpop.f32.mrb[0].mxu0
  %v6828 = vadd.f32 %v6539, %v6827
  %v6829 = vpop.f32.mrb[0].mxu0
  %v6830 = vpop.f32.mrb[0].mxu0
  %v6831 = vadd.f32 %v6542, %v6830
  %v6832 = vpop.f32.mrb[0].mxu0
  %6833 = vdwg.mxu0
  %6834 = vmatprep.subr.bf16.mxu0 0
  %6835 = vmatpush1.bf16.msra.mxu0 %v5598
  %6836 = vmatprep.subr.bf16.mxu0 0
  %6837 = vmatpush1.bf16.msra.mxu0 %v5599
  %6838 = vmatprep.subr.bf16.mxu0 0
  %6839 = vmatpush1.bf16.msra.mxu0 %v5600
  %6840 = vmatprep.subr.bf16.mxu0 0
  %6841 = vmatpush1.bf16.msra.mxu0 %v5601
  %6842 = vmatprep.subr.bf16.mxu0 0
  %6843 = vmatpush1.bf16.msra.mxu0 %v5602
  %6844 = vmatprep.subr.bf16.mxu0 0
  %6845 = vmatpush1.bf16.msra.mxu0 %v5603
  %6846 = vmatprep.subr.bf16.mxu0 0
  %6847 = vmatpush1.bf16.msra.mxu0 %v5604
  %6848 = vmatprep.subr.bf16.mxu0 0
  %6849 = vmatpush1.bf16.msra.mxu0 %v5605
  %6850 = vmatprep.subr.bf16.mxu0 0
  %6851 = vmatpush1.bf16.msra.mxu0 0
  %6852 = vmatprep.subr.bf16.mxu0 0
  %6853 = vmatpush1.bf16.msra.mxu0 0
  %6854 = vmatprep.subr.bf16.mxu0 0
  %6855 = vmatpush1.bf16.msra.mxu0 0
  %6856 = vmatprep.subr.bf16.mxu0 0
  %6857 = vmatpush1.bf16.msra.mxu0 0
  %6858 = vmatprep.subr.bf16.mxu0 0
  %6859 = vmatpush1.bf16.msra.mxu0 0
  %6860 = vmatprep.subr.bf16.mxu0 0
  %6861 = vmatpush1.bf16.msra.mxu0 0
  %6862 = vmatprep.subr.bf16.mxu0 0
  %6863 = vmatpush1.bf16.msra.mxu0 0
  %6864 = vmatprep.subr.bf16.mxu0 0
  %6865 = vmatpush1.bf16.msra.mxu0 0
  %6866 = vmatprep.mubr.bf16.mxu0 0
  %6867 = vmatmul.mubr.bf16.gmra.mrb[0].mxu0 %v4822
  %v6868 = vpop.f32.mrb[0].mxu0
  %v6869 = vadd.f32 %v6580, %v6868
  %v6870 = vpop.f32.mrb[0].mxu0
  %v6871 = vpop.f32.mrb[0].mxu0
  %v6872 = vadd.f32 %v6583, %v6871
  %v6873 = vpop.f32.mrb[0].mxu0
  %6874 = vmatprep.mubr.bf16.mxu0 0
  %6875 = vmatmul.mubr.bf16.gmra.mrb[0].mxu0 %v4831
  %v6876 = vpop.f32.mrb[0].mxu0
  %v6877 = vadd.f32 %v6588, %v6876
  %v6878 = vpop.f32.mrb[0].mxu0
  %v6879 = vpop.f32.mrb[0].mxu0
  %v6880 = vadd.f32 %v6591, %v6879
  %v6881 = vpop.f32.mrb[0].mxu0
  %6882 = vmatprep.mubr.bf16.mxu0 0
  %6883 = vmatmul.mubr.bf16.gmra.mrb[0].mxu0 %v4840
  %v6884 = vpop.f32.mrb[0].mxu0
  %v6885 = vadd.f32 %v6596, %v6884
  %v6886 = vpop.f32.mrb[0].mxu0
  %v6887 = vpop.f32.mrb[0].mxu0
  %v6888 = vadd.f32 %v6599, %v6887
  %v6889 = vpop.f32.mrb[0].mxu0
  %6890 = vmatprep.mubr.bf16.mxu0 0
  %6891 = vmatmul.mubr.bf16.gmra.mrb[0].mxu0 %v4849
  %v6892 = vpop.f32.mrb[0].mxu0
  %v6893 = vadd.f32 %v6604, %v6892
  %v6894 = vpop.f32.mrb[0].mxu0
  %v6895 = vpop.f32.mrb[0].mxu0
  %v6896 = vadd.f32 %v6607, %v6895
  %v6897 = vpop.f32.mrb[0].mxu0
  %6898 = vmatprep.mubr.bf16.mxu0 0
  %6899 = vmatmul.mubr.bf16.gmra.mrb[0].mxu0 %v4858
  %v6900 = vpop.f32.mrb[0].mxu0
  %v6901 = vadd.f32 %v6612, %v6900
  %v6902 = vpop.f32.mrb[0].mxu0
  %v6903 = vpop.f32.mrb[0].mxu0
  %v6904 = vadd.f32 %v6615, %v6903
  %v6905 = vpop.f32.mrb[0].mxu0
  %6906 = vmatprep.mubr.bf16.mxu0 0
  %6907 = vmatmul.mubr.bf16.gmra.mrb[0].mxu0 %v4867
  %v6908 = vpop.f32.mrb[0].mxu0
  %v6909 = vadd.f32 %v6620, %v6908
  %v6910 = vpop.f32.mrb[0].mxu0
  %v6911 = vpop.f32.mrb[0].mxu0
  %v6912 = vadd.f32 %v6623, %v6911
  %v6913 = vpop.f32.mrb[0].mxu0
  %6914 = vmatprep.mubr.bf16.mxu0 0
  %6915 = vmatmul.mubr.bf16.gmra.mrb[0].mxu0 %v4876
  %v6916 = vpop.f32.mrb[0].mxu0
  %v6917 = vadd.f32 %v6628, %v6916
  %v6918 = vpop.f32.mrb[0].mxu0
  %v6919 = vpop.f32.mrb[0].mxu0
  %v6920 = vadd.f32 %v6631, %v6919
  %v6921 = vpop.f32.mrb[0].mxu0
  %6922 = vmatprep.mubr.bf16.mxu0 0
  %6923 = vmatmul.mubr.bf16.gmra.mrb[0].mxu0 %v4885
  %v6924 = vpop.f32.mrb[0].mxu0
  %v6925 = vadd.f32 %v6636, %v6924
  %v6926 = vpop.f32.mrb[0].mxu0
  %v6927 = vpop.f32.mrb[0].mxu0
  %v6928 = vadd.f32 %v6639, %v6927
  %v6929 = vpop.f32.mrb[0].mxu0
  %6930 = vmatprep.mubr.bf16.mxu0 0
  %6931 = vmatmul.mubr.bf16.gmra.mrb[0].mxu0 %v4894
  %v6932 = vpop.f32.mrb[0].mxu0
  %v6933 = vadd.f32 %v6644, %v6932
  %v6934 = vpop.f32.mrb[0].mxu0
  %v6935 = vpop.f32.mrb[0].mxu0
  %v6936 = vadd.f32 %v6647, %v6935
  %v6937 = vpop.f32.mrb[0].mxu0
  %6938 = vmatprep.mubr.bf16.mxu0 0
  %6939 = vmatmul.mubr.bf16.gmra.mrb[0].mxu0 %v4903
  %v6940 = vpop.f32.mrb[0].mxu0
  %v6941 = vadd.f32 %v6652, %v6940
  %v6942 = vpop.f32.mrb[0].mxu0
  %v6943 = vpop.f32.mrb[0].mxu0
  %v6944 = vadd.f32 %v6655, %v6943
  %v6945 = vpop.f32.mrb[0].mxu0
  %6946 = vmatprep.mubr.bf16.mxu0 0
  %6947 = vmatmul.mubr.bf16.gmra.mrb[0].mxu0 %v4912
  %v6948 = vpop.f32.mrb[0].mxu0
  %v6949 = vadd.f32 %v6660, %v6948
  %v6950 = vpop.f32.mrb[0].mxu0
  %v6951 = vpop.f32.mrb[0].mxu0
  %v6952 = vadd.f32 %v6663, %v6951
  %v6953 = vpop.f32.mrb[0].mxu0
  %6954 = vmatprep.mubr.bf16.mxu0 0
  %6955 = vmatmul.mubr.bf16.gmra.mrb[0].mxu0 %v4921
  %v6956 = vpop.f32.mrb[0].mxu0
  %v6957 = vadd.f32 %v6668, %v6956
  %v6958 = vpop.f32.mrb[0].mxu0
  %v6959 = vpop.f32.mrb[0].mxu0
  %v6960 = vadd.f32 %v6671, %v6959
  %v6961 = vpop.f32.mrb[0].mxu0
  %6962 = vmatprep.mubr.bf16.mxu0 0
  %6963 = vmatmul.mubr.bf16.gmra.mrb[0].mxu0 %v4930
  %v6964 = vpop.f32.mrb[0].mxu0
  %v6965 = vadd.f32 %v6676, %v6964
  %v6966 = vpop.f32.mrb[0].mxu0
  %v6967 = vpop.f32.mrb[0].mxu0
  %v6968 = vadd.f32 %v6679, %v6967
  %v6969 = vpop.f32.mrb[0].mxu0
  %6970 = vmatprep.mubr.bf16.mxu0 0
  %6971 = vmatmul.mubr.bf16.gmra.mrb[0].mxu0 %v4939
  %v6972 = vpop.f32.mrb[0].mxu0
  %v6973 = vadd.f32 %v6684, %v6972
  %v6974 = vpop.f32.mrb[0].mxu0
  %v6975 = vpop.f32.mrb[0].mxu0
  %v6976 = vadd.f32 %v6687, %v6975
  %v6977 = vpop.f32.mrb[0].mxu0
  %6978 = vmatprep.mubr.bf16.mxu0 0
  %6979 = vmatmul.mubr.bf16.gmra.mrb[0].mxu0 %v4948
  %v6980 = vpop.f32.mrb[0].mxu0
  %v6981 = vadd.f32 %v6692, %v6980
  %v6982 = vpop.f32.mrb[0].mxu0
  %v6983 = vpop.f32.mrb[0].mxu0
  %v6984 = vadd.f32 %v6695, %v6983
  %v6985 = vpop.f32.mrb[0].mxu0
  %6986 = vmatprep.mubr.bf16.mxu0 0
  %6987 = vmatmul.mubr.bf16.gmra.mrb[0].mxu0 %v4957
  %v6988 = vpop.f32.mrb[0].mxu0
  %v6989 = vadd.f32 %v6700, %v6988
  %v6990 = vpop.f32.mrb[0].mxu0
  %v6991 = vpop.f32.mrb[0].mxu0
  %v6992 = vadd.f32 %v6703, %v6991
  %v6993 = vpop.f32.mrb[0].mxu0
  %6994 = vmatprep.mubr.bf16.mxu0 0
  %6995 = vmatmul.mubr.bf16.gmra.mrb[0].mxu0 %v4966
  %v6996 = vpop.f32.mrb[0].mxu0
  %v6997 = vadd.f32 %v6708, %v6996
  %v6998 = vpop.f32.mrb[0].mxu0
  %v6999 = vpop.f32.mrb[0].mxu0
  %v7000 = vadd.f32 %v6711, %v6999
  %v7001 = vpop.f32.mrb[0].mxu0
  %7002 = vmatprep.mubr.bf16.mxu0 0
  %7003 = vmatmul.mubr.bf16.gmra.mrb[0].mxu0 %v4975
  %v7004 = vpop.f32.mrb[0].mxu0
  %v7005 = vadd.f32 %v6716, %v7004
  %v7006 = vpop.f32.mrb[0].mxu0
  %v7007 = vpop.f32.mrb[0].mxu0
  %v7008 = vadd.f32 %v6719, %v7007
  %v7009 = vpop.f32.mrb[0].mxu0
  %7010 = vmatprep.mubr.bf16.mxu0 0
  %7011 = vmatmul.mubr.bf16.gmra.mrb[0].mxu0 %v4984
  %v7012 = vpop.f32.mrb[0].mxu0
  %v7013 = vadd.f32 %v6724, %v7012
  %v7014 = vpop.f32.mrb[0].mxu0
  %v7015 = vpop.f32.mrb[0].mxu0
  %v7016 = vadd.f32 %v6727, %v7015
  %v7017 = vpop.f32.mrb[0].mxu0
  %7018 = vmatprep.mubr.bf16.mxu0 0
  %7019 = vmatmul.mubr.bf16.gmra.mrb[0].mxu0 %v4993
  %v7020 = vpop.f32.mrb[0].mxu0
  %v7021 = vadd.f32 %v6732, %v7020
  %v7022 = vpop.f32.mrb[0].mxu0
  %v7023 = vpop.f32.mrb[0].mxu0
  %v7024 = vadd.f32 %v6735, %v7023
  %v7025 = vpop.f32.mrb[0].mxu0
  %7026 = vmatprep.mubr.bf16.mxu0 0
  %7027 = vmatmul.mubr.bf16.gmra.mrb[0].mxu0 %v5002
  %v7028 = vpop.f32.mrb[0].mxu0
  %v7029 = vadd.f32 %v6740, %v7028
  %v7030 = vpop.f32.mrb[0].mxu0
  %v7031 = vpop.f32.mrb[0].mxu0
  %v7032 = vadd.f32 %v6743, %v7031
  %v7033 = vpop.f32.mrb[0].mxu0
  %7034 = vmatprep.mubr.bf16.mxu0 0
  %7035 = vmatmul.mubr.bf16.gmra.mrb[0].mxu0 %v5011
  %v7036 = vpop.f32.mrb[0].mxu0
  %v7037 = vadd.f32 %v6748, %v7036
  %v7038 = vpop.f32.mrb[0].mxu0
  %v7039 = vpop.f32.mrb[0].mxu0
  %v7040 = vadd.f32 %v6751, %v7039
  %v7041 = vpop.f32.mrb[0].mxu0
  %7042 = vmatprep.mubr.bf16.mxu0 0
  %7043 = vmatmul.mubr.bf16.gmra.mrb[0].mxu0 %v5020
  %v7044 = vpop.f32.mrb[0].mxu0
  %v7045 = vadd.f32 %v6756, %v7044
  %v7046 = vpop.f32.mrb[0].mxu0
  %v7047 = vpop.f32.mrb[0].mxu0
  %v7048 = vadd.f32 %v6759, %v7047
  %v7049 = vpop.f32.mrb[0].mxu0
  %7050 = vmatprep.mubr.bf16.mxu0 0
  %7051 = vmatmul.mubr.bf16.gmra.mrb[0].mxu0 %v5029
  %v7052 = vpop.f32.mrb[0].mxu0
  %v7053 = vadd.f32 %v6764, %v7052
  %v7054 = vpop.f32.mrb[0].mxu0
  %v7055 = vpop.f32.mrb[0].mxu0
  %v7056 = vadd.f32 %v6767, %v7055
  %v7057 = vpop.f32.mrb[0].mxu0
  %7058 = vmatprep.mubr.bf16.mxu0 0
  %7059 = vmatmul.mubr.bf16.gmra.mrb[0].mxu0 %v5038
  %v7060 = vpop.f32.mrb[0].mxu0
  %v7061 = vadd.f32 %v6772, %v7060
  %v7062 = vpop.f32.mrb[0].mxu0
  %v7063 = vpop.f32.mrb[0].mxu0
  %v7064 = vadd.f32 %v6775, %v7063
  %v7065 = vpop.f32.mrb[0].mxu0
  %7066 = vmatprep.mubr.bf16.mxu0 0
  %7067 = vmatmul.mubr.bf16.gmra.mrb[0].mxu0 %v5047
  %v7068 = vpop.f32.mrb[0].mxu0
  %v7069 = vadd.f32 %v6780, %v7068
  %v7070 = vpop.f32.mrb[0].mxu0
  %v7071 = vpop.f32.mrb[0].mxu0
  %v7072 = vadd.f32 %v6783, %v7071
  %v7073 = vpop.f32.mrb[0].mxu0
  %7074 = vmatprep.mubr.bf16.mxu0 0
  %7075 = vmatmul.mubr.bf16.gmra.mrb[0].mxu0 %v5056
  %v7076 = vpop.f32.mrb[0].mxu0
  %v7077 = vadd.f32 %v6788, %v7076
  %v7078 = vpop.f32.mrb[0].mxu0
  %v7079 = vpop.f32.mrb[0].mxu0
  %v7080 = vadd.f32 %v6791, %v7079
  %v7081 = vpop.f32.mrb[0].mxu0
  %7082 = vmatprep.mubr.bf16.mxu0 0
  %7083 = vmatmul.mubr.bf16.gmra.mrb[0].mxu0 %v5065
  %v7084 = vpop.f32.mrb[0].mxu0
  %v7085 = vadd.f32 %v6796, %v7084
  %v7086 = vpop.f32.mrb[0].mxu0
  %v7087 = vpop.f32.mrb[0].mxu0
  %v7088 = vadd.f32 %v6799, %v7087
  %v7089 = vpop.f32.mrb[0].mxu0
  %7090 = vmatprep.mubr.bf16.mxu0 0
  %7091 = vmatmul.mubr.bf16.gmra.mrb[0].mxu0 %v5074
  %v7092 = vpop.f32.mrb[0].mxu0
  %v7093 = vadd.f32 %v6804, %v7092
  %v7094 = vpop.f32.mrb[0].mxu0
  %v7095 = vpop.f32.mrb[0].mxu0
  %v7096 = vadd.f32 %v6807, %v7095
  %v7097 = vpop.f32.mrb[0].mxu0
  %7098 = vmatprep.mubr.bf16.mxu0 0
  %7099 = vmatmul.mubr.bf16.gmra.mrb[0].mxu0 %v5083
  %v7100 = vpop.f32.mrb[0].mxu0
  %v7101 = vadd.f32 %v6812, %v7100
  %v7102 = vpop.f32.mrb[0].mxu0
  %v7103 = vpop.f32.mrb[0].mxu0
  %v7104 = vadd.f32 %v6815, %v7103
  %v7105 = vpop.f32.mrb[0].mxu0
  %7106 = vmatprep.mubr.bf16.mxu0 0
  %7107 = vmatmul.mubr.bf16.gmra.mrb[0].mxu0 %v5092
  %v7108 = vpop.f32.mrb[0].mxu0
  %v7109 = vadd.f32 %v6820, %v7108
  %v7110 = vpop.f32.mrb[0].mxu0
  %v7111 = vpop.f32.mrb[0].mxu0
  %v7112 = vadd.f32 %v6823, %v7111
  %v7113 = vpop.f32.mrb[0].mxu0
  %7114 = vmatprep.mubr.bf16.mxu0 0
  %7115 = vmatmul.mubr.bf16.gmra.mrb[0].mxu0 %v5101
  %v7116 = vpop.f32.mrb[0].mxu0
  %v7117 = vadd.f32 %v6828, %v7116
  %v7118 = vpop.f32.mrb[0].mxu0
  %v7119 = vpop.f32.mrb[0].mxu0
  %v7120 = vadd.f32 %v6831, %v7119
  %v7121 = vpop.f32.mrb[0].mxu0
  %7122 = vdwg.mxu0
  %v7123 = vadd.f32 %v6869, %v6872
  %v7124 = vadd.f32 %v7123, %v6877
  %v7125 = vadd.f32 %v7124, %v6880
  %v7126 = vadd.f32 %v7125, %v6885
  %v7127 = vadd.f32 %v7126, %v6888
  %v7128 = vadd.f32 %v7127, %v6893
  %v7129 = vadd.f32 %v7128, %v6896
  %v7130 = vadd.f32 %v7129, %v6901
  %v7131 = vadd.f32 %v7130, %v6904
  %v7132 = vadd.f32 %v7131, %v6909
  %v7133 = vadd.f32 %v7132, %v6912
  %v7134 = vadd.f32 %v7133, %v6917
  %v7135 = vadd.f32 %v7134, %v6920
  %v7136 = vadd.f32 %v7135, %v6925
  %v7137 = vadd.f32 %v7136, %v6928
  %v7138 = vadd.f32 %v7137, %v6933
  %v7139 = vadd.f32 %v7138, %v6936
  %v7140 = vadd.f32 %v7139, %v6941
  %v7141 = vadd.f32 %v7140, %v6944
  %v7142 = vadd.f32 %v7141, %v6949
  %v7143 = vadd.f32 %v7142, %v6952
  %v7144 = vadd.f32 %v7143, %v6957
  %v7145 = vadd.f32 %v7144, %v6960
  %v7146 = vadd.f32 %v7145, %v6965
  %v7147 = vadd.f32 %v7146, %v6968
  %v7148 = vadd.f32 %v7147, %v6973
  %v7149 = vadd.f32 %v7148, %v6976
  %v7150 = vadd.f32 %v7149, %v6981
  %v7151 = vadd.f32 %v7150, %v6984
  %v7152 = vadd.f32 %v7151, %v6989
  %v7153 = vadd.f32 %v7152, %v6992
  %v7154 = vadd.f32 %v7153, %v6997
  %v7155 = vadd.f32 %v7154, %v7000
  %v7156 = vadd.f32 %v7155, %v7005
  %v7157 = vadd.f32 %v7156, %v7008
  %v7158 = vadd.f32 %v7157, %v7013
  %v7159 = vadd.f32 %v7158, %v7016
  %v7160 = vadd.f32 %v7159, %v7021
  %v7161 = vadd.f32 %v7160, %v7024
  %v7162 = vadd.f32 %v7161, %v7029
  %v7163 = vadd.f32 %v7162, %v7032
  %v7164 = vadd.f32 %v7163, %v7037
  %v7165 = vadd.f32 %v7164, %v7040
  %v7166 = vadd.f32 %v7165, %v7045
  %v7167 = vadd.f32 %v7166, %v7048
  %v7168 = vadd.f32 %v7167, %v7053
  %v7169 = vadd.f32 %v7168, %v7056
  %v7170 = vadd.f32 %v7169, %v7061
  %v7171 = vadd.f32 %v7170, %v7064
  %v7172 = vadd.f32 %v7171, %v7069
  %v7173 = vadd.f32 %v7172, %v7072
  %v7174 = vadd.f32 %v7173, %v7077
  %v7175 = vadd.f32 %v7174, %v7080
  %v7176 = vadd.f32 %v7175, %v7085
  %v7177 = vadd.f32 %v7176, %v7088
  %v7178 = vadd.f32 %v7177, %v7093
  %v7179 = vadd.f32 %v7178, %v7096
  %v7180 = vadd.f32 %v7179, %v7101
  %v7181 = vadd.f32 %v7180, %v7104
  %v7182 = vadd.f32 %v7181, %v7109
  %v7183 = vadd.f32 %v7182, %v7112
  %v7184 = vadd.f32 %v7183, %v7117
  %v7185 = vadd.f32 %v7184, %v7120
  %v7186 = vrot.slane %v7185, 4
  %v7187 = vadd.f32 %v7185, %v7186
  %v7188 = vrot.slane %v7187, 2
  %v7189 = vadd.f32 %v7187, %v7188
  %v7190 = vrot.slane %v7189, 1
  %v7191 = vadd.f32 %v7189, %v7190
  %v7192 = vmul.f32 %v7191, %v3684
  %v7193 = vsub.f32 %v6869, %v7192
  %v7194 = vsub.f32 %v6872, %v7192
  %v7195 = vsub.f32 %v6877, %v7192
  %v7196 = vsub.f32 %v6880, %v7192
  %v7197 = vsub.f32 %v6885, %v7192
  %v7198 = vsub.f32 %v6888, %v7192
  %v7199 = vsub.f32 %v6893, %v7192
  %v7200 = vsub.f32 %v6896, %v7192
  %v7201 = vsub.f32 %v6901, %v7192
  %v7202 = vsub.f32 %v6904, %v7192
  %v7203 = vsub.f32 %v6909, %v7192
  %v7204 = vsub.f32 %v6912, %v7192
  %v7205 = vsub.f32 %v6917, %v7192
  %v7206 = vsub.f32 %v6920, %v7192
  %v7207 = vsub.f32 %v6925, %v7192
  %v7208 = vsub.f32 %v6928, %v7192
  %v7209 = vsub.f32 %v6933, %v7192
  %v7210 = vsub.f32 %v6936, %v7192
  %v7211 = vsub.f32 %v6941, %v7192
  %v7212 = vsub.f32 %v6944, %v7192
  %v7213 = vsub.f32 %v6949, %v7192
  %v7214 = vsub.f32 %v6952, %v7192
  %v7215 = vsub.f32 %v6957, %v7192
  %v7216 = vsub.f32 %v6960, %v7192
  %v7217 = vsub.f32 %v6965, %v7192
  %v7218 = vsub.f32 %v6968, %v7192
  %v7219 = vsub.f32 %v6973, %v7192
  %v7220 = vsub.f32 %v6976, %v7192
  %v7221 = vsub.f32 %v6981, %v7192
  %v7222 = vsub.f32 %v6984, %v7192
  %v7223 = vsub.f32 %v6989, %v7192
  %v7224 = vsub.f32 %v6992, %v7192
  %v7225 = vsub.f32 %v6997, %v7192
  %v7226 = vsub.f32 %v7000, %v7192
  %v7227 = vsub.f32 %v7005, %v7192
  %v7228 = vsub.f32 %v7008, %v7192
  %v7229 = vsub.f32 %v7013, %v7192
  %v7230 = vsub.f32 %v7016, %v7192
  %v7231 = vsub.f32 %v7021, %v7192
  %v7232 = vsub.f32 %v7024, %v7192
  %v7233 = vsub.f32 %v7029, %v7192
  %v7234 = vsub.f32 %v7032, %v7192
  %v7235 = vsub.f32 %v7037, %v7192
  %v7236 = vsub.f32 %v7040, %v7192
  %v7237 = vsub.f32 %v7045, %v7192
  %v7238 = vsub.f32 %v7048, %v7192
  %v7239 = vsub.f32 %v7053, %v7192
  %v7240 = vsub.f32 %v7056, %v7192
  %v7241 = vsub.f32 %v7061, %v7192
  %v7242 = vsub.f32 %v7064, %v7192
  %v7243 = vsub.f32 %v7069, %v7192
  %v7244 = vsub.f32 %v7072, %v7192
  %v7245 = vsub.f32 %v7077, %v7192
  %v7246 = vsub.f32 %v7080, %v7192
  %v7247 = vsub.f32 %v7085, %v7192
  %v7248 = vsub.f32 %v7088, %v7192
  %v7249 = vsub.f32 %v7093, %v7192
  %v7250 = vsub.f32 %v7096, %v7192
  %v7251 = vsub.f32 %v7101, %v7192
  %v7252 = vsub.f32 %v7104, %v7192
  %v7253 = vsub.f32 %v7109, %v7192
  %v7254 = vsub.f32 %v7112, %v7192
  %v7255 = vsub.f32 %v7117, %v7192
  %v7256 = vsub.f32 %v7120, %v7192
  %v7257 = vmul.f32 %v7193, %v7193
  %v7258 = vmul.f32 %v7194, %v7194
  %v7259 = vmul.f32 %v7195, %v7195
  %v7260 = vmul.f32 %v7196, %v7196
  %v7261 = vmul.f32 %v7197, %v7197
  %v7262 = vmul.f32 %v7198, %v7198
  %v7263 = vmul.f32 %v7199, %v7199
  %v7264 = vmul.f32 %v7200, %v7200
  %v7265 = vmul.f32 %v7201, %v7201
  %v7266 = vmul.f32 %v7202, %v7202
  %v7267 = vmul.f32 %v7203, %v7203
  %v7268 = vmul.f32 %v7204, %v7204
  %v7269 = vmul.f32 %v7205, %v7205
  %v7270 = vmul.f32 %v7206, %v7206
  %v7271 = vmul.f32 %v7207, %v7207
  %v7272 = vmul.f32 %v7208, %v7208
  %v7273 = vmul.f32 %v7209, %v7209
  %v7274 = vmul.f32 %v7210, %v7210
  %v7275 = vmul.f32 %v7211, %v7211
  %v7276 = vmul.f32 %v7212, %v7212
  %v7277 = vmul.f32 %v7213, %v7213
  %v7278 = vmul.f32 %v7214, %v7214
  %v7279 = vmul.f32 %v7215, %v7215
  %v7280 = vmul.f32 %v7216, %v7216
  %v7281 = vmul.f32 %v7217, %v7217
  %v7282 = vmul.f32 %v7218, %v7218
  %v7283 = vmul.f32 %v7219, %v7219
  %v7284 = vmul.f32 %v7220, %v7220
  %v7285 = vmul.f32 %v7221, %v7221
  %v7286 = vmul.f32 %v7222, %v7222
  %v7287 = vmul.f32 %v7223, %v7223
  %v7288 = vmul.f32 %v7224, %v7224
  %v7289 = vmul.f32 %v7225, %v7225
  %v7290 = vmul.f32 %v7226, %v7226
  %v7291 = vmul.f32 %v7227, %v7227
  %v7292 = vmul.f32 %v7228, %v7228
  %v7293 = vmul.f32 %v7229, %v7229
  %v7294 = vmul.f32 %v7230, %v7230
  %v7295 = vmul.f32 %v7231, %v7231
  %v7296 = vmul.f32 %v7232, %v7232
  %v7297 = vmul.f32 %v7233, %v7233
  %v7298 = vmul.f32 %v7234, %v7234
  %v7299 = vmul.f32 %v7235, %v7235
  %v7300 = vmul.f32 %v7236, %v7236
  %v7301 = vmul.f32 %v7237, %v7237
  %v7302 = vmul.f32 %v7238, %v7238
  %v7303 = vmul.f32 %v7239, %v7239
  %v7304 = vmul.f32 %v7240, %v7240
  %v7305 = vmul.f32 %v7241, %v7241
  %v7306 = vmul.f32 %v7242, %v7242
  %v7307 = vmul.f32 %v7243, %v7243
  %v7308 = vmul.f32 %v7244, %v7244
  %v7309 = vmul.f32 %v7245, %v7245
  %v7310 = vmul.f32 %v7246, %v7246
  %v7311 = vmul.f32 %v7247, %v7247
  %v7312 = vmul.f32 %v7248, %v7248
  %v7313 = vmul.f32 %v7249, %v7249
  %v7314 = vmul.f32 %v7250, %v7250
  %v7315 = vmul.f32 %v7251, %v7251
  %v7316 = vmul.f32 %v7252, %v7252
  %v7317 = vmul.f32 %v7253, %v7253
  %v7318 = vmul.f32 %v7254, %v7254
  %v7319 = vmul.f32 %v7255, %v7255
  %v7320 = vmul.f32 %v7256, %v7256
  %v7321 = vadd.f32 %v7257, %v7258
  %v7322 = vadd.f32 %v7321, %v7259
  %v7323 = vadd.f32 %v7322, %v7260
  %v7324 = vadd.f32 %v7323, %v7261
  %v7325 = vadd.f32 %v7324, %v7262
  %v7326 = vadd.f32 %v7325, %v7263
  %v7327 = vadd.f32 %v7326, %v7264
  %v7328 = vadd.f32 %v7327, %v7265
  %v7329 = vadd.f32 %v7328, %v7266
  %v7330 = vadd.f32 %v7329, %v7267
  %v7331 = vadd.f32 %v7330, %v7268
  %v7332 = vadd.f32 %v7331, %v7269
  %v7333 = vadd.f32 %v7332, %v7270
  %v7334 = vadd.f32 %v7333, %v7271
  %v7335 = vadd.f32 %v7334, %v7272
  %v7336 = vadd.f32 %v7335, %v7273
  %v7337 = vadd.f32 %v7336, %v7274
  %v7338 = vadd.f32 %v7337, %v7275
  %v7339 = vadd.f32 %v7338, %v7276
  %v7340 = vadd.f32 %v7339, %v7277
  %v7341 = vadd.f32 %v7340, %v7278
  %v7342 = vadd.f32 %v7341, %v7279
  %v7343 = vadd.f32 %v7342, %v7280
  %v7344 = vadd.f32 %v7343, %v7281
  %v7345 = vadd.f32 %v7344, %v7282
  %v7346 = vadd.f32 %v7345, %v7283
  %v7347 = vadd.f32 %v7346, %v7284
  %v7348 = vadd.f32 %v7347, %v7285
  %v7349 = vadd.f32 %v7348, %v7286
  %v7350 = vadd.f32 %v7349, %v7287
  %v7351 = vadd.f32 %v7350, %v7288
  %v7352 = vadd.f32 %v7351, %v7289
  %v7353 = vadd.f32 %v7352, %v7290
  %v7354 = vadd.f32 %v7353, %v7291
  %v7355 = vadd.f32 %v7354, %v7292
  %v7356 = vadd.f32 %v7355, %v7293
  %v7357 = vadd.f32 %v7356, %v7294
  %v7358 = vadd.f32 %v7357, %v7295
  %v7359 = vadd.f32 %v7358, %v7296
  %v7360 = vadd.f32 %v7359, %v7297
  %v7361 = vadd.f32 %v7360, %v7298
  %v7362 = vadd.f32 %v7361, %v7299
  %v7363 = vadd.f32 %v7362, %v7300
  %v7364 = vadd.f32 %v7363, %v7301
  %v7365 = vadd.f32 %v7364, %v7302
  %v7366 = vadd.f32 %v7365, %v7303
  %v7367 = vadd.f32 %v7366, %v7304
  %v7368 = vadd.f32 %v7367, %v7305
  %v7369 = vadd.f32 %v7368, %v7306
  %v7370 = vadd.f32 %v7369, %v7307
  %v7371 = vadd.f32 %v7370, %v7308
  %v7372 = vadd.f32 %v7371, %v7309
  %v7373 = vadd.f32 %v7372, %v7310
  %v7374 = vadd.f32 %v7373, %v7311
  %v7375 = vadd.f32 %v7374, %v7312
  %v7376 = vadd.f32 %v7375, %v7313
  %v7377 = vadd.f32 %v7376, %v7314
  %v7378 = vadd.f32 %v7377, %v7315
  %v7379 = vadd.f32 %v7378, %v7316
  %v7380 = vadd.f32 %v7379, %v7317
  %v7381 = vadd.f32 %v7380, %v7318
  %v7382 = vadd.f32 %v7381, %v7319
  %v7383 = vadd.f32 %v7382, %v7320
  %v7384 = vrot.slane %v7383, 4
  %v7385 = vadd.f32 %v7383, %v7384
  %v7386 = vrot.slane %v7385, 2
  %v7387 = vadd.f32 %v7385, %v7386
  %v7388 = vrot.slane %v7387, 1
  %v7389 = vadd.f32 %v7387, %v7388
  %v7390 = vmul.f32 %v7389, %v3684
  %v7391 = vld [vmem:[%s5] sm:$0x1]
  %v7392 = vadd.f32 %v7390, 1e-05
  %v7393 = vrsqrt.pop %v7392
  %v7394 = vmul.f32 %v7391, %v7393
  %v7395 = vld [vmem:[%s6] sm:$0x1]
  %v7396 = vmul.f32 %v7192, %v7394
  %v7397 = vsub.f32 %v7395, %v7396
  %v7399 = vlaneseq
  %v7400 = vshrl.u32 %v7399, 7
  %v7401 = vsub.s32 0, %v7400
  %v7402 = vrot.slane %v7394, %v7401
  %v7404 = vmul.f32 %v6869, %v7402
  %v7405 = vmul.f32 %v6872, %v7402
  %v7406 = vmul.f32 %v6877, %v7402
  %v7407 = vmul.f32 %v6880, %v7402
  %v7408 = vmul.f32 %v6885, %v7402
  %v7409 = vmul.f32 %v6888, %v7402
  %v7410 = vmul.f32 %v6893, %v7402
  %v7411 = vmul.f32 %v6896, %v7402
  %v7412 = vmul.f32 %v6901, %v7402
  %v7413 = vmul.f32 %v6904, %v7402
  %v7414 = vmul.f32 %v6909, %v7402
  %v7415 = vmul.f32 %v6912, %v7402
  %v7416 = vmul.f32 %v6917, %v7402
  %v7417 = vmul.f32 %v6920, %v7402
  %v7418 = vmul.f32 %v6925, %v7402
  %v7419 = vmul.f32 %v6928, %v7402
  %v7420 = vmul.f32 %v6933, %v7402
  %v7421 = vmul.f32 %v6936, %v7402
  %v7422 = vmul.f32 %v6941, %v7402
  %v7423 = vmul.f32 %v6944, %v7402
  %v7424 = vmul.f32 %v6949, %v7402
  %v7425 = vmul.f32 %v6952, %v7402
  %v7426 = vmul.f32 %v6957, %v7402
  %v7427 = vmul.f32 %v6960, %v7402
  %v7428 = vmul.f32 %v6965, %v7402
  %v7429 = vmul.f32 %v6968, %v7402
  %v7430 = vmul.f32 %v6973, %v7402
  %v7431 = vmul.f32 %v6976, %v7402
  %v7432 = vmul.f32 %v6981, %v7402
  %v7433 = vmul.f32 %v6984, %v7402
  %v7434 = vmul.f32 %v6989, %v7402
  %v7435 = vmul.f32 %v6992, %v7402
  %v7436 = vmul.f32 %v6997, %v7402
  %v7437 = vmul.f32 %v7000, %v7402
  %v7438 = vmul.f32 %v7005, %v7402
  %v7439 = vmul.f32 %v7008, %v7402
  %v7440 = vmul.f32 %v7013, %v7402
  %v7441 = vmul.f32 %v7016, %v7402
  %v7442 = vmul.f32 %v7021, %v7402
  %v7443 = vmul.f32 %v7024, %v7402
  %v7444 = vmul.f32 %v7029, %v7402
  %v7445 = vmul.f32 %v7032, %v7402
  %v7446 = vmul.f32 %v7037, %v7402
  %v7447 = vmul.f32 %v7040, %v7402
  %v7448 = vmul.f32 %v7045, %v7402
  %v7449 = vmul.f32 %v7048, %v7402
  %v7450 = vmul.f32 %v7053, %v7402
  %v7451 = vmul.f32 %v7056, %v7402
  %v7452 = vmul.f32 %v7061, %v7402
  %v7453 = vmul.f32 %v7064, %v7402
  %v7454 = vmul.f32 %v7069, %v7402
  %v7455 = vmul.f32 %v7072, %v7402
  %v7456 = vmul.f32 %v7077, %v7402
  %v7457 = vmul.f32 %v7080, %v7402
  %v7458 = vmul.f32 %v7085, %v7402
  %v7459 = vmul.f32 %v7088, %v7402
  %v7460 = vmul.f32 %v7093, %v7402
  %v7461 = vmul.f32 %v7096, %v7402
  %v7462 = vmul.f32 %v7101, %v7402
  %v7463 = vmul.f32 %v7104, %v7402
  %v7464 = vmul.f32 %v7109, %v7402
  %v7465 = vmul.f32 %v7112, %v7402
  %v7466 = vmul.f32 %v7117, %v7402
  %v7467 = vmul.f32 %v7120, %v7402
  %v7469 = vlaneseq
  %v7470 = vshrl.u32 %v7469, 7
  %v7471 = vsub.s32 0, %v7470
  %v7472 = vrot.slane %v7397, %v7471
  %v7474 = vadd.f32 %v7404, %v7472
  %v7475 = vadd.f32 %v7405, %v7472
  %v7476 = vadd.f32 %v7406, %v7472
  %v7477 = vadd.f32 %v7407, %v7472
  %v7478 = vadd.f32 %v7408, %v7472
  %v7479 = vadd.f32 %v7409, %v7472
  %v7480 = vadd.f32 %v7410, %v7472
  %v7481 = vadd.f32 %v7411, %v7472
  %v7482 = vadd.f32 %v7412, %v7472
  %v7483 = vadd.f32 %v7413, %v7472
  %v7484 = vadd.f32 %v7414, %v7472
  %v7485 = vadd.f32 %v7415, %v7472
  %v7486 = vadd.f32 %v7416, %v7472
  %v7487 = vadd.f32 %v7417, %v7472
  %v7488 = vadd.f32 %v7418, %v7472
  %v7489 = vadd.f32 %v7419, %v7472
  %v7490 = vadd.f32 %v7420, %v7472
  %v7491 = vadd.f32 %v7421, %v7472
  %v7492 = vadd.f32 %v7422, %v7472
  %v7493 = vadd.f32 %v7423, %v7472
  %v7494 = vadd.f32 %v7424, %v7472
  %v7495 = vadd.f32 %v7425, %v7472
  %v7496 = vadd.f32 %v7426, %v7472
  %v7497 = vadd.f32 %v7427, %v7472
  %v7498 = vadd.f32 %v7428, %v7472
  %v7499 = vadd.f32 %v7429, %v7472
  %v7500 = vadd.f32 %v7430, %v7472
  %v7501 = vadd.f32 %v7431, %v7472
  %v7502 = vadd.f32 %v7432, %v7472
  %v7503 = vadd.f32 %v7433, %v7472
  %v7504 = vadd.f32 %v7434, %v7472
  %v7505 = vadd.f32 %v7435, %v7472
  %v7506 = vadd.f32 %v7436, %v7472
  %v7507 = vadd.f32 %v7437, %v7472
  %v7508 = vadd.f32 %v7438, %v7472
  %v7509 = vadd.f32 %v7439, %v7472
  %v7510 = vadd.f32 %v7440, %v7472
  %v7511 = vadd.f32 %v7441, %v7472
  %v7512 = vadd.f32 %v7442, %v7472
  %v7513 = vadd.f32 %v7443, %v7472
  %v7514 = vadd.f32 %v7444, %v7472
  %v7515 = vadd.f32 %v7445, %v7472
  %v7516 = vadd.f32 %v7446, %v7472
  %v7517 = vadd.f32 %v7447, %v7472
  %v7518 = vadd.f32 %v7448, %v7472
  %v7519 = vadd.f32 %v7449, %v7472
  %v7520 = vadd.f32 %v7450, %v7472
  %v7521 = vadd.f32 %v7451, %v7472
  %v7522 = vadd.f32 %v7452, %v7472
  %v7523 = vadd.f32 %v7453, %v7472
  %v7524 = vadd.f32 %v7454, %v7472
  %v7525 = vadd.f32 %v7455, %v7472
  %v7526 = vadd.f32 %v7456, %v7472
  %v7527 = vadd.f32 %v7457, %v7472
  %v7528 = vadd.f32 %v7458, %v7472
  %v7529 = vadd.f32 %v7459, %v7472
  %v7530 = vadd.f32 %v7460, %v7472
  %v7531 = vadd.f32 %v7461, %v7472
  %v7532 = vadd.f32 %v7462, %v7472
  %v7533 = vadd.f32 %v7463, %v7472
  %v7534 = vadd.f32 %v7464, %v7472
  %v7535 = vadd.f32 %v7465, %v7472
  %v7536 = vadd.f32 %v7466, %v7472
  %v7537 = vadd.f32 %v7467, %v7472
  %v7538 = vmax.f32 %v7474, 0.0
  %v7539 = vmax.f32 %v7475, 0.0
  %v7540 = vmax.f32 %v7476, 0.0
  %v7541 = vmax.f32 %v7477, 0.0
  %v7542 = vmax.f32 %v7478, 0.0
  %v7543 = vmax.f32 %v7479, 0.0
  %v7544 = vmax.f32 %v7480, 0.0
  %v7545 = vmax.f32 %v7481, 0.0
  %v7546 = vmax.f32 %v7482, 0.0
  %v7547 = vmax.f32 %v7483, 0.0
  %v7548 = vmax.f32 %v7484, 0.0
  %v7549 = vmax.f32 %v7485, 0.0
  %v7550 = vmax.f32 %v7486, 0.0
  %v7551 = vmax.f32 %v7487, 0.0
  %v7552 = vmax.f32 %v7488, 0.0
  %v7553 = vmax.f32 %v7489, 0.0
  %v7554 = vmax.f32 %v7490, 0.0
  %v7555 = vmax.f32 %v7491, 0.0
  %v7556 = vmax.f32 %v7492, 0.0
  %v7557 = vmax.f32 %v7493, 0.0
  %v7558 = vmax.f32 %v7494, 0.0
  %v7559 = vmax.f32 %v7495, 0.0
  %v7560 = vmax.f32 %v7496, 0.0
  %v7561 = vmax.f32 %v7497, 0.0
  %v7562 = vmax.f32 %v7498, 0.0
  %v7563 = vmax.f32 %v7499, 0.0
  %v7564 = vmax.f32 %v7500, 0.0
  %v7565 = vmax.f32 %v7501, 0.0
  %v7566 = vmax.f32 %v7502, 0.0
  %v7567 = vmax.f32 %v7503, 0.0
  %v7568 = vmax.f32 %v7504, 0.0
  %v7569 = vmax.f32 %v7505, 0.0
  %v7570 = vmax.f32 %v7506, 0.0
  %v7571 = vmax.f32 %v7507, 0.0
  %v7572 = vmax.f32 %v7508, 0.0
  %v7573 = vmax.f32 %v7509, 0.0
  %v7574 = vmax.f32 %v7510, 0.0
  %v7575 = vmax.f32 %v7511, 0.0
  %v7576 = vmax.f32 %v7512, 0.0
  %v7577 = vmax.f32 %v7513, 0.0
  %v7578 = vmax.f32 %v7514, 0.0
  %v7579 = vmax.f32 %v7515, 0.0
  %v7580 = vmax.f32 %v7516, 0.0
  %v7581 = vmax.f32 %v7517, 0.0
  %v7582 = vmax.f32 %v7518, 0.0
  %v7583 = vmax.f32 %v7519, 0.0
  %v7584 = vmax.f32 %v7520, 0.0
  %v7585 = vmax.f32 %v7521, 0.0
  %v7586 = vmax.f32 %v7522, 0.0
  %v7587 = vmax.f32 %v7523, 0.0
  %v7588 = vmax.f32 %v7524, 0.0
  %v7589 = vmax.f32 %v7525, 0.0
  %v7590 = vmax.f32 %v7526, 0.0
  %v7591 = vmax.f32 %v7527, 0.0
  %v7592 = vmax.f32 %v7528, 0.0
  %v7593 = vmax.f32 %v7529, 0.0
  %v7594 = vmax.f32 %v7530, 0.0
  %v7595 = vmax.f32 %v7531, 0.0
  %v7596 = vmax.f32 %v7532, 0.0
  %v7597 = vmax.f32 %v7533, 0.0
  %v7598 = vmax.f32 %v7534, 0.0
  %v7599 = vmax.f32 %v7535, 0.0
  %v7600 = vmax.f32 %v7536, 0.0
  %v7601 = vmax.f32 %v7537, 0.0
  %7602 = vst [vmem:[%s7] sm:$0xff] %v7538
  %7603 = vst [vmem:[%s7 + $0x8] sm:$0xff] %v7539
  %7604 = vst [vmem:[%s7 + $0x10] sm:$0xff] %v7540
  %7605 = vst [vmem:[%s7 + $0x18] sm:$0xff] %v7541
  %7606 = vst [vmem:[%s7 + $0x20] sm:$0xff] %v7542
  %7607 = vst [vmem:[%s7 + $0x28] sm:$0xff] %v7543
  %7608 = vst [vmem:[%s7 + $0x30] sm:$0xff] %v7544
  %7609 = vst [vmem:[%s7 + $0x38] sm:$0xff] %v7545
  %7610 = vst [vmem:[%s7 + $0x40] sm:$0xff] %v7546
  %7611 = vst [vmem:[%s7 + $0x48] sm:$0xff] %v7547
  %7612 = vst [vmem:[%s7 + $0x50] sm:$0xff] %v7548
  %7613 = vst [vmem:[%s7 + $0x58] sm:$0xff] %v7549
  %7614 = vst [vmem:[%s7 + $0x60] sm:$0xff] %v7550
  %7615 = vst [vmem:[%s7 + $0x68] sm:$0xff] %v7551
  %7616 = vst [vmem:[%s7 + $0x70] sm:$0xff] %v7552
  %7617 = vst [vmem:[%s7 + $0x78] sm:$0xff] %v7553
  %7618 = vst [vmem:[%s7 + $0x80] sm:$0xff] %v7554
  %7619 = vst [vmem:[%s7 + $0x88] sm:$0xff] %v7555
  %7620 = vst [vmem:[%s7 + $0x90] sm:$0xff] %v7556
  %7621 = vst [vmem:[%s7 + $0x98] sm:$0xff] %v7557
  %7622 = vst [vmem:[%s7 + $0xa0] sm:$0xff] %v7558
  %7623 = vst [vmem:[%s7 + $0xa8] sm:$0xff] %v7559
  %7624 = vst [vmem:[%s7 + $0xb0] sm:$0xff] %v7560
  %7625 = vst [vmem:[%s7 + $0xb8] sm:$0xff] %v7561
  %7626 = vst [vmem:[%s7 + $0xc0] sm:$0xff] %v7562
  %7627 = vst [vmem:[%s7 + $0xc8] sm:$0xff] %v7563
  %7628 = vst [vmem:[%s7 + $0xd0] sm:$0xff] %v7564
  %7629 = vst [vmem:[%s7 + $0xd8] sm:$0xff] %v7565
  %7630 = vst [vmem:[%s7 + $0xe0] sm:$0xff] %v7566
  %7631 = vst [vmem:[%s7 + $0xe8] sm:$0xff] %v7567
  %7632 = vst [vmem:[%s7 + $0xf0] sm:$0xff] %v7568
  %7633 = vst [vmem:[%s7 + $0xf8] sm:$0xff] %v7569
  %7634 = vst [vmem:[%s7 + $0x100] sm:$0xff] %v7570
  %7635 = vst [vmem:[%s7 + $0x108] sm:$0xff] %v7571
  %7636 = vst [vmem:[%s7 + $0x110] sm:$0xff] %v7572
  %7637 = vst [vmem:[%s7 + $0x118] sm:$0xff] %v7573
  %7638 = vst [vmem:[%s7 + $0x120] sm:$0xff] %v7574
  %7639 = vst [vmem:[%s7 + $0x128] sm:$0xff] %v7575
  %7640 = vst [vmem:[%s7 + $0x130] sm:$0xff] %v7576
  %7641 = vst [vmem:[%s7 + $0x138] sm:$0xff] %v7577
  %7642 = vst [vmem:[%s7 + $0x140] sm:$0xff] %v7578
  %7643 = vst [vmem:[%s7 + $0x148] sm:$0xff] %v7579
  %7644 = vst [vmem:[%s7 + $0x150] sm:$0xff] %v7580
  %7645 = vst [vmem:[%s7 + $0x158] sm:$0xff] %v7581
  %7646 = vst [vmem:[%s7 + $0x160] sm:$0xff] %v7582
  %7647 = vst [vmem:[%s7 + $0x168] sm:$0xff] %v7583
  %7648 = vst [vmem:[%s7 + $0x170] sm:$0xff] %v7584
  %7649 = vst [vmem:[%s7 + $0x178] sm:$0xff] %v7585
  %7650 = vst [vmem:[%s7 + $0x180] sm:$0xff] %v7586
  %7651 = vst [vmem:[%s7 + $0x188] sm:$0xff] %v7587
  %7652 = vst [vmem:[%s7 + $0x190] sm:$0xff] %v7588
  %7653 = vst [vmem:[%s7 + $0x198] sm:$0xff] %v7589
  %7654 = vst [vmem:[%s7 + $0x1a0] sm:$0xff] %v7590
  %7655 = vst [vmem:[%s7 + $0x1a8] sm:$0xff] %v7591
  %7656 = vst [vmem:[%s7 + $0x1b0] sm:$0xff] %v7592
  %7657 = vst [vmem:[%s7 + $0x1b8] sm:$0xff] %v7593
  %7658 = vst [vmem:[%s7 + $0x1c0] sm:$0xff] %v7594
  %7659 = vst [vmem:[%s7 + $0x1c8] sm:$0xff] %v7595
  %7660 = vst [vmem:[%s7 + $0x1d0] sm:$0xff] %v7596
  %7661 = vst [vmem:[%s7 + $0x1d8] sm:$0xff] %v7597
  %7662 = vst [vmem:[%s7 + $0x1e0] sm:$0xff] %v7598
  %7663 = vst [vmem:[%s7 + $0x1e8] sm:$0xff] %v7599
  %7664 = vst [vmem:[%s7 + $0x1f0] sm:$0xff] %v7600
  %7665 = vst [vmem:[%s7 + $0x1f8] sm:$0xff] %v7601
  // Predicated region
  $region30: #{double_conv.1} parent=0 // pred_check
    _
  $region31: #{double_conv.1} parent=0 // pred_check_branch
    %7667 = sbr.rel (0) target = $region33
  $region32: #{double_conv.1} parent=0 // pred_region
    _
  $region33: #{double_conv.1} parent=0 // pred_fallthru
    _
  // Predicated region
  $region34: #{double_conv.1} parent=0 // pred_check
    _
  $region35: #{double_conv.1} parent=0 // pred_check_branch
    %7669 = sbr.rel (0) target = $region37
  $region36: #{double_conv.1} parent=0 // pred_region
    _
  $region37: #{double_conv.1} parent=0 // pred_fallthru
    _

</llo_original>
